<compile_context>
chip_gen: v7x
topology: tpu7x:2x2x1
jax: 0.10.0
libtpu: 0.0.40
codegen_flags: <defaults>
</compile_context>

<pallas_src>
import math
import jax
import jax.numpy as jnp
from jax import lax
from jax.experimental import pallas as pl
from jax.experimental.pallas import tpu as pltpu

D_MODEL = 8          # feature_size
NHEAD = 8            # nn.TransformerEncoderLayer(nhead=8) -> head_dim = 1
NUM_LAYERS = 3
DIM_FF = 2048        # PyTorch default dim_feedforward
LN_EPS = 1e-5
OUT_PAD = 128        # lane-dense decoder output width (first D_MODEL cols used)


def _layer_norm(v, w, b):
    mu = jnp.mean(v, axis=-1, keepdims=True)
    var = jnp.mean((v - mu) ** 2, axis=-1, keepdims=True)
    return (v - mu) * lax.rsqrt(var + LN_EPS) * w + b


def transam_kernel(x_ref, pe_ref, mask_ref,
                   q_w_ref, q_b_ref, kv_w_ref, kv_b_ref, out_w_ref, out_b_ref,
                   ln1_w_ref, ln1_b_ref,
                   ff1_w_ref, ff1_b_ref, ff2_w_ref, ff2_b_ref,
                   ln2_w_ref, ln2_b_ref,
                   dec_w_ref, dec_b_ref,
                   o_ref):
    """Whole batch folded to (M = S*N, E) rows; one grid step."""
    E = q_w_ref.shape[-1]
    L = q_w_ref.shape[0]

    # positional encoding (pre-broadcast per flattened row in the wrapper)
    x = x_ref[...] + pe_ref[...]                        # (M, E) f32
    # static additive mask (0 / -1e30), built once in the wrapper
    mask = mask_ref[...]                                # (M, M) f32

    # TODO(synk): at larger S*N switch to a kv-tiled flash-style loop over a
    # 'parallel' row-tile grid axis (weights VMEM-resident via constant
    # index_maps) so v7x's 2 TensorCores and 64 MiB VMEM are used; at M=16 the
    # whole problem fits a single step.
    for l in range(L):
        # ---- multi-head self attention (head_dim == 1) ----
        q = (jnp.dot(x, q_w_ref[l], preferred_element_type=jnp.float32)
             + q_b_ref[l:l + 1, :])                     # (M, E)
        # k/v produced directly in (feature, key) layout -> keys on lanes,
        # no in-kernel transpose (same dim-numbers as a q@k^T flash dot).
        kvT = (lax.dot_general(kv_w_ref[l], x, (((1,), (1,)), ((), ())),
                               preferred_element_type=jnp.float32)
               + kv_b_ref[l])                           # (2E, M)
        owt = out_w_ref[l]                              # (E, E) out_proj^T
        attn = jnp.zeros_like(x)                        # (M, E)
        for h in range(NHEAD):                          # head_dim == 1
            s = q[:, h:h + 1] * kvT[h:h + 1, :] + mask              # (M, M)
            m = jnp.max(s, axis=-1, keepdims=True)                  # lane red.
            p = jnp.exp(s - m)                                      # (M, M)
            denom = jnp.sum(p, axis=-1, keepdims=True)              # (M, 1)
            pv = jnp.sum(p * kvT[E + h:E + h + 1, :],
                         axis=-1, keepdims=True)                    # (M, 1)
            head = pv * pl.reciprocal(denom, approx=True)           # (M, 1)
            # rank-1 out_proj accumulation (no concat needed)
            attn = attn + head * owt[h:h + 1, :]                    # (M, E)
        x = _layer_norm(x + attn + out_b_ref[l:l + 1, :],
                        ln1_w_ref[l:l + 1, :], ln1_b_ref[l:l + 1, :])

        # ---- feed forward (relu): bf16 weights on the MXU, f32 accum ----
        h1 = (jnp.dot(x.astype(jnp.bfloat16), ff1_w_ref[l],
                      preferred_element_type=jnp.float32)
              + ff1_b_ref[l:l + 1, :])                  # (M, F) f32
        h1 = jnp.maximum(h1, 0.0)
        ff = (jnp.dot(h1.astype(jnp.bfloat16), ff2_w_ref[l],
                      preferred_element_type=jnp.float32)
              + ff2_b_ref[l:l + 1, :])                  # (M, E) f32
        x = _layer_norm(x + ff,
                        ln2_w_ref[l:l + 1, :], ln2_b_ref[l:l + 1, :])

    # ---- final decoder Linear(E, E), zero-padded to 128 lanes so the store
    # is a full-width unmasked vst (wrapper slices [:, :E] back out) ----
    o_ref[...] = (jnp.dot(x, dec_w_ref[...], preferred_element_type=jnp.float32)
                  + dec_b_ref[...]).astype(o_ref.dtype)


def positional_encoding(S, E):
    pos = jnp.arange(S, dtype=jnp.float32)[:, None]
    div = jnp.exp(jnp.arange(0, E, 2, dtype=jnp.float32) * (-math.log(10000.0) / E))
    pe = jnp.zeros((S, E), jnp.float32)
    pe = pe.at[:, 0::2].set(jnp.sin(pos * div))
    pe = pe.at[:, 1::2].set(jnp.cos(pos * div))
    return pe


def init_params(key):
    """Deterministic synthetic parameters (PyTorch tensor layouts)."""
    E, L, F = D_MODEL, NUM_LAYERS, DIM_FF
    ks = jax.random.split(key, 9)
    u = lambda k, shape, s=0.1: jax.random.uniform(k, shape, jnp.float32, -s, s)
    return dict(
        in_w=u(ks[0], (L, 3 * E, E)),     # MultiheadAttention.in_proj_weight
        in_b=u(ks[1], (L, 3 * E)),
        out_w=u(ks[2], (L, E, E)),        # out_proj.weight
        out_b=u(ks[3], (L, E)),
        ln1_w=jnp.ones((L, E), jnp.float32), ln1_b=jnp.zeros((L, E), jnp.float32),
        ff1_w=u(ks[4], (L, F, E)),        # linear1.weight (PyTorch layout)
        ff1_b=u(ks[5], (L, F)),
        ff2_w=u(ks[6], (L, E, F)),        # linear2.weight (PyTorch layout)
        ff2_b=u(ks[7], (L, E)),
        ln2_w=jnp.ones((L, E), jnp.float32), ln2_b=jnp.zeros((L, E), jnp.float32),
        dec_w=u(ks[8], (E, E)),           # decoder = nn.Linear(E, E), uniform +-0.1
        dec_b=jnp.zeros((E,), jnp.float32),  # decoder.bias zeroed
    )


def transam_forward(src, params):
    """src: (S, N, E) float32, seq-first like the PyTorch module."""
    S, N, E = src.shape
    assert E == D_MODEL and E % NHEAD == 0
    assert E == NHEAD  # head_dim == 1 for this module (d_model=8, nhead=8)
    M = S * N
    head_dim = E // NHEAD

    # Free row-major collapse (no transpose of the activation).
    x2d = src.astype(jnp.float32).reshape(M, E)
    pe2d = jnp.broadcast_to(positional_encoding(S, E)[:, None, :],
                            (S, N, E)).reshape(M, E)

    # Static combined "same-sequence AND causal" additive mask over the
    # flattened rows, built once in the wrapper (never recomputed in-kernel).
    # Finite -1e30 (not -inf) so no inf-inf NaN path can ever appear.
    r = jnp.arange(M, dtype=jnp.int32)
    keep = (((r[:, None] % N) == (r[None, :] % N)) &
            ((r[None, :] // N) <= (r[:, None] // N)))
    mask = jnp.where(keep, 0.0, -1e30).astype(jnp.float32)      # (M, M)

    # Fold the 1/sqrt(head_dim) attention scale into the q projection.
    q_scale = 1.0 / math.sqrt(head_dim)
    q_w = params["in_w"][:, :E, :] * q_scale                    # (L, E, E) native
    q_b = params["in_b"][:, :E] * q_scale                       # (L, E)
    q_w_t = jnp.transpose(q_w, (0, 2, 1))                       # (L, E, E) lane-dense
    kv_w = params["in_w"][:, E:, :]                             # (L, 2E, E) native
    kv_b = params["in_b"][:, E:, None]                          # (L, 2E, 1) column bias

    out_w_t = jnp.transpose(params["out_w"], (0, 2, 1))         # (L, E, E)

    # FFN weight stacks: lane-dense, pre-transposed, stored bf16 (halves the
    # kernel's dominant HBM traffic); f32 accumulation happens in-kernel.
    ff1_w_t = jnp.transpose(params["ff1_w"], (0, 2, 1)).astype(jnp.bfloat16)  # (L, E, F)
    ff2_w_t = jnp.transpose(params["ff2_w"], (0, 2, 1)).astype(jnp.bfloat16)  # (L, F, E)

    # Decoder zero-padded to a 128-lane output (unmasked full-width stores).
    dec_w_pad = jnp.zeros((E, OUT_PAD), jnp.float32).at[:, :E].set(params["dec_w"].T)
    dec_b_pad = jnp.zeros((1, OUT_PAD), jnp.float32).at[0, :E].set(params["dec_b"])

    operands = (x2d, pe2d, mask,
                q_w_t, q_b, kv_w, kv_b, out_w_t, params["out_b"],
                params["ln1_w"], params["ln1_b"],
                ff1_w_t, params["ff1_b"], ff2_w_t, params["ff2_b"],
                params["ln2_w"], params["ln2_b"],
                dec_w_pad, dec_b_pad)

    # Whole batch in one grid step; full-array blocks (total VMEM use is only
    # a few MiB even with default double-buffering, so no Buffered() tuning
    # is needed at this size).
    full = lambda a: pl.BlockSpec(a.shape, lambda _, nd=a.ndim: (0,) * nd)

    out_pad = pl.pallas_call(
        transam_kernel,
        out_shape=jax.ShapeDtypeStruct((M, OUT_PAD), jnp.float32),
        grid=(1,),
        in_specs=[full(a) for a in operands],
        out_specs=pl.BlockSpec((M, OUT_PAD), lambda _: (0, 0)),
        compiler_params=pltpu.CompilerParams(
            dimension_semantics=("arbitrary",)),
    )(*operands)

    return out_pad[:, :E].reshape(S, N, E)


if __name__ == "__main__":
    key = jax.random.PRNGKey(0)
    kp, kx = jax.random.split(key)
    params = init_params(kp)

    S, N = 8, 2                       # (seq, batch), feature = 8
    src = jax.random.normal(kx, (S, N, D_MODEL), jnp.float32)

    out = transam_forward(src, params)
    jax.block_until_ready(out)
    assert out.shape == (S, N, D_MODEL)
    assert bool(jnp.all(jnp.isfinite(out)))
    # TODO(synk): dropout layers are eval-mode identities (no RNG path emitted).
    print("KERNEL_OK")
</pallas_src>

<mosaic_0001>
module attributes {stable_mosaic.version = 11 : i64} {
  func.func @transam_kernel(%arg0: i32, %arg1: memref<16x8xf32, #tpu.memory_space<vmem>>, %arg2: memref<16x8xf32, #tpu.memory_space<vmem>>, %arg3: memref<16x16xf32, #tpu.memory_space<vmem>>, %arg4: memref<3x8x8xf32, #tpu.memory_space<vmem>>, %arg5: memref<3x8xf32, #tpu.memory_space<vmem>>, %arg6: memref<3x16x8xf32, #tpu.memory_space<vmem>>, %arg7: memref<3x16x1xf32, #tpu.memory_space<vmem>>, %arg8: memref<3x8x8xf32, #tpu.memory_space<vmem>>, %arg9: memref<3x8xf32, #tpu.memory_space<vmem>>, %arg10: memref<3x8xf32, #tpu.memory_space<vmem>>, %arg11: memref<3x8xf32, #tpu.memory_space<vmem>>, %arg12: memref<3x8x2048xbf16, #tpu.memory_space<vmem>>, %arg13: memref<3x2048xf32, #tpu.memory_space<vmem>>, %arg14: memref<3x2048x8xbf16, #tpu.memory_space<vmem>>, %arg15: memref<3x8xf32, #tpu.memory_space<vmem>>, %arg16: memref<3x8xf32, #tpu.memory_space<vmem>>, %arg17: memref<3x8xf32, #tpu.memory_space<vmem>>, %arg18: memref<8x128xf32, #tpu.memory_space<vmem>>, %arg19: memref<1x128xf32, #tpu.memory_space<vmem>>, %arg20: memref<16x128xf32, #tpu.memory_space<vmem>>) attributes {dimension_semantics = [#tpu.dimension_semantics<arbitrary>], iteration_bounds = array<i64: 1>, scalar_prefetch = 0 : i64, scratch_operands = 0 : i64, tpu.core_type = #tpu.core_type<tc>, window_params = [{pipeline_mode = #tpu.pipeline_mode<synchronous>, transform_indices = @transform_0, window_bounds = array<i64: 16, 8>}, {pipeline_mode = #tpu.pipeline_mode<synchronous>, transform_indices = @transform_1, window_bounds = array<i64: 16, 8>}, {pipeline_mode = #tpu.pipeline_mode<synchronous>, transform_indices = @transform_2, window_bounds = array<i64: 16, 16>}, {pipeline_mode = #tpu.pipeline_mode<synchronous>, transform_indices = @transform_3, window_bounds = array<i64: 3, 8, 8>}, {pipeline_mode = #tpu.pipeline_mode<synchronous>, transform_indices = @transform_4, window_bounds = array<i64: 3, 8>}, {pipeline_mode = #tpu.pipeline_mode<synchronous>, transform_indices = @transform_5, window_bounds = array<i64: 3, 16, 8>}, {pipeline_mode = #tpu.pipeline_mode<synchronous>, transform_indices = @transform_6, window_bounds = array<i64: 3, 16, 1>}, {pipeline_mode = #tpu.pipeline_mode<synchronous>, transform_indices = @transform_7, window_bounds = array<i64: 3, 8, 8>}, {pipeline_mode = #tpu.pipeline_mode<synchronous>, transform_indices = @transform_8, window_bounds = array<i64: 3, 8>}, {pipeline_mode = #tpu.pipeline_mode<synchronous>, transform_indices = @transform_9, window_bounds = array<i64: 3, 8>}, {pipeline_mode = #tpu.pipeline_mode<synchronous>, transform_indices = @transform_10, window_bounds = array<i64: 3, 8>}, {pipeline_mode = #tpu.pipeline_mode<synchronous>, transform_indices = @transform_11, window_bounds = array<i64: 3, 8, 2048>}, {pipeline_mode = #tpu.pipeline_mode<synchronous>, transform_indices = @transform_12, window_bounds = array<i64: 3, 2048>}, {pipeline_mode = #tpu.pipeline_mode<synchronous>, transform_indices = @transform_13, window_bounds = array<i64: 3, 2048, 8>}, {pipeline_mode = #tpu.pipeline_mode<synchronous>, transform_indices = @transform_14, window_bounds = array<i64: 3, 8>}, {pipeline_mode = #tpu.pipeline_mode<synchronous>, transform_indices = @transform_15, window_bounds = array<i64: 3, 8>}, {pipeline_mode = #tpu.pipeline_mode<synchronous>, transform_indices = @transform_16, window_bounds = array<i64: 3, 8>}, {pipeline_mode = #tpu.pipeline_mode<synchronous>, transform_indices = @transform_17, window_bounds = array<i64: 8, 128>}, {pipeline_mode = #tpu.pipeline_mode<synchronous>, transform_indices = @transform_18, window_bounds = array<i64: 1, 128>}, {pipeline_mode = #tpu.pipeline_mode<synchronous>, transform_indices = @transform_19, window_bounds = array<i64: 16, 128>}]} {
    %c0 = arith.constant 0 : index
    %c0_0 = arith.constant 0 : index
    %0 = vector.load %arg1[%c0, %c0_0] : memref<16x8xf32, #tpu.memory_space<vmem>>, vector<16x8xf32>
    %c0_1 = arith.constant 0 : index
    %c0_2 = arith.constant 0 : index
    %1 = vector.load %arg2[%c0_1, %c0_2] : memref<16x8xf32, #tpu.memory_space<vmem>>, vector<16x8xf32>
    %2 = arith.addf %0, %1 : vector<16x8xf32>
    %c0_3 = arith.constant 0 : index
    %c0_4 = arith.constant 0 : index
    %3 = vector.load %arg3[%c0_3, %c0_4] : memref<16x16xf32, #tpu.memory_space<vmem>>, vector<16x16xf32>
    %c0_5 = arith.constant 0 : index
    %c0_6 = arith.constant 0 : index
    %c0_7 = arith.constant 0 : index
    %4 = vector.load %arg4[%c0_5, %c0_6, %c0_7] : memref<3x8x8xf32, #tpu.memory_space<vmem>>, vector<1x8x8xf32>
    %5 = vector.shape_cast %4 : vector<1x8x8xf32> to vector<8x8xf32>
    %cst = arith.constant dense<0.000000e+00> : vector<16x8xf32>
    %6 = tpu.matmul %2, %5, %cst {dimension_numbers = #tpu.dot_dimension_numbers<[1], [0], [0], [1], [0, 0, 1, 1], [], []>} : vector<16x8xf32>, vector<8x8xf32>, vector<16x8xf32> -> vector<16x8xf32>
    %c0_8 = arith.constant 0 : index
    %c0_9 = arith.constant 0 : index
    %7 = vector.load %arg5[%c0_8, %c0_9] : memref<3x8xf32, #tpu.memory_space<vmem>>, vector<1x8xf32>
    %8 = vector.broadcast %7 : vector<1x8xf32> to vector<16x8xf32>
    %9 = arith.addf %6, %8 : vector<16x8xf32>
    %c0_10 = arith.constant 0 : index
    %c0_11 = arith.constant 0 : index
    %c0_12 = arith.constant 0 : index
    %10 = vector.load %arg6[%c0_10, %c0_11, %c0_12] : memref<3x16x8xf32, #tpu.memory_space<vmem>>, vector<1x16x8xf32>
    %11 = vector.shape_cast %10 : vector<1x16x8xf32> to vector<16x8xf32>
    %cst_13 = arith.constant dense<0.000000e+00> : vector<16x16xf32>
    %12 = tpu.matmul %11, %2, %cst_13 {dimension_numbers = #tpu.dot_dimension_numbers<[1], [1], [0], [0], [0, 0, 1, 0], [], []>} : vector<16x8xf32>, vector<16x8xf32>, vector<16x16xf32> -> vector<16x16xf32>
    %c0_14 = arith.constant 0 : index
    %c0_15 = arith.constant 0 : index
    %c0_16 = arith.constant 0 : index
    %13 = vector.load %arg7[%c0_14, %c0_15, %c0_16] : memref<3x16x1xf32, #tpu.memory_space<vmem>>, vector<1x16x1xf32>
    %14 = vector.shape_cast %13 : vector<1x16x1xf32> to vector<16x1xf32>
    %15 = vector.broadcast %14 : vector<16x1xf32> to vector<16x16xf32>
    %16 = arith.addf %12, %15 : vector<16x16xf32>
    %c0_17 = arith.constant 0 : index
    %c0_18 = arith.constant 0 : index
    %c0_19 = arith.constant 0 : index
    %17 = vector.load %arg8[%c0_17, %c0_18, %c0_19] : memref<3x8x8xf32, #tpu.memory_space<vmem>>, vector<1x8x8xf32>
    %18 = vector.shape_cast %17 : vector<1x8x8xf32> to vector<8x8xf32>
    %cst_20 = arith.constant 0.000000e+00 : f32
    %19 = vector.broadcast %cst_20 : f32 to vector<16x8xf32>
    %20 = vector.extract_strided_slice %9 {offsets = [0, 0], sizes = [16, 1], strides = [1, 1]} : vector<16x8xf32> to vector<16x1xf32>
    %21 = vector.extract_strided_slice %16 {offsets = [0, 0], sizes = [1, 16], strides = [1, 1]} : vector<16x16xf32> to vector<1x16xf32>
    %22 = vector.broadcast %20 : vector<16x1xf32> to vector<16x16xf32>
    %23 = vector.broadcast %21 : vector<1x16xf32> to vector<16x16xf32>
    %24 = arith.mulf %22, %23 : vector<16x16xf32>
    %25 = arith.addf %24, %3 : vector<16x16xf32>
    %cst_21 = arith.constant dense<0xFF800000> : vector<16xf32>
    %26 = vector.multi_reduction <maximumf>, %25, %cst_21 [1] : vector<16x16xf32> to vector<16xf32>
    %27 = vector.shape_cast %26 : vector<16xf32> to vector<16x1xf32>
    %28 = vector.broadcast %27 : vector<16x1xf32> to vector<16x16xf32>
    %29 = arith.subf %25, %28 : vector<16x16xf32>
    %30 = math.exp %29 : vector<16x16xf32>
    %cst_22 = arith.constant dense<0.000000e+00> : vector<16xf32>
    %31 = vector.multi_reduction <add>, %30, %cst_22 [1] : vector<16x16xf32> to vector<16xf32>
    %32 = vector.shape_cast %31 : vector<16xf32> to vector<16x1xf32>
    %33 = vector.extract_strided_slice %16 {offsets = [8, 0], sizes = [1, 16], strides = [1, 1]} : vector<16x16xf32> to vector<1x16xf32>
    %34 = vector.broadcast %33 : vector<1x16xf32> to vector<16x16xf32>
    %35 = arith.mulf %30, %34 : vector<16x16xf32>
    %cst_23 = arith.constant dense<0.000000e+00> : vector<16xf32>
    %36 = vector.multi_reduction <add>, %35, %cst_23 [1] : vector<16x16xf32> to vector<16xf32>
    %37 = vector.shape_cast %36 : vector<16xf32> to vector<16x1xf32>
    %38 = tpu.reciprocal %32 {approx = true} : vector<16x1xf32> -> vector<16x1xf32>
    %39 = arith.mulf %37, %38 : vector<16x1xf32>
    %40 = vector.extract_strided_slice %18 {offsets = [0, 0], sizes = [1, 8], strides = [1, 1]} : vector<8x8xf32> to vector<1x8xf32>
    %41 = vector.broadcast %39 : vector<16x1xf32> to vector<16x8xf32>
    %42 = vector.broadcast %40 : vector<1x8xf32> to vector<16x8xf32>
    %43 = arith.mulf %41, %42 : vector<16x8xf32>
    %44 = arith.addf %19, %43 : vector<16x8xf32>
    %45 = vector.extract_strided_slice %9 {offsets = [0, 1], sizes = [16, 1], strides = [1, 1]} : vector<16x8xf32> to vector<16x1xf32>
    %46 = vector.extract_strided_slice %16 {offsets = [1, 0], sizes = [1, 16], strides = [1, 1]} : vector<16x16xf32> to vector<1x16xf32>
    %47 = vector.broadcast %45 : vector<16x1xf32> to vector<16x16xf32>
    %48 = vector.broadcast %46 : vector<1x16xf32> to vector<16x16xf32>
    %49 = arith.mulf %47, %48 : vector<16x16xf32>
    %50 = arith.addf %49, %3 : vector<16x16xf32>
    %cst_24 = arith.constant dense<0xFF800000> : vector<16xf32>
    %51 = vector.multi_reduction <maximumf>, %50, %cst_24 [1] : vector<16x16xf32> to vector<16xf32>
    %52 = vector.shape_cast %51 : vector<16xf32> to vector<16x1xf32>
    %53 = vector.broadcast %52 : vector<16x1xf32> to vector<16x16xf32>
    %54 = arith.subf %50, %53 : vector<16x16xf32>
    %55 = math.exp %54 : vector<16x16xf32>
    %cst_25 = arith.constant dense<0.000000e+00> : vector<16xf32>
    %56 = vector.multi_reduction <add>, %55, %cst_25 [1] : vector<16x16xf32> to vector<16xf32>
    %57 = vector.shape_cast %56 : vector<16xf32> to vector<16x1xf32>
    %58 = vector.extract_strided_slice %16 {offsets = [9, 0], sizes = [1, 16], strides = [1, 1]} : vector<16x16xf32> to vector<1x16xf32>
    %59 = vector.broadcast %58 : vector<1x16xf32> to vector<16x16xf32>
    %60 = arith.mulf %55, %59 : vector<16x16xf32>
    %cst_26 = arith.constant dense<0.000000e+00> : vector<16xf32>
    %61 = vector.multi_reduction <add>, %60, %cst_26 [1] : vector<16x16xf32> to vector<16xf32>
    %62 = vector.shape_cast %61 : vector<16xf32> to vector<16x1xf32>
    %63 = tpu.reciprocal %57 {approx = true} : vector<16x1xf32> -> vector<16x1xf32>
    %64 = arith.mulf %62, %63 : vector<16x1xf32>
    %65 = vector.extract_strided_slice %18 {offsets = [1, 0], sizes = [1, 8], strides = [1, 1]} : vector<8x8xf32> to vector<1x8xf32>
    %66 = vector.broadcast %64 : vector<16x1xf32> to vector<16x8xf32>
    %67 = vector.broadcast %65 : vector<1x8xf32> to vector<16x8xf32>
    %68 = arith.mulf %66, %67 : vector<16x8xf32>
    %69 = arith.addf %44, %68 : vector<16x8xf32>
    %70 = vector.extract_strided_slice %9 {offsets = [0, 2], sizes = [16, 1], strides = [1, 1]} : vector<16x8xf32> to vector<16x1xf32>
    %71 = vector.extract_strided_slice %16 {offsets = [2, 0], sizes = [1, 16], strides = [1, 1]} : vector<16x16xf32> to vector<1x16xf32>
    %72 = vector.broadcast %70 : vector<16x1xf32> to vector<16x16xf32>
    %73 = vector.broadcast %71 : vector<1x16xf32> to vector<16x16xf32>
    %74 = arith.mulf %72, %73 : vector<16x16xf32>
    %75 = arith.addf %74, %3 : vector<16x16xf32>
    %cst_27 = arith.constant dense<0xFF800000> : vector<16xf32>
    %76 = vector.multi_reduction <maximumf>, %75, %cst_27 [1] : vector<16x16xf32> to vector<16xf32>
    %77 = vector.shape_cast %76 : vector<16xf32> to vector<16x1xf32>
    %78 = vector.broadcast %77 : vector<16x1xf32> to vector<16x16xf32>
    %79 = arith.subf %75, %78 : vector<16x16xf32>
    %80 = math.exp %79 : vector<16x16xf32>
    %cst_28 = arith.constant dense<0.000000e+00> : vector<16xf32>
    %81 = vector.multi_reduction <add>, %80, %cst_28 [1] : vector<16x16xf32> to vector<16xf32>
    %82 = vector.shape_cast %81 : vector<16xf32> to vector<16x1xf32>
    %83 = vector.extract_strided_slice %16 {offsets = [10, 0], sizes = [1, 16], strides = [1, 1]} : vector<16x16xf32> to vector<1x16xf32>
    %84 = vector.broadcast %83 : vector<1x16xf32> to vector<16x16xf32>
    %85 = arith.mulf %80, %84 : vector<16x16xf32>
    %cst_29 = arith.constant dense<0.000000e+00> : vector<16xf32>
    %86 = vector.multi_reduction <add>, %85, %cst_29 [1] : vector<16x16xf32> to vector<16xf32>
    %87 = vector.shape_cast %86 : vector<16xf32> to vector<16x1xf32>
    %88 = tpu.reciprocal %82 {approx = true} : vector<16x1xf32> -> vector<16x1xf32>
    %89 = arith.mulf %87, %88 : vector<16x1xf32>
    %90 = vector.extract_strided_slice %18 {offsets = [2, 0], sizes = [1, 8], strides = [1, 1]} : vector<8x8xf32> to vector<1x8xf32>
    %91 = vector.broadcast %89 : vector<16x1xf32> to vector<16x8xf32>
    %92 = vector.broadcast %90 : vector<1x8xf32> to vector<16x8xf32>
    %93 = arith.mulf %91, %92 : vector<16x8xf32>
    %94 = arith.addf %69, %93 : vector<16x8xf32>
    %95 = vector.extract_strided_slice %9 {offsets = [0, 3], sizes = [16, 1], strides = [1, 1]} : vector<16x8xf32> to vector<16x1xf32>
    %96 = vector.extract_strided_slice %16 {offsets = [3, 0], sizes = [1, 16], strides = [1, 1]} : vector<16x16xf32> to vector<1x16xf32>
    %97 = vector.broadcast %95 : vector<16x1xf32> to vector<16x16xf32>
    %98 = vector.broadcast %96 : vector<1x16xf32> to vector<16x16xf32>
    %99 = arith.mulf %97, %98 : vector<16x16xf32>
    %100 = arith.addf %99, %3 : vector<16x16xf32>
    %cst_30 = arith.constant dense<0xFF800000> : vector<16xf32>
    %101 = vector.multi_reduction <maximumf>, %100, %cst_30 [1] : vector<16x16xf32> to vector<16xf32>
    %102 = vector.shape_cast %101 : vector<16xf32> to vector<16x1xf32>
    %103 = vector.broadcast %102 : vector<16x1xf32> to vector<16x16xf32>
    %104 = arith.subf %100, %103 : vector<16x16xf32>
    %105 = math.exp %104 : vector<16x16xf32>
    %cst_31 = arith.constant dense<0.000000e+00> : vector<16xf32>
    %106 = vector.multi_reduction <add>, %105, %cst_31 [1] : vector<16x16xf32> to vector<16xf32>
    %107 = vector.shape_cast %106 : vector<16xf32> to vector<16x1xf32>
    %108 = vector.extract_strided_slice %16 {offsets = [11, 0], sizes = [1, 16], strides = [1, 1]} : vector<16x16xf32> to vector<1x16xf32>
    %109 = vector.broadcast %108 : vector<1x16xf32> to vector<16x16xf32>
    %110 = arith.mulf %105, %109 : vector<16x16xf32>
    %cst_32 = arith.constant dense<0.000000e+00> : vector<16xf32>
    %111 = vector.multi_reduction <add>, %110, %cst_32 [1] : vector<16x16xf32> to vector<16xf32>
    %112 = vector.shape_cast %111 : vector<16xf32> to vector<16x1xf32>
    %113 = tpu.reciprocal %107 {approx = true} : vector<16x1xf32> -> vector<16x1xf32>
    %114 = arith.mulf %112, %113 : vector<16x1xf32>
    %115 = vector.extract_strided_slice %18 {offsets = [3, 0], sizes = [1, 8], strides = [1, 1]} : vector<8x8xf32> to vector<1x8xf32>
    %116 = vector.broadcast %114 : vector<16x1xf32> to vector<16x8xf32>
    %117 = vector.broadcast %115 : vector<1x8xf32> to vector<16x8xf32>
    %118 = arith.mulf %116, %117 : vector<16x8xf32>
    %119 = arith.addf %94, %118 : vector<16x8xf32>
    %120 = vector.extract_strided_slice %9 {offsets = [0, 4], sizes = [16, 1], strides = [1, 1]} : vector<16x8xf32> to vector<16x1xf32>
    %121 = vector.extract_strided_slice %16 {offsets = [4, 0], sizes = [1, 16], strides = [1, 1]} : vector<16x16xf32> to vector<1x16xf32>
    %122 = vector.broadcast %120 : vector<16x1xf32> to vector<16x16xf32>
    %123 = vector.broadcast %121 : vector<1x16xf32> to vector<16x16xf32>
    %124 = arith.mulf %122, %123 : vector<16x16xf32>
    %125 = arith.addf %124, %3 : vector<16x16xf32>
    %cst_33 = arith.constant dense<0xFF800000> : vector<16xf32>
    %126 = vector.multi_reduction <maximumf>, %125, %cst_33 [1] : vector<16x16xf32> to vector<16xf32>
    %127 = vector.shape_cast %126 : vector<16xf32> to vector<16x1xf32>
    %128 = vector.broadcast %127 : vector<16x1xf32> to vector<16x16xf32>
    %129 = arith.subf %125, %128 : vector<16x16xf32>
    %130 = math.exp %129 : vector<16x16xf32>
    %cst_34 = arith.constant dense<0.000000e+00> : vector<16xf32>
    %131 = vector.multi_reduction <add>, %130, %cst_34 [1] : vector<16x16xf32> to vector<16xf32>
    %132 = vector.shape_cast %131 : vector<16xf32> to vector<16x1xf32>
    %133 = vector.extract_strided_slice %16 {offsets = [12, 0], sizes = [1, 16], strides = [1, 1]} : vector<16x16xf32> to vector<1x16xf32>
    %134 = vector.broadcast %133 : vector<1x16xf32> to vector<16x16xf32>
    %135 = arith.mulf %130, %134 : vector<16x16xf32>
    %cst_35 = arith.constant dense<0.000000e+00> : vector<16xf32>
    %136 = vector.multi_reduction <add>, %135, %cst_35 [1] : vector<16x16xf32> to vector<16xf32>
    %137 = vector.shape_cast %136 : vector<16xf32> to vector<16x1xf32>
    %138 = tpu.reciprocal %132 {approx = true} : vector<16x1xf32> -> vector<16x1xf32>
    %139 = arith.mulf %137, %138 : vector<16x1xf32>
    %140 = vector.extract_strided_slice %18 {offsets = [4, 0], sizes = [1, 8], strides = [1, 1]} : vector<8x8xf32> to vector<1x8xf32>
    %141 = vector.broadcast %139 : vector<16x1xf32> to vector<16x8xf32>
    %142 = vector.broadcast %140 : vector<1x8xf32> to vector<16x8xf32>
    %143 = arith.mulf %141, %142 : vector<16x8xf32>
    %144 = arith.addf %119, %143 : vector<16x8xf32>
    %145 = vector.extract_strided_slice %9 {offsets = [0, 5], sizes = [16, 1], strides = [1, 1]} : vector<16x8xf32> to vector<16x1xf32>
    %146 = vector.extract_strided_slice %16 {offsets = [5, 0], sizes = [1, 16], strides = [1, 1]} : vector<16x16xf32> to vector<1x16xf32>
    %147 = vector.broadcast %145 : vector<16x1xf32> to vector<16x16xf32>
    %148 = vector.broadcast %146 : vector<1x16xf32> to vector<16x16xf32>
    %149 = arith.mulf %147, %148 : vector<16x16xf32>
    %150 = arith.addf %149, %3 : vector<16x16xf32>
    %cst_36 = arith.constant dense<0xFF800000> : vector<16xf32>
    %151 = vector.multi_reduction <maximumf>, %150, %cst_36 [1] : vector<16x16xf32> to vector<16xf32>
    %152 = vector.shape_cast %151 : vector<16xf32> to vector<16x1xf32>
    %153 = vector.broadcast %152 : vector<16x1xf32> to vector<16x16xf32>
    %154 = arith.subf %150, %153 : vector<16x16xf32>
    %155 = math.exp %154 : vector<16x16xf32>
    %cst_37 = arith.constant dense<0.000000e+00> : vector<16xf32>
    %156 = vector.multi_reduction <add>, %155, %cst_37 [1] : vector<16x16xf32> to vector<16xf32>
    %157 = vector.shape_cast %156 : vector<16xf32> to vector<16x1xf32>
    %158 = vector.extract_strided_slice %16 {offsets = [13, 0], sizes = [1, 16], strides = [1, 1]} : vector<16x16xf32> to vector<1x16xf32>
    %159 = vector.broadcast %158 : vector<1x16xf32> to vector<16x16xf32>
    %160 = arith.mulf %155, %159 : vector<16x16xf32>
    %cst_38 = arith.constant dense<0.000000e+00> : vector<16xf32>
    %161 = vector.multi_reduction <add>, %160, %cst_38 [1] : vector<16x16xf32> to vector<16xf32>
    %162 = vector.shape_cast %161 : vector<16xf32> to vector<16x1xf32>
    %163 = tpu.reciprocal %157 {approx = true} : vector<16x1xf32> -> vector<16x1xf32>
    %164 = arith.mulf %162, %163 : vector<16x1xf32>
    %165 = vector.extract_strided_slice %18 {offsets = [5, 0], sizes = [1, 8], strides = [1, 1]} : vector<8x8xf32> to vector<1x8xf32>
    %166 = vector.broadcast %164 : vector<16x1xf32> to vector<16x8xf32>
    %167 = vector.broadcast %165 : vector<1x8xf32> to vector<16x8xf32>
    %168 = arith.mulf %166, %167 : vector<16x8xf32>
    %169 = arith.addf %144, %168 : vector<16x8xf32>
    %170 = vector.extract_strided_slice %9 {offsets = [0, 6], sizes = [16, 1], strides = [1, 1]} : vector<16x8xf32> to vector<16x1xf32>
    %171 = vector.extract_strided_slice %16 {offsets = [6, 0], sizes = [1, 16], strides = [1, 1]} : vector<16x16xf32> to vector<1x16xf32>
    %172 = vector.broadcast %170 : vector<16x1xf32> to vector<16x16xf32>
    %173 = vector.broadcast %171 : vector<1x16xf32> to vector<16x16xf32>
    %174 = arith.mulf %172, %173 : vector<16x16xf32>
    %175 = arith.addf %174, %3 : vector<16x16xf32>
    %cst_39 = arith.constant dense<0xFF800000> : vector<16xf32>
    %176 = vector.multi_reduction <maximumf>, %175, %cst_39 [1] : vector<16x16xf32> to vector<16xf32>
    %177 = vector.shape_cast %176 : vector<16xf32> to vector<16x1xf32>
    %178 = vector.broadcast %177 : vector<16x1xf32> to vector<16x16xf32>
    %179 = arith.subf %175, %178 : vector<16x16xf32>
    %180 = math.exp %179 : vector<16x16xf32>
    %cst_40 = arith.constant dense<0.000000e+00> : vector<16xf32>
    %181 = vector.multi_reduction <add>, %180, %cst_40 [1] : vector<16x16xf32> to vector<16xf32>
    %182 = vector.shape_cast %181 : vector<16xf32> to vector<16x1xf32>
    %183 = vector.extract_strided_slice %16 {offsets = [14, 0], sizes = [1, 16], strides = [1, 1]} : vector<16x16xf32> to vector<1x16xf32>
    %184 = vector.broadcast %183 : vector<1x16xf32> to vector<16x16xf32>
    %185 = arith.mulf %180, %184 : vector<16x16xf32>
    %cst_41 = arith.constant dense<0.000000e+00> : vector<16xf32>
    %186 = vector.multi_reduction <add>, %185, %cst_41 [1] : vector<16x16xf32> to vector<16xf32>
    %187 = vector.shape_cast %186 : vector<16xf32> to vector<16x1xf32>
    %188 = tpu.reciprocal %182 {approx = true} : vector<16x1xf32> -> vector<16x1xf32>
    %189 = arith.mulf %187, %188 : vector<16x1xf32>
    %190 = vector.extract_strided_slice %18 {offsets = [6, 0], sizes = [1, 8], strides = [1, 1]} : vector<8x8xf32> to vector<1x8xf32>
    %191 = vector.broadcast %189 : vector<16x1xf32> to vector<16x8xf32>
    %192 = vector.broadcast %190 : vector<1x8xf32> to vector<16x8xf32>
    %193 = arith.mulf %191, %192 : vector<16x8xf32>
    %194 = arith.addf %169, %193 : vector<16x8xf32>
    %195 = vector.extract_strided_slice %9 {offsets = [0, 7], sizes = [16, 1], strides = [1, 1]} : vector<16x8xf32> to vector<16x1xf32>
    %196 = vector.extract_strided_slice %16 {offsets = [7, 0], sizes = [1, 16], strides = [1, 1]} : vector<16x16xf32> to vector<1x16xf32>
    %197 = vector.broadcast %195 : vector<16x1xf32> to vector<16x16xf32>
    %198 = vector.broadcast %196 : vector<1x16xf32> to vector<16x16xf32>
    %199 = arith.mulf %197, %198 : vector<16x16xf32>
    %200 = arith.addf %199, %3 : vector<16x16xf32>
    %cst_42 = arith.constant dense<0xFF800000> : vector<16xf32>
    %201 = vector.multi_reduction <maximumf>, %200, %cst_42 [1] : vector<16x16xf32> to vector<16xf32>
    %202 = vector.shape_cast %201 : vector<16xf32> to vector<16x1xf32>
    %203 = vector.broadcast %202 : vector<16x1xf32> to vector<16x16xf32>
    %204 = arith.subf %200, %203 : vector<16x16xf32>
    %205 = math.exp %204 : vector<16x16xf32>
    %cst_43 = arith.constant dense<0.000000e+00> : vector<16xf32>
    %206 = vector.multi_reduction <add>, %205, %cst_43 [1] : vector<16x16xf32> to vector<16xf32>
    %207 = vector.shape_cast %206 : vector<16xf32> to vector<16x1xf32>
    %208 = vector.extract_strided_slice %16 {offsets = [15, 0], sizes = [1, 16], strides = [1, 1]} : vector<16x16xf32> to vector<1x16xf32>
    %209 = vector.broadcast %208 : vector<1x16xf32> to vector<16x16xf32>
    %210 = arith.mulf %205, %209 : vector<16x16xf32>
    %cst_44 = arith.constant dense<0.000000e+00> : vector<16xf32>
    %211 = vector.multi_reduction <add>, %210, %cst_44 [1] : vector<16x16xf32> to vector<16xf32>
    %212 = vector.shape_cast %211 : vector<16xf32> to vector<16x1xf32>
    %213 = tpu.reciprocal %207 {approx = true} : vector<16x1xf32> -> vector<16x1xf32>
    %214 = arith.mulf %212, %213 : vector<16x1xf32>
    %215 = vector.extract_strided_slice %18 {offsets = [7, 0], sizes = [1, 8], strides = [1, 1]} : vector<8x8xf32> to vector<1x8xf32>
    %216 = vector.broadcast %214 : vector<16x1xf32> to vector<16x8xf32>
    %217 = vector.broadcast %215 : vector<1x8xf32> to vector<16x8xf32>
    %218 = arith.mulf %216, %217 : vector<16x8xf32>
    %219 = arith.addf %194, %218 : vector<16x8xf32>
    %220 = arith.addf %2, %219 : vector<16x8xf32>
    %c0_45 = arith.constant 0 : index
    %c0_46 = arith.constant 0 : index
    %221 = vector.load %arg9[%c0_45, %c0_46] : memref<3x8xf32, #tpu.memory_space<vmem>>, vector<1x8xf32>
    %222 = vector.broadcast %221 : vector<1x8xf32> to vector<16x8xf32>
    %223 = arith.addf %220, %222 : vector<16x8xf32>
    %c0_47 = arith.constant 0 : index
    %c0_48 = arith.constant 0 : index
    %224 = vector.load %arg10[%c0_47, %c0_48] : memref<3x8xf32, #tpu.memory_space<vmem>>, vector<1x8xf32>
    %c0_49 = arith.constant 0 : index
    %c0_50 = arith.constant 0 : index
    %225 = vector.load %arg11[%c0_49, %c0_50] : memref<3x8xf32, #tpu.memory_space<vmem>>, vector<1x8xf32>
    %cst_51 = arith.constant dense<0.000000e+00> : vector<16xf32>
    %226 = vector.multi_reduction <add>, %223, %cst_51 [1] : vector<16x8xf32> to vector<16xf32>
    %227 = vector.shape_cast %226 : vector<16xf32> to vector<16x1xf32>
    %cst_52 = arith.constant 8.000000e+00 : f32
    %228 = vector.broadcast %cst_52 : f32 to vector<16x1xf32>
    %229 = arith.divf %227, %228 : vector<16x1xf32>
    %230 = vector.broadcast %229 : vector<16x1xf32> to vector<16x8xf32>
    %231 = arith.subf %223, %230 : vector<16x8xf32>
    %232 = arith.mulf %231, %231 : vector<16x8xf32>
    %cst_53 = arith.constant dense<0.000000e+00> : vector<16xf32>
    %233 = vector.multi_reduction <add>, %232, %cst_53 [1] : vector<16x8xf32> to vector<16xf32>
    %234 = vector.shape_cast %233 : vector<16xf32> to vector<16x1xf32>
    %cst_54 = arith.constant 8.000000e+00 : f32
    %235 = vector.broadcast %cst_54 : f32 to vector<16x1xf32>
    %236 = arith.divf %234, %235 : vector<16x1xf32>
    %237 = vector.broadcast %229 : vector<16x1xf32> to vector<16x8xf32>
    %238 = arith.subf %223, %237 : vector<16x8xf32>
    %cst_55 = arith.constant 9.99999974E-6 : f32
    %239 = vector.broadcast %cst_55 : f32 to vector<16x1xf32>
    %240 = arith.addf %236, %239 : vector<16x1xf32>
    %241 = math.rsqrt %240 : vector<16x1xf32>
    %242 = vector.broadcast %241 : vector<16x1xf32> to vector<16x8xf32>
    %243 = arith.mulf %238, %242 : vector<16x8xf32>
    %244 = vector.broadcast %224 : vector<1x8xf32> to vector<16x8xf32>
    %245 = arith.mulf %243, %244 : vector<16x8xf32>
    %246 = vector.broadcast %225 : vector<1x8xf32> to vector<16x8xf32>
    %247 = arith.addf %245, %246 : vector<16x8xf32>
    %248 = arith.truncf %247 : vector<16x8xf32> to vector<16x8xbf16>
    %c0_56 = arith.constant 0 : index
    %c0_57 = arith.constant 0 : index
    %c0_58 = arith.constant 0 : index
    %249 = vector.load %arg12[%c0_56, %c0_57, %c0_58] : memref<3x8x2048xbf16, #tpu.memory_space<vmem>>, vector<1x8x2048xbf16>
    %250 = vector.shape_cast %249 : vector<1x8x2048xbf16> to vector<8x2048xbf16>
    %cst_59 = arith.constant dense<0.000000e+00> : vector<16x2048xf32>
    %251 = tpu.matmul %248, %250, %cst_59 {dimension_numbers = #tpu.dot_dimension_numbers<[1], [0], [0], [1], [0, 0, 1, 1], [], []>} : vector<16x8xbf16>, vector<8x2048xbf16>, vector<16x2048xf32> -> vector<16x2048xf32>
    %c0_60 = arith.constant 0 : index
    %c0_61 = arith.constant 0 : index
    %252 = vector.load %arg13[%c0_60, %c0_61] : memref<3x2048xf32, #tpu.memory_space<vmem>>, vector<1x2048xf32>
    %253 = vector.broadcast %252 : vector<1x2048xf32> to vector<16x2048xf32>
    %254 = arith.addf %251, %253 : vector<16x2048xf32>
    %cst_62 = arith.constant 0.000000e+00 : f32
    %255 = vector.broadcast %cst_62 : f32 to vector<16x2048xf32>
    %256 = arith.maximumf %254, %255 : vector<16x2048xf32>
    %257 = arith.truncf %256 : vector<16x2048xf32> to vector<16x2048xbf16>
    %c0_63 = arith.constant 0 : index
    %c0_64 = arith.constant 0 : index
    %c0_65 = arith.constant 0 : index
    %258 = vector.load %arg14[%c0_63, %c0_64, %c0_65] : memref<3x2048x8xbf16, #tpu.memory_space<vmem>>, vector<1x2048x8xbf16>
    %259 = vector.shape_cast %258 : vector<1x2048x8xbf16> to vector<2048x8xbf16>
    %cst_66 = arith.constant dense<0.000000e+00> : vector<16x8xf32>
    %260 = tpu.matmul %257, %259, %cst_66 {dimension_numbers = #tpu.dot_dimension_numbers<[1], [0], [0], [1], [0, 0, 1, 1], [], []>} : vector<16x2048xbf16>, vector<2048x8xbf16>, vector<16x8xf32> -> vector<16x8xf32>
    %c0_67 = arith.constant 0 : index
    %c0_68 = arith.constant 0 : index
    %261 = vector.load %arg15[%c0_67, %c0_68] : memref<3x8xf32, #tpu.memory_space<vmem>>, vector<1x8xf32>
    %262 = vector.broadcast %261 : vector<1x8xf32> to vector<16x8xf32>
    %263 = arith.addf %260, %262 : vector<16x8xf32>
    %264 = arith.addf %247, %263 : vector<16x8xf32>
    %c0_69 = arith.constant 0 : index
    %c0_70 = arith.constant 0 : index
    %265 = vector.load %arg16[%c0_69, %c0_70] : memref<3x8xf32, #tpu.memory_space<vmem>>, vector<1x8xf32>
    %c0_71 = arith.constant 0 : index
    %c0_72 = arith.constant 0 : index
    %266 = vector.load %arg17[%c0_71, %c0_72] : memref<3x8xf32, #tpu.memory_space<vmem>>, vector<1x8xf32>
    %cst_73 = arith.constant dense<0.000000e+00> : vector<16xf32>
    %267 = vector.multi_reduction <add>, %264, %cst_73 [1] : vector<16x8xf32> to vector<16xf32>
    %268 = vector.shape_cast %267 : vector<16xf32> to vector<16x1xf32>
    %cst_74 = arith.constant 8.000000e+00 : f32
    %269 = vector.broadcast %cst_74 : f32 to vector<16x1xf32>
    %270 = arith.divf %268, %269 : vector<16x1xf32>
    %271 = vector.broadcast %270 : vector<16x1xf32> to vector<16x8xf32>
    %272 = arith.subf %264, %271 : vector<16x8xf32>
    %273 = arith.mulf %272, %272 : vector<16x8xf32>
    %cst_75 = arith.constant dense<0.000000e+00> : vector<16xf32>
    %274 = vector.multi_reduction <add>, %273, %cst_75 [1] : vector<16x8xf32> to vector<16xf32>
    %275 = vector.shape_cast %274 : vector<16xf32> to vector<16x1xf32>
    %cst_76 = arith.constant 8.000000e+00 : f32
    %276 = vector.broadcast %cst_76 : f32 to vector<16x1xf32>
    %277 = arith.divf %275, %276 : vector<16x1xf32>
    %278 = vector.broadcast %270 : vector<16x1xf32> to vector<16x8xf32>
    %279 = arith.subf %264, %278 : vector<16x8xf32>
    %cst_77 = arith.constant 9.99999974E-6 : f32
    %280 = vector.broadcast %cst_77 : f32 to vector<16x1xf32>
    %281 = arith.addf %277, %280 : vector<16x1xf32>
    %282 = math.rsqrt %281 : vector<16x1xf32>
    %283 = vector.broadcast %282 : vector<16x1xf32> to vector<16x8xf32>
    %284 = arith.mulf %279, %283 : vector<16x8xf32>
    %285 = vector.broadcast %265 : vector<1x8xf32> to vector<16x8xf32>
    %286 = arith.mulf %284, %285 : vector<16x8xf32>
    %287 = vector.broadcast %266 : vector<1x8xf32> to vector<16x8xf32>
    %288 = arith.addf %286, %287 : vector<16x8xf32>
    %c1 = arith.constant 1 : index
    %c0_78 = arith.constant 0 : index
    %c0_79 = arith.constant 0 : index
    %289 = vector.load %arg4[%c1, %c0_78, %c0_79] : memref<3x8x8xf32, #tpu.memory_space<vmem>>, vector<1x8x8xf32>
    %290 = vector.shape_cast %289 : vector<1x8x8xf32> to vector<8x8xf32>
    %cst_80 = arith.constant dense<0.000000e+00> : vector<16x8xf32>
    %291 = tpu.matmul %288, %290, %cst_80 {dimension_numbers = #tpu.dot_dimension_numbers<[1], [0], [0], [1], [0, 0, 1, 1], [], []>} : vector<16x8xf32>, vector<8x8xf32>, vector<16x8xf32> -> vector<16x8xf32>
    %c1_81 = arith.constant 1 : index
    %c0_82 = arith.constant 0 : index
    %292 = vector.load %arg5[%c1_81, %c0_82] : memref<3x8xf32, #tpu.memory_space<vmem>>, vector<1x8xf32>
    %293 = vector.broadcast %292 : vector<1x8xf32> to vector<16x8xf32>
    %294 = arith.addf %291, %293 : vector<16x8xf32>
    %c1_83 = arith.constant 1 : index
    %c0_84 = arith.constant 0 : index
    %c0_85 = arith.constant 0 : index
    %295 = vector.load %arg6[%c1_83, %c0_84, %c0_85] : memref<3x16x8xf32, #tpu.memory_space<vmem>>, vector<1x16x8xf32>
    %296 = vector.shape_cast %295 : vector<1x16x8xf32> to vector<16x8xf32>
    %cst_86 = arith.constant dense<0.000000e+00> : vector<16x16xf32>
    %297 = tpu.matmul %296, %288, %cst_86 {dimension_numbers = #tpu.dot_dimension_numbers<[1], [1], [0], [0], [0, 0, 1, 0], [], []>} : vector<16x8xf32>, vector<16x8xf32>, vector<16x16xf32> -> vector<16x16xf32>
    %c1_87 = arith.constant 1 : index
    %c0_88 = arith.constant 0 : index
    %c0_89 = arith.constant 0 : index
    %298 = vector.load %arg7[%c1_87, %c0_88, %c0_89] : memref<3x16x1xf32, #tpu.memory_space<vmem>>, vector<1x16x1xf32>
    %299 = vector.shape_cast %298 : vector<1x16x1xf32> to vector<16x1xf32>
    %300 = vector.broadcast %299 : vector<16x1xf32> to vector<16x16xf32>
    %301 = arith.addf %297, %300 : vector<16x16xf32>
    %c1_90 = arith.constant 1 : index
    %c0_91 = arith.constant 0 : index
    %c0_92 = arith.constant 0 : index
    %302 = vector.load %arg8[%c1_90, %c0_91, %c0_92] : memref<3x8x8xf32, #tpu.memory_space<vmem>>, vector<1x8x8xf32>
    %303 = vector.shape_cast %302 : vector<1x8x8xf32> to vector<8x8xf32>
    %cst_93 = arith.constant 0.000000e+00 : f32
    %304 = vector.broadcast %cst_93 : f32 to vector<16x8xf32>
    %305 = vector.extract_strided_slice %294 {offsets = [0, 0], sizes = [16, 1], strides = [1, 1]} : vector<16x8xf32> to vector<16x1xf32>
    %306 = vector.extract_strided_slice %301 {offsets = [0, 0], sizes = [1, 16], strides = [1, 1]} : vector<16x16xf32> to vector<1x16xf32>
    %307 = vector.broadcast %305 : vector<16x1xf32> to vector<16x16xf32>
    %308 = vector.broadcast %306 : vector<1x16xf32> to vector<16x16xf32>
    %309 = arith.mulf %307, %308 : vector<16x16xf32>
    %310 = arith.addf %309, %3 : vector<16x16xf32>
    %cst_94 = arith.constant dense<0xFF800000> : vector<16xf32>
    %311 = vector.multi_reduction <maximumf>, %310, %cst_94 [1] : vector<16x16xf32> to vector<16xf32>
    %312 = vector.shape_cast %311 : vector<16xf32> to vector<16x1xf32>
    %313 = vector.broadcast %312 : vector<16x1xf32> to vector<16x16xf32>
    %314 = arith.subf %310, %313 : vector<16x16xf32>
    %315 = math.exp %314 : vector<16x16xf32>
    %cst_95 = arith.constant dense<0.000000e+00> : vector<16xf32>
    %316 = vector.multi_reduction <add>, %315, %cst_95 [1] : vector<16x16xf32> to vector<16xf32>
    %317 = vector.shape_cast %316 : vector<16xf32> to vector<16x1xf32>
    %318 = vector.extract_strided_slice %301 {offsets = [8, 0], sizes = [1, 16], strides = [1, 1]} : vector<16x16xf32> to vector<1x16xf32>
    %319 = vector.broadcast %318 : vector<1x16xf32> to vector<16x16xf32>
    %320 = arith.mulf %315, %319 : vector<16x16xf32>
    %cst_96 = arith.constant dense<0.000000e+00> : vector<16xf32>
    %321 = vector.multi_reduction <add>, %320, %cst_96 [1] : vector<16x16xf32> to vector<16xf32>
    %322 = vector.shape_cast %321 : vector<16xf32> to vector<16x1xf32>
    %323 = tpu.reciprocal %317 {approx = true} : vector<16x1xf32> -> vector<16x1xf32>
    %324 = arith.mulf %322, %323 : vector<16x1xf32>
    %325 = vector.extract_strided_slice %303 {offsets = [0, 0], sizes = [1, 8], strides = [1, 1]} : vector<8x8xf32> to vector<1x8xf32>
    %326 = vector.broadcast %324 : vector<16x1xf32> to vector<16x8xf32>
    %327 = vector.broadcast %325 : vector<1x8xf32> to vector<16x8xf32>
    %328 = arith.mulf %326, %327 : vector<16x8xf32>
    %329 = arith.addf %304, %328 : vector<16x8xf32>
    %330 = vector.extract_strided_slice %294 {offsets = [0, 1], sizes = [16, 1], strides = [1, 1]} : vector<16x8xf32> to vector<16x1xf32>
    %331 = vector.extract_strided_slice %301 {offsets = [1, 0], sizes = [1, 16], strides = [1, 1]} : vector<16x16xf32> to vector<1x16xf32>
    %332 = vector.broadcast %330 : vector<16x1xf32> to vector<16x16xf32>
    %333 = vector.broadcast %331 : vector<1x16xf32> to vector<16x16xf32>
    %334 = arith.mulf %332, %333 : vector<16x16xf32>
    %335 = arith.addf %334, %3 : vector<16x16xf32>
    %cst_97 = arith.constant dense<0xFF800000> : vector<16xf32>
    %336 = vector.multi_reduction <maximumf>, %335, %cst_97 [1] : vector<16x16xf32> to vector<16xf32>
    %337 = vector.shape_cast %336 : vector<16xf32> to vector<16x1xf32>
    %338 = vector.broadcast %337 : vector<16x1xf32> to vector<16x16xf32>
    %339 = arith.subf %335, %338 : vector<16x16xf32>
    %340 = math.exp %339 : vector<16x16xf32>
    %cst_98 = arith.constant dense<0.000000e+00> : vector<16xf32>
    %341 = vector.multi_reduction <add>, %340, %cst_98 [1] : vector<16x16xf32> to vector<16xf32>
    %342 = vector.shape_cast %341 : vector<16xf32> to vector<16x1xf32>
    %343 = vector.extract_strided_slice %301 {offsets = [9, 0], sizes = [1, 16], strides = [1, 1]} : vector<16x16xf32> to vector<1x16xf32>
    %344 = vector.broadcast %343 : vector<1x16xf32> to vector<16x16xf32>
    %345 = arith.mulf %340, %344 : vector<16x16xf32>
    %cst_99 = arith.constant dense<0.000000e+00> : vector<16xf32>
    %346 = vector.multi_reduction <add>, %345, %cst_99 [1] : vector<16x16xf32> to vector<16xf32>
    %347 = vector.shape_cast %346 : vector<16xf32> to vector<16x1xf32>
    %348 = tpu.reciprocal %342 {approx = true} : vector<16x1xf32> -> vector<16x1xf32>
    %349 = arith.mulf %347, %348 : vector<16x1xf32>
    %350 = vector.extract_strided_slice %303 {offsets = [1, 0], sizes = [1, 8], strides = [1, 1]} : vector<8x8xf32> to vector<1x8xf32>
    %351 = vector.broadcast %349 : vector<16x1xf32> to vector<16x8xf32>
    %352 = vector.broadcast %350 : vector<1x8xf32> to vector<16x8xf32>
    %353 = arith.mulf %351, %352 : vector<16x8xf32>
    %354 = arith.addf %329, %353 : vector<16x8xf32>
    %355 = vector.extract_strided_slice %294 {offsets = [0, 2], sizes = [16, 1], strides = [1, 1]} : vector<16x8xf32> to vector<16x1xf32>
    %356 = vector.extract_strided_slice %301 {offsets = [2, 0], sizes = [1, 16], strides = [1, 1]} : vector<16x16xf32> to vector<1x16xf32>
    %357 = vector.broadcast %355 : vector<16x1xf32> to vector<16x16xf32>
    %358 = vector.broadcast %356 : vector<1x16xf32> to vector<16x16xf32>
    %359 = arith.mulf %357, %358 : vector<16x16xf32>
    %360 = arith.addf %359, %3 : vector<16x16xf32>
    %cst_100 = arith.constant dense<0xFF800000> : vector<16xf32>
    %361 = vector.multi_reduction <maximumf>, %360, %cst_100 [1] : vector<16x16xf32> to vector<16xf32>
    %362 = vector.shape_cast %361 : vector<16xf32> to vector<16x1xf32>
    %363 = vector.broadcast %362 : vector<16x1xf32> to vector<16x16xf32>
    %364 = arith.subf %360, %363 : vector<16x16xf32>
    %365 = math.exp %364 : vector<16x16xf32>
    %cst_101 = arith.constant dense<0.000000e+00> : vector<16xf32>
    %366 = vector.multi_reduction <add>, %365, %cst_101 [1] : vector<16x16xf32> to vector<16xf32>
    %367 = vector.shape_cast %366 : vector<16xf32> to vector<16x1xf32>
    %368 = vector.extract_strided_slice %301 {offsets = [10, 0], sizes = [1, 16], strides = [1, 1]} : vector<16x16xf32> to vector<1x16xf32>
    %369 = vector.broadcast %368 : vector<1x16xf32> to vector<16x16xf32>
    %370 = arith.mulf %365, %369 : vector<16x16xf32>
    %cst_102 = arith.constant dense<0.000000e+00> : vector<16xf32>
    %371 = vector.multi_reduction <add>, %370, %cst_102 [1] : vector<16x16xf32> to vector<16xf32>
    %372 = vector.shape_cast %371 : vector<16xf32> to vector<16x1xf32>
    %373 = tpu.reciprocal %367 {approx = true} : vector<16x1xf32> -> vector<16x1xf32>
    %374 = arith.mulf %372, %373 : vector<16x1xf32>
    %375 = vector.extract_strided_slice %303 {offsets = [2, 0], sizes = [1, 8], strides = [1, 1]} : vector<8x8xf32> to vector<1x8xf32>
    %376 = vector.broadcast %374 : vector<16x1xf32> to vector<16x8xf32>
    %377 = vector.broadcast %375 : vector<1x8xf32> to vector<16x8xf32>
    %378 = arith.mulf %376, %377 : vector<16x8xf32>
    %379 = arith.addf %354, %378 : vector<16x8xf32>
    %380 = vector.extract_strided_slice %294 {offsets = [0, 3], sizes = [16, 1], strides = [1, 1]} : vector<16x8xf32> to vector<16x1xf32>
    %381 = vector.extract_strided_slice %301 {offsets = [3, 0], sizes = [1, 16], strides = [1, 1]} : vector<16x16xf32> to vector<1x16xf32>
    %382 = vector.broadcast %380 : vector<16x1xf32> to vector<16x16xf32>
    %383 = vector.broadcast %381 : vector<1x16xf32> to vector<16x16xf32>
    %384 = arith.mulf %382, %383 : vector<16x16xf32>
    %385 = arith.addf %384, %3 : vector<16x16xf32>
    %cst_103 = arith.constant dense<0xFF800000> : vector<16xf32>
    %386 = vector.multi_reduction <maximumf>, %385, %cst_103 [1] : vector<16x16xf32> to vector<16xf32>
    %387 = vector.shape_cast %386 : vector<16xf32> to vector<16x1xf32>
    %388 = vector.broadcast %387 : vector<16x1xf32> to vector<16x16xf32>
    %389 = arith.subf %385, %388 : vector<16x16xf32>
    %390 = math.exp %389 : vector<16x16xf32>
    %cst_104 = arith.constant dense<0.000000e+00> : vector<16xf32>
    %391 = vector.multi_reduction <add>, %390, %cst_104 [1] : vector<16x16xf32> to vector<16xf32>
    %392 = vector.shape_cast %391 : vector<16xf32> to vector<16x1xf32>
    %393 = vector.extract_strided_slice %301 {offsets = [11, 0], sizes = [1, 16], strides = [1, 1]} : vector<16x16xf32> to vector<1x16xf32>
    %394 = vector.broadcast %393 : vector<1x16xf32> to vector<16x16xf32>
    %395 = arith.mulf %390, %394 : vector<16x16xf32>
    %cst_105 = arith.constant dense<0.000000e+00> : vector<16xf32>
    %396 = vector.multi_reduction <add>, %395, %cst_105 [1] : vector<16x16xf32> to vector<16xf32>
    %397 = vector.shape_cast %396 : vector<16xf32> to vector<16x1xf32>
    %398 = tpu.reciprocal %392 {approx = true} : vector<16x1xf32> -> vector<16x1xf32>
    %399 = arith.mulf %397, %398 : vector<16x1xf32>
    %400 = vector.extract_strided_slice %303 {offsets = [3, 0], sizes = [1, 8], strides = [1, 1]} : vector<8x8xf32> to vector<1x8xf32>
    %401 = vector.broadcast %399 : vector<16x1xf32> to vector<16x8xf32>
    %402 = vector.broadcast %400 : vector<1x8xf32> to vector<16x8xf32>
    %403 = arith.mulf %401, %402 : vector<16x8xf32>
    %404 = arith.addf %379, %403 : vector<16x8xf32>
    %405 = vector.extract_strided_slice %294 {offsets = [0, 4], sizes = [16, 1], strides = [1, 1]} : vector<16x8xf32> to vector<16x1xf32>
    %406 = vector.extract_strided_slice %301 {offsets = [4, 0], sizes = [1, 16], strides = [1, 1]} : vector<16x16xf32> to vector<1x16xf32>
    %407 = vector.broadcast %405 : vector<16x1xf32> to vector<16x16xf32>
    %408 = vector.broadcast %406 : vector<1x16xf32> to vector<16x16xf32>
    %409 = arith.mulf %407, %408 : vector<16x16xf32>
    %410 = arith.addf %409, %3 : vector<16x16xf32>
    %cst_106 = arith.constant dense<0xFF800000> : vector<16xf32>
    %411 = vector.multi_reduction <maximumf>, %410, %cst_106 [1] : vector<16x16xf32> to vector<16xf32>
    %412 = vector.shape_cast %411 : vector<16xf32> to vector<16x1xf32>
    %413 = vector.broadcast %412 : vector<16x1xf32> to vector<16x16xf32>
    %414 = arith.subf %410, %413 : vector<16x16xf32>
    %415 = math.exp %414 : vector<16x16xf32>
    %cst_107 = arith.constant dense<0.000000e+00> : vector<16xf32>
    %416 = vector.multi_reduction <add>, %415, %cst_107 [1] : vector<16x16xf32> to vector<16xf32>
    %417 = vector.shape_cast %416 : vector<16xf32> to vector<16x1xf32>
    %418 = vector.extract_strided_slice %301 {offsets = [12, 0], sizes = [1, 16], strides = [1, 1]} : vector<16x16xf32> to vector<1x16xf32>
    %419 = vector.broadcast %418 : vector<1x16xf32> to vector<16x16xf32>
    %420 = arith.mulf %415, %419 : vector<16x16xf32>
    %cst_108 = arith.constant dense<0.000000e+00> : vector<16xf32>
    %421 = vector.multi_reduction <add>, %420, %cst_108 [1] : vector<16x16xf32> to vector<16xf32>
    %422 = vector.shape_cast %421 : vector<16xf32> to vector<16x1xf32>
    %423 = tpu.reciprocal %417 {approx = true} : vector<16x1xf32> -> vector<16x1xf32>
    %424 = arith.mulf %422, %423 : vector<16x1xf32>
    %425 = vector.extract_strided_slice %303 {offsets = [4, 0], sizes = [1, 8], strides = [1, 1]} : vector<8x8xf32> to vector<1x8xf32>
    %426 = vector.broadcast %424 : vector<16x1xf32> to vector<16x8xf32>
    %427 = vector.broadcast %425 : vector<1x8xf32> to vector<16x8xf32>
    %428 = arith.mulf %426, %427 : vector<16x8xf32>
    %429 = arith.addf %404, %428 : vector<16x8xf32>
    %430 = vector.extract_strided_slice %294 {offsets = [0, 5], sizes = [16, 1], strides = [1, 1]} : vector<16x8xf32> to vector<16x1xf32>
    %431 = vector.extract_strided_slice %301 {offsets = [5, 0], sizes = [1, 16], strides = [1, 1]} : vector<16x16xf32> to vector<1x16xf32>
    %432 = vector.broadcast %430 : vector<16x1xf32> to vector<16x16xf32>
    %433 = vector.broadcast %431 : vector<1x16xf32> to vector<16x16xf32>
    %434 = arith.mulf %432, %433 : vector<16x16xf32>
    %435 = arith.addf %434, %3 : vector<16x16xf32>
    %cst_109 = arith.constant dense<0xFF800000> : vector<16xf32>
    %436 = vector.multi_reduction <maximumf>, %435, %cst_109 [1] : vector<16x16xf32> to vector<16xf32>
    %437 = vector.shape_cast %436 : vector<16xf32> to vector<16x1xf32>
    %438 = vector.broadcast %437 : vector<16x1xf32> to vector<16x16xf32>
    %439 = arith.subf %435, %438 : vector<16x16xf32>
    %440 = math.exp %439 : vector<16x16xf32>
    %cst_110 = arith.constant dense<0.000000e+00> : vector<16xf32>
    %441 = vector.multi_reduction <add>, %440, %cst_110 [1] : vector<16x16xf32> to vector<16xf32>
    %442 = vector.shape_cast %441 : vector<16xf32> to vector<16x1xf32>
    %443 = vector.extract_strided_slice %301 {offsets = [13, 0], sizes = [1, 16], strides = [1, 1]} : vector<16x16xf32> to vector<1x16xf32>
    %444 = vector.broadcast %443 : vector<1x16xf32> to vector<16x16xf32>
    %445 = arith.mulf %440, %444 : vector<16x16xf32>
    %cst_111 = arith.constant dense<0.000000e+00> : vector<16xf32>
    %446 = vector.multi_reduction <add>, %445, %cst_111 [1] : vector<16x16xf32> to vector<16xf32>
    %447 = vector.shape_cast %446 : vector<16xf32> to vector<16x1xf32>
    %448 = tpu.reciprocal %442 {approx = true} : vector<16x1xf32> -> vector<16x1xf32>
    %449 = arith.mulf %447, %448 : vector<16x1xf32>
    %450 = vector.extract_strided_slice %303 {offsets = [5, 0], sizes = [1, 8], strides = [1, 1]} : vector<8x8xf32> to vector<1x8xf32>
    %451 = vector.broadcast %449 : vector<16x1xf32> to vector<16x8xf32>
    %452 = vector.broadcast %450 : vector<1x8xf32> to vector<16x8xf32>
    %453 = arith.mulf %451, %452 : vector<16x8xf32>
    %454 = arith.addf %429, %453 : vector<16x8xf32>
    %455 = vector.extract_strided_slice %294 {offsets = [0, 6], sizes = [16, 1], strides = [1, 1]} : vector<16x8xf32> to vector<16x1xf32>
    %456 = vector.extract_strided_slice %301 {offsets = [6, 0], sizes = [1, 16], strides = [1, 1]} : vector<16x16xf32> to vector<1x16xf32>
    %457 = vector.broadcast %455 : vector<16x1xf32> to vector<16x16xf32>
    %458 = vector.broadcast %456 : vector<1x16xf32> to vector<16x16xf32>
    %459 = arith.mulf %457, %458 : vector<16x16xf32>
    %460 = arith.addf %459, %3 : vector<16x16xf32>
    %cst_112 = arith.constant dense<0xFF800000> : vector<16xf32>
    %461 = vector.multi_reduction <maximumf>, %460, %cst_112 [1] : vector<16x16xf32> to vector<16xf32>
    %462 = vector.shape_cast %461 : vector<16xf32> to vector<16x1xf32>
    %463 = vector.broadcast %462 : vector<16x1xf32> to vector<16x16xf32>
    %464 = arith.subf %460, %463 : vector<16x16xf32>
    %465 = math.exp %464 : vector<16x16xf32>
    %cst_113 = arith.constant dense<0.000000e+00> : vector<16xf32>
    %466 = vector.multi_reduction <add>, %465, %cst_113 [1] : vector<16x16xf32> to vector<16xf32>
    %467 = vector.shape_cast %466 : vector<16xf32> to vector<16x1xf32>
    %468 = vector.extract_strided_slice %301 {offsets = [14, 0], sizes = [1, 16], strides = [1, 1]} : vector<16x16xf32> to vector<1x16xf32>
    %469 = vector.broadcast %468 : vector<1x16xf32> to vector<16x16xf32>
    %470 = arith.mulf %465, %469 : vector<16x16xf32>
    %cst_114 = arith.constant dense<0.000000e+00> : vector<16xf32>
    %471 = vector.multi_reduction <add>, %470, %cst_114 [1] : vector<16x16xf32> to vector<16xf32>
    %472 = vector.shape_cast %471 : vector<16xf32> to vector<16x1xf32>
    %473 = tpu.reciprocal %467 {approx = true} : vector<16x1xf32> -> vector<16x1xf32>
    %474 = arith.mulf %472, %473 : vector<16x1xf32>
    %475 = vector.extract_strided_slice %303 {offsets = [6, 0], sizes = [1, 8], strides = [1, 1]} : vector<8x8xf32> to vector<1x8xf32>
    %476 = vector.broadcast %474 : vector<16x1xf32> to vector<16x8xf32>
    %477 = vector.broadcast %475 : vector<1x8xf32> to vector<16x8xf32>
    %478 = arith.mulf %476, %477 : vector<16x8xf32>
    %479 = arith.addf %454, %478 : vector<16x8xf32>
    %480 = vector.extract_strided_slice %294 {offsets = [0, 7], sizes = [16, 1], strides = [1, 1]} : vector<16x8xf32> to vector<16x1xf32>
    %481 = vector.extract_strided_slice %301 {offsets = [7, 0], sizes = [1, 16], strides = [1, 1]} : vector<16x16xf32> to vector<1x16xf32>
    %482 = vector.broadcast %480 : vector<16x1xf32> to vector<16x16xf32>
    %483 = vector.broadcast %481 : vector<1x16xf32> to vector<16x16xf32>
    %484 = arith.mulf %482, %483 : vector<16x16xf32>
    %485 = arith.addf %484, %3 : vector<16x16xf32>
    %cst_115 = arith.constant dense<0xFF800000> : vector<16xf32>
    %486 = vector.multi_reduction <maximumf>, %485, %cst_115 [1] : vector<16x16xf32> to vector<16xf32>
    %487 = vector.shape_cast %486 : vector<16xf32> to vector<16x1xf32>
    %488 = vector.broadcast %487 : vector<16x1xf32> to vector<16x16xf32>
    %489 = arith.subf %485, %488 : vector<16x16xf32>
    %490 = math.exp %489 : vector<16x16xf32>
    %cst_116 = arith.constant dense<0.000000e+00> : vector<16xf32>
    %491 = vector.multi_reduction <add>, %490, %cst_116 [1] : vector<16x16xf32> to vector<16xf32>
    %492 = vector.shape_cast %491 : vector<16xf32> to vector<16x1xf32>
    %493 = vector.extract_strided_slice %301 {offsets = [15, 0], sizes = [1, 16], strides = [1, 1]} : vector<16x16xf32> to vector<1x16xf32>
    %494 = vector.broadcast %493 : vector<1x16xf32> to vector<16x16xf32>
    %495 = arith.mulf %490, %494 : vector<16x16xf32>
    %cst_117 = arith.constant dense<0.000000e+00> : vector<16xf32>
    %496 = vector.multi_reduction <add>, %495, %cst_117 [1] : vector<16x16xf32> to vector<16xf32>
    %497 = vector.shape_cast %496 : vector<16xf32> to vector<16x1xf32>
    %498 = tpu.reciprocal %492 {approx = true} : vector<16x1xf32> -> vector<16x1xf32>
    %499 = arith.mulf %497, %498 : vector<16x1xf32>
    %500 = vector.extract_strided_slice %303 {offsets = [7, 0], sizes = [1, 8], strides = [1, 1]} : vector<8x8xf32> to vector<1x8xf32>
    %501 = vector.broadcast %499 : vector<16x1xf32> to vector<16x8xf32>
    %502 = vector.broadcast %500 : vector<1x8xf32> to vector<16x8xf32>
    %503 = arith.mulf %501, %502 : vector<16x8xf32>
    %504 = arith.addf %479, %503 : vector<16x8xf32>
    %505 = arith.addf %288, %504 : vector<16x8xf32>
    %c1_118 = arith.constant 1 : index
    %c0_119 = arith.constant 0 : index
    %506 = vector.load %arg9[%c1_118, %c0_119] : memref<3x8xf32, #tpu.memory_space<vmem>>, vector<1x8xf32>
    %507 = vector.broadcast %506 : vector<1x8xf32> to vector<16x8xf32>
    %508 = arith.addf %505, %507 : vector<16x8xf32>
    %c1_120 = arith.constant 1 : index
    %c0_121 = arith.constant 0 : index
    %509 = vector.load %arg10[%c1_120, %c0_121] : memref<3x8xf32, #tpu.memory_space<vmem>>, vector<1x8xf32>
    %c1_122 = arith.constant 1 : index
    %c0_123 = arith.constant 0 : index
    %510 = vector.load %arg11[%c1_122, %c0_123] : memref<3x8xf32, #tpu.memory_space<vmem>>, vector<1x8xf32>
    %cst_124 = arith.constant dense<0.000000e+00> : vector<16xf32>
    %511 = vector.multi_reduction <add>, %508, %cst_124 [1] : vector<16x8xf32> to vector<16xf32>
    %512 = vector.shape_cast %511 : vector<16xf32> to vector<16x1xf32>
    %cst_125 = arith.constant 8.000000e+00 : f32
    %513 = vector.broadcast %cst_125 : f32 to vector<16x1xf32>
    %514 = arith.divf %512, %513 : vector<16x1xf32>
    %515 = vector.broadcast %514 : vector<16x1xf32> to vector<16x8xf32>
    %516 = arith.subf %508, %515 : vector<16x8xf32>
    %517 = arith.mulf %516, %516 : vector<16x8xf32>
    %cst_126 = arith.constant dense<0.000000e+00> : vector<16xf32>
    %518 = vector.multi_reduction <add>, %517, %cst_126 [1] : vector<16x8xf32> to vector<16xf32>
    %519 = vector.shape_cast %518 : vector<16xf32> to vector<16x1xf32>
    %cst_127 = arith.constant 8.000000e+00 : f32
    %520 = vector.broadcast %cst_127 : f32 to vector<16x1xf32>
    %521 = arith.divf %519, %520 : vector<16x1xf32>
    %522 = vector.broadcast %514 : vector<16x1xf32> to vector<16x8xf32>
    %523 = arith.subf %508, %522 : vector<16x8xf32>
    %cst_128 = arith.constant 9.99999974E-6 : f32
    %524 = vector.broadcast %cst_128 : f32 to vector<16x1xf32>
    %525 = arith.addf %521, %524 : vector<16x1xf32>
    %526 = math.rsqrt %525 : vector<16x1xf32>
    %527 = vector.broadcast %526 : vector<16x1xf32> to vector<16x8xf32>
    %528 = arith.mulf %523, %527 : vector<16x8xf32>
    %529 = vector.broadcast %509 : vector<1x8xf32> to vector<16x8xf32>
    %530 = arith.mulf %528, %529 : vector<16x8xf32>
    %531 = vector.broadcast %510 : vector<1x8xf32> to vector<16x8xf32>
    %532 = arith.addf %530, %531 : vector<16x8xf32>
    %533 = arith.truncf %532 : vector<16x8xf32> to vector<16x8xbf16>
    %c1_129 = arith.constant 1 : index
    %c0_130 = arith.constant 0 : index
    %c0_131 = arith.constant 0 : index
    %534 = vector.load %arg12[%c1_129, %c0_130, %c0_131] : memref<3x8x2048xbf16, #tpu.memory_space<vmem>>, vector<1x8x2048xbf16>
    %535 = vector.shape_cast %534 : vector<1x8x2048xbf16> to vector<8x2048xbf16>
    %cst_132 = arith.constant dense<0.000000e+00> : vector<16x2048xf32>
    %536 = tpu.matmul %533, %535, %cst_132 {dimension_numbers = #tpu.dot_dimension_numbers<[1], [0], [0], [1], [0, 0, 1, 1], [], []>} : vector<16x8xbf16>, vector<8x2048xbf16>, vector<16x2048xf32> -> vector<16x2048xf32>
    %c1_133 = arith.constant 1 : index
    %c0_134 = arith.constant 0 : index
    %537 = vector.load %arg13[%c1_133, %c0_134] : memref<3x2048xf32, #tpu.memory_space<vmem>>, vector<1x2048xf32>
    %538 = vector.broadcast %537 : vector<1x2048xf32> to vector<16x2048xf32>
    %539 = arith.addf %536, %538 : vector<16x2048xf32>
    %cst_135 = arith.constant 0.000000e+00 : f32
    %540 = vector.broadcast %cst_135 : f32 to vector<16x2048xf32>
    %541 = arith.maximumf %539, %540 : vector<16x2048xf32>
    %542 = arith.truncf %541 : vector<16x2048xf32> to vector<16x2048xbf16>
    %c1_136 = arith.constant 1 : index
    %c0_137 = arith.constant 0 : index
    %c0_138 = arith.constant 0 : index
    %543 = vector.load %arg14[%c1_136, %c0_137, %c0_138] : memref<3x2048x8xbf16, #tpu.memory_space<vmem>>, vector<1x2048x8xbf16>
    %544 = vector.shape_cast %543 : vector<1x2048x8xbf16> to vector<2048x8xbf16>
    %cst_139 = arith.constant dense<0.000000e+00> : vector<16x8xf32>
    %545 = tpu.matmul %542, %544, %cst_139 {dimension_numbers = #tpu.dot_dimension_numbers<[1], [0], [0], [1], [0, 0, 1, 1], [], []>} : vector<16x2048xbf16>, vector<2048x8xbf16>, vector<16x8xf32> -> vector<16x8xf32>
    %c1_140 = arith.constant 1 : index
    %c0_141 = arith.constant 0 : index
    %546 = vector.load %arg15[%c1_140, %c0_141] : memref<3x8xf32, #tpu.memory_space<vmem>>, vector<1x8xf32>
    %547 = vector.broadcast %546 : vector<1x8xf32> to vector<16x8xf32>
    %548 = arith.addf %545, %547 : vector<16x8xf32>
    %549 = arith.addf %532, %548 : vector<16x8xf32>
    %c1_142 = arith.constant 1 : index
    %c0_143 = arith.constant 0 : index
    %550 = vector.load %arg16[%c1_142, %c0_143] : memref<3x8xf32, #tpu.memory_space<vmem>>, vector<1x8xf32>
    %c1_144 = arith.constant 1 : index
    %c0_145 = arith.constant 0 : index
    %551 = vector.load %arg17[%c1_144, %c0_145] : memref<3x8xf32, #tpu.memory_space<vmem>>, vector<1x8xf32>
    %cst_146 = arith.constant dense<0.000000e+00> : vector<16xf32>
    %552 = vector.multi_reduction <add>, %549, %cst_146 [1] : vector<16x8xf32> to vector<16xf32>
    %553 = vector.shape_cast %552 : vector<16xf32> to vector<16x1xf32>
    %cst_147 = arith.constant 8.000000e+00 : f32
    %554 = vector.broadcast %cst_147 : f32 to vector<16x1xf32>
    %555 = arith.divf %553, %554 : vector<16x1xf32>
    %556 = vector.broadcast %555 : vector<16x1xf32> to vector<16x8xf32>
    %557 = arith.subf %549, %556 : vector<16x8xf32>
    %558 = arith.mulf %557, %557 : vector<16x8xf32>
    %cst_148 = arith.constant dense<0.000000e+00> : vector<16xf32>
    %559 = vector.multi_reduction <add>, %558, %cst_148 [1] : vector<16x8xf32> to vector<16xf32>
    %560 = vector.shape_cast %559 : vector<16xf32> to vector<16x1xf32>
    %cst_149 = arith.constant 8.000000e+00 : f32
    %561 = vector.broadcast %cst_149 : f32 to vector<16x1xf32>
    %562 = arith.divf %560, %561 : vector<16x1xf32>
    %563 = vector.broadcast %555 : vector<16x1xf32> to vector<16x8xf32>
    %564 = arith.subf %549, %563 : vector<16x8xf32>
    %cst_150 = arith.constant 9.99999974E-6 : f32
    %565 = vector.broadcast %cst_150 : f32 to vector<16x1xf32>
    %566 = arith.addf %562, %565 : vector<16x1xf32>
    %567 = math.rsqrt %566 : vector<16x1xf32>
    %568 = vector.broadcast %567 : vector<16x1xf32> to vector<16x8xf32>
    %569 = arith.mulf %564, %568 : vector<16x8xf32>
    %570 = vector.broadcast %550 : vector<1x8xf32> to vector<16x8xf32>
    %571 = arith.mulf %569, %570 : vector<16x8xf32>
    %572 = vector.broadcast %551 : vector<1x8xf32> to vector<16x8xf32>
    %573 = arith.addf %571, %572 : vector<16x8xf32>
    %c2 = arith.constant 2 : index
    %c0_151 = arith.constant 0 : index
    %c0_152 = arith.constant 0 : index
    %574 = vector.load %arg4[%c2, %c0_151, %c0_152] : memref<3x8x8xf32, #tpu.memory_space<vmem>>, vector<1x8x8xf32>
    %575 = vector.shape_cast %574 : vector<1x8x8xf32> to vector<8x8xf32>
    %cst_153 = arith.constant dense<0.000000e+00> : vector<16x8xf32>
    %576 = tpu.matmul %573, %575, %cst_153 {dimension_numbers = #tpu.dot_dimension_numbers<[1], [0], [0], [1], [0, 0, 1, 1], [], []>} : vector<16x8xf32>, vector<8x8xf32>, vector<16x8xf32> -> vector<16x8xf32>
    %c2_154 = arith.constant 2 : index
    %c0_155 = arith.constant 0 : index
    %577 = vector.load %arg5[%c2_154, %c0_155] : memref<3x8xf32, #tpu.memory_space<vmem>>, vector<1x8xf32>
    %578 = vector.broadcast %577 : vector<1x8xf32> to vector<16x8xf32>
    %579 = arith.addf %576, %578 : vector<16x8xf32>
    %c2_156 = arith.constant 2 : index
    %c0_157 = arith.constant 0 : index
    %c0_158 = arith.constant 0 : index
    %580 = vector.load %arg6[%c2_156, %c0_157, %c0_158] : memref<3x16x8xf32, #tpu.memory_space<vmem>>, vector<1x16x8xf32>
    %581 = vector.shape_cast %580 : vector<1x16x8xf32> to vector<16x8xf32>
    %cst_159 = arith.constant dense<0.000000e+00> : vector<16x16xf32>
    %582 = tpu.matmul %581, %573, %cst_159 {dimension_numbers = #tpu.dot_dimension_numbers<[1], [1], [0], [0], [0, 0, 1, 0], [], []>} : vector<16x8xf32>, vector<16x8xf32>, vector<16x16xf32> -> vector<16x16xf32>
    %c2_160 = arith.constant 2 : index
    %c0_161 = arith.constant 0 : index
    %c0_162 = arith.constant 0 : index
    %583 = vector.load %arg7[%c2_160, %c0_161, %c0_162] : memref<3x16x1xf32, #tpu.memory_space<vmem>>, vector<1x16x1xf32>
    %584 = vector.shape_cast %583 : vector<1x16x1xf32> to vector<16x1xf32>
    %585 = vector.broadcast %584 : vector<16x1xf32> to vector<16x16xf32>
    %586 = arith.addf %582, %585 : vector<16x16xf32>
    %c2_163 = arith.constant 2 : index
    %c0_164 = arith.constant 0 : index
    %c0_165 = arith.constant 0 : index
    %587 = vector.load %arg8[%c2_163, %c0_164, %c0_165] : memref<3x8x8xf32, #tpu.memory_space<vmem>>, vector<1x8x8xf32>
    %588 = vector.shape_cast %587 : vector<1x8x8xf32> to vector<8x8xf32>
    %cst_166 = arith.constant 0.000000e+00 : f32
    %589 = vector.broadcast %cst_166 : f32 to vector<16x8xf32>
    %590 = vector.extract_strided_slice %579 {offsets = [0, 0], sizes = [16, 1], strides = [1, 1]} : vector<16x8xf32> to vector<16x1xf32>
    %591 = vector.extract_strided_slice %586 {offsets = [0, 0], sizes = [1, 16], strides = [1, 1]} : vector<16x16xf32> to vector<1x16xf32>
    %592 = vector.broadcast %590 : vector<16x1xf32> to vector<16x16xf32>
    %593 = vector.broadcast %591 : vector<1x16xf32> to vector<16x16xf32>
    %594 = arith.mulf %592, %593 : vector<16x16xf32>
    %595 = arith.addf %594, %3 : vector<16x16xf32>
    %cst_167 = arith.constant dense<0xFF800000> : vector<16xf32>
    %596 = vector.multi_reduction <maximumf>, %595, %cst_167 [1] : vector<16x16xf32> to vector<16xf32>
    %597 = vector.shape_cast %596 : vector<16xf32> to vector<16x1xf32>
    %598 = vector.broadcast %597 : vector<16x1xf32> to vector<16x16xf32>
    %599 = arith.subf %595, %598 : vector<16x16xf32>
    %600 = math.exp %599 : vector<16x16xf32>
    %cst_168 = arith.constant dense<0.000000e+00> : vector<16xf32>
    %601 = vector.multi_reduction <add>, %600, %cst_168 [1] : vector<16x16xf32> to vector<16xf32>
    %602 = vector.shape_cast %601 : vector<16xf32> to vector<16x1xf32>
    %603 = vector.extract_strided_slice %586 {offsets = [8, 0], sizes = [1, 16], strides = [1, 1]} : vector<16x16xf32> to vector<1x16xf32>
    %604 = vector.broadcast %603 : vector<1x16xf32> to vector<16x16xf32>
    %605 = arith.mulf %600, %604 : vector<16x16xf32>
    %cst_169 = arith.constant dense<0.000000e+00> : vector<16xf32>
    %606 = vector.multi_reduction <add>, %605, %cst_169 [1] : vector<16x16xf32> to vector<16xf32>
    %607 = vector.shape_cast %606 : vector<16xf32> to vector<16x1xf32>
    %608 = tpu.reciprocal %602 {approx = true} : vector<16x1xf32> -> vector<16x1xf32>
    %609 = arith.mulf %607, %608 : vector<16x1xf32>
    %610 = vector.extract_strided_slice %588 {offsets = [0, 0], sizes = [1, 8], strides = [1, 1]} : vector<8x8xf32> to vector<1x8xf32>
    %611 = vector.broadcast %609 : vector<16x1xf32> to vector<16x8xf32>
    %612 = vector.broadcast %610 : vector<1x8xf32> to vector<16x8xf32>
    %613 = arith.mulf %611, %612 : vector<16x8xf32>
    %614 = arith.addf %589, %613 : vector<16x8xf32>
    %615 = vector.extract_strided_slice %579 {offsets = [0, 1], sizes = [16, 1], strides = [1, 1]} : vector<16x8xf32> to vector<16x1xf32>
    %616 = vector.extract_strided_slice %586 {offsets = [1, 0], sizes = [1, 16], strides = [1, 1]} : vector<16x16xf32> to vector<1x16xf32>
    %617 = vector.broadcast %615 : vector<16x1xf32> to vector<16x16xf32>
    %618 = vector.broadcast %616 : vector<1x16xf32> to vector<16x16xf32>
    %619 = arith.mulf %617, %618 : vector<16x16xf32>
    %620 = arith.addf %619, %3 : vector<16x16xf32>
    %cst_170 = arith.constant dense<0xFF800000> : vector<16xf32>
    %621 = vector.multi_reduction <maximumf>, %620, %cst_170 [1] : vector<16x16xf32> to vector<16xf32>
    %622 = vector.shape_cast %621 : vector<16xf32> to vector<16x1xf32>
    %623 = vector.broadcast %622 : vector<16x1xf32> to vector<16x16xf32>
    %624 = arith.subf %620, %623 : vector<16x16xf32>
    %625 = math.exp %624 : vector<16x16xf32>
    %cst_171 = arith.constant dense<0.000000e+00> : vector<16xf32>
    %626 = vector.multi_reduction <add>, %625, %cst_171 [1] : vector<16x16xf32> to vector<16xf32>
    %627 = vector.shape_cast %626 : vector<16xf32> to vector<16x1xf32>
    %628 = vector.extract_strided_slice %586 {offsets = [9, 0], sizes = [1, 16], strides = [1, 1]} : vector<16x16xf32> to vector<1x16xf32>
    %629 = vector.broadcast %628 : vector<1x16xf32> to vector<16x16xf32>
    %630 = arith.mulf %625, %629 : vector<16x16xf32>
    %cst_172 = arith.constant dense<0.000000e+00> : vector<16xf32>
    %631 = vector.multi_reduction <add>, %630, %cst_172 [1] : vector<16x16xf32> to vector<16xf32>
    %632 = vector.shape_cast %631 : vector<16xf32> to vector<16x1xf32>
    %633 = tpu.reciprocal %627 {approx = true} : vector<16x1xf32> -> vector<16x1xf32>
    %634 = arith.mulf %632, %633 : vector<16x1xf32>
    %635 = vector.extract_strided_slice %588 {offsets = [1, 0], sizes = [1, 8], strides = [1, 1]} : vector<8x8xf32> to vector<1x8xf32>
    %636 = vector.broadcast %634 : vector<16x1xf32> to vector<16x8xf32>
    %637 = vector.broadcast %635 : vector<1x8xf32> to vector<16x8xf32>
    %638 = arith.mulf %636, %637 : vector<16x8xf32>
    %639 = arith.addf %614, %638 : vector<16x8xf32>
    %640 = vector.extract_strided_slice %579 {offsets = [0, 2], sizes = [16, 1], strides = [1, 1]} : vector<16x8xf32> to vector<16x1xf32>
    %641 = vector.extract_strided_slice %586 {offsets = [2, 0], sizes = [1, 16], strides = [1, 1]} : vector<16x16xf32> to vector<1x16xf32>
    %642 = vector.broadcast %640 : vector<16x1xf32> to vector<16x16xf32>
    %643 = vector.broadcast %641 : vector<1x16xf32> to vector<16x16xf32>
    %644 = arith.mulf %642, %643 : vector<16x16xf32>
    %645 = arith.addf %644, %3 : vector<16x16xf32>
    %cst_173 = arith.constant dense<0xFF800000> : vector<16xf32>
    %646 = vector.multi_reduction <maximumf>, %645, %cst_173 [1] : vector<16x16xf32> to vector<16xf32>
    %647 = vector.shape_cast %646 : vector<16xf32> to vector<16x1xf32>
    %648 = vector.broadcast %647 : vector<16x1xf32> to vector<16x16xf32>
    %649 = arith.subf %645, %648 : vector<16x16xf32>
    %650 = math.exp %649 : vector<16x16xf32>
    %cst_174 = arith.constant dense<0.000000e+00> : vector<16xf32>
    %651 = vector.multi_reduction <add>, %650, %cst_174 [1] : vector<16x16xf32> to vector<16xf32>
    %652 = vector.shape_cast %651 : vector<16xf32> to vector<16x1xf32>
    %653 = vector.extract_strided_slice %586 {offsets = [10, 0], sizes = [1, 16], strides = [1, 1]} : vector<16x16xf32> to vector<1x16xf32>
    %654 = vector.broadcast %653 : vector<1x16xf32> to vector<16x16xf32>
    %655 = arith.mulf %650, %654 : vector<16x16xf32>
    %cst_175 = arith.constant dense<0.000000e+00> : vector<16xf32>
    %656 = vector.multi_reduction <add>, %655, %cst_175 [1] : vector<16x16xf32> to vector<16xf32>
    %657 = vector.shape_cast %656 : vector<16xf32> to vector<16x1xf32>
    %658 = tpu.reciprocal %652 {approx = true} : vector<16x1xf32> -> vector<16x1xf32>
    %659 = arith.mulf %657, %658 : vector<16x1xf32>
    %660 = vector.extract_strided_slice %588 {offsets = [2, 0], sizes = [1, 8], strides = [1, 1]} : vector<8x8xf32> to vector<1x8xf32>
    %661 = vector.broadcast %659 : vector<16x1xf32> to vector<16x8xf32>
    %662 = vector.broadcast %660 : vector<1x8xf32> to vector<16x8xf32>
    %663 = arith.mulf %661, %662 : vector<16x8xf32>
    %664 = arith.addf %639, %663 : vector<16x8xf32>
    %665 = vector.extract_strided_slice %579 {offsets = [0, 3], sizes = [16, 1], strides = [1, 1]} : vector<16x8xf32> to vector<16x1xf32>
    %666 = vector.extract_strided_slice %586 {offsets = [3, 0], sizes = [1, 16], strides = [1, 1]} : vector<16x16xf32> to vector<1x16xf32>
    %667 = vector.broadcast %665 : vector<16x1xf32> to vector<16x16xf32>
    %668 = vector.broadcast %666 : vector<1x16xf32> to vector<16x16xf32>
    %669 = arith.mulf %667, %668 : vector<16x16xf32>
    %670 = arith.addf %669, %3 : vector<16x16xf32>
    %cst_176 = arith.constant dense<0xFF800000> : vector<16xf32>
    %671 = vector.multi_reduction <maximumf>, %670, %cst_176 [1] : vector<16x16xf32> to vector<16xf32>
    %672 = vector.shape_cast %671 : vector<16xf32> to vector<16x1xf32>
    %673 = vector.broadcast %672 : vector<16x1xf32> to vector<16x16xf32>
    %674 = arith.subf %670, %673 : vector<16x16xf32>
    %675 = math.exp %674 : vector<16x16xf32>
    %cst_177 = arith.constant dense<0.000000e+00> : vector<16xf32>
    %676 = vector.multi_reduction <add>, %675, %cst_177 [1] : vector<16x16xf32> to vector<16xf32>
    %677 = vector.shape_cast %676 : vector<16xf32> to vector<16x1xf32>
    %678 = vector.extract_strided_slice %586 {offsets = [11, 0], sizes = [1, 16], strides = [1, 1]} : vector<16x16xf32> to vector<1x16xf32>
    %679 = vector.broadcast %678 : vector<1x16xf32> to vector<16x16xf32>
    %680 = arith.mulf %675, %679 : vector<16x16xf32>
    %cst_178 = arith.constant dense<0.000000e+00> : vector<16xf32>
    %681 = vector.multi_reduction <add>, %680, %cst_178 [1] : vector<16x16xf32> to vector<16xf32>
    %682 = vector.shape_cast %681 : vector<16xf32> to vector<16x1xf32>
    %683 = tpu.reciprocal %677 {approx = true} : vector<16x1xf32> -> vector<16x1xf32>
    %684 = arith.mulf %682, %683 : vector<16x1xf32>
    %685 = vector.extract_strided_slice %588 {offsets = [3, 0], sizes = [1, 8], strides = [1, 1]} : vector<8x8xf32> to vector<1x8xf32>
    %686 = vector.broadcast %684 : vector<16x1xf32> to vector<16x8xf32>
    %687 = vector.broadcast %685 : vector<1x8xf32> to vector<16x8xf32>
    %688 = arith.mulf %686, %687 : vector<16x8xf32>
    %689 = arith.addf %664, %688 : vector<16x8xf32>
    %690 = vector.extract_strided_slice %579 {offsets = [0, 4], sizes = [16, 1], strides = [1, 1]} : vector<16x8xf32> to vector<16x1xf32>
    %691 = vector.extract_strided_slice %586 {offsets = [4, 0], sizes = [1, 16], strides = [1, 1]} : vector<16x16xf32> to vector<1x16xf32>
    %692 = vector.broadcast %690 : vector<16x1xf32> to vector<16x16xf32>
    %693 = vector.broadcast %691 : vector<1x16xf32> to vector<16x16xf32>
    %694 = arith.mulf %692, %693 : vector<16x16xf32>
    %695 = arith.addf %694, %3 : vector<16x16xf32>
    %cst_179 = arith.constant dense<0xFF800000> : vector<16xf32>
    %696 = vector.multi_reduction <maximumf>, %695, %cst_179 [1] : vector<16x16xf32> to vector<16xf32>
    %697 = vector.shape_cast %696 : vector<16xf32> to vector<16x1xf32>
    %698 = vector.broadcast %697 : vector<16x1xf32> to vector<16x16xf32>
    %699 = arith.subf %695, %698 : vector<16x16xf32>
    %700 = math.exp %699 : vector<16x16xf32>
    %cst_180 = arith.constant dense<0.000000e+00> : vector<16xf32>
    %701 = vector.multi_reduction <add>, %700, %cst_180 [1] : vector<16x16xf32> to vector<16xf32>
    %702 = vector.shape_cast %701 : vector<16xf32> to vector<16x1xf32>
    %703 = vector.extract_strided_slice %586 {offsets = [12, 0], sizes = [1, 16], strides = [1, 1]} : vector<16x16xf32> to vector<1x16xf32>
    %704 = vector.broadcast %703 : vector<1x16xf32> to vector<16x16xf32>
    %705 = arith.mulf %700, %704 : vector<16x16xf32>
    %cst_181 = arith.constant dense<0.000000e+00> : vector<16xf32>
    %706 = vector.multi_reduction <add>, %705, %cst_181 [1] : vector<16x16xf32> to vector<16xf32>
    %707 = vector.shape_cast %706 : vector<16xf32> to vector<16x1xf32>
    %708 = tpu.reciprocal %702 {approx = true} : vector<16x1xf32> -> vector<16x1xf32>
    %709 = arith.mulf %707, %708 : vector<16x1xf32>
    %710 = vector.extract_strided_slice %588 {offsets = [4, 0], sizes = [1, 8], strides = [1, 1]} : vector<8x8xf32> to vector<1x8xf32>
    %711 = vector.broadcast %709 : vector<16x1xf32> to vector<16x8xf32>
    %712 = vector.broadcast %710 : vector<1x8xf32> to vector<16x8xf32>
    %713 = arith.mulf %711, %712 : vector<16x8xf32>
    %714 = arith.addf %689, %713 : vector<16x8xf32>
    %715 = vector.extract_strided_slice %579 {offsets = [0, 5], sizes = [16, 1], strides = [1, 1]} : vector<16x8xf32> to vector<16x1xf32>
    %716 = vector.extract_strided_slice %586 {offsets = [5, 0], sizes = [1, 16], strides = [1, 1]} : vector<16x16xf32> to vector<1x16xf32>
    %717 = vector.broadcast %715 : vector<16x1xf32> to vector<16x16xf32>
    %718 = vector.broadcast %716 : vector<1x16xf32> to vector<16x16xf32>
    %719 = arith.mulf %717, %718 : vector<16x16xf32>
    %720 = arith.addf %719, %3 : vector<16x16xf32>
    %cst_182 = arith.constant dense<0xFF800000> : vector<16xf32>
    %721 = vector.multi_reduction <maximumf>, %720, %cst_182 [1] : vector<16x16xf32> to vector<16xf32>
    %722 = vector.shape_cast %721 : vector<16xf32> to vector<16x1xf32>
    %723 = vector.broadcast %722 : vector<16x1xf32> to vector<16x16xf32>
    %724 = arith.subf %720, %723 : vector<16x16xf32>
    %725 = math.exp %724 : vector<16x16xf32>
    %cst_183 = arith.constant dense<0.000000e+00> : vector<16xf32>
    %726 = vector.multi_reduction <add>, %725, %cst_183 [1] : vector<16x16xf32> to vector<16xf32>
    %727 = vector.shape_cast %726 : vector<16xf32> to vector<16x1xf32>
    %728 = vector.extract_strided_slice %586 {offsets = [13, 0], sizes = [1, 16], strides = [1, 1]} : vector<16x16xf32> to vector<1x16xf32>
    %729 = vector.broadcast %728 : vector<1x16xf32> to vector<16x16xf32>
    %730 = arith.mulf %725, %729 : vector<16x16xf32>
    %cst_184 = arith.constant dense<0.000000e+00> : vector<16xf32>
    %731 = vector.multi_reduction <add>, %730, %cst_184 [1] : vector<16x16xf32> to vector<16xf32>
    %732 = vector.shape_cast %731 : vector<16xf32> to vector<16x1xf32>
    %733 = tpu.reciprocal %727 {approx = true} : vector<16x1xf32> -> vector<16x1xf32>
    %734 = arith.mulf %732, %733 : vector<16x1xf32>
    %735 = vector.extract_strided_slice %588 {offsets = [5, 0], sizes = [1, 8], strides = [1, 1]} : vector<8x8xf32> to vector<1x8xf32>
    %736 = vector.broadcast %734 : vector<16x1xf32> to vector<16x8xf32>
    %737 = vector.broadcast %735 : vector<1x8xf32> to vector<16x8xf32>
    %738 = arith.mulf %736, %737 : vector<16x8xf32>
    %739 = arith.addf %714, %738 : vector<16x8xf32>
    %740 = vector.extract_strided_slice %579 {offsets = [0, 6], sizes = [16, 1], strides = [1, 1]} : vector<16x8xf32> to vector<16x1xf32>
    %741 = vector.extract_strided_slice %586 {offsets = [6, 0], sizes = [1, 16], strides = [1, 1]} : vector<16x16xf32> to vector<1x16xf32>
    %742 = vector.broadcast %740 : vector<16x1xf32> to vector<16x16xf32>
    %743 = vector.broadcast %741 : vector<1x16xf32> to vector<16x16xf32>
    %744 = arith.mulf %742, %743 : vector<16x16xf32>
    %745 = arith.addf %744, %3 : vector<16x16xf32>
    %cst_185 = arith.constant dense<0xFF800000> : vector<16xf32>
    %746 = vector.multi_reduction <maximumf>, %745, %cst_185 [1] : vector<16x16xf32> to vector<16xf32>
    %747 = vector.shape_cast %746 : vector<16xf32> to vector<16x1xf32>
    %748 = vector.broadcast %747 : vector<16x1xf32> to vector<16x16xf32>
    %749 = arith.subf %745, %748 : vector<16x16xf32>
    %750 = math.exp %749 : vector<16x16xf32>
    %cst_186 = arith.constant dense<0.000000e+00> : vector<16xf32>
    %751 = vector.multi_reduction <add>, %750, %cst_186 [1] : vector<16x16xf32> to vector<16xf32>
    %752 = vector.shape_cast %751 : vector<16xf32> to vector<16x1xf32>
    %753 = vector.extract_strided_slice %586 {offsets = [14, 0], sizes = [1, 16], strides = [1, 1]} : vector<16x16xf32> to vector<1x16xf32>
    %754 = vector.broadcast %753 : vector<1x16xf32> to vector<16x16xf32>
    %755 = arith.mulf %750, %754 : vector<16x16xf32>
    %cst_187 = arith.constant dense<0.000000e+00> : vector<16xf32>
    %756 = vector.multi_reduction <add>, %755, %cst_187 [1] : vector<16x16xf32> to vector<16xf32>
    %757 = vector.shape_cast %756 : vector<16xf32> to vector<16x1xf32>
    %758 = tpu.reciprocal %752 {approx = true} : vector<16x1xf32> -> vector<16x1xf32>
    %759 = arith.mulf %757, %758 : vector<16x1xf32>
    %760 = vector.extract_strided_slice %588 {offsets = [6, 0], sizes = [1, 8], strides = [1, 1]} : vector<8x8xf32> to vector<1x8xf32>
    %761 = vector.broadcast %759 : vector<16x1xf32> to vector<16x8xf32>
    %762 = vector.broadcast %760 : vector<1x8xf32> to vector<16x8xf32>
    %763 = arith.mulf %761, %762 : vector<16x8xf32>
    %764 = arith.addf %739, %763 : vector<16x8xf32>
    %765 = vector.extract_strided_slice %579 {offsets = [0, 7], sizes = [16, 1], strides = [1, 1]} : vector<16x8xf32> to vector<16x1xf32>
    %766 = vector.extract_strided_slice %586 {offsets = [7, 0], sizes = [1, 16], strides = [1, 1]} : vector<16x16xf32> to vector<1x16xf32>
    %767 = vector.broadcast %765 : vector<16x1xf32> to vector<16x16xf32>
    %768 = vector.broadcast %766 : vector<1x16xf32> to vector<16x16xf32>
    %769 = arith.mulf %767, %768 : vector<16x16xf32>
    %770 = arith.addf %769, %3 : vector<16x16xf32>
    %cst_188 = arith.constant dense<0xFF800000> : vector<16xf32>
    %771 = vector.multi_reduction <maximumf>, %770, %cst_188 [1] : vector<16x16xf32> to vector<16xf32>
    %772 = vector.shape_cast %771 : vector<16xf32> to vector<16x1xf32>
    %773 = vector.broadcast %772 : vector<16x1xf32> to vector<16x16xf32>
    %774 = arith.subf %770, %773 : vector<16x16xf32>
    %775 = math.exp %774 : vector<16x16xf32>
    %cst_189 = arith.constant dense<0.000000e+00> : vector<16xf32>
    %776 = vector.multi_reduction <add>, %775, %cst_189 [1] : vector<16x16xf32> to vector<16xf32>
    %777 = vector.shape_cast %776 : vector<16xf32> to vector<16x1xf32>
    %778 = vector.extract_strided_slice %586 {offsets = [15, 0], sizes = [1, 16], strides = [1, 1]} : vector<16x16xf32> to vector<1x16xf32>
    %779 = vector.broadcast %778 : vector<1x16xf32> to vector<16x16xf32>
    %780 = arith.mulf %775, %779 : vector<16x16xf32>
    %cst_190 = arith.constant dense<0.000000e+00> : vector<16xf32>
    %781 = vector.multi_reduction <add>, %780, %cst_190 [1] : vector<16x16xf32> to vector<16xf32>
    %782 = vector.shape_cast %781 : vector<16xf32> to vector<16x1xf32>
    %783 = tpu.reciprocal %777 {approx = true} : vector<16x1xf32> -> vector<16x1xf32>
    %784 = arith.mulf %782, %783 : vector<16x1xf32>
    %785 = vector.extract_strided_slice %588 {offsets = [7, 0], sizes = [1, 8], strides = [1, 1]} : vector<8x8xf32> to vector<1x8xf32>
    %786 = vector.broadcast %784 : vector<16x1xf32> to vector<16x8xf32>
    %787 = vector.broadcast %785 : vector<1x8xf32> to vector<16x8xf32>
    %788 = arith.mulf %786, %787 : vector<16x8xf32>
    %789 = arith.addf %764, %788 : vector<16x8xf32>
    %790 = arith.addf %573, %789 : vector<16x8xf32>
    %c2_191 = arith.constant 2 : index
    %c0_192 = arith.constant 0 : index
    %791 = vector.load %arg9[%c2_191, %c0_192] : memref<3x8xf32, #tpu.memory_space<vmem>>, vector<1x8xf32>
    %792 = vector.broadcast %791 : vector<1x8xf32> to vector<16x8xf32>
    %793 = arith.addf %790, %792 : vector<16x8xf32>
    %c2_193 = arith.constant 2 : index
    %c0_194 = arith.constant 0 : index
    %794 = vector.load %arg10[%c2_193, %c0_194] : memref<3x8xf32, #tpu.memory_space<vmem>>, vector<1x8xf32>
    %c2_195 = arith.constant 2 : index
    %c0_196 = arith.constant 0 : index
    %795 = vector.load %arg11[%c2_195, %c0_196] : memref<3x8xf32, #tpu.memory_space<vmem>>, vector<1x8xf32>
    %cst_197 = arith.constant dense<0.000000e+00> : vector<16xf32>
    %796 = vector.multi_reduction <add>, %793, %cst_197 [1] : vector<16x8xf32> to vector<16xf32>
    %797 = vector.shape_cast %796 : vector<16xf32> to vector<16x1xf32>
    %cst_198 = arith.constant 8.000000e+00 : f32
    %798 = vector.broadcast %cst_198 : f32 to vector<16x1xf32>
    %799 = arith.divf %797, %798 : vector<16x1xf32>
    %800 = vector.broadcast %799 : vector<16x1xf32> to vector<16x8xf32>
    %801 = arith.subf %793, %800 : vector<16x8xf32>
    %802 = arith.mulf %801, %801 : vector<16x8xf32>
    %cst_199 = arith.constant dense<0.000000e+00> : vector<16xf32>
    %803 = vector.multi_reduction <add>, %802, %cst_199 [1] : vector<16x8xf32> to vector<16xf32>
    %804 = vector.shape_cast %803 : vector<16xf32> to vector<16x1xf32>
    %cst_200 = arith.constant 8.000000e+00 : f32
    %805 = vector.broadcast %cst_200 : f32 to vector<16x1xf32>
    %806 = arith.divf %804, %805 : vector<16x1xf32>
    %807 = vector.broadcast %799 : vector<16x1xf32> to vector<16x8xf32>
    %808 = arith.subf %793, %807 : vector<16x8xf32>
    %cst_201 = arith.constant 9.99999974E-6 : f32
    %809 = vector.broadcast %cst_201 : f32 to vector<16x1xf32>
    %810 = arith.addf %806, %809 : vector<16x1xf32>
    %811 = math.rsqrt %810 : vector<16x1xf32>
    %812 = vector.broadcast %811 : vector<16x1xf32> to vector<16x8xf32>
    %813 = arith.mulf %808, %812 : vector<16x8xf32>
    %814 = vector.broadcast %794 : vector<1x8xf32> to vector<16x8xf32>
    %815 = arith.mulf %813, %814 : vector<16x8xf32>
    %816 = vector.broadcast %795 : vector<1x8xf32> to vector<16x8xf32>
    %817 = arith.addf %815, %816 : vector<16x8xf32>
    %818 = arith.truncf %817 : vector<16x8xf32> to vector<16x8xbf16>
    %c2_202 = arith.constant 2 : index
    %c0_203 = arith.constant 0 : index
    %c0_204 = arith.constant 0 : index
    %819 = vector.load %arg12[%c2_202, %c0_203, %c0_204] : memref<3x8x2048xbf16, #tpu.memory_space<vmem>>, vector<1x8x2048xbf16>
    %820 = vector.shape_cast %819 : vector<1x8x2048xbf16> to vector<8x2048xbf16>
    %cst_205 = arith.constant dense<0.000000e+00> : vector<16x2048xf32>
    %821 = tpu.matmul %818, %820, %cst_205 {dimension_numbers = #tpu.dot_dimension_numbers<[1], [0], [0], [1], [0, 0, 1, 1], [], []>} : vector<16x8xbf16>, vector<8x2048xbf16>, vector<16x2048xf32> -> vector<16x2048xf32>
    %c2_206 = arith.constant 2 : index
    %c0_207 = arith.constant 0 : index
    %822 = vector.load %arg13[%c2_206, %c0_207] : memref<3x2048xf32, #tpu.memory_space<vmem>>, vector<1x2048xf32>
    %823 = vector.broadcast %822 : vector<1x2048xf32> to vector<16x2048xf32>
    %824 = arith.addf %821, %823 : vector<16x2048xf32>
    %cst_208 = arith.constant 0.000000e+00 : f32
    %825 = vector.broadcast %cst_208 : f32 to vector<16x2048xf32>
    %826 = arith.maximumf %824, %825 : vector<16x2048xf32>
    %827 = arith.truncf %826 : vector<16x2048xf32> to vector<16x2048xbf16>
    %c2_209 = arith.constant 2 : index
    %c0_210 = arith.constant 0 : index
    %c0_211 = arith.constant 0 : index
    %828 = vector.load %arg14[%c2_209, %c0_210, %c0_211] : memref<3x2048x8xbf16, #tpu.memory_space<vmem>>, vector<1x2048x8xbf16>
    %829 = vector.shape_cast %828 : vector<1x2048x8xbf16> to vector<2048x8xbf16>
    %cst_212 = arith.constant dense<0.000000e+00> : vector<16x8xf32>
    %830 = tpu.matmul %827, %829, %cst_212 {dimension_numbers = #tpu.dot_dimension_numbers<[1], [0], [0], [1], [0, 0, 1, 1], [], []>} : vector<16x2048xbf16>, vector<2048x8xbf16>, vector<16x8xf32> -> vector<16x8xf32>
    %c2_213 = arith.constant 2 : index
    %c0_214 = arith.constant 0 : index
    %831 = vector.load %arg15[%c2_213, %c0_214] : memref<3x8xf32, #tpu.memory_space<vmem>>, vector<1x8xf32>
    %832 = vector.broadcast %831 : vector<1x8xf32> to vector<16x8xf32>
    %833 = arith.addf %830, %832 : vector<16x8xf32>
    %834 = arith.addf %817, %833 : vector<16x8xf32>
    %c2_215 = arith.constant 2 : index
    %c0_216 = arith.constant 0 : index
    %835 = vector.load %arg16[%c2_215, %c0_216] : memref<3x8xf32, #tpu.memory_space<vmem>>, vector<1x8xf32>
    %c2_217 = arith.constant 2 : index
    %c0_218 = arith.constant 0 : index
    %836 = vector.load %arg17[%c2_217, %c0_218] : memref<3x8xf32, #tpu.memory_space<vmem>>, vector<1x8xf32>
    %cst_219 = arith.constant dense<0.000000e+00> : vector<16xf32>
    %837 = vector.multi_reduction <add>, %834, %cst_219 [1] : vector<16x8xf32> to vector<16xf32>
    %838 = vector.shape_cast %837 : vector<16xf32> to vector<16x1xf32>
    %cst_220 = arith.constant 8.000000e+00 : f32
    %839 = vector.broadcast %cst_220 : f32 to vector<16x1xf32>
    %840 = arith.divf %838, %839 : vector<16x1xf32>
    %841 = vector.broadcast %840 : vector<16x1xf32> to vector<16x8xf32>
    %842 = arith.subf %834, %841 : vector<16x8xf32>
    %843 = arith.mulf %842, %842 : vector<16x8xf32>
    %cst_221 = arith.constant dense<0.000000e+00> : vector<16xf32>
    %844 = vector.multi_reduction <add>, %843, %cst_221 [1] : vector<16x8xf32> to vector<16xf32>
    %845 = vector.shape_cast %844 : vector<16xf32> to vector<16x1xf32>
    %cst_222 = arith.constant 8.000000e+00 : f32
    %846 = vector.broadcast %cst_222 : f32 to vector<16x1xf32>
    %847 = arith.divf %845, %846 : vector<16x1xf32>
    %848 = vector.broadcast %840 : vector<16x1xf32> to vector<16x8xf32>
    %849 = arith.subf %834, %848 : vector<16x8xf32>
    %cst_223 = arith.constant 9.99999974E-6 : f32
    %850 = vector.broadcast %cst_223 : f32 to vector<16x1xf32>
    %851 = arith.addf %847, %850 : vector<16x1xf32>
    %852 = math.rsqrt %851 : vector<16x1xf32>
    %853 = vector.broadcast %852 : vector<16x1xf32> to vector<16x8xf32>
    %854 = arith.mulf %849, %853 : vector<16x8xf32>
    %855 = vector.broadcast %835 : vector<1x8xf32> to vector<16x8xf32>
    %856 = arith.mulf %854, %855 : vector<16x8xf32>
    %857 = vector.broadcast %836 : vector<1x8xf32> to vector<16x8xf32>
    %858 = arith.addf %856, %857 : vector<16x8xf32>
    %c0_224 = arith.constant 0 : index
    %c0_225 = arith.constant 0 : index
    %859 = vector.load %arg18[%c0_224, %c0_225] : memref<8x128xf32, #tpu.memory_space<vmem>>, vector<8x128xf32>
    %cst_226 = arith.constant dense<0.000000e+00> : vector<16x128xf32>
    %860 = tpu.matmul %858, %859, %cst_226 {dimension_numbers = #tpu.dot_dimension_numbers<[1], [0], [0], [1], [0, 0, 1, 1], [], []>} : vector<16x8xf32>, vector<8x128xf32>, vector<16x128xf32> -> vector<16x128xf32>
    %c0_227 = arith.constant 0 : index
    %c0_228 = arith.constant 0 : index
    %861 = vector.load %arg19[%c0_227, %c0_228] : memref<1x128xf32, #tpu.memory_space<vmem>>, vector<1x128xf32>
    %862 = vector.broadcast %861 : vector<1x128xf32> to vector<16x128xf32>
    %863 = arith.addf %860, %862 : vector<16x128xf32>
    %c0_229 = arith.constant 0 : index
    %c0_230 = arith.constant 0 : index
    %864 = vector.load %arg20[%c0_229, %c0_230] : memref<16x128xf32, #tpu.memory_space<vmem>>, vector<16x128xf32>
    tpu.vector_store %arg20[%c0_229, %c0_230], %863 {strides = array<i32>} : memref<16x128xf32, #tpu.memory_space<vmem>>, vector<16x128xf32>,
    return
  }
  func.func @transform_0(%arg0: i32) -> (i32, i32) {
    %c0_i32 = arith.constant 0 : i32
    %c0_i32_0 = arith.constant 0 : i32
    %c0_i32_1 = arith.constant 0 : i32
    return %c0_i32, %c0_i32_0 : i32, i32
  }
  func.func @transform_1(%arg0: i32) -> (i32, i32) {
    %c0_i32 = arith.constant 0 : i32
    %c0_i32_0 = arith.constant 0 : i32
    %c0_i32_1 = arith.constant 0 : i32
    return %c0_i32, %c0_i32_0 : i32, i32
  }
  func.func @transform_2(%arg0: i32) -> (i32, i32) {
    %c0_i32 = arith.constant 0 : i32
    %c0_i32_0 = arith.constant 0 : i32
    %c0_i32_1 = arith.constant 0 : i32
    return %c0_i32, %c0_i32_0 : i32, i32
  }
  func.func @transform_3(%arg0: i32) -> (i32, i32, i32) {
    %c0_i32 = arith.constant 0 : i32
    %c0_i32_0 = arith.constant 0 : i32
    %c0_i32_1 = arith.constant 0 : i32
    %c0_i32_2 = arith.constant 0 : i32
    return %c0_i32, %c0_i32_0, %c0_i32_1 : i32, i32, i32
  }
  func.func @transform_4(%arg0: i32) -> (i32, i32) {
    %c0_i32 = arith.constant 0 : i32
    %c0_i32_0 = arith.constant 0 : i32
    %c0_i32_1 = arith.constant 0 : i32
    return %c0_i32, %c0_i32_0 : i32, i32
  }
  func.func @transform_5(%arg0: i32) -> (i32, i32, i32) {
    %c0_i32 = arith.constant 0 : i32
    %c0_i32_0 = arith.constant 0 : i32
    %c0_i32_1 = arith.constant 0 : i32
    %c0_i32_2 = arith.constant 0 : i32
    return %c0_i32, %c0_i32_0, %c0_i32_1 : i32, i32, i32
  }
  func.func @transform_6(%arg0: i32) -> (i32, i32, i32) {
    %c0_i32 = arith.constant 0 : i32
    %c0_i32_0 = arith.constant 0 : i32
    %c0_i32_1 = arith.constant 0 : i32
    %c0_i32_2 = arith.constant 0 : i32
    return %c0_i32, %c0_i32_0, %c0_i32_1 : i32, i32, i32
  }
  func.func @transform_7(%arg0: i32) -> (i32, i32, i32) {
    %c0_i32 = arith.constant 0 : i32
    %c0_i32_0 = arith.constant 0 : i32
    %c0_i32_1 = arith.constant 0 : i32
    %c0_i32_2 = arith.constant 0 : i32
    return %c0_i32, %c0_i32_0, %c0_i32_1 : i32, i32, i32
  }
  func.func @transform_8(%arg0: i32) -> (i32, i32) {
    %c0_i32 = arith.constant 0 : i32
    %c0_i32_0 = arith.constant 0 : i32
    %c0_i32_1 = arith.constant 0 : i32
    return %c0_i32, %c0_i32_0 : i32, i32
  }
  func.func @transform_9(%arg0: i32) -> (i32, i32) {
    %c0_i32 = arith.constant 0 : i32
    %c0_i32_0 = arith.constant 0 : i32
    %c0_i32_1 = arith.constant 0 : i32
    return %c0_i32, %c0_i32_0 : i32, i32
  }
  func.func @transform_10(%arg0: i32) -> (i32, i32) {
    %c0_i32 = arith.constant 0 : i32
    %c0_i32_0 = arith.constant 0 : i32
    %c0_i32_1 = arith.constant 0 : i32
    return %c0_i32, %c0_i32_0 : i32, i32
  }
  func.func @transform_11(%arg0: i32) -> (i32, i32, i32) {
    %c0_i32 = arith.constant 0 : i32
    %c0_i32_0 = arith.constant 0 : i32
    %c0_i32_1 = arith.constant 0 : i32
    %c0_i32_2 = arith.constant 0 : i32
    return %c0_i32, %c0_i32_0, %c0_i32_1 : i32, i32, i32
  }
  func.func @transform_12(%arg0: i32) -> (i32, i32) {
    %c0_i32 = arith.constant 0 : i32
    %c0_i32_0 = arith.constant 0 : i32
    %c0_i32_1 = arith.constant 0 : i32
    return %c0_i32, %c0_i32_0 : i32, i32
  }
  func.func @transform_13(%arg0: i32) -> (i32, i32, i32) {
    %c0_i32 = arith.constant 0 : i32
    %c0_i32_0 = arith.constant 0 : i32
    %c0_i32_1 = arith.constant 0 : i32
    %c0_i32_2 = arith.constant 0 : i32
    return %c0_i32, %c0_i32_0, %c0_i32_1 : i32, i32, i32
  }
  func.func @transform_14(%arg0: i32) -> (i32, i32) {
    %c0_i32 = arith.constant 0 : i32
    %c0_i32_0 = arith.constant 0 : i32
    %c0_i32_1 = arith.constant 0 : i32
    return %c0_i32, %c0_i32_0 : i32, i32
  }
  func.func @transform_15(%arg0: i32) -> (i32, i32) {
    %c0_i32 = arith.constant 0 : i32
    %c0_i32_0 = arith.constant 0 : i32
    %c0_i32_1 = arith.constant 0 : i32
    return %c0_i32, %c0_i32_0 : i32, i32
  }
  func.func @transform_16(%arg0: i32) -> (i32, i32) {
    %c0_i32 = arith.constant 0 : i32
    %c0_i32_0 = arith.constant 0 : i32
    %c0_i32_1 = arith.constant 0 : i32
    return %c0_i32, %c0_i32_0 : i32, i32
  }
  func.func @transform_17(%arg0: i32) -> (i32, i32) {
    %c0_i32 = arith.constant 0 : i32
    %c0_i32_0 = arith.constant 0 : i32
    %c0_i32_1 = arith.constant 0 : i32
    return %c0_i32, %c0_i32_0 : i32, i32
  }
  func.func @transform_18(%arg0: i32) -> (i32, i32) {
    %c0_i32 = arith.constant 0 : i32
    %c0_i32_0 = arith.constant 0 : i32
    %c0_i32_1 = arith.constant 0 : i32
    return %c0_i32, %c0_i32_0 : i32, i32
  }
  func.func @transform_19(%arg0: i32) -> (i32, i32) {
    %c0_i32 = arith.constant 0 : i32
    %c0_i32_0 = arith.constant 0 : i32
    %c0_i32_1 = arith.constant 0 : i32
    return %c0_i32, %c0_i32_0 : i32, i32
  }
}

</mosaic_0001>

<llo_original>
// kernel: tpu_custom_call.1
$region0: #{tpu_custom_call.1}
  #allocation0 [shape = 'u32[]', space=smem, size = 0x4, offset = 0x4, fixed_abs, tag = 'smem constant byte address 0x4 - core index']
  #allocation1 [shape = 'u32[144,128]{1,0:T(1,128)}', space=vmem, size = 0x12000, scoped, tag = 'internal scratch']
  %s0 = inlined_call_operand.vmem [shape: f32[16,8], index: 0, kind: input, shape index: {}]
  %s1 = inlined_call_operand.vmem [shape: f32[16,8], index: 1, kind: input, shape index: {}]
  %s2 = inlined_call_operand.vmem [shape: f32[16,16], index: 2, kind: input, shape index: {}]
  %s3 = inlined_call_operand.vmem [shape: f32[3,8,8], index: 3, kind: input, shape index: {}]
  %s4 = inlined_call_operand.vmem [shape: f32[3,8], index: 4, kind: input, shape index: {}]
  %s5 = inlined_call_operand.vmem [shape: f32[3,16,8], index: 5, kind: input, shape index: {}]
  %s6 = inlined_call_operand.vmem [shape: f32[3,16,1], index: 6, kind: input, shape index: {}]
  %s7 = inlined_call_operand.vmem [shape: f32[3,8,8], index: 7, kind: input, shape index: {}]
  %s8 = inlined_call_operand.vmem [shape: f32[3,8], index: 8, kind: input, shape index: {}]
  %s9 = inlined_call_operand.vmem [shape: f32[3,8], index: 9, kind: input, shape index: {}]
  %s10 = inlined_call_operand.vmem [shape: f32[3,8], index: 10, kind: input, shape index: {}]
  %s11 = inlined_call_operand.vmem [shape: bf16[3,8,2048], index: 11, kind: input, shape index: {}]
  %s12 = inlined_call_operand.vmem [shape: f32[3,2048], index: 12, kind: input, shape index: {}]
  %s13 = inlined_call_operand.vmem [shape: bf16[3,2048,8], index: 13, kind: input, shape index: {}]
  %s14 = inlined_call_operand.vmem [shape: f32[3,8], index: 14, kind: input, shape index: {}]
  %s15 = inlined_call_operand.vmem [shape: f32[3,8], index: 15, kind: input, shape index: {}]
  %s16 = inlined_call_operand.vmem [shape: f32[3,8], index: 16, kind: input, shape index: {}]
  %s17 = inlined_call_operand.vmem [shape: f32[8,128], index: 17, kind: input, shape index: {}]
  %s18 = inlined_call_operand.vmem [shape: f32[1,128], index: 18, kind: input, shape index: {}]
  %s19 = inlined_call_operand.hbm [shape: f32[16,128], index: 19, kind: output, shape index: {}]
  %s20 = sld [smem:[#allocation0]]
  $region86: #{tpu_custom_call.1} parent=0
    _
  %s22 = ssub.s32 1, %s20
  %s23 = scalar_select 0, %s22, %s20
  $region1: #{tpu_custom_call.1} parent=0
    #allocation2 [shape = 'u8[8192]{0}', space=vmem, size = 0x2000, scoped, tag = 'output window, operand 0, single buffered']
    #allocation3 [shape = 's32[1]{0}', space=sflag, size = 0x4, scoped, tag = 'scoped memory for tpu_custom_call.1']
    %24 = vsyncpa [#allocation3], 0
    // Predicated region
    $region2: #{tpu_custom_call.1} parent=1 // pred_check
      _
    $region3: #{tpu_custom_call.1} parent=1 // pred_check_branch
      %26 = sbr.rel (0) target = $region5
    $region4: #{tpu_custom_call.1} parent=1 // pred_region
      _
    $region5: #{tpu_custom_call.1} parent=1 // pred_fallthru
      _
    // Predicated region
    $region6: #{tpu_custom_call.1} parent=1 // pred_check
      _
    $region7: #{tpu_custom_call.1} parent=1 // pred_check_branch
      %28 = sbr.rel (0) target = $region9
    $region8: #{tpu_custom_call.1} parent=1 // pred_region
      _
    $region9: #{tpu_custom_call.1} parent=1 // pred_fallthru
      _
    // Predicated region
    $region10: #{tpu_custom_call.1} parent=1 // pred_check
      _
    $region11: #{tpu_custom_call.1} parent=1 // pred_check_branch
      %30 = sbr.rel (0) target = $region13
    $region12: #{tpu_custom_call.1} parent=1 // pred_region
      _
    $region13: #{tpu_custom_call.1} parent=1 // pred_fallthru
      _
    // Predicated region
    $region14: #{tpu_custom_call.1} parent=1 // pred_check
      _
    $region15: #{tpu_custom_call.1} parent=1 // pred_check_branch
      %32 = sbr.rel (0) target = $region17
    $region16: #{tpu_custom_call.1} parent=1 // pred_region
      _
    $region17: #{tpu_custom_call.1} parent=1 // pred_fallthru
      _
    // Predicated region
    $region18: #{tpu_custom_call.1} parent=1 // pred_check
      _
    $region19: #{tpu_custom_call.1} parent=1 // pred_check_branch
      %34 = sbr.rel (0) target = $region21
    $region20: #{tpu_custom_call.1} parent=1 // pred_region
      _
    $region21: #{tpu_custom_call.1} parent=1 // pred_fallthru
      _
    // Predicated region
    $region22: #{tpu_custom_call.1} parent=1 // pred_check
      _
    $region23: #{tpu_custom_call.1} parent=1 // pred_check_branch
      %36 = sbr.rel (0) target = $region25
    $region24: #{tpu_custom_call.1} parent=1 // pred_region
      _
    $region25: #{tpu_custom_call.1} parent=1 // pred_fallthru
      _
    // Predicated region
    $region26: #{tpu_custom_call.1} parent=1 // pred_check
      _
    $region27: #{tpu_custom_call.1} parent=1 // pred_check_branch
      %38 = sbr.rel (0) target = $region29
    $region28: #{tpu_custom_call.1} parent=1 // pred_region
      _
    $region29: #{tpu_custom_call.1} parent=1 // pred_fallthru
      _
    // Predicated region
    $region30: #{tpu_custom_call.1} parent=1 // pred_check
      _
    $region31: #{tpu_custom_call.1} parent=1 // pred_check_branch
      %40 = sbr.rel (0) target = $region33
    $region32: #{tpu_custom_call.1} parent=1 // pred_region
      _
    $region33: #{tpu_custom_call.1} parent=1 // pred_fallthru
      _
    // Predicated region
    $region34: #{tpu_custom_call.1} parent=1 // pred_check
      _
    $region35: #{tpu_custom_call.1} parent=1 // pred_check_branch
      %42 = sbr.rel (0) target = $region37
    $region36: #{tpu_custom_call.1} parent=1 // pred_region
      _
    $region37: #{tpu_custom_call.1} parent=1 // pred_fallthru
      _
    // Predicated region
    $region38: #{tpu_custom_call.1} parent=1 // pred_check
      _
    $region39: #{tpu_custom_call.1} parent=1 // pred_check_branch
      %44 = sbr.rel (0) target = $region41
    $region40: #{tpu_custom_call.1} parent=1 // pred_region
      _
    $region41: #{tpu_custom_call.1} parent=1 // pred_fallthru
      _
    // Predicated region
    $region42: #{tpu_custom_call.1} parent=1 // pred_check
      _
    $region43: #{tpu_custom_call.1} parent=1 // pred_check_branch
      %46 = sbr.rel (0) target = $region45
    $region44: #{tpu_custom_call.1} parent=1 // pred_region
      _
    $region45: #{tpu_custom_call.1} parent=1 // pred_fallthru
      _
    // Predicated region
    $region46: #{tpu_custom_call.1} parent=1 // pred_check
      _
    $region47: #{tpu_custom_call.1} parent=1 // pred_check_branch
      %48 = sbr.rel (0) target = $region49
    $region48: #{tpu_custom_call.1} parent=1 // pred_region
      _
    $region49: #{tpu_custom_call.1} parent=1 // pred_fallthru
      _
    // Predicated region
    $region50: #{tpu_custom_call.1} parent=1 // pred_check
      _
    $region51: #{tpu_custom_call.1} parent=1 // pred_check_branch
      %50 = sbr.rel (0) target = $region53
    $region52: #{tpu_custom_call.1} parent=1 // pred_region
      _
    $region53: #{tpu_custom_call.1} parent=1 // pred_fallthru
      _
    // Predicated region
    $region54: #{tpu_custom_call.1} parent=1 // pred_check
      _
    $region55: #{tpu_custom_call.1} parent=1 // pred_check_branch
      %52 = sbr.rel (0) target = $region57
    $region56: #{tpu_custom_call.1} parent=1 // pred_region
      _
    $region57: #{tpu_custom_call.1} parent=1 // pred_fallthru
      _
    // Predicated region
    $region58: #{tpu_custom_call.1} parent=1 // pred_check
      _
    $region59: #{tpu_custom_call.1} parent=1 // pred_check_branch
      %54 = sbr.rel (0) target = $region61
    $region60: #{tpu_custom_call.1} parent=1 // pred_region
      _
    $region61: #{tpu_custom_call.1} parent=1 // pred_fallthru
      _
    // Predicated region
    $region62: #{tpu_custom_call.1} parent=1 // pred_check
      _
    $region63: #{tpu_custom_call.1} parent=1 // pred_check_branch
      %56 = sbr.rel (0) target = $region65
    $region64: #{tpu_custom_call.1} parent=1 // pred_region
      _
    $region65: #{tpu_custom_call.1} parent=1 // pred_fallthru
      _
    // Predicated region
    $region66: #{tpu_custom_call.1} parent=1 // pred_check
      _
    $region67: #{tpu_custom_call.1} parent=1 // pred_check_branch
      %58 = sbr.rel (0) target = $region69
    $region68: #{tpu_custom_call.1} parent=1 // pred_region
      _
    $region69: #{tpu_custom_call.1} parent=1 // pred_fallthru
      _
    // Predicated region
    $region70: #{tpu_custom_call.1} parent=1 // pred_check
      _
    $region71: #{tpu_custom_call.1} parent=1 // pred_check_branch
      %60 = sbr.rel (0) target = $region73
    $region72: #{tpu_custom_call.1} parent=1 // pred_region
      _
    $region73: #{tpu_custom_call.1} parent=1 // pred_fallthru
      _
    // Predicated region
    $region74: #{tpu_custom_call.1} parent=1 // pred_check
      _
    $region75: #{tpu_custom_call.1} parent=1 // pred_check_branch
      %62 = sbr.rel (0) target = $region77
    $region76: #{tpu_custom_call.1} parent=1 // pred_region
      _
    $region77: #{tpu_custom_call.1} parent=1 // pred_fallthru
      _
    %v64 = vld [vmem:[%s0] sm:$0xff]
    %v65 = vld [vmem:[%s0 + $0x8] sm:$0xff]
    %v66 = vld [vmem:[%s1] sm:$0xff]
    %v67 = vld [vmem:[%s1 + $0x8] sm:$0xff]
    %v68 = vadd.f32 %v64, %v66
    %v69 = vadd.f32 %v65, %v67
    %v70 = vld [vmem:[%s2] sm:$0xff]
    %v71 = vld [vmem:[%s2 + $0x8] sm:$0xff]
    %v72 = vld [vmem:[%s3] sm:$0xff]
    %v73 = vld [vmem:[%s4] sm:$0x1]
    %v74 = vlaneseq
    %v75 = vshrl.u32 %v74, 7
    %v76 = vsub.s32 0, %v75
    %v77 = vrot.slane %v73, %v76
    %vm78 = vcmask 64512
    %v80 = vsel %vm78, %v68, 0
    %v83 = vsel %vm78, %v69, 0
    %85 = vmatprep.subr.mxu0 0.0
    %86 = vmatpush1.msra.mxu0 %v72
    %87 = vmatprep.subr.mxu0 0.0
    %88 = vmatpush1.msra.mxu0 0.0
    %89 = vmatprep.subr.mxu0 0.0
    %90 = vmatpush1.msra.mxu0 0.0
    %91 = vmatprep.subr.mxu0 0.0
    %92 = vmatpush1.msra.mxu0 0.0
    %93 = vmatprep.subr.mxu0 0.0
    %94 = vmatpush1.msra.mxu0 0.0
    %95 = vmatprep.subr.mxu0 0.0
    %96 = vmatpush1.msra.mxu0 0.0
    %97 = vmatprep.subr.mxu0 0.0
    %98 = vmatpush1.msra.mxu0 0.0
    %99 = vmatprep.subr.mxu0 0.0
    %100 = vmatpush1.msra.mxu0 0.0
    %101 = vmatprep.subr.mxu0 0.0
    %102 = vmatpush1.msra.mxu0 0.0
    %103 = vmatprep.subr.mxu0 0.0
    %104 = vmatpush1.msra.mxu0 0.0
    %105 = vmatprep.subr.mxu0 0.0
    %106 = vmatpush1.msra.mxu0 0.0
    %107 = vmatprep.subr.mxu0 0.0
    %108 = vmatpush1.msra.mxu0 0.0
    %109 = vmatprep.subr.mxu0 0.0
    %110 = vmatpush1.msra.mxu0 0.0
    %111 = vmatprep.subr.mxu0 0.0
    %112 = vmatpush1.msra.mxu0 0.0
    %113 = vmatprep.subr.mxu0 0.0
    %114 = vmatpush1.msra.mxu0 0.0
    %115 = vmatprep.subr.mxu0 0.0
    %116 = vmatpush1.msra.mxu0 0.0
    %117 = vmatprep.subr.mxu0 0.0
    %118 = vmatpush1.msra.mxu0 0.0
    %119 = vmatprep.subr.mxu0 0.0
    %120 = vmatpush1.msra.mxu0 0.0
    %121 = vmatprep.subr.mxu0 0.0
    %122 = vmatpush1.msra.mxu0 0.0
    %123 = vmatprep.subr.mxu0 0.0
    %124 = vmatpush1.msra.mxu0 0.0
    %125 = vmatprep.subr.mxu0 0.0
    %126 = vmatpush1.msra.mxu0 0.0
    %127 = vmatprep.subr.mxu0 0.0
    %128 = vmatpush1.msra.mxu0 0.0
    %129 = vmatprep.subr.mxu0 0.0
    %130 = vmatpush1.msra.mxu0 0.0
    %131 = vmatprep.subr.mxu0 0.0
    %132 = vmatpush1.msra.mxu0 0.0
    %133 = vmatprep.subr.mxu0 0.0
    %134 = vmatpush1.msra.mxu0 0.0
    %135 = vmatprep.subr.mxu0 0.0
    %136 = vmatpush1.msra.mxu0 0.0
    %137 = vmatprep.subr.mxu0 0.0
    %138 = vmatpush1.msra.mxu0 0.0
    %139 = vmatprep.subr.mxu0 0.0
    %140 = vmatpush1.msra.mxu0 0.0
    %141 = vmatprep.subr.mxu0 0.0
    %142 = vmatpush1.msra.mxu0 0.0
    %143 = vmatprep.subr.mxu0 0.0
    %144 = vmatpush1.msra.mxu0 0.0
    %145 = vmatprep.subr.mxu0 0.0
    %146 = vmatpush1.msra.mxu0 0.0
    %147 = vmatprep.subr.mxu0 0.0
    %148 = vmatpush1.msra.mxu0 0.0
    %149 = vmatprep.mubr.f32.mxu0 0.0
    %150 = vmatmul.mubr.f32.gmra.mrb[0].mxu0 %v80
    %v151 = vpop.f32.mrb[0].mxu0
    %v152 = vadd.f32 %v77, %v151
    %v153 = vpop.f32.mrb[0].mxu0
    %154 = vmatprep.mubr.f32.mxu0 0.0
    %155 = vmatmul.mubr.f32.gmra.mrb[0].mxu0 %v83
    %v156 = vpop.f32.mrb[0].mxu0
    %v157 = vadd.f32 %v77, %v156
    %v158 = vpop.f32.mrb[0].mxu0
    %159 = vdwg.mxu0
    %v160 = vld [vmem:[%s5] sm:$0xff]
    %v161 = vld [vmem:[%s5 + $0x8] sm:$0xff]
    %v162 = vld [vmem:[%s6] sm:$0xff]
    %v163 = vld [vmem:[%s6 + $0x8] sm:$0xff]
    %165 = vset.pattern.permute.xlu0 0
    %166 = vperm.xlu0 %165, %v162
    %v167 = vpop.permute.xlu0 %166
    %170 = vset.pattern.permute.xlu0 0
    %171 = vperm.xlu0 %170, %v163
    %v172 = vpop.permute.xlu0 %171
    %v175 = vsel %vm78, %v160, 0
    %v178 = vsel %vm78, %v161, 0
    %180 = vmatprep.subr.mxu0 0.0
    %181 = vmatpush1.xpose.msra.mxu0 %v80
    %182 = vmatprep.subr.mxu0 0.0
    %183 = vmatpush1.xpose.msra.mxu0 %v83
    %184 = vmatprep.subr.mxu0 0.0
    %185 = vmatpush1.xpose.msra.mxu0 0.0
    %186 = vmatprep.subr.mxu0 0.0
    %187 = vmatpush1.xpose.msra.mxu0 0.0
    %188 = vmatprep.subr.mxu0 0.0
    %189 = vmatpush1.xpose.msra.mxu0 0.0
    %190 = vmatprep.subr.mxu0 0.0
    %191 = vmatpush1.xpose.msra.mxu0 0.0
    %192 = vmatprep.subr.mxu0 0.0
    %193 = vmatpush1.xpose.msra.mxu0 0.0
    %194 = vmatprep.subr.mxu0 0.0
    %195 = vmatpush1.xpose.msra.mxu0 0.0
    %196 = vmatprep.subr.mxu0 0.0
    %197 = vmatpush1.xpose.msra.mxu0 0.0
    %198 = vmatprep.subr.mxu0 0.0
    %199 = vmatpush1.xpose.msra.mxu0 0.0
    %200 = vmatprep.subr.mxu0 0.0
    %201 = vmatpush1.xpose.msra.mxu0 0.0
    %202 = vmatprep.subr.mxu0 0.0
    %203 = vmatpush1.xpose.msra.mxu0 0.0
    %204 = vmatprep.subr.mxu0 0.0
    %205 = vmatpush1.xpose.msra.mxu0 0.0
    %206 = vmatprep.subr.mxu0 0.0
    %207 = vmatpush1.xpose.msra.mxu0 0.0
    %208 = vmatprep.subr.mxu0 0.0
    %209 = vmatpush1.xpose.msra.mxu0 0.0
    %210 = vmatprep.subr.mxu0 0.0
    %211 = vmatpush1.xpose.msra.mxu0 0.0
    %212 = vmatprep.subr.mxu0 0.0
    %213 = vmatpush1.xpose.msra.mxu0 0.0
    %214 = vmatprep.subr.mxu0 0.0
    %215 = vmatpush1.xpose.msra.mxu0 0.0
    %216 = vmatprep.subr.mxu0 0.0
    %217 = vmatpush1.xpose.msra.mxu0 0.0
    %218 = vmatprep.subr.mxu0 0.0
    %219 = vmatpush1.xpose.msra.mxu0 0.0
    %220 = vmatprep.subr.mxu0 0.0
    %221 = vmatpush1.xpose.msra.mxu0 0.0
    %222 = vmatprep.subr.mxu0 0.0
    %223 = vmatpush1.xpose.msra.mxu0 0.0
    %224 = vmatprep.subr.mxu0 0.0
    %225 = vmatpush1.xpose.msra.mxu0 0.0
    %226 = vmatprep.subr.mxu0 0.0
    %227 = vmatpush1.xpose.msra.mxu0 0.0
    %228 = vmatprep.subr.mxu0 0.0
    %229 = vmatpush1.xpose.msra.mxu0 0.0
    %230 = vmatprep.subr.mxu0 0.0
    %231 = vmatpush1.xpose.msra.mxu0 0.0
    %232 = vmatprep.subr.mxu0 0.0
    %233 = vmatpush1.xpose.msra.mxu0 0.0
    %234 = vmatprep.subr.mxu0 0.0
    %235 = vmatpush1.xpose.msra.mxu0 0.0
    %236 = vmatprep.subr.mxu0 0.0
    %237 = vmatpush1.xpose.msra.mxu0 0.0
    %238 = vmatprep.subr.mxu0 0.0
    %239 = vmatpush1.xpose.msra.mxu0 0.0
    %240 = vmatprep.subr.mxu0 0.0
    %241 = vmatpush1.xpose.msra.mxu0 0.0
    %242 = vmatprep.subr.mxu0 0.0
    %243 = vmatpush1.xpose.msra.mxu0 0.0
    %244 = vmatprep.mubr.f32.mxu0 0.0
    %245 = vmatmul.mubr.f32.gmra.mrb[0].mxu0 %v175
    %v246 = vpop.f32.mrb[0].mxu0
    %v247 = vadd.f32 %v167, %v246
    %v248 = vpop.f32.mrb[0].mxu0
    %249 = vmatprep.mubr.f32.mxu0 0.0
    %250 = vmatmul.mubr.f32.gmra.mrb[0].mxu0 %v178
    %v251 = vpop.f32.mrb[0].mxu0
    %v252 = vadd.f32 %v172, %v251
    %v253 = vpop.f32.mrb[0].mxu0
    %254 = vdwg.mxu0
    %v255 = vld [vmem:[%s7] sm:$0xff]
    %257 = vset.pattern.permute.xlu0 0
    %258 = vperm.xlu0 %257, %v152
    %v259 = vpop.permute.xlu0 %258
    %262 = vset.pattern.permute.xlu0 0
    %263 = vperm.xlu0 %262, %v157
    %v264 = vpop.permute.xlu0 %263
    %v266 = vlaneseq
    %v267 = vshrl.u32 %v266, 7
    %v268 = vsub.s32 0, %v267
    %v269 = vrot.slane %v247, %v268
    %v270 = vmul.f32 %v259, %v269
    %v271 = vmul.f32 %v264, %v269
    %v272 = vadd.f32 %v270, %v70
    %v273 = vadd.f32 %v271, %v71
    %vm274 = vcmask 130048
    %v275 = vsel %vm274, %v272, -inf
    %276 = vmax.xlane.f32.xlu0 %v275
    %v277 = vpop.xlane.xlu0 %276
    %v278 = vsel %vm274, %v273, -inf
    %279 = vmax.xlane.f32.xlu0 %v278
    %v280 = vpop.xlane.xlu0 %279
    %v281 = vsub.f32 %v272, %v277
    %v282 = vsub.f32 %v273, %v280
    %v283 = vmul.f32 %v281, 1.442695
    %v284 = vpow.pop %v283
    %v285 = vmul.f32 %v282, 1.442695
    %v286 = vpow.pop %v285
    %v287 = vsel %vm274, %v284, 0.0
    %288 = vadd.xlane.f32.xlu0 %v287
    %v289 = vpop.xlane.xlu0 %288
    %v290 = vsel %vm274, %v286, 0.0
    %291 = vadd.xlane.f32.xlu0 %v290
    %v292 = vpop.xlane.xlu0 %291
    %v293 = vlaneseq
    %v294 = vshrl.u32 %v293, 7
    %v295 = vsub.s32 0, %v294
    %v296 = vrot.slane %v252, %v295
    %v297 = vmul.f32 %v284, %v296
    %v298 = vmul.f32 %v286, %v296
    %v299 = vsel %vm274, %v297, 0.0
    %300 = vadd.xlane.f32.xlu0 %v299
    %v301 = vpop.xlane.xlu0 %300
    %v302 = vsel %vm274, %v298, 0.0
    %303 = vadd.xlane.f32.xlu0 %v302
    %v304 = vpop.xlane.xlu0 %303
    %v305 = vrcp.pop %v289
    %v306 = vrcp.pop %v292
    %v307 = vmul.f32 %v301, %v305
    %v308 = vmul.f32 %v304, %v306
    %v309 = vlaneseq
    %v310 = vshrl.u32 %v309, 7
    %v311 = vsub.s32 0, %v310
    %v312 = vrot.slane %v255, %v311
    %v313 = vmul.f32 %v307, %v312
    %v314 = vmul.f32 %v308, %v312
    %v315 = vadd.f32 %v313, 0.0
    %v316 = vadd.f32 %v314, 0.0
    %317 = vset.pattern.permute.xlu0 1
    %318 = vperm.xlu0 %317, %v152
    %v319 = vpop.permute.xlu0 %318
    %321 = vset.pattern.permute.xlu0 1
    %322 = vperm.xlu0 %321, %v157
    %v323 = vpop.permute.xlu0 %322
    %v325 = vlaneseq
    %v326 = vshrl.u32 %v325, 7
    %v327 = vsub.s32 1, %v326
    %v328 = vrot.slane %v247, %v327
    %v329 = vmul.f32 %v319, %v328
    %v330 = vmul.f32 %v323, %v328
    %v331 = vadd.f32 %v329, %v70
    %v332 = vadd.f32 %v330, %v71
    %v333 = vsel %vm274, %v331, -inf
    %334 = vmax.xlane.f32.xlu0 %v333
    %v335 = vpop.xlane.xlu0 %334
    %v336 = vsel %vm274, %v332, -inf
    %337 = vmax.xlane.f32.xlu0 %v336
    %v338 = vpop.xlane.xlu0 %337
    %v339 = vsub.f32 %v331, %v335
    %v340 = vsub.f32 %v332, %v338
    %v341 = vmul.f32 %v339, 1.442695
    %v342 = vpow.pop %v341
    %v343 = vmul.f32 %v340, 1.442695
    %v344 = vpow.pop %v343
    %v345 = vsel %vm274, %v342, 0.0
    %346 = vadd.xlane.f32.xlu0 %v345
    %v347 = vpop.xlane.xlu0 %346
    %v348 = vsel %vm274, %v344, 0.0
    %349 = vadd.xlane.f32.xlu0 %v348
    %v350 = vpop.xlane.xlu0 %349
    %v351 = vlaneseq
    %v352 = vshrl.u32 %v351, 7
    %v353 = vsub.s32 1, %v352
    %v354 = vrot.slane %v252, %v353
    %v355 = vmul.f32 %v342, %v354
    %v356 = vmul.f32 %v344, %v354
    %v357 = vsel %vm274, %v355, 0.0
    %358 = vadd.xlane.f32.xlu0 %v357
    %v359 = vpop.xlane.xlu0 %358
    %v360 = vsel %vm274, %v356, 0.0
    %361 = vadd.xlane.f32.xlu0 %v360
    %v362 = vpop.xlane.xlu0 %361
    %v363 = vrcp.pop %v347
    %v364 = vrcp.pop %v350
    %v365 = vmul.f32 %v359, %v363
    %v366 = vmul.f32 %v362, %v364
    %v367 = vlaneseq
    %v368 = vshrl.u32 %v367, 7
    %v369 = vsub.s32 1, %v368
    %v370 = vrot.slane %v255, %v369
    %v371 = vmul.f32 %v365, %v370
    %v372 = vmul.f32 %v366, %v370
    %v373 = vadd.f32 %v315, %v371
    %v374 = vadd.f32 %v316, %v372
    %375 = vset.pattern.permute.xlu0 2
    %376 = vperm.xlu0 %375, %v152
    %v377 = vpop.permute.xlu0 %376
    %379 = vset.pattern.permute.xlu0 2
    %380 = vperm.xlu0 %379, %v157
    %v381 = vpop.permute.xlu0 %380
    %v383 = vlaneseq
    %v384 = vshrl.u32 %v383, 7
    %v385 = vsub.s32 2, %v384
    %v386 = vrot.slane %v247, %v385
    %v387 = vmul.f32 %v377, %v386
    %v388 = vmul.f32 %v381, %v386
    %v389 = vadd.f32 %v387, %v70
    %v390 = vadd.f32 %v388, %v71
    %v391 = vsel %vm274, %v389, -inf
    %392 = vmax.xlane.f32.xlu0 %v391
    %v393 = vpop.xlane.xlu0 %392
    %v394 = vsel %vm274, %v390, -inf
    %395 = vmax.xlane.f32.xlu0 %v394
    %v396 = vpop.xlane.xlu0 %395
    %v397 = vsub.f32 %v389, %v393
    %v398 = vsub.f32 %v390, %v396
    %v399 = vmul.f32 %v397, 1.442695
    %v400 = vpow.pop %v399
    %v401 = vmul.f32 %v398, 1.442695
    %v402 = vpow.pop %v401
    %v403 = vsel %vm274, %v400, 0.0
    %404 = vadd.xlane.f32.xlu0 %v403
    %v405 = vpop.xlane.xlu0 %404
    %v406 = vsel %vm274, %v402, 0.0
    %407 = vadd.xlane.f32.xlu0 %v406
    %v408 = vpop.xlane.xlu0 %407
    %v409 = vlaneseq
    %v410 = vshrl.u32 %v409, 7
    %v411 = vsub.s32 2, %v410
    %v412 = vrot.slane %v252, %v411
    %v413 = vmul.f32 %v400, %v412
    %v414 = vmul.f32 %v402, %v412
    %v415 = vsel %vm274, %v413, 0.0
    %416 = vadd.xlane.f32.xlu0 %v415
    %v417 = vpop.xlane.xlu0 %416
    %v418 = vsel %vm274, %v414, 0.0
    %419 = vadd.xlane.f32.xlu0 %v418
    %v420 = vpop.xlane.xlu0 %419
    %v421 = vrcp.pop %v405
    %v422 = vrcp.pop %v408
    %v423 = vmul.f32 %v417, %v421
    %v424 = vmul.f32 %v420, %v422
    %v425 = vlaneseq
    %v426 = vshrl.u32 %v425, 7
    %v427 = vsub.s32 2, %v426
    %v428 = vrot.slane %v255, %v427
    %v429 = vmul.f32 %v423, %v428
    %v430 = vmul.f32 %v424, %v428
    %v431 = vadd.f32 %v373, %v429
    %v432 = vadd.f32 %v374, %v430
    %433 = vset.pattern.permute.xlu0 3
    %434 = vperm.xlu0 %433, %v152
    %v435 = vpop.permute.xlu0 %434
    %437 = vset.pattern.permute.xlu0 3
    %438 = vperm.xlu0 %437, %v157
    %v439 = vpop.permute.xlu0 %438
    %v441 = vlaneseq
    %v442 = vshrl.u32 %v441, 7
    %v443 = vsub.s32 3, %v442
    %v444 = vrot.slane %v247, %v443
    %v445 = vmul.f32 %v435, %v444
    %v446 = vmul.f32 %v439, %v444
    %v447 = vadd.f32 %v445, %v70
    %v448 = vadd.f32 %v446, %v71
    %v449 = vsel %vm274, %v447, -inf
    %450 = vmax.xlane.f32.xlu0 %v449
    %v451 = vpop.xlane.xlu0 %450
    %v452 = vsel %vm274, %v448, -inf
    %453 = vmax.xlane.f32.xlu0 %v452
    %v454 = vpop.xlane.xlu0 %453
    %v455 = vsub.f32 %v447, %v451
    %v456 = vsub.f32 %v448, %v454
    %v457 = vmul.f32 %v455, 1.442695
    %v458 = vpow.pop %v457
    %v459 = vmul.f32 %v456, 1.442695
    %v460 = vpow.pop %v459
    %v461 = vsel %vm274, %v458, 0.0
    %462 = vadd.xlane.f32.xlu0 %v461
    %v463 = vpop.xlane.xlu0 %462
    %v464 = vsel %vm274, %v460, 0.0
    %465 = vadd.xlane.f32.xlu0 %v464
    %v466 = vpop.xlane.xlu0 %465
    %v467 = vlaneseq
    %v468 = vshrl.u32 %v467, 7
    %v469 = vsub.s32 3, %v468
    %v470 = vrot.slane %v252, %v469
    %v471 = vmul.f32 %v458, %v470
    %v472 = vmul.f32 %v460, %v470
    %v473 = vsel %vm274, %v471, 0.0
    %474 = vadd.xlane.f32.xlu0 %v473
    %v475 = vpop.xlane.xlu0 %474
    %v476 = vsel %vm274, %v472, 0.0
    %477 = vadd.xlane.f32.xlu0 %v476
    %v478 = vpop.xlane.xlu0 %477
    %v479 = vrcp.pop %v463
    %v480 = vrcp.pop %v466
    %v481 = vmul.f32 %v475, %v479
    %v482 = vmul.f32 %v478, %v480
    %v483 = vlaneseq
    %v484 = vshrl.u32 %v483, 7
    %v485 = vsub.s32 3, %v484
    %v486 = vrot.slane %v255, %v485
    %v487 = vmul.f32 %v481, %v486
    %v488 = vmul.f32 %v482, %v486
    %v489 = vadd.f32 %v431, %v487
    %v490 = vadd.f32 %v432, %v488
    %491 = vset.pattern.permute.xlu0 4
    %492 = vperm.xlu0 %491, %v152
    %v493 = vpop.permute.xlu0 %492
    %495 = vset.pattern.permute.xlu0 4
    %496 = vperm.xlu0 %495, %v157
    %v497 = vpop.permute.xlu0 %496
    %v499 = vlaneseq
    %v500 = vshrl.u32 %v499, 7
    %v501 = vsub.s32 4, %v500
    %v502 = vrot.slane %v247, %v501
    %v503 = vmul.f32 %v493, %v502
    %v504 = vmul.f32 %v497, %v502
    %v505 = vadd.f32 %v503, %v70
    %v506 = vadd.f32 %v504, %v71
    %v507 = vsel %vm274, %v505, -inf
    %508 = vmax.xlane.f32.xlu0 %v507
    %v509 = vpop.xlane.xlu0 %508
    %v510 = vsel %vm274, %v506, -inf
    %511 = vmax.xlane.f32.xlu0 %v510
    %v512 = vpop.xlane.xlu0 %511
    %v513 = vsub.f32 %v505, %v509
    %v514 = vsub.f32 %v506, %v512
    %v515 = vmul.f32 %v513, 1.442695
    %v516 = vpow.pop %v515
    %v517 = vmul.f32 %v514, 1.442695
    %v518 = vpow.pop %v517
    %v519 = vsel %vm274, %v516, 0.0
    %520 = vadd.xlane.f32.xlu0 %v519
    %v521 = vpop.xlane.xlu0 %520
    %v522 = vsel %vm274, %v518, 0.0
    %523 = vadd.xlane.f32.xlu0 %v522
    %v524 = vpop.xlane.xlu0 %523
    %v525 = vlaneseq
    %v526 = vshrl.u32 %v525, 7
    %v527 = vsub.s32 4, %v526
    %v528 = vrot.slane %v252, %v527
    %v529 = vmul.f32 %v516, %v528
    %v530 = vmul.f32 %v518, %v528
    %v531 = vsel %vm274, %v529, 0.0
    %532 = vadd.xlane.f32.xlu0 %v531
    %v533 = vpop.xlane.xlu0 %532
    %v534 = vsel %vm274, %v530, 0.0
    %535 = vadd.xlane.f32.xlu0 %v534
    %v536 = vpop.xlane.xlu0 %535
    %v537 = vrcp.pop %v521
    %v538 = vrcp.pop %v524
    %v539 = vmul.f32 %v533, %v537
    %v540 = vmul.f32 %v536, %v538
    %v541 = vlaneseq
    %v542 = vshrl.u32 %v541, 7
    %v543 = vsub.s32 4, %v542
    %v544 = vrot.slane %v255, %v543
    %v545 = vmul.f32 %v539, %v544
    %v546 = vmul.f32 %v540, %v544
    %v547 = vadd.f32 %v489, %v545
    %v548 = vadd.f32 %v490, %v546
    %549 = vset.pattern.permute.xlu0 5
    %550 = vperm.xlu0 %549, %v152
    %v551 = vpop.permute.xlu0 %550
    %553 = vset.pattern.permute.xlu0 5
    %554 = vperm.xlu0 %553, %v157
    %v555 = vpop.permute.xlu0 %554
    %v557 = vlaneseq
    %v558 = vshrl.u32 %v557, 7
    %v559 = vsub.s32 5, %v558
    %v560 = vrot.slane %v247, %v559
    %v561 = vmul.f32 %v551, %v560
    %v562 = vmul.f32 %v555, %v560
    %v563 = vadd.f32 %v561, %v70
    %v564 = vadd.f32 %v562, %v71
    %v565 = vsel %vm274, %v563, -inf
    %566 = vmax.xlane.f32.xlu0 %v565
    %v567 = vpop.xlane.xlu0 %566
    %v568 = vsel %vm274, %v564, -inf
    %569 = vmax.xlane.f32.xlu0 %v568
    %v570 = vpop.xlane.xlu0 %569
    %v571 = vsub.f32 %v563, %v567
    %v572 = vsub.f32 %v564, %v570
    %v573 = vmul.f32 %v571, 1.442695
    %v574 = vpow.pop %v573
    %v575 = vmul.f32 %v572, 1.442695
    %v576 = vpow.pop %v575
    %v577 = vsel %vm274, %v574, 0.0
    %578 = vadd.xlane.f32.xlu0 %v577
    %v579 = vpop.xlane.xlu0 %578
    %v580 = vsel %vm274, %v576, 0.0
    %581 = vadd.xlane.f32.xlu0 %v580
    %v582 = vpop.xlane.xlu0 %581
    %v583 = vlaneseq
    %v584 = vshrl.u32 %v583, 7
    %v585 = vsub.s32 5, %v584
    %v586 = vrot.slane %v252, %v585
    %v587 = vmul.f32 %v574, %v586
    %v588 = vmul.f32 %v576, %v586
    %v589 = vsel %vm274, %v587, 0.0
    %590 = vadd.xlane.f32.xlu0 %v589
    %v591 = vpop.xlane.xlu0 %590
    %v592 = vsel %vm274, %v588, 0.0
    %593 = vadd.xlane.f32.xlu0 %v592
    %v594 = vpop.xlane.xlu0 %593
    %v595 = vrcp.pop %v579
    %v596 = vrcp.pop %v582
    %v597 = vmul.f32 %v591, %v595
    %v598 = vmul.f32 %v594, %v596
    %v599 = vlaneseq
    %v600 = vshrl.u32 %v599, 7
    %v601 = vsub.s32 5, %v600
    %v602 = vrot.slane %v255, %v601
    %v603 = vmul.f32 %v597, %v602
    %v604 = vmul.f32 %v598, %v602
    %v605 = vadd.f32 %v547, %v603
    %v606 = vadd.f32 %v548, %v604
    %607 = vset.pattern.permute.xlu0 6
    %608 = vperm.xlu0 %607, %v152
    %v609 = vpop.permute.xlu0 %608
    %611 = vset.pattern.permute.xlu0 6
    %612 = vperm.xlu0 %611, %v157
    %v613 = vpop.permute.xlu0 %612
    %v615 = vlaneseq
    %v616 = vshrl.u32 %v615, 7
    %v617 = vsub.s32 6, %v616
    %v618 = vrot.slane %v247, %v617
    %v619 = vmul.f32 %v609, %v618
    %v620 = vmul.f32 %v613, %v618
    %v621 = vadd.f32 %v619, %v70
    %v622 = vadd.f32 %v620, %v71
    %v623 = vsel %vm274, %v621, -inf
    %624 = vmax.xlane.f32.xlu0 %v623
    %v625 = vpop.xlane.xlu0 %624
    %v626 = vsel %vm274, %v622, -inf
    %627 = vmax.xlane.f32.xlu0 %v626
    %v628 = vpop.xlane.xlu0 %627
    %v629 = vsub.f32 %v621, %v625
    %v630 = vsub.f32 %v622, %v628
    %v631 = vmul.f32 %v629, 1.442695
    %v632 = vpow.pop %v631
    %v633 = vmul.f32 %v630, 1.442695
    %v634 = vpow.pop %v633
    %v635 = vsel %vm274, %v632, 0.0
    %636 = vadd.xlane.f32.xlu0 %v635
    %v637 = vpop.xlane.xlu0 %636
    %v638 = vsel %vm274, %v634, 0.0
    %639 = vadd.xlane.f32.xlu0 %v638
    %v640 = vpop.xlane.xlu0 %639
    %v641 = vlaneseq
    %v642 = vshrl.u32 %v641, 7
    %v643 = vsub.s32 6, %v642
    %v644 = vrot.slane %v252, %v643
    %v645 = vmul.f32 %v632, %v644
    %v646 = vmul.f32 %v634, %v644
    %v647 = vsel %vm274, %v645, 0.0
    %648 = vadd.xlane.f32.xlu0 %v647
    %v649 = vpop.xlane.xlu0 %648
    %v650 = vsel %vm274, %v646, 0.0
    %651 = vadd.xlane.f32.xlu0 %v650
    %v652 = vpop.xlane.xlu0 %651
    %v653 = vrcp.pop %v637
    %v654 = vrcp.pop %v640
    %v655 = vmul.f32 %v649, %v653
    %v656 = vmul.f32 %v652, %v654
    %v657 = vlaneseq
    %v658 = vshrl.u32 %v657, 7
    %v659 = vsub.s32 6, %v658
    %v660 = vrot.slane %v255, %v659
    %v661 = vmul.f32 %v655, %v660
    %v662 = vmul.f32 %v656, %v660
    %v663 = vadd.f32 %v605, %v661
    %v664 = vadd.f32 %v606, %v662
    %665 = vset.pattern.permute.xlu0 7
    %666 = vperm.xlu0 %665, %v152
    %v667 = vpop.permute.xlu0 %666
    %669 = vset.pattern.permute.xlu0 7
    %670 = vperm.xlu0 %669, %v157
    %v671 = vpop.permute.xlu0 %670
    %v673 = vlaneseq
    %v674 = vshrl.u32 %v673, 7
    %v675 = vsub.s32 7, %v674
    %v676 = vrot.slane %v247, %v675
    %v677 = vmul.f32 %v667, %v676
    %v678 = vmul.f32 %v671, %v676
    %v679 = vadd.f32 %v677, %v70
    %v680 = vadd.f32 %v678, %v71
    %v681 = vsel %vm274, %v679, -inf
    %682 = vmax.xlane.f32.xlu0 %v681
    %v683 = vpop.xlane.xlu0 %682
    %v684 = vsel %vm274, %v680, -inf
    %685 = vmax.xlane.f32.xlu0 %v684
    %v686 = vpop.xlane.xlu0 %685
    %v687 = vsub.f32 %v679, %v683
    %v688 = vsub.f32 %v680, %v686
    %v689 = vmul.f32 %v687, 1.442695
    %v690 = vpow.pop %v689
    %v691 = vmul.f32 %v688, 1.442695
    %v692 = vpow.pop %v691
    %v693 = vsel %vm274, %v690, 0.0
    %694 = vadd.xlane.f32.xlu0 %v693
    %v695 = vpop.xlane.xlu0 %694
    %v696 = vsel %vm274, %v692, 0.0
    %697 = vadd.xlane.f32.xlu0 %v696
    %v698 = vpop.xlane.xlu0 %697
    %v699 = vlaneseq
    %v700 = vshrl.u32 %v699, 7
    %v701 = vsub.s32 7, %v700
    %v702 = vrot.slane %v252, %v701
    %v703 = vmul.f32 %v690, %v702
    %v704 = vmul.f32 %v692, %v702
    %v705 = vsel %vm274, %v703, 0.0
    %706 = vadd.xlane.f32.xlu0 %v705
    %v707 = vpop.xlane.xlu0 %706
    %v708 = vsel %vm274, %v704, 0.0
    %709 = vadd.xlane.f32.xlu0 %v708
    %v710 = vpop.xlane.xlu0 %709
    %v711 = vrcp.pop %v695
    %v712 = vrcp.pop %v698
    %v713 = vmul.f32 %v707, %v711
    %v714 = vmul.f32 %v710, %v712
    %v715 = vlaneseq
    %v716 = vshrl.u32 %v715, 7
    %v717 = vsub.s32 7, %v716
    %v718 = vrot.slane %v255, %v717
    %v719 = vmul.f32 %v713, %v718
    %v720 = vmul.f32 %v714, %v718
    %v721 = vadd.f32 %v663, %v719
    %v722 = vadd.f32 %v664, %v720
    %v723 = vadd.f32 %v68, %v721
    %v724 = vadd.f32 %v69, %v722
    %v725 = vld [vmem:[%s8] sm:$0x1]
    %v726 = vlaneseq
    %v727 = vshrl.u32 %v726, 7
    %v728 = vsub.s32 0, %v727
    %v729 = vrot.slane %v725, %v728
    %v730 = vadd.f32 %v723, %v729
    %v731 = vadd.f32 %v724, %v729
    %v732 = vld [vmem:[%s9] sm:$0x1]
    %v733 = vld [vmem:[%s10] sm:$0x1]
    %v734 = vsel %vm78, %v730, 0.0
    %735 = vadd.xlane.f32.xlu0 %v734
    %v736 = vpop.xlane.xlu0 %735
    %v737 = vsel %vm78, %v731, 0.0
    %738 = vadd.xlane.f32.xlu0 %v737
    %v739 = vpop.xlane.xlu0 %738
    %v740 = vrcp.pop 8.0
    %v741 = vmul.f32 %v736, %v740
    %v742 = vmul.f32 %v739, %v740
    %v743 = vsub.f32 %v730, %v741
    %v744 = vsub.f32 %v731, %v742
    %v745 = vmul.f32 %v743, %v743
    %v746 = vmul.f32 %v744, %v744
    %v747 = vsel %vm78, %v745, 0.0
    %748 = vadd.xlane.f32.xlu0 %v747
    %v749 = vpop.xlane.xlu0 %748
    %v750 = vsel %vm78, %v746, 0.0
    %751 = vadd.xlane.f32.xlu0 %v750
    %v752 = vpop.xlane.xlu0 %751
    %v753 = vmul.f32 %v749, %v740
    %v754 = vmul.f32 %v752, %v740
    %v755 = vadd.f32 %v753, 1e-05
    %v756 = vadd.f32 %v754, 1e-05
    %v757 = vrsqrt.pop %v755
    %v758 = vrsqrt.pop %v756
    %v759 = vmul.f32 %v743, %v757
    %v760 = vmul.f32 %v744, %v758
    %v761 = vlaneseq
    %v762 = vshrl.u32 %v761, 7
    %v763 = vsub.s32 0, %v762
    %v764 = vrot.slane %v732, %v763
    %v765 = vmul.f32 %v759, %v764
    %v766 = vmul.f32 %v760, %v764
    %v767 = vlaneseq
    %v768 = vshrl.u32 %v767, 7
    %v769 = vsub.s32 0, %v768
    %v770 = vrot.slane %v733, %v769
    %v771 = vadd.f32 %v765, %v770
    %v772 = vadd.f32 %v766, %v770
    %v773 = vpack.c.bf16 %v772, %v771
    %v774 = vld [vmem:[%s11] sm:$0xff]
    %v775 = vld [vmem:[%s11 + $0x8] sm:$0xff]
    %v776 = vld [vmem:[%s11 + $0x10] sm:$0xff]
    %v777 = vld [vmem:[%s11 + $0x18] sm:$0xff]
    %v778 = vld [vmem:[%s11 + $0x20] sm:$0xff]
    %v779 = vld [vmem:[%s11 + $0x28] sm:$0xff]
    %v780 = vld [vmem:[%s11 + $0x30] sm:$0xff]
    %v781 = vld [vmem:[%s11 + $0x38] sm:$0xff]
    %v782 = vld [vmem:[%s12] ss:$4 sm:$0xff]
    %s783 = scalar_lea.vmem %s12, 32
    %v784 = vld [vmem:[%s783] ss:$4 sm:$0xff]
    %v787 = vlaneseq
    %v788 = vshrl.u32 %v787, 7
    %v789 = vsub.s32 0, %v788
    %v790 = vrot.slane %v782, %v789
    %v791 = vlaneseq
    %v792 = vshrl.u32 %v791, 7
    %v793 = vsub.s32 1, %v792
    %v794 = vrot.slane %v782, %v793
    %v795 = vlaneseq
    %v796 = vshrl.u32 %v795, 7
    %v797 = vsub.s32 2, %v796
    %v798 = vrot.slane %v782, %v797
    %v799 = vlaneseq
    %v800 = vshrl.u32 %v799, 7
    %v801 = vsub.s32 3, %v800
    %v802 = vrot.slane %v782, %v801
    %v803 = vlaneseq
    %v804 = vshrl.u32 %v803, 7
    %v805 = vsub.s32 4, %v804
    %v806 = vrot.slane %v782, %v805
    %v807 = vlaneseq
    %v808 = vshrl.u32 %v807, 7
    %v809 = vsub.s32 5, %v808
    %v810 = vrot.slane %v782, %v809
    %v811 = vlaneseq
    %v812 = vshrl.u32 %v811, 7
    %v813 = vsub.s32 6, %v812
    %v814 = vrot.slane %v782, %v813
    %v815 = vlaneseq
    %v816 = vshrl.u32 %v815, 7
    %v817 = vsub.s32 7, %v816
    %v818 = vrot.slane %v782, %v817
    %v819 = vlaneseq
    %v820 = vshrl.u32 %v819, 7
    %v821 = vsub.s32 0, %v820
    %v822 = vrot.slane %v784, %v821
    %v823 = vlaneseq
    %v824 = vshrl.u32 %v823, 7
    %v825 = vsub.s32 1, %v824
    %v826 = vrot.slane %v784, %v825
    %v827 = vlaneseq
    %v828 = vshrl.u32 %v827, 7
    %v829 = vsub.s32 2, %v828
    %v830 = vrot.slane %v784, %v829
    %v831 = vlaneseq
    %v832 = vshrl.u32 %v831, 7
    %v833 = vsub.s32 3, %v832
    %v834 = vrot.slane %v784, %v833
    %v835 = vlaneseq
    %v836 = vshrl.u32 %v835, 7
    %v837 = vsub.s32 4, %v836
    %v838 = vrot.slane %v784, %v837
    %v839 = vlaneseq
    %v840 = vshrl.u32 %v839, 7
    %v841 = vsub.s32 5, %v840
    %v842 = vrot.slane %v784, %v841
    %v843 = vlaneseq
    %v844 = vshrl.u32 %v843, 7
    %v845 = vsub.s32 6, %v844
    %v846 = vrot.slane %v784, %v845
    %v847 = vlaneseq
    %v848 = vshrl.u32 %v847, 7
    %v849 = vsub.s32 7, %v848
    %v850 = vrot.slane %v784, %v849
    %v875 = vunpack.c.l.b16 %v774
    %v876 = vunpack.c.h.b16 %v774
    %v877 = vunpack.c.l.b16 %v775
    %v878 = vunpack.c.h.b16 %v775
    %v879 = vunpack.c.l.b16 %v776
    %v880 = vunpack.c.h.b16 %v776
    %v881 = vunpack.c.l.b16 %v777
    %v882 = vunpack.c.h.b16 %v777
    %v883 = vunpack.c.l.b16 %v778
    %v884 = vunpack.c.h.b16 %v778
    %v885 = vunpack.c.l.b16 %v779
    %v886 = vunpack.c.h.b16 %v779
    %v887 = vunpack.c.l.b16 %v780
    %v888 = vunpack.c.h.b16 %v780
    %v889 = vunpack.c.l.b16 %v781
    %v890 = vunpack.c.h.b16 %v781
    %v891 = vpack.c.b16 %v875, %v875
    %v892 = vpack.c.b16 %v876, %v876
    %v893 = vpack.c.b16 %v877, %v877
    %v894 = vpack.c.b16 %v878, %v878
    %v895 = vpack.c.b16 %v879, %v879
    %v896 = vpack.c.b16 %v880, %v880
    %v897 = vpack.c.b16 %v881, %v881
    %v898 = vpack.c.b16 %v882, %v882
    %v899 = vpack.c.b16 %v883, %v883
    %v900 = vpack.c.b16 %v884, %v884
    %v901 = vpack.c.b16 %v885, %v885
    %v902 = vpack.c.b16 %v886, %v886
    %v903 = vpack.c.b16 %v887, %v887
    %v904 = vpack.c.b16 %v888, %v888
    %v905 = vpack.c.b16 %v889, %v889
    %v906 = vpack.c.b16 %v890, %v890
    %v908 = vsel %vm78, %v773, 0
    %vm910 = vcmask 1043456
    %v912 = vsel %vm910, %v891, 0
    %v915 = vsel %vm910, %v892, 0
    %v918 = vsel %vm910, %v893, 0
    %v921 = vsel %vm910, %v894, 0
    %v924 = vsel %vm910, %v895, 0
    %v927 = vsel %vm910, %v896, 0
    %v930 = vsel %vm910, %v897, 0
    %v933 = vsel %vm910, %v898, 0
    %v936 = vsel %vm910, %v899, 0
    %v939 = vsel %vm910, %v900, 0
    %v942 = vsel %vm910, %v901, 0
    %v945 = vsel %vm910, %v902, 0
    %v948 = vsel %vm910, %v903, 0
    %v951 = vsel %vm910, %v904, 0
    %v954 = vsel %vm910, %v905, 0
    %v957 = vsel %vm910, %v906, 0
    %959 = vmatprep.subr.bf16.mxu0 %v915
    %960 = vmatpush1.bf16.msra.mxu0 %v912
    %961 = vmatprep.subr.bf16.mxu0 0
    %962 = vmatpush1.bf16.msra.mxu0 0
    %963 = vmatprep.subr.bf16.mxu0 0
    %964 = vmatpush1.bf16.msra.mxu0 0
    %965 = vmatprep.subr.bf16.mxu0 0
    %966 = vmatpush1.bf16.msra.mxu0 0
    %967 = vmatprep.subr.bf16.mxu0 0
    %968 = vmatpush1.bf16.msra.mxu0 0
    %969 = vmatprep.subr.bf16.mxu0 0
    %970 = vmatpush1.bf16.msra.mxu0 0
    %971 = vmatprep.subr.bf16.mxu0 0
    %972 = vmatpush1.bf16.msra.mxu0 0
    %973 = vmatprep.subr.bf16.mxu0 0
    %974 = vmatpush1.bf16.msra.mxu0 0
    %975 = vmatprep.subr.bf16.mxu0 0
    %976 = vmatpush1.bf16.msra.mxu0 0
    %977 = vmatprep.subr.bf16.mxu0 0
    %978 = vmatpush1.bf16.msra.mxu0 0
    %979 = vmatprep.subr.bf16.mxu0 0
    %980 = vmatpush1.bf16.msra.mxu0 0
    %981 = vmatprep.subr.bf16.mxu0 0
    %982 = vmatpush1.bf16.msra.mxu0 0
    %983 = vmatprep.subr.bf16.mxu0 0
    %984 = vmatpush1.bf16.msra.mxu0 0
    %985 = vmatprep.subr.bf16.mxu0 0
    %986 = vmatpush1.bf16.msra.mxu0 0
    %987 = vmatprep.subr.bf16.mxu0 0
    %988 = vmatpush1.bf16.msra.mxu0 0
    %989 = vmatprep.subr.bf16.mxu0 0
    %990 = vmatpush1.bf16.msra.mxu0 0
    %991 = vmatprep.mubr.bf16.mxu0 0
    %992 = vmatmul.mubr.bf16.gmra.mrb[0].mxu0 %v908
    %v993 = vpop.f32.mrb[0].mxu0
    %v994 = vadd.f32 %v790, %v993
    %v995 = vpop.f32.mrb[0].mxu0
    %v996 = vadd.f32 %v794, %v995
    %v997 = vpop.f32.mrb[0].mxu0
    %v998 = vadd.f32 %v790, %v997
    %v999 = vpop.f32.mrb[0].mxu0
    %v1000 = vadd.f32 %v794, %v999
    %1001 = vdwg.mxu0
    %1002 = vmatprep.subr.bf16.mxu0 %v921
    %1003 = vmatpush1.bf16.msra.mxu0 %v918
    %1004 = vmatprep.subr.bf16.mxu0 0
    %1005 = vmatpush1.bf16.msra.mxu0 0
    %1006 = vmatprep.subr.bf16.mxu0 0
    %1007 = vmatpush1.bf16.msra.mxu0 0
    %1008 = vmatprep.subr.bf16.mxu0 0
    %1009 = vmatpush1.bf16.msra.mxu0 0
    %1010 = vmatprep.subr.bf16.mxu0 0
    %1011 = vmatpush1.bf16.msra.mxu0 0
    %1012 = vmatprep.subr.bf16.mxu0 0
    %1013 = vmatpush1.bf16.msra.mxu0 0
    %1014 = vmatprep.subr.bf16.mxu0 0
    %1015 = vmatpush1.bf16.msra.mxu0 0
    %1016 = vmatprep.subr.bf16.mxu0 0
    %1017 = vmatpush1.bf16.msra.mxu0 0
    %1018 = vmatprep.subr.bf16.mxu0 0
    %1019 = vmatpush1.bf16.msra.mxu0 0
    %1020 = vmatprep.subr.bf16.mxu0 0
    %1021 = vmatpush1.bf16.msra.mxu0 0
    %1022 = vmatprep.subr.bf16.mxu0 0
    %1023 = vmatpush1.bf16.msra.mxu0 0
    %1024 = vmatprep.subr.bf16.mxu0 0
    %1025 = vmatpush1.bf16.msra.mxu0 0
    %1026 = vmatprep.subr.bf16.mxu0 0
    %1027 = vmatpush1.bf16.msra.mxu0 0
    %1028 = vmatprep.subr.bf16.mxu0 0
    %1029 = vmatpush1.bf16.msra.mxu0 0
    %1030 = vmatprep.subr.bf16.mxu0 0
    %1031 = vmatpush1.bf16.msra.mxu0 0
    %1032 = vmatprep.subr.bf16.mxu0 0
    %1033 = vmatpush1.bf16.msra.mxu0 0
    %1034 = vmatprep.mubr.bf16.mxu0 0
    %1035 = vmatmul.mubr.bf16.gmra.mrb[0].mxu0 %v908
    %v1036 = vpop.f32.mrb[0].mxu0
    %v1037 = vadd.f32 %v798, %v1036
    %v1038 = vpop.f32.mrb[0].mxu0
    %v1039 = vadd.f32 %v802, %v1038
    %v1040 = vpop.f32.mrb[0].mxu0
    %v1041 = vadd.f32 %v798, %v1040
    %v1042 = vpop.f32.mrb[0].mxu0
    %v1043 = vadd.f32 %v802, %v1042
    %1044 = vdwg.mxu0
    %1045 = vmatprep.subr.bf16.mxu0 %v927
    %1046 = vmatpush1.bf16.msra.mxu0 %v924
    %1047 = vmatprep.subr.bf16.mxu0 0
    %1048 = vmatpush1.bf16.msra.mxu0 0
    %1049 = vmatprep.subr.bf16.mxu0 0
    %1050 = vmatpush1.bf16.msra.mxu0 0
    %1051 = vmatprep.subr.bf16.mxu0 0
    %1052 = vmatpush1.bf16.msra.mxu0 0
    %1053 = vmatprep.subr.bf16.mxu0 0
    %1054 = vmatpush1.bf16.msra.mxu0 0
    %1055 = vmatprep.subr.bf16.mxu0 0
    %1056 = vmatpush1.bf16.msra.mxu0 0
    %1057 = vmatprep.subr.bf16.mxu0 0
    %1058 = vmatpush1.bf16.msra.mxu0 0
    %1059 = vmatprep.subr.bf16.mxu0 0
    %1060 = vmatpush1.bf16.msra.mxu0 0
    %1061 = vmatprep.subr.bf16.mxu0 0
    %1062 = vmatpush1.bf16.msra.mxu0 0
    %1063 = vmatprep.subr.bf16.mxu0 0
    %1064 = vmatpush1.bf16.msra.mxu0 0
    %1065 = vmatprep.subr.bf16.mxu0 0
    %1066 = vmatpush1.bf16.msra.mxu0 0
    %1067 = vmatprep.subr.bf16.mxu0 0
    %1068 = vmatpush1.bf16.msra.mxu0 0
    %1069 = vmatprep.subr.bf16.mxu0 0
    %1070 = vmatpush1.bf16.msra.mxu0 0
    %1071 = vmatprep.subr.bf16.mxu0 0
    %1072 = vmatpush1.bf16.msra.mxu0 0
    %1073 = vmatprep.subr.bf16.mxu0 0
    %1074 = vmatpush1.bf16.msra.mxu0 0
    %1075 = vmatprep.subr.bf16.mxu0 0
    %1076 = vmatpush1.bf16.msra.mxu0 0
    %1077 = vmatprep.mubr.bf16.mxu0 0
    %1078 = vmatmul.mubr.bf16.gmra.mrb[0].mxu0 %v908
    %v1079 = vpop.f32.mrb[0].mxu0
    %v1080 = vadd.f32 %v806, %v1079
    %v1081 = vpop.f32.mrb[0].mxu0
    %v1082 = vadd.f32 %v810, %v1081
    %v1083 = vpop.f32.mrb[0].mxu0
    %v1084 = vadd.f32 %v806, %v1083
    %v1085 = vpop.f32.mrb[0].mxu0
    %v1086 = vadd.f32 %v810, %v1085
    %1087 = vdwg.mxu0
    %1088 = vmatprep.subr.bf16.mxu0 %v933
    %1089 = vmatpush1.bf16.msra.mxu0 %v930
    %1090 = vmatprep.subr.bf16.mxu0 0
    %1091 = vmatpush1.bf16.msra.mxu0 0
    %1092 = vmatprep.subr.bf16.mxu0 0
    %1093 = vmatpush1.bf16.msra.mxu0 0
    %1094 = vmatprep.subr.bf16.mxu0 0
    %1095 = vmatpush1.bf16.msra.mxu0 0
    %1096 = vmatprep.subr.bf16.mxu0 0
    %1097 = vmatpush1.bf16.msra.mxu0 0
    %1098 = vmatprep.subr.bf16.mxu0 0
    %1099 = vmatpush1.bf16.msra.mxu0 0
    %1100 = vmatprep.subr.bf16.mxu0 0
    %1101 = vmatpush1.bf16.msra.mxu0 0
    %1102 = vmatprep.subr.bf16.mxu0 0
    %1103 = vmatpush1.bf16.msra.mxu0 0
    %1104 = vmatprep.subr.bf16.mxu0 0
    %1105 = vmatpush1.bf16.msra.mxu0 0
    %1106 = vmatprep.subr.bf16.mxu0 0
    %1107 = vmatpush1.bf16.msra.mxu0 0
    %1108 = vmatprep.subr.bf16.mxu0 0
    %1109 = vmatpush1.bf16.msra.mxu0 0
    %1110 = vmatprep.subr.bf16.mxu0 0
    %1111 = vmatpush1.bf16.msra.mxu0 0
    %1112 = vmatprep.subr.bf16.mxu0 0
    %1113 = vmatpush1.bf16.msra.mxu0 0
    %1114 = vmatprep.subr.bf16.mxu0 0
    %1115 = vmatpush1.bf16.msra.mxu0 0
    %1116 = vmatprep.subr.bf16.mxu0 0
    %1117 = vmatpush1.bf16.msra.mxu0 0
    %1118 = vmatprep.subr.bf16.mxu0 0
    %1119 = vmatpush1.bf16.msra.mxu0 0
    %1120 = vmatprep.mubr.bf16.mxu0 0
    %1121 = vmatmul.mubr.bf16.gmra.mrb[0].mxu0 %v908
    %v1122 = vpop.f32.mrb[0].mxu0
    %v1123 = vadd.f32 %v814, %v1122
    %v1124 = vpop.f32.mrb[0].mxu0
    %v1125 = vadd.f32 %v818, %v1124
    %v1126 = vpop.f32.mrb[0].mxu0
    %v1127 = vadd.f32 %v814, %v1126
    %v1128 = vpop.f32.mrb[0].mxu0
    %v1129 = vadd.f32 %v818, %v1128
    %1130 = vdwg.mxu0
    %1131 = vmatprep.subr.bf16.mxu0 %v939
    %1132 = vmatpush1.bf16.msra.mxu0 %v936
    %1133 = vmatprep.subr.bf16.mxu0 0
    %1134 = vmatpush1.bf16.msra.mxu0 0
    %1135 = vmatprep.subr.bf16.mxu0 0
    %1136 = vmatpush1.bf16.msra.mxu0 0
    %1137 = vmatprep.subr.bf16.mxu0 0
    %1138 = vmatpush1.bf16.msra.mxu0 0
    %1139 = vmatprep.subr.bf16.mxu0 0
    %1140 = vmatpush1.bf16.msra.mxu0 0
    %1141 = vmatprep.subr.bf16.mxu0 0
    %1142 = vmatpush1.bf16.msra.mxu0 0
    %1143 = vmatprep.subr.bf16.mxu0 0
    %1144 = vmatpush1.bf16.msra.mxu0 0
    %1145 = vmatprep.subr.bf16.mxu0 0
    %1146 = vmatpush1.bf16.msra.mxu0 0
    %1147 = vmatprep.subr.bf16.mxu0 0
    %1148 = vmatpush1.bf16.msra.mxu0 0
    %1149 = vmatprep.subr.bf16.mxu0 0
    %1150 = vmatpush1.bf16.msra.mxu0 0
    %1151 = vmatprep.subr.bf16.mxu0 0
    %1152 = vmatpush1.bf16.msra.mxu0 0
    %1153 = vmatprep.subr.bf16.mxu0 0
    %1154 = vmatpush1.bf16.msra.mxu0 0
    %1155 = vmatprep.subr.bf16.mxu0 0
    %1156 = vmatpush1.bf16.msra.mxu0 0
    %1157 = vmatprep.subr.bf16.mxu0 0
    %1158 = vmatpush1.bf16.msra.mxu0 0
    %1159 = vmatprep.subr.bf16.mxu0 0
    %1160 = vmatpush1.bf16.msra.mxu0 0
    %1161 = vmatprep.subr.bf16.mxu0 0
    %1162 = vmatpush1.bf16.msra.mxu0 0
    %1163 = vmatprep.mubr.bf16.mxu0 0
    %1164 = vmatmul.mubr.bf16.gmra.mrb[0].mxu0 %v908
    %v1165 = vpop.f32.mrb[0].mxu0
    %v1166 = vadd.f32 %v822, %v1165
    %v1167 = vpop.f32.mrb[0].mxu0
    %v1168 = vadd.f32 %v826, %v1167
    %v1169 = vpop.f32.mrb[0].mxu0
    %v1170 = vadd.f32 %v822, %v1169
    %v1171 = vpop.f32.mrb[0].mxu0
    %v1172 = vadd.f32 %v826, %v1171
    %1173 = vdwg.mxu0
    %1174 = vmatprep.subr.bf16.mxu0 %v945
    %1175 = vmatpush1.bf16.msra.mxu0 %v942
    %1176 = vmatprep.subr.bf16.mxu0 0
    %1177 = vmatpush1.bf16.msra.mxu0 0
    %1178 = vmatprep.subr.bf16.mxu0 0
    %1179 = vmatpush1.bf16.msra.mxu0 0
    %1180 = vmatprep.subr.bf16.mxu0 0
    %1181 = vmatpush1.bf16.msra.mxu0 0
    %1182 = vmatprep.subr.bf16.mxu0 0
    %1183 = vmatpush1.bf16.msra.mxu0 0
    %1184 = vmatprep.subr.bf16.mxu0 0
    %1185 = vmatpush1.bf16.msra.mxu0 0
    %1186 = vmatprep.subr.bf16.mxu0 0
    %1187 = vmatpush1.bf16.msra.mxu0 0
    %1188 = vmatprep.subr.bf16.mxu0 0
    %1189 = vmatpush1.bf16.msra.mxu0 0
    %1190 = vmatprep.subr.bf16.mxu0 0
    %1191 = vmatpush1.bf16.msra.mxu0 0
    %1192 = vmatprep.subr.bf16.mxu0 0
    %1193 = vmatpush1.bf16.msra.mxu0 0
    %1194 = vmatprep.subr.bf16.mxu0 0
    %1195 = vmatpush1.bf16.msra.mxu0 0
    %1196 = vmatprep.subr.bf16.mxu0 0
    %1197 = vmatpush1.bf16.msra.mxu0 0
    %1198 = vmatprep.subr.bf16.mxu0 0
    %1199 = vmatpush1.bf16.msra.mxu0 0
    %1200 = vmatprep.subr.bf16.mxu0 0
    %1201 = vmatpush1.bf16.msra.mxu0 0
    %1202 = vmatprep.subr.bf16.mxu0 0
    %1203 = vmatpush1.bf16.msra.mxu0 0
    %1204 = vmatprep.subr.bf16.mxu0 0
    %1205 = vmatpush1.bf16.msra.mxu0 0
    %1206 = vmatprep.mubr.bf16.mxu0 0
    %1207 = vmatmul.mubr.bf16.gmra.mrb[0].mxu0 %v908
    %v1208 = vpop.f32.mrb[0].mxu0
    %v1209 = vadd.f32 %v830, %v1208
    %v1210 = vpop.f32.mrb[0].mxu0
    %v1211 = vadd.f32 %v834, %v1210
    %v1212 = vpop.f32.mrb[0].mxu0
    %v1213 = vadd.f32 %v830, %v1212
    %v1214 = vpop.f32.mrb[0].mxu0
    %v1215 = vadd.f32 %v834, %v1214
    %1216 = vdwg.mxu0
    %1217 = vmatprep.subr.bf16.mxu0 %v951
    %1218 = vmatpush1.bf16.msra.mxu0 %v948
    %1219 = vmatprep.subr.bf16.mxu0 0
    %1220 = vmatpush1.bf16.msra.mxu0 0
    %1221 = vmatprep.subr.bf16.mxu0 0
    %1222 = vmatpush1.bf16.msra.mxu0 0
    %1223 = vmatprep.subr.bf16.mxu0 0
    %1224 = vmatpush1.bf16.msra.mxu0 0
    %1225 = vmatprep.subr.bf16.mxu0 0
    %1226 = vmatpush1.bf16.msra.mxu0 0
    %1227 = vmatprep.subr.bf16.mxu0 0
    %1228 = vmatpush1.bf16.msra.mxu0 0
    %1229 = vmatprep.subr.bf16.mxu0 0
    %1230 = vmatpush1.bf16.msra.mxu0 0
    %1231 = vmatprep.subr.bf16.mxu0 0
    %1232 = vmatpush1.bf16.msra.mxu0 0
    %1233 = vmatprep.subr.bf16.mxu0 0
    %1234 = vmatpush1.bf16.msra.mxu0 0
    %1235 = vmatprep.subr.bf16.mxu0 0
    %1236 = vmatpush1.bf16.msra.mxu0 0
    %1237 = vmatprep.subr.bf16.mxu0 0
    %1238 = vmatpush1.bf16.msra.mxu0 0
    %1239 = vmatprep.subr.bf16.mxu0 0
    %1240 = vmatpush1.bf16.msra.mxu0 0
    %1241 = vmatprep.subr.bf16.mxu0 0
    %1242 = vmatpush1.bf16.msra.mxu0 0
    %1243 = vmatprep.subr.bf16.mxu0 0
    %1244 = vmatpush1.bf16.msra.mxu0 0
    %1245 = vmatprep.subr.bf16.mxu0 0
    %1246 = vmatpush1.bf16.msra.mxu0 0
    %1247 = vmatprep.subr.bf16.mxu0 0
    %1248 = vmatpush1.bf16.msra.mxu0 0
    %1249 = vmatprep.mubr.bf16.mxu0 0
    %1250 = vmatmul.mubr.bf16.gmra.mrb[0].mxu0 %v908
    %v1251 = vpop.f32.mrb[0].mxu0
    %v1252 = vadd.f32 %v838, %v1251
    %v1253 = vpop.f32.mrb[0].mxu0
    %v1254 = vadd.f32 %v842, %v1253
    %v1255 = vpop.f32.mrb[0].mxu0
    %v1256 = vadd.f32 %v838, %v1255
    %v1257 = vpop.f32.mrb[0].mxu0
    %v1258 = vadd.f32 %v842, %v1257
    %1259 = vdwg.mxu0
    %1260 = vmatprep.subr.bf16.mxu0 %v957
    %1261 = vmatpush1.bf16.msra.mxu0 %v954
    %1262 = vmatprep.subr.bf16.mxu0 0
    %1263 = vmatpush1.bf16.msra.mxu0 0
    %1264 = vmatprep.subr.bf16.mxu0 0
    %1265 = vmatpush1.bf16.msra.mxu0 0
    %1266 = vmatprep.subr.bf16.mxu0 0
    %1267 = vmatpush1.bf16.msra.mxu0 0
    %1268 = vmatprep.subr.bf16.mxu0 0
    %1269 = vmatpush1.bf16.msra.mxu0 0
    %1270 = vmatprep.subr.bf16.mxu0 0
    %1271 = vmatpush1.bf16.msra.mxu0 0
    %1272 = vmatprep.subr.bf16.mxu0 0
    %1273 = vmatpush1.bf16.msra.mxu0 0
    %1274 = vmatprep.subr.bf16.mxu0 0
    %1275 = vmatpush1.bf16.msra.mxu0 0
    %1276 = vmatprep.subr.bf16.mxu0 0
    %1277 = vmatpush1.bf16.msra.mxu0 0
    %1278 = vmatprep.subr.bf16.mxu0 0
    %1279 = vmatpush1.bf16.msra.mxu0 0
    %1280 = vmatprep.subr.bf16.mxu0 0
    %1281 = vmatpush1.bf16.msra.mxu0 0
    %1282 = vmatprep.subr.bf16.mxu0 0
    %1283 = vmatpush1.bf16.msra.mxu0 0
    %1284 = vmatprep.subr.bf16.mxu0 0
    %1285 = vmatpush1.bf16.msra.mxu0 0
    %1286 = vmatprep.subr.bf16.mxu0 0
    %1287 = vmatpush1.bf16.msra.mxu0 0
    %1288 = vmatprep.subr.bf16.mxu0 0
    %1289 = vmatpush1.bf16.msra.mxu0 0
    %1290 = vmatprep.subr.bf16.mxu0 0
    %1291 = vmatpush1.bf16.msra.mxu0 0
    %1292 = vmatprep.mubr.bf16.mxu0 0
    %1293 = vmatmul.mubr.bf16.gmra.mrb[0].mxu0 %v908
    %v1294 = vpop.f32.mrb[0].mxu0
    %v1295 = vadd.f32 %v846, %v1294
    %v1296 = vpop.f32.mrb[0].mxu0
    %v1297 = vadd.f32 %v850, %v1296
    %v1298 = vpop.f32.mrb[0].mxu0
    %v1299 = vadd.f32 %v846, %v1298
    %v1300 = vpop.f32.mrb[0].mxu0
    %v1301 = vadd.f32 %v850, %v1300
    %1302 = vdwg.mxu0
    %v1303 = vmax.f32 %v994, 0.0
    %v1304 = vmax.f32 %v996, 0.0
    %v1305 = vmax.f32 %v1037, 0.0
    %v1306 = vmax.f32 %v1039, 0.0
    %v1307 = vmax.f32 %v1080, 0.0
    %v1308 = vmax.f32 %v1082, 0.0
    %v1309 = vmax.f32 %v1123, 0.0
    %v1310 = vmax.f32 %v1125, 0.0
    %v1311 = vmax.f32 %v1166, 0.0
    %v1312 = vmax.f32 %v1168, 0.0
    %v1313 = vmax.f32 %v1209, 0.0
    %v1314 = vmax.f32 %v1211, 0.0
    %v1315 = vmax.f32 %v1252, 0.0
    %v1316 = vmax.f32 %v1254, 0.0
    %v1317 = vmax.f32 %v1295, 0.0
    %v1318 = vmax.f32 %v1297, 0.0
    %v1319 = vmax.f32 %v998, 0.0
    %v1320 = vmax.f32 %v1000, 0.0
    %v1321 = vmax.f32 %v1041, 0.0
    %v1322 = vmax.f32 %v1043, 0.0
    %v1323 = vmax.f32 %v1084, 0.0
    %v1324 = vmax.f32 %v1086, 0.0
    %v1325 = vmax.f32 %v1127, 0.0
    %v1326 = vmax.f32 %v1129, 0.0
    %v1327 = vmax.f32 %v1170, 0.0
    %v1328 = vmax.f32 %v1172, 0.0
    %v1329 = vmax.f32 %v1213, 0.0
    %v1330 = vmax.f32 %v1215, 0.0
    %v1331 = vmax.f32 %v1256, 0.0
    %v1332 = vmax.f32 %v1258, 0.0
    %v1333 = vmax.f32 %v1299, 0.0
    %v1334 = vmax.f32 %v1301, 0.0
    %v1335 = vpack.c.bf16 %v1319, %v1303
    %v1336 = vpack.c.bf16 %v1320, %v1304
    %v1337 = vpack.c.bf16 %v1321, %v1305
    %v1338 = vpack.c.bf16 %v1322, %v1306
    %v1339 = vpack.c.bf16 %v1323, %v1307
    %v1340 = vpack.c.bf16 %v1324, %v1308
    %v1341 = vpack.c.bf16 %v1325, %v1309
    %v1342 = vpack.c.bf16 %v1326, %v1310
    %v1343 = vpack.c.bf16 %v1327, %v1311
    %v1344 = vpack.c.bf16 %v1328, %v1312
    %v1345 = vpack.c.bf16 %v1329, %v1313
    %v1346 = vpack.c.bf16 %v1330, %v1314
    %v1347 = vpack.c.bf16 %v1331, %v1315
    %v1348 = vpack.c.bf16 %v1332, %v1316
    %v1349 = vpack.c.bf16 %v1333, %v1317
    %v1350 = vpack.c.bf16 %v1334, %v1318
    %v1351 = vld [vmem:[%s13] sm:$0xf]
    %v1352 = vld [vmem:[%s13 + $0x4] sm:$0xf]
    %v1353 = vld [vmem:[%s13 + $0x8] sm:$0xf]
    %v1354 = vld [vmem:[%s13 + $0xc] sm:$0xf]
    %v1355 = vld [vmem:[%s13 + $0x10] sm:$0xf]
    %v1356 = vld [vmem:[%s13 + $0x14] sm:$0xf]
    %v1357 = vld [vmem:[%s13 + $0x18] sm:$0xf]
    %v1358 = vld [vmem:[%s13 + $0x1c] sm:$0xf]
    %v1359 = vld [vmem:[%s13 + $0x20] sm:$0xf]
    %v1360 = vld [vmem:[%s13 + $0x24] sm:$0xf]
    %v1361 = vld [vmem:[%s13 + $0x28] sm:$0xf]
    %v1362 = vld [vmem:[%s13 + $0x2c] sm:$0xf]
    %v1363 = vld [vmem:[%s13 + $0x30] sm:$0xf]
    %v1364 = vld [vmem:[%s13 + $0x34] sm:$0xf]
    %v1365 = vld [vmem:[%s13 + $0x38] sm:$0xf]
    %v1366 = vld [vmem:[%s13 + $0x3c] sm:$0xf]
    %v1367 = vld [vmem:[%s13 + $0x40] sm:$0xf]
    %v1368 = vld [vmem:[%s13 + $0x44] sm:$0xf]
    %v1369 = vld [vmem:[%s13 + $0x48] sm:$0xf]
    %v1370 = vld [vmem:[%s13 + $0x4c] sm:$0xf]
    %v1371 = vld [vmem:[%s13 + $0x50] sm:$0xf]
    %v1372 = vld [vmem:[%s13 + $0x54] sm:$0xf]
    %v1373 = vld [vmem:[%s13 + $0x58] sm:$0xf]
    %v1374 = vld [vmem:[%s13 + $0x5c] sm:$0xf]
    %v1375 = vld [vmem:[%s13 + $0x60] sm:$0xf]
    %v1376 = vld [vmem:[%s13 + $0x64] sm:$0xf]
    %v1377 = vld [vmem:[%s13 + $0x68] sm:$0xf]
    %v1378 = vld [vmem:[%s13 + $0x6c] sm:$0xf]
    %v1379 = vld [vmem:[%s13 + $0x70] sm:$0xf]
    %v1380 = vld [vmem:[%s13 + $0x74] sm:$0xf]
    %v1381 = vld [vmem:[%s13 + $0x78] sm:$0xf]
    %v1382 = vld [vmem:[%s13 + $0x7c] sm:$0xf]
    %v1383 = vld [vmem:[%s13 + $0x80] sm:$0xf]
    %v1384 = vld [vmem:[%s13 + $0x84] sm:$0xf]
    %v1385 = vld [vmem:[%s13 + $0x88] sm:$0xf]
    %v1386 = vld [vmem:[%s13 + $0x8c] sm:$0xf]
    %v1387 = vld [vmem:[%s13 + $0x90] sm:$0xf]
    %v1388 = vld [vmem:[%s13 + $0x94] sm:$0xf]
    %v1389 = vld [vmem:[%s13 + $0x98] sm:$0xf]
    %v1390 = vld [vmem:[%s13 + $0x9c] sm:$0xf]
    %v1391 = vld [vmem:[%s13 + $0xa0] sm:$0xf]
    %v1392 = vld [vmem:[%s13 + $0xa4] sm:$0xf]
    %v1393 = vld [vmem:[%s13 + $0xa8] sm:$0xf]
    %v1394 = vld [vmem:[%s13 + $0xac] sm:$0xf]
    %v1395 = vld [vmem:[%s13 + $0xb0] sm:$0xf]
    %v1396 = vld [vmem:[%s13 + $0xb4] sm:$0xf]
    %v1397 = vld [vmem:[%s13 + $0xb8] sm:$0xf]
    %v1398 = vld [vmem:[%s13 + $0xbc] sm:$0xf]
    %v1399 = vld [vmem:[%s13 + $0xc0] sm:$0xf]
    %v1400 = vld [vmem:[%s13 + $0xc4] sm:$0xf]
    %v1401 = vld [vmem:[%s13 + $0xc8] sm:$0xf]
    %v1402 = vld [vmem:[%s13 + $0xcc] sm:$0xf]
    %v1403 = vld [vmem:[%s13 + $0xd0] sm:$0xf]
    %v1404 = vld [vmem:[%s13 + $0xd4] sm:$0xf]
    %v1405 = vld [vmem:[%s13 + $0xd8] sm:$0xf]
    %v1406 = vld [vmem:[%s13 + $0xdc] sm:$0xf]
    %v1407 = vld [vmem:[%s13 + $0xe0] sm:$0xf]
    %v1408 = vld [vmem:[%s13 + $0xe4] sm:$0xf]
    %v1409 = vld [vmem:[%s13 + $0xe8] sm:$0xf]
    %v1410 = vld [vmem:[%s13 + $0xec] sm:$0xf]
    %v1411 = vld [vmem:[%s13 + $0xf0] sm:$0xf]
    %v1412 = vld [vmem:[%s13 + $0xf4] sm:$0xf]
    %v1413 = vld [vmem:[%s13 + $0xf8] sm:$0xf]
    %v1414 = vld [vmem:[%s13 + $0xfc] sm:$0xf]
    %v1415 = vld [vmem:[%s13 + $0x100] sm:$0xf]
    %v1416 = vld [vmem:[%s13 + $0x104] sm:$0xf]
    %v1417 = vld [vmem:[%s13 + $0x108] sm:$0xf]
    %v1418 = vld [vmem:[%s13 + $0x10c] sm:$0xf]
    %v1419 = vld [vmem:[%s13 + $0x110] sm:$0xf]
    %v1420 = vld [vmem:[%s13 + $0x114] sm:$0xf]
    %v1421 = vld [vmem:[%s13 + $0x118] sm:$0xf]
    %v1422 = vld [vmem:[%s13 + $0x11c] sm:$0xf]
    %v1423 = vld [vmem:[%s13 + $0x120] sm:$0xf]
    %v1424 = vld [vmem:[%s13 + $0x124] sm:$0xf]
    %v1425 = vld [vmem:[%s13 + $0x128] sm:$0xf]
    %v1426 = vld [vmem:[%s13 + $0x12c] sm:$0xf]
    %v1427 = vld [vmem:[%s13 + $0x130] sm:$0xf]
    %v1428 = vld [vmem:[%s13 + $0x134] sm:$0xf]
    %v1429 = vld [vmem:[%s13 + $0x138] sm:$0xf]
    %v1430 = vld [vmem:[%s13 + $0x13c] sm:$0xf]
    %v1431 = vld [vmem:[%s13 + $0x140] sm:$0xf]
    %v1432 = vld [vmem:[%s13 + $0x144] sm:$0xf]
    %v1433 = vld [vmem:[%s13 + $0x148] sm:$0xf]
    %v1434 = vld [vmem:[%s13 + $0x14c] sm:$0xf]
    %v1435 = vld [vmem:[%s13 + $0x150] sm:$0xf]
    %v1436 = vld [vmem:[%s13 + $0x154] sm:$0xf]
    %v1437 = vld [vmem:[%s13 + $0x158] sm:$0xf]
    %v1438 = vld [vmem:[%s13 + $0x15c] sm:$0xf]
    %v1439 = vld [vmem:[%s13 + $0x160] sm:$0xf]
    %v1440 = vld [vmem:[%s13 + $0x164] sm:$0xf]
    %v1441 = vld [vmem:[%s13 + $0x168] sm:$0xf]
    %v1442 = vld [vmem:[%s13 + $0x16c] sm:$0xf]
    %v1443 = vld [vmem:[%s13 + $0x170] sm:$0xf]
    %v1444 = vld [vmem:[%s13 + $0x174] sm:$0xf]
    %v1445 = vld [vmem:[%s13 + $0x178] sm:$0xf]
    %v1446 = vld [vmem:[%s13 + $0x17c] sm:$0xf]
    %v1447 = vld [vmem:[%s13 + $0x180] sm:$0xf]
    %v1448 = vld [vmem:[%s13 + $0x184] sm:$0xf]
    %v1449 = vld [vmem:[%s13 + $0x188] sm:$0xf]
    %v1450 = vld [vmem:[%s13 + $0x18c] sm:$0xf]
    %v1451 = vld [vmem:[%s13 + $0x190] sm:$0xf]
    %v1452 = vld [vmem:[%s13 + $0x194] sm:$0xf]
    %v1453 = vld [vmem:[%s13 + $0x198] sm:$0xf]
    %v1454 = vld [vmem:[%s13 + $0x19c] sm:$0xf]
    %v1455 = vld [vmem:[%s13 + $0x1a0] sm:$0xf]
    %v1456 = vld [vmem:[%s13 + $0x1a4] sm:$0xf]
    %v1457 = vld [vmem:[%s13 + $0x1a8] sm:$0xf]
    %v1458 = vld [vmem:[%s13 + $0x1ac] sm:$0xf]
    %v1459 = vld [vmem:[%s13 + $0x1b0] sm:$0xf]
    %v1460 = vld [vmem:[%s13 + $0x1b4] sm:$0xf]
    %v1461 = vld [vmem:[%s13 + $0x1b8] sm:$0xf]
    %v1462 = vld [vmem:[%s13 + $0x1bc] sm:$0xf]
    %v1463 = vld [vmem:[%s13 + $0x1c0] sm:$0xf]
    %v1464 = vld [vmem:[%s13 + $0x1c4] sm:$0xf]
    %v1465 = vld [vmem:[%s13 + $0x1c8] sm:$0xf]
    %v1466 = vld [vmem:[%s13 + $0x1cc] sm:$0xf]
    %v1467 = vld [vmem:[%s13 + $0x1d0] sm:$0xf]
    %v1468 = vld [vmem:[%s13 + $0x1d4] sm:$0xf]
    %v1469 = vld [vmem:[%s13 + $0x1d8] sm:$0xf]
    %v1470 = vld [vmem:[%s13 + $0x1dc] sm:$0xf]
    %v1471 = vld [vmem:[%s13 + $0x1e0] sm:$0xf]
    %v1472 = vld [vmem:[%s13 + $0x1e4] sm:$0xf]
    %v1473 = vld [vmem:[%s13 + $0x1e8] sm:$0xf]
    %v1474 = vld [vmem:[%s13 + $0x1ec] sm:$0xf]
    %v1475 = vld [vmem:[%s13 + $0x1f0] sm:$0xf]
    %v1476 = vld [vmem:[%s13 + $0x1f4] sm:$0xf]
    %v1477 = vld [vmem:[%s13 + $0x1f8] sm:$0xf]
    %v1478 = vld [vmem:[%s13 + $0x1fc] sm:$0xf]
    %v1479 = vld [vmem:[%s13 + $0x200] sm:$0xf]
    %v1480 = vld [vmem:[%s13 + $0x204] sm:$0xf]
    %v1481 = vld [vmem:[%s13 + $0x208] sm:$0xf]
    %v1482 = vld [vmem:[%s13 + $0x20c] sm:$0xf]
    %v1483 = vld [vmem:[%s13 + $0x210] sm:$0xf]
    %v1484 = vld [vmem:[%s13 + $0x214] sm:$0xf]
    %v1485 = vld [vmem:[%s13 + $0x218] sm:$0xf]
    %v1486 = vld [vmem:[%s13 + $0x21c] sm:$0xf]
    %v1487 = vld [vmem:[%s13 + $0x220] sm:$0xf]
    %v1488 = vld [vmem:[%s13 + $0x224] sm:$0xf]
    %v1489 = vld [vmem:[%s13 + $0x228] sm:$0xf]
    %v1490 = vld [vmem:[%s13 + $0x22c] sm:$0xf]
    %v1491 = vld [vmem:[%s13 + $0x230] sm:$0xf]
    %v1492 = vld [vmem:[%s13 + $0x234] sm:$0xf]
    %v1493 = vld [vmem:[%s13 + $0x238] sm:$0xf]
    %v1494 = vld [vmem:[%s13 + $0x23c] sm:$0xf]
    %v1495 = vld [vmem:[%s13 + $0x240] sm:$0xf]
    %v1496 = vld [vmem:[%s13 + $0x244] sm:$0xf]
    %v1497 = vld [vmem:[%s13 + $0x248] sm:$0xf]
    %v1498 = vld [vmem:[%s13 + $0x24c] sm:$0xf]
    %v1499 = vld [vmem:[%s13 + $0x250] sm:$0xf]
    %v1500 = vld [vmem:[%s13 + $0x254] sm:$0xf]
    %v1501 = vld [vmem:[%s13 + $0x258] sm:$0xf]
    %v1502 = vld [vmem:[%s13 + $0x25c] sm:$0xf]
    %v1503 = vld [vmem:[%s13 + $0x260] sm:$0xf]
    %v1504 = vld [vmem:[%s13 + $0x264] sm:$0xf]
    %v1505 = vld [vmem:[%s13 + $0x268] sm:$0xf]
    %v1506 = vld [vmem:[%s13 + $0x26c] sm:$0xf]
    %v1507 = vld [vmem:[%s13 + $0x270] sm:$0xf]
    %v1508 = vld [vmem:[%s13 + $0x274] sm:$0xf]
    %v1509 = vld [vmem:[%s13 + $0x278] sm:$0xf]
    %v1510 = vld [vmem:[%s13 + $0x27c] sm:$0xf]
    %v1511 = vld [vmem:[%s13 + $0x280] sm:$0xf]
    %v1512 = vld [vmem:[%s13 + $0x284] sm:$0xf]
    %v1513 = vld [vmem:[%s13 + $0x288] sm:$0xf]
    %v1514 = vld [vmem:[%s13 + $0x28c] sm:$0xf]
    %v1515 = vld [vmem:[%s13 + $0x290] sm:$0xf]
    %v1516 = vld [vmem:[%s13 + $0x294] sm:$0xf]
    %v1517 = vld [vmem:[%s13 + $0x298] sm:$0xf]
    %v1518 = vld [vmem:[%s13 + $0x29c] sm:$0xf]
    %v1519 = vld [vmem:[%s13 + $0x2a0] sm:$0xf]
    %v1520 = vld [vmem:[%s13 + $0x2a4] sm:$0xf]
    %v1521 = vld [vmem:[%s13 + $0x2a8] sm:$0xf]
    %v1522 = vld [vmem:[%s13 + $0x2ac] sm:$0xf]
    %v1523 = vld [vmem:[%s13 + $0x2b0] sm:$0xf]
    %v1524 = vld [vmem:[%s13 + $0x2b4] sm:$0xf]
    %v1525 = vld [vmem:[%s13 + $0x2b8] sm:$0xf]
    %v1526 = vld [vmem:[%s13 + $0x2bc] sm:$0xf]
    %v1527 = vld [vmem:[%s13 + $0x2c0] sm:$0xf]
    %v1528 = vld [vmem:[%s13 + $0x2c4] sm:$0xf]
    %v1529 = vld [vmem:[%s13 + $0x2c8] sm:$0xf]
    %v1530 = vld [vmem:[%s13 + $0x2cc] sm:$0xf]
    %v1531 = vld [vmem:[%s13 + $0x2d0] sm:$0xf]
    %v1532 = vld [vmem:[%s13 + $0x2d4] sm:$0xf]
    %v1533 = vld [vmem:[%s13 + $0x2d8] sm:$0xf]
    %v1534 = vld [vmem:[%s13 + $0x2dc] sm:$0xf]
    %v1535 = vld [vmem:[%s13 + $0x2e0] sm:$0xf]
    %v1536 = vld [vmem:[%s13 + $0x2e4] sm:$0xf]
    %v1537 = vld [vmem:[%s13 + $0x2e8] sm:$0xf]
    %v1538 = vld [vmem:[%s13 + $0x2ec] sm:$0xf]
    %v1539 = vld [vmem:[%s13 + $0x2f0] sm:$0xf]
    %v1540 = vld [vmem:[%s13 + $0x2f4] sm:$0xf]
    %v1541 = vld [vmem:[%s13 + $0x2f8] sm:$0xf]
    %v1542 = vld [vmem:[%s13 + $0x2fc] sm:$0xf]
    %v1543 = vld [vmem:[%s13 + $0x300] sm:$0xf]
    %v1544 = vld [vmem:[%s13 + $0x304] sm:$0xf]
    %v1545 = vld [vmem:[%s13 + $0x308] sm:$0xf]
    %v1546 = vld [vmem:[%s13 + $0x30c] sm:$0xf]
    %v1547 = vld [vmem:[%s13 + $0x310] sm:$0xf]
    %v1548 = vld [vmem:[%s13 + $0x314] sm:$0xf]
    %v1549 = vld [vmem:[%s13 + $0x318] sm:$0xf]
    %v1550 = vld [vmem:[%s13 + $0x31c] sm:$0xf]
    %v1551 = vld [vmem:[%s13 + $0x320] sm:$0xf]
    %v1552 = vld [vmem:[%s13 + $0x324] sm:$0xf]
    %v1553 = vld [vmem:[%s13 + $0x328] sm:$0xf]
    %v1554 = vld [vmem:[%s13 + $0x32c] sm:$0xf]
    %v1555 = vld [vmem:[%s13 + $0x330] sm:$0xf]
    %v1556 = vld [vmem:[%s13 + $0x334] sm:$0xf]
    %v1557 = vld [vmem:[%s13 + $0x338] sm:$0xf]
    %v1558 = vld [vmem:[%s13 + $0x33c] sm:$0xf]
    %v1559 = vld [vmem:[%s13 + $0x340] sm:$0xf]
    %v1560 = vld [vmem:[%s13 + $0x344] sm:$0xf]
    %v1561 = vld [vmem:[%s13 + $0x348] sm:$0xf]
    %v1562 = vld [vmem:[%s13 + $0x34c] sm:$0xf]
    %v1563 = vld [vmem:[%s13 + $0x350] sm:$0xf]
    %v1564 = vld [vmem:[%s13 + $0x354] sm:$0xf]
    %v1565 = vld [vmem:[%s13 + $0x358] sm:$0xf]
    %v1566 = vld [vmem:[%s13 + $0x35c] sm:$0xf]
    %v1567 = vld [vmem:[%s13 + $0x360] sm:$0xf]
    %v1568 = vld [vmem:[%s13 + $0x364] sm:$0xf]
    %v1569 = vld [vmem:[%s13 + $0x368] sm:$0xf]
    %v1570 = vld [vmem:[%s13 + $0x36c] sm:$0xf]
    %v1571 = vld [vmem:[%s13 + $0x370] sm:$0xf]
    %v1572 = vld [vmem:[%s13 + $0x374] sm:$0xf]
    %v1573 = vld [vmem:[%s13 + $0x378] sm:$0xf]
    %v1574 = vld [vmem:[%s13 + $0x37c] sm:$0xf]
    %v1575 = vld [vmem:[%s13 + $0x380] sm:$0xf]
    %v1576 = vld [vmem:[%s13 + $0x384] sm:$0xf]
    %v1577 = vld [vmem:[%s13 + $0x388] sm:$0xf]
    %v1578 = vld [vmem:[%s13 + $0x38c] sm:$0xf]
    %v1579 = vld [vmem:[%s13 + $0x390] sm:$0xf]
    %v1580 = vld [vmem:[%s13 + $0x394] sm:$0xf]
    %v1581 = vld [vmem:[%s13 + $0x398] sm:$0xf]
    %v1582 = vld [vmem:[%s13 + $0x39c] sm:$0xf]
    %v1583 = vld [vmem:[%s13 + $0x3a0] sm:$0xf]
    %v1584 = vld [vmem:[%s13 + $0x3a4] sm:$0xf]
    %v1585 = vld [vmem:[%s13 + $0x3a8] sm:$0xf]
    %v1586 = vld [vmem:[%s13 + $0x3ac] sm:$0xf]
    %v1587 = vld [vmem:[%s13 + $0x3b0] sm:$0xf]
    %v1588 = vld [vmem:[%s13 + $0x3b4] sm:$0xf]
    %v1589 = vld [vmem:[%s13 + $0x3b8] sm:$0xf]
    %v1590 = vld [vmem:[%s13 + $0x3bc] sm:$0xf]
    %v1591 = vld [vmem:[%s13 + $0x3c0] sm:$0xf]
    %v1592 = vld [vmem:[%s13 + $0x3c4] sm:$0xf]
    %v1593 = vld [vmem:[%s13 + $0x3c8] sm:$0xf]
    %v1594 = vld [vmem:[%s13 + $0x3cc] sm:$0xf]
    %v1595 = vld [vmem:[%s13 + $0x3d0] sm:$0xf]
    %v1596 = vld [vmem:[%s13 + $0x3d4] sm:$0xf]
    %v1597 = vld [vmem:[%s13 + $0x3d8] sm:$0xf]
    %v1598 = vld [vmem:[%s13 + $0x3dc] sm:$0xf]
    %v1599 = vld [vmem:[%s13 + $0x3e0] sm:$0xf]
    %v1600 = vld [vmem:[%s13 + $0x3e4] sm:$0xf]
    %v1601 = vld [vmem:[%s13 + $0x3e8] sm:$0xf]
    %v1602 = vld [vmem:[%s13 + $0x3ec] sm:$0xf]
    %v1603 = vld [vmem:[%s13 + $0x3f0] sm:$0xf]
    %v1604 = vld [vmem:[%s13 + $0x3f4] sm:$0xf]
    %v1605 = vld [vmem:[%s13 + $0x3f8] sm:$0xf]
    %v1606 = vld [vmem:[%s13 + $0x3fc] sm:$0xf]
    %v1607 = vld [vmem:[%s14] sm:$0x1]
    %v1608 = vlaneseq
    %v1609 = vshrl.u32 %v1608, 7
    %v1610 = vsub.s32 0, %v1609
    %v1611 = vrot.slane %v1607, %v1610
    %v1868 = vunpack.c.l.b16 %v1351
    %v1869 = vunpack.c.l.b16 %v1352
    %v1870 = vunpack.c.l.b16 %v1353
    %v1871 = vunpack.c.l.b16 %v1354
    %v1872 = vunpack.c.l.b16 %v1355
    %v1873 = vunpack.c.l.b16 %v1356
    %v1874 = vunpack.c.l.b16 %v1357
    %v1875 = vunpack.c.l.b16 %v1358
    %v1876 = vunpack.c.l.b16 %v1359
    %v1877 = vunpack.c.l.b16 %v1360
    %v1878 = vunpack.c.l.b16 %v1361
    %v1879 = vunpack.c.l.b16 %v1362
    %v1880 = vunpack.c.l.b16 %v1363
    %v1881 = vunpack.c.l.b16 %v1364
    %v1882 = vunpack.c.l.b16 %v1365
    %v1883 = vunpack.c.l.b16 %v1366
    %v1884 = vunpack.c.l.b16 %v1367
    %v1885 = vunpack.c.l.b16 %v1368
    %v1886 = vunpack.c.l.b16 %v1369
    %v1887 = vunpack.c.l.b16 %v1370
    %v1888 = vunpack.c.l.b16 %v1371
    %v1889 = vunpack.c.l.b16 %v1372
    %v1890 = vunpack.c.l.b16 %v1373
    %v1891 = vunpack.c.l.b16 %v1374
    %v1892 = vunpack.c.l.b16 %v1375
    %v1893 = vunpack.c.l.b16 %v1376
    %v1894 = vunpack.c.l.b16 %v1377
    %v1895 = vunpack.c.l.b16 %v1378
    %v1896 = vunpack.c.l.b16 %v1379
    %v1897 = vunpack.c.l.b16 %v1380
    %v1898 = vunpack.c.l.b16 %v1381
    %v1899 = vunpack.c.l.b16 %v1382
    %v1900 = vunpack.c.l.b16 %v1383
    %v1901 = vunpack.c.l.b16 %v1384
    %v1902 = vunpack.c.l.b16 %v1385
    %v1903 = vunpack.c.l.b16 %v1386
    %v1904 = vunpack.c.l.b16 %v1387
    %v1905 = vunpack.c.l.b16 %v1388
    %v1906 = vunpack.c.l.b16 %v1389
    %v1907 = vunpack.c.l.b16 %v1390
    %v1908 = vunpack.c.l.b16 %v1391
    %v1909 = vunpack.c.l.b16 %v1392
    %v1910 = vunpack.c.l.b16 %v1393
    %v1911 = vunpack.c.l.b16 %v1394
    %v1912 = vunpack.c.l.b16 %v1395
    %v1913 = vunpack.c.l.b16 %v1396
    %v1914 = vunpack.c.l.b16 %v1397
    %v1915 = vunpack.c.l.b16 %v1398
    %v1916 = vunpack.c.l.b16 %v1399
    %v1917 = vunpack.c.l.b16 %v1400
    %v1918 = vunpack.c.l.b16 %v1401
    %v1919 = vunpack.c.l.b16 %v1402
    %v1920 = vunpack.c.l.b16 %v1403
    %v1921 = vunpack.c.l.b16 %v1404
    %v1922 = vunpack.c.l.b16 %v1405
    %v1923 = vunpack.c.l.b16 %v1406
    %v1924 = vunpack.c.l.b16 %v1407
    %v1925 = vunpack.c.l.b16 %v1408
    %v1926 = vunpack.c.l.b16 %v1409
    %v1927 = vunpack.c.l.b16 %v1410
    %v1928 = vunpack.c.l.b16 %v1411
    %v1929 = vunpack.c.l.b16 %v1412
    %v1930 = vunpack.c.l.b16 %v1413
    %v1931 = vunpack.c.l.b16 %v1414
    %v1932 = vunpack.c.l.b16 %v1415
    %v1933 = vunpack.c.l.b16 %v1416
    %v1934 = vunpack.c.l.b16 %v1417
    %v1935 = vunpack.c.l.b16 %v1418
    %v1936 = vunpack.c.l.b16 %v1419
    %v1937 = vunpack.c.l.b16 %v1420
    %v1938 = vunpack.c.l.b16 %v1421
    %v1939 = vunpack.c.l.b16 %v1422
    %v1940 = vunpack.c.l.b16 %v1423
    %v1941 = vunpack.c.l.b16 %v1424
    %v1942 = vunpack.c.l.b16 %v1425
    %v1943 = vunpack.c.l.b16 %v1426
    %v1944 = vunpack.c.l.b16 %v1427
    %v1945 = vunpack.c.l.b16 %v1428
    %v1946 = vunpack.c.l.b16 %v1429
    %v1947 = vunpack.c.l.b16 %v1430
    %v1948 = vunpack.c.l.b16 %v1431
    %v1949 = vunpack.c.l.b16 %v1432
    %v1950 = vunpack.c.l.b16 %v1433
    %v1951 = vunpack.c.l.b16 %v1434
    %v1952 = vunpack.c.l.b16 %v1435
    %v1953 = vunpack.c.l.b16 %v1436
    %v1954 = vunpack.c.l.b16 %v1437
    %v1955 = vunpack.c.l.b16 %v1438
    %v1956 = vunpack.c.l.b16 %v1439
    %v1957 = vunpack.c.l.b16 %v1440
    %v1958 = vunpack.c.l.b16 %v1441
    %v1959 = vunpack.c.l.b16 %v1442
    %v1960 = vunpack.c.l.b16 %v1443
    %v1961 = vunpack.c.l.b16 %v1444
    %v1962 = vunpack.c.l.b16 %v1445
    %v1963 = vunpack.c.l.b16 %v1446
    %v1964 = vunpack.c.l.b16 %v1447
    %v1965 = vunpack.c.l.b16 %v1448
    %v1966 = vunpack.c.l.b16 %v1449
    %v1967 = vunpack.c.l.b16 %v1450
    %v1968 = vunpack.c.l.b16 %v1451
    %v1969 = vunpack.c.l.b16 %v1452
    %v1970 = vunpack.c.l.b16 %v1453
    %v1971 = vunpack.c.l.b16 %v1454
    %v1972 = vunpack.c.l.b16 %v1455
    %v1973 = vunpack.c.l.b16 %v1456
    %v1974 = vunpack.c.l.b16 %v1457
    %v1975 = vunpack.c.l.b16 %v1458
    %v1976 = vunpack.c.l.b16 %v1459
    %v1977 = vunpack.c.l.b16 %v1460
    %v1978 = vunpack.c.l.b16 %v1461
    %v1979 = vunpack.c.l.b16 %v1462
    %v1980 = vunpack.c.l.b16 %v1463
    %v1981 = vunpack.c.l.b16 %v1464
    %v1982 = vunpack.c.l.b16 %v1465
    %v1983 = vunpack.c.l.b16 %v1466
    %v1984 = vunpack.c.l.b16 %v1467
    %v1985 = vunpack.c.l.b16 %v1468
    %v1986 = vunpack.c.l.b16 %v1469
    %v1987 = vunpack.c.l.b16 %v1470
    %v1988 = vunpack.c.l.b16 %v1471
    %v1989 = vunpack.c.l.b16 %v1472
    %v1990 = vunpack.c.l.b16 %v1473
    %v1991 = vunpack.c.l.b16 %v1474
    %v1992 = vunpack.c.l.b16 %v1475
    %v1993 = vunpack.c.l.b16 %v1476
    %v1994 = vunpack.c.l.b16 %v1477
    %v1995 = vunpack.c.l.b16 %v1478
    %v1996 = vunpack.c.l.b16 %v1479
    %v1997 = vunpack.c.l.b16 %v1480
    %v1998 = vunpack.c.l.b16 %v1481
    %v1999 = vunpack.c.l.b16 %v1482
    %v2000 = vunpack.c.l.b16 %v1483
    %v2001 = vunpack.c.l.b16 %v1484
    %v2002 = vunpack.c.l.b16 %v1485
    %v2003 = vunpack.c.l.b16 %v1486
    %v2004 = vunpack.c.l.b16 %v1487
    %v2005 = vunpack.c.l.b16 %v1488
    %v2006 = vunpack.c.l.b16 %v1489
    %v2007 = vunpack.c.l.b16 %v1490
    %v2008 = vunpack.c.l.b16 %v1491
    %v2009 = vunpack.c.l.b16 %v1492
    %v2010 = vunpack.c.l.b16 %v1493
    %v2011 = vunpack.c.l.b16 %v1494
    %v2012 = vunpack.c.l.b16 %v1495
    %v2013 = vunpack.c.l.b16 %v1496
    %v2014 = vunpack.c.l.b16 %v1497
    %v2015 = vunpack.c.l.b16 %v1498
    %v2016 = vunpack.c.l.b16 %v1499
    %v2017 = vunpack.c.l.b16 %v1500
    %v2018 = vunpack.c.l.b16 %v1501
    %v2019 = vunpack.c.l.b16 %v1502
    %v2020 = vunpack.c.l.b16 %v1503
    %v2021 = vunpack.c.l.b16 %v1504
    %v2022 = vunpack.c.l.b16 %v1505
    %v2023 = vunpack.c.l.b16 %v1506
    %v2024 = vunpack.c.l.b16 %v1507
    %v2025 = vunpack.c.l.b16 %v1508
    %v2026 = vunpack.c.l.b16 %v1509
    %v2027 = vunpack.c.l.b16 %v1510
    %v2028 = vunpack.c.l.b16 %v1511
    %v2029 = vunpack.c.l.b16 %v1512
    %v2030 = vunpack.c.l.b16 %v1513
    %v2031 = vunpack.c.l.b16 %v1514
    %v2032 = vunpack.c.l.b16 %v1515
    %v2033 = vunpack.c.l.b16 %v1516
    %v2034 = vunpack.c.l.b16 %v1517
    %v2035 = vunpack.c.l.b16 %v1518
    %v2036 = vunpack.c.l.b16 %v1519
    %v2037 = vunpack.c.l.b16 %v1520
    %v2038 = vunpack.c.l.b16 %v1521
    %v2039 = vunpack.c.l.b16 %v1522
    %v2040 = vunpack.c.l.b16 %v1523
    %v2041 = vunpack.c.l.b16 %v1524
    %v2042 = vunpack.c.l.b16 %v1525
    %v2043 = vunpack.c.l.b16 %v1526
    %v2044 = vunpack.c.l.b16 %v1527
    %v2045 = vunpack.c.l.b16 %v1528
    %v2046 = vunpack.c.l.b16 %v1529
    %v2047 = vunpack.c.l.b16 %v1530
    %v2048 = vunpack.c.l.b16 %v1531
    %v2049 = vunpack.c.l.b16 %v1532
    %v2050 = vunpack.c.l.b16 %v1533
    %v2051 = vunpack.c.l.b16 %v1534
    %v2052 = vunpack.c.l.b16 %v1535
    %v2053 = vunpack.c.l.b16 %v1536
    %v2054 = vunpack.c.l.b16 %v1537
    %v2055 = vunpack.c.l.b16 %v1538
    %v2056 = vunpack.c.l.b16 %v1539
    %v2057 = vunpack.c.l.b16 %v1540
    %v2058 = vunpack.c.l.b16 %v1541
    %v2059 = vunpack.c.l.b16 %v1542
    %v2060 = vunpack.c.l.b16 %v1543
    %v2061 = vunpack.c.l.b16 %v1544
    %v2062 = vunpack.c.l.b16 %v1545
    %v2063 = vunpack.c.l.b16 %v1546
    %v2064 = vunpack.c.l.b16 %v1547
    %v2065 = vunpack.c.l.b16 %v1548
    %v2066 = vunpack.c.l.b16 %v1549
    %v2067 = vunpack.c.l.b16 %v1550
    %v2068 = vunpack.c.l.b16 %v1551
    %v2069 = vunpack.c.l.b16 %v1552
    %v2070 = vunpack.c.l.b16 %v1553
    %v2071 = vunpack.c.l.b16 %v1554
    %v2072 = vunpack.c.l.b16 %v1555
    %v2073 = vunpack.c.l.b16 %v1556
    %v2074 = vunpack.c.l.b16 %v1557
    %v2075 = vunpack.c.l.b16 %v1558
    %v2076 = vunpack.c.l.b16 %v1559
    %v2077 = vunpack.c.l.b16 %v1560
    %v2078 = vunpack.c.l.b16 %v1561
    %v2079 = vunpack.c.l.b16 %v1562
    %v2080 = vunpack.c.l.b16 %v1563
    %v2081 = vunpack.c.l.b16 %v1564
    %v2082 = vunpack.c.l.b16 %v1565
    %v2083 = vunpack.c.l.b16 %v1566
    %v2084 = vunpack.c.l.b16 %v1567
    %v2085 = vunpack.c.l.b16 %v1568
    %v2086 = vunpack.c.l.b16 %v1569
    %v2087 = vunpack.c.l.b16 %v1570
    %v2088 = vunpack.c.l.b16 %v1571
    %v2089 = vunpack.c.l.b16 %v1572
    %v2090 = vunpack.c.l.b16 %v1573
    %v2091 = vunpack.c.l.b16 %v1574
    %v2092 = vunpack.c.l.b16 %v1575
    %v2093 = vunpack.c.l.b16 %v1576
    %v2094 = vunpack.c.l.b16 %v1577
    %v2095 = vunpack.c.l.b16 %v1578
    %v2096 = vunpack.c.l.b16 %v1579
    %v2097 = vunpack.c.l.b16 %v1580
    %v2098 = vunpack.c.l.b16 %v1581
    %v2099 = vunpack.c.l.b16 %v1582
    %v2100 = vunpack.c.l.b16 %v1583
    %v2101 = vunpack.c.l.b16 %v1584
    %v2102 = vunpack.c.l.b16 %v1585
    %v2103 = vunpack.c.l.b16 %v1586
    %v2104 = vunpack.c.l.b16 %v1587
    %v2105 = vunpack.c.l.b16 %v1588
    %v2106 = vunpack.c.l.b16 %v1589
    %v2107 = vunpack.c.l.b16 %v1590
    %v2108 = vunpack.c.l.b16 %v1591
    %v2109 = vunpack.c.l.b16 %v1592
    %v2110 = vunpack.c.l.b16 %v1593
    %v2111 = vunpack.c.l.b16 %v1594
    %v2112 = vunpack.c.l.b16 %v1595
    %v2113 = vunpack.c.l.b16 %v1596
    %v2114 = vunpack.c.l.b16 %v1597
    %v2115 = vunpack.c.l.b16 %v1598
    %v2116 = vunpack.c.l.b16 %v1599
    %v2117 = vunpack.c.l.b16 %v1600
    %v2118 = vunpack.c.l.b16 %v1601
    %v2119 = vunpack.c.l.b16 %v1602
    %v2120 = vunpack.c.l.b16 %v1603
    %v2121 = vunpack.c.l.b16 %v1604
    %v2122 = vunpack.c.l.b16 %v1605
    %v2123 = vunpack.c.l.b16 %v1606
    %v2124 = vpack.c.b16 %v1869, %v1868
    %v2125 = vpack.c.b16 %v1871, %v1870
    %v2126 = vpack.c.b16 %v1873, %v1872
    %v2127 = vpack.c.b16 %v1875, %v1874
    %v2128 = vpack.c.b16 %v1877, %v1876
    %v2129 = vpack.c.b16 %v1879, %v1878
    %v2130 = vpack.c.b16 %v1881, %v1880
    %v2131 = vpack.c.b16 %v1883, %v1882
    %v2132 = vpack.c.b16 %v1885, %v1884
    %v2133 = vpack.c.b16 %v1887, %v1886
    %v2134 = vpack.c.b16 %v1889, %v1888
    %v2135 = vpack.c.b16 %v1891, %v1890
    %v2136 = vpack.c.b16 %v1893, %v1892
    %v2137 = vpack.c.b16 %v1895, %v1894
    %v2138 = vpack.c.b16 %v1897, %v1896
    %v2139 = vpack.c.b16 %v1899, %v1898
    %v2140 = vpack.c.b16 %v1901, %v1900
    %v2141 = vpack.c.b16 %v1903, %v1902
    %v2142 = vpack.c.b16 %v1905, %v1904
    %v2143 = vpack.c.b16 %v1907, %v1906
    %v2144 = vpack.c.b16 %v1909, %v1908
    %v2145 = vpack.c.b16 %v1911, %v1910
    %v2146 = vpack.c.b16 %v1913, %v1912
    %v2147 = vpack.c.b16 %v1915, %v1914
    %v2148 = vpack.c.b16 %v1917, %v1916
    %v2149 = vpack.c.b16 %v1919, %v1918
    %v2150 = vpack.c.b16 %v1921, %v1920
    %v2151 = vpack.c.b16 %v1923, %v1922
    %v2152 = vpack.c.b16 %v1925, %v1924
    %v2153 = vpack.c.b16 %v1927, %v1926
    %v2154 = vpack.c.b16 %v1929, %v1928
    %v2155 = vpack.c.b16 %v1931, %v1930
    %v2156 = vpack.c.b16 %v1933, %v1932
    %v2157 = vpack.c.b16 %v1935, %v1934
    %v2158 = vpack.c.b16 %v1937, %v1936
    %v2159 = vpack.c.b16 %v1939, %v1938
    %v2160 = vpack.c.b16 %v1941, %v1940
    %v2161 = vpack.c.b16 %v1943, %v1942
    %v2162 = vpack.c.b16 %v1945, %v1944
    %v2163 = vpack.c.b16 %v1947, %v1946
    %v2164 = vpack.c.b16 %v1949, %v1948
    %v2165 = vpack.c.b16 %v1951, %v1950
    %v2166 = vpack.c.b16 %v1953, %v1952
    %v2167 = vpack.c.b16 %v1955, %v1954
    %v2168 = vpack.c.b16 %v1957, %v1956
    %v2169 = vpack.c.b16 %v1959, %v1958
    %v2170 = vpack.c.b16 %v1961, %v1960
    %v2171 = vpack.c.b16 %v1963, %v1962
    %v2172 = vpack.c.b16 %v1965, %v1964
    %v2173 = vpack.c.b16 %v1967, %v1966
    %v2174 = vpack.c.b16 %v1969, %v1968
    %v2175 = vpack.c.b16 %v1971, %v1970
    %v2176 = vpack.c.b16 %v1973, %v1972
    %v2177 = vpack.c.b16 %v1975, %v1974
    %v2178 = vpack.c.b16 %v1977, %v1976
    %v2179 = vpack.c.b16 %v1979, %v1978
    %v2180 = vpack.c.b16 %v1981, %v1980
    %v2181 = vpack.c.b16 %v1983, %v1982
    %v2182 = vpack.c.b16 %v1985, %v1984
    %v2183 = vpack.c.b16 %v1987, %v1986
    %v2184 = vpack.c.b16 %v1989, %v1988
    %v2185 = vpack.c.b16 %v1991, %v1990
    %v2186 = vpack.c.b16 %v1993, %v1992
    %v2187 = vpack.c.b16 %v1995, %v1994
    %v2188 = vpack.c.b16 %v1997, %v1996
    %v2189 = vpack.c.b16 %v1999, %v1998
    %v2190 = vpack.c.b16 %v2001, %v2000
    %v2191 = vpack.c.b16 %v2003, %v2002
    %v2192 = vpack.c.b16 %v2005, %v2004
    %v2193 = vpack.c.b16 %v2007, %v2006
    %v2194 = vpack.c.b16 %v2009, %v2008
    %v2195 = vpack.c.b16 %v2011, %v2010
    %v2196 = vpack.c.b16 %v2013, %v2012
    %v2197 = vpack.c.b16 %v2015, %v2014
    %v2198 = vpack.c.b16 %v2017, %v2016
    %v2199 = vpack.c.b16 %v2019, %v2018
    %v2200 = vpack.c.b16 %v2021, %v2020
    %v2201 = vpack.c.b16 %v2023, %v2022
    %v2202 = vpack.c.b16 %v2025, %v2024
    %v2203 = vpack.c.b16 %v2027, %v2026
    %v2204 = vpack.c.b16 %v2029, %v2028
    %v2205 = vpack.c.b16 %v2031, %v2030
    %v2206 = vpack.c.b16 %v2033, %v2032
    %v2207 = vpack.c.b16 %v2035, %v2034
    %v2208 = vpack.c.b16 %v2037, %v2036
    %v2209 = vpack.c.b16 %v2039, %v2038
    %v2210 = vpack.c.b16 %v2041, %v2040
    %v2211 = vpack.c.b16 %v2043, %v2042
    %v2212 = vpack.c.b16 %v2045, %v2044
    %v2213 = vpack.c.b16 %v2047, %v2046
    %v2214 = vpack.c.b16 %v2049, %v2048
    %v2215 = vpack.c.b16 %v2051, %v2050
    %v2216 = vpack.c.b16 %v2053, %v2052
    %v2217 = vpack.c.b16 %v2055, %v2054
    %v2218 = vpack.c.b16 %v2057, %v2056
    %v2219 = vpack.c.b16 %v2059, %v2058
    %v2220 = vpack.c.b16 %v2061, %v2060
    %v2221 = vpack.c.b16 %v2063, %v2062
    %v2222 = vpack.c.b16 %v2065, %v2064
    %v2223 = vpack.c.b16 %v2067, %v2066
    %v2224 = vpack.c.b16 %v2069, %v2068
    %v2225 = vpack.c.b16 %v2071, %v2070
    %v2226 = vpack.c.b16 %v2073, %v2072
    %v2227 = vpack.c.b16 %v2075, %v2074
    %v2228 = vpack.c.b16 %v2077, %v2076
    %v2229 = vpack.c.b16 %v2079, %v2078
    %v2230 = vpack.c.b16 %v2081, %v2080
    %v2231 = vpack.c.b16 %v2083, %v2082
    %v2232 = vpack.c.b16 %v2085, %v2084
    %v2233 = vpack.c.b16 %v2087, %v2086
    %v2234 = vpack.c.b16 %v2089, %v2088
    %v2235 = vpack.c.b16 %v2091, %v2090
    %v2236 = vpack.c.b16 %v2093, %v2092
    %v2237 = vpack.c.b16 %v2095, %v2094
    %v2238 = vpack.c.b16 %v2097, %v2096
    %v2239 = vpack.c.b16 %v2099, %v2098
    %v2240 = vpack.c.b16 %v2101, %v2100
    %v2241 = vpack.c.b16 %v2103, %v2102
    %v2242 = vpack.c.b16 %v2105, %v2104
    %v2243 = vpack.c.b16 %v2107, %v2106
    %v2244 = vpack.c.b16 %v2109, %v2108
    %v2245 = vpack.c.b16 %v2111, %v2110
    %v2246 = vpack.c.b16 %v2113, %v2112
    %v2247 = vpack.c.b16 %v2115, %v2114
    %v2248 = vpack.c.b16 %v2117, %v2116
    %v2249 = vpack.c.b16 %v2119, %v2118
    %v2250 = vpack.c.b16 %v2121, %v2120
    %v2251 = vpack.c.b16 %v2123, %v2122
    %2380 = vmatprep.subr.bf16.mxu0 0
    %2381 = vmatpush1.bf16.msra.mxu0 %v2124
    %2382 = vmatprep.subr.bf16.mxu0 0
    %2383 = vmatpush1.bf16.msra.mxu0 %v2125
    %2384 = vmatprep.subr.bf16.mxu0 0
    %2385 = vmatpush1.bf16.msra.mxu0 %v2126
    %2386 = vmatprep.subr.bf16.mxu0 0
    %2387 = vmatpush1.bf16.msra.mxu0 %v2127
    %2388 = vmatprep.subr.bf16.mxu0 0
    %2389 = vmatpush1.bf16.msra.mxu0 %v2128
    %2390 = vmatprep.subr.bf16.mxu0 0
    %2391 = vmatpush1.bf16.msra.mxu0 %v2129
    %2392 = vmatprep.subr.bf16.mxu0 0
    %2393 = vmatpush1.bf16.msra.mxu0 %v2130
    %2394 = vmatprep.subr.bf16.mxu0 0
    %2395 = vmatpush1.bf16.msra.mxu0 %v2131
    %2396 = vmatprep.subr.bf16.mxu0 0
    %2397 = vmatpush1.bf16.msra.mxu0 %v2132
    %2398 = vmatprep.subr.bf16.mxu0 0
    %2399 = vmatpush1.bf16.msra.mxu0 %v2133
    %2400 = vmatprep.subr.bf16.mxu0 0
    %2401 = vmatpush1.bf16.msra.mxu0 %v2134
    %2402 = vmatprep.subr.bf16.mxu0 0
    %2403 = vmatpush1.bf16.msra.mxu0 %v2135
    %2404 = vmatprep.subr.bf16.mxu0 0
    %2405 = vmatpush1.bf16.msra.mxu0 %v2136
    %2406 = vmatprep.subr.bf16.mxu0 0
    %2407 = vmatpush1.bf16.msra.mxu0 %v2137
    %2408 = vmatprep.subr.bf16.mxu0 0
    %2409 = vmatpush1.bf16.msra.mxu0 %v2138
    %2410 = vmatprep.subr.bf16.mxu0 0
    %2411 = vmatpush1.bf16.msra.mxu0 %v2139
    %2412 = vmatprep.mubr.bf16.mxu0 %v1336
    %2413 = vmatmul.mubr.bf16.gmra.mrb[0].mxu0 %v1335
    %v2414 = vpop.f32.mrb[0].mxu0
    %v2415 = vadd.f32 %v1611, %v2414
    %v2416 = vpop.f32.mrb[0].mxu0
    %v2417 = vpop.f32.mrb[0].mxu0
    %v2418 = vadd.f32 %v1611, %v2417
    %v2419 = vpop.f32.mrb[0].mxu0
    %2420 = vdwg.mxu0
    %2421 = vmatprep.subr.bf16.mxu0 0
    %2422 = vmatpush1.bf16.msra.mxu0 %v2140
    %2423 = vmatprep.subr.bf16.mxu0 0
    %2424 = vmatpush1.bf16.msra.mxu0 %v2141
    %2425 = vmatprep.subr.bf16.mxu0 0
    %2426 = vmatpush1.bf16.msra.mxu0 %v2142
    %2427 = vmatprep.subr.bf16.mxu0 0
    %2428 = vmatpush1.bf16.msra.mxu0 %v2143
    %2429 = vmatprep.subr.bf16.mxu0 0
    %2430 = vmatpush1.bf16.msra.mxu0 %v2144
    %2431 = vmatprep.subr.bf16.mxu0 0
    %2432 = vmatpush1.bf16.msra.mxu0 %v2145
    %2433 = vmatprep.subr.bf16.mxu0 0
    %2434 = vmatpush1.bf16.msra.mxu0 %v2146
    %2435 = vmatprep.subr.bf16.mxu0 0
    %2436 = vmatpush1.bf16.msra.mxu0 %v2147
    %2437 = vmatprep.subr.bf16.mxu0 0
    %2438 = vmatpush1.bf16.msra.mxu0 %v2148
    %2439 = vmatprep.subr.bf16.mxu0 0
    %2440 = vmatpush1.bf16.msra.mxu0 %v2149
    %2441 = vmatprep.subr.bf16.mxu0 0
    %2442 = vmatpush1.bf16.msra.mxu0 %v2150
    %2443 = vmatprep.subr.bf16.mxu0 0
    %2444 = vmatpush1.bf16.msra.mxu0 %v2151
    %2445 = vmatprep.subr.bf16.mxu0 0
    %2446 = vmatpush1.bf16.msra.mxu0 %v2152
    %2447 = vmatprep.subr.bf16.mxu0 0
    %2448 = vmatpush1.bf16.msra.mxu0 %v2153
    %2449 = vmatprep.subr.bf16.mxu0 0
    %2450 = vmatpush1.bf16.msra.mxu0 %v2154
    %2451 = vmatprep.subr.bf16.mxu0 0
    %2452 = vmatpush1.bf16.msra.mxu0 %v2155
    %2453 = vmatprep.mubr.bf16.mxu0 %v1338
    %2454 = vmatmul.mubr.bf16.gmra.mrb[0].mxu0 %v1337
    %v2455 = vpop.f32.mrb[0].mxu0
    %v2456 = vadd.f32 %v2415, %v2455
    %v2457 = vpop.f32.mrb[0].mxu0
    %v2458 = vpop.f32.mrb[0].mxu0
    %v2459 = vadd.f32 %v2418, %v2458
    %v2460 = vpop.f32.mrb[0].mxu0
    %2461 = vdwg.mxu0
    %2462 = vmatprep.subr.bf16.mxu0 0
    %2463 = vmatpush1.bf16.msra.mxu0 %v2156
    %2464 = vmatprep.subr.bf16.mxu0 0
    %2465 = vmatpush1.bf16.msra.mxu0 %v2157
    %2466 = vmatprep.subr.bf16.mxu0 0
    %2467 = vmatpush1.bf16.msra.mxu0 %v2158
    %2468 = vmatprep.subr.bf16.mxu0 0
    %2469 = vmatpush1.bf16.msra.mxu0 %v2159
    %2470 = vmatprep.subr.bf16.mxu0 0
    %2471 = vmatpush1.bf16.msra.mxu0 %v2160
    %2472 = vmatprep.subr.bf16.mxu0 0
    %2473 = vmatpush1.bf16.msra.mxu0 %v2161
    %2474 = vmatprep.subr.bf16.mxu0 0
    %2475 = vmatpush1.bf16.msra.mxu0 %v2162
    %2476 = vmatprep.subr.bf16.mxu0 0
    %2477 = vmatpush1.bf16.msra.mxu0 %v2163
    %2478 = vmatprep.subr.bf16.mxu0 0
    %2479 = vmatpush1.bf16.msra.mxu0 %v2164
    %2480 = vmatprep.subr.bf16.mxu0 0
    %2481 = vmatpush1.bf16.msra.mxu0 %v2165
    %2482 = vmatprep.subr.bf16.mxu0 0
    %2483 = vmatpush1.bf16.msra.mxu0 %v2166
    %2484 = vmatprep.subr.bf16.mxu0 0
    %2485 = vmatpush1.bf16.msra.mxu0 %v2167
    %2486 = vmatprep.subr.bf16.mxu0 0
    %2487 = vmatpush1.bf16.msra.mxu0 %v2168
    %2488 = vmatprep.subr.bf16.mxu0 0
    %2489 = vmatpush1.bf16.msra.mxu0 %v2169
    %2490 = vmatprep.subr.bf16.mxu0 0
    %2491 = vmatpush1.bf16.msra.mxu0 %v2170
    %2492 = vmatprep.subr.bf16.mxu0 0
    %2493 = vmatpush1.bf16.msra.mxu0 %v2171
    %2494 = vmatprep.mubr.bf16.mxu0 %v1340
    %2495 = vmatmul.mubr.bf16.gmra.mrb[0].mxu0 %v1339
    %v2496 = vpop.f32.mrb[0].mxu0
    %v2497 = vadd.f32 %v2456, %v2496
    %v2498 = vpop.f32.mrb[0].mxu0
    %v2499 = vpop.f32.mrb[0].mxu0
    %v2500 = vadd.f32 %v2459, %v2499
    %v2501 = vpop.f32.mrb[0].mxu0
    %2502 = vdwg.mxu0
    %2503 = vmatprep.subr.bf16.mxu0 0
    %2504 = vmatpush1.bf16.msra.mxu0 %v2172
    %2505 = vmatprep.subr.bf16.mxu0 0
    %2506 = vmatpush1.bf16.msra.mxu0 %v2173
    %2507 = vmatprep.subr.bf16.mxu0 0
    %2508 = vmatpush1.bf16.msra.mxu0 %v2174
    %2509 = vmatprep.subr.bf16.mxu0 0
    %2510 = vmatpush1.bf16.msra.mxu0 %v2175
    %2511 = vmatprep.subr.bf16.mxu0 0
    %2512 = vmatpush1.bf16.msra.mxu0 %v2176
    %2513 = vmatprep.subr.bf16.mxu0 0
    %2514 = vmatpush1.bf16.msra.mxu0 %v2177
    %2515 = vmatprep.subr.bf16.mxu0 0
    %2516 = vmatpush1.bf16.msra.mxu0 %v2178
    %2517 = vmatprep.subr.bf16.mxu0 0
    %2518 = vmatpush1.bf16.msra.mxu0 %v2179
    %2519 = vmatprep.subr.bf16.mxu0 0
    %2520 = vmatpush1.bf16.msra.mxu0 %v2180
    %2521 = vmatprep.subr.bf16.mxu0 0
    %2522 = vmatpush1.bf16.msra.mxu0 %v2181
    %2523 = vmatprep.subr.bf16.mxu0 0
    %2524 = vmatpush1.bf16.msra.mxu0 %v2182
    %2525 = vmatprep.subr.bf16.mxu0 0
    %2526 = vmatpush1.bf16.msra.mxu0 %v2183
    %2527 = vmatprep.subr.bf16.mxu0 0
    %2528 = vmatpush1.bf16.msra.mxu0 %v2184
    %2529 = vmatprep.subr.bf16.mxu0 0
    %2530 = vmatpush1.bf16.msra.mxu0 %v2185
    %2531 = vmatprep.subr.bf16.mxu0 0
    %2532 = vmatpush1.bf16.msra.mxu0 %v2186
    %2533 = vmatprep.subr.bf16.mxu0 0
    %2534 = vmatpush1.bf16.msra.mxu0 %v2187
    %2535 = vmatprep.mubr.bf16.mxu0 %v1342
    %2536 = vmatmul.mubr.bf16.gmra.mrb[0].mxu0 %v1341
    %v2537 = vpop.f32.mrb[0].mxu0
    %v2538 = vadd.f32 %v2497, %v2537
    %v2539 = vpop.f32.mrb[0].mxu0
    %v2540 = vpop.f32.mrb[0].mxu0
    %v2541 = vadd.f32 %v2500, %v2540
    %v2542 = vpop.f32.mrb[0].mxu0
    %2543 = vdwg.mxu0
    %2544 = vmatprep.subr.bf16.mxu0 0
    %2545 = vmatpush1.bf16.msra.mxu0 %v2188
    %2546 = vmatprep.subr.bf16.mxu0 0
    %2547 = vmatpush1.bf16.msra.mxu0 %v2189
    %2548 = vmatprep.subr.bf16.mxu0 0
    %2549 = vmatpush1.bf16.msra.mxu0 %v2190
    %2550 = vmatprep.subr.bf16.mxu0 0
    %2551 = vmatpush1.bf16.msra.mxu0 %v2191
    %2552 = vmatprep.subr.bf16.mxu0 0
    %2553 = vmatpush1.bf16.msra.mxu0 %v2192
    %2554 = vmatprep.subr.bf16.mxu0 0
    %2555 = vmatpush1.bf16.msra.mxu0 %v2193
    %2556 = vmatprep.subr.bf16.mxu0 0
    %2557 = vmatpush1.bf16.msra.mxu0 %v2194
    %2558 = vmatprep.subr.bf16.mxu0 0
    %2559 = vmatpush1.bf16.msra.mxu0 %v2195
    %2560 = vmatprep.subr.bf16.mxu0 0
    %2561 = vmatpush1.bf16.msra.mxu0 %v2196
    %2562 = vmatprep.subr.bf16.mxu0 0
    %2563 = vmatpush1.bf16.msra.mxu0 %v2197
    %2564 = vmatprep.subr.bf16.mxu0 0
    %2565 = vmatpush1.bf16.msra.mxu0 %v2198
    %2566 = vmatprep.subr.bf16.mxu0 0
    %2567 = vmatpush1.bf16.msra.mxu0 %v2199
    %2568 = vmatprep.subr.bf16.mxu0 0
    %2569 = vmatpush1.bf16.msra.mxu0 %v2200
    %2570 = vmatprep.subr.bf16.mxu0 0
    %2571 = vmatpush1.bf16.msra.mxu0 %v2201
    %2572 = vmatprep.subr.bf16.mxu0 0
    %2573 = vmatpush1.bf16.msra.mxu0 %v2202
    %2574 = vmatprep.subr.bf16.mxu0 0
    %2575 = vmatpush1.bf16.msra.mxu0 %v2203
    %2576 = vmatprep.mubr.bf16.mxu0 %v1344
    %2577 = vmatmul.mubr.bf16.gmra.mrb[0].mxu0 %v1343
    %v2578 = vpop.f32.mrb[0].mxu0
    %v2579 = vadd.f32 %v2538, %v2578
    %v2580 = vpop.f32.mrb[0].mxu0
    %v2581 = vpop.f32.mrb[0].mxu0
    %v2582 = vadd.f32 %v2541, %v2581
    %v2583 = vpop.f32.mrb[0].mxu0
    %2584 = vdwg.mxu0
    %2585 = vmatprep.subr.bf16.mxu0 0
    %2586 = vmatpush1.bf16.msra.mxu0 %v2204
    %2587 = vmatprep.subr.bf16.mxu0 0
    %2588 = vmatpush1.bf16.msra.mxu0 %v2205
    %2589 = vmatprep.subr.bf16.mxu0 0
    %2590 = vmatpush1.bf16.msra.mxu0 %v2206
    %2591 = vmatprep.subr.bf16.mxu0 0
    %2592 = vmatpush1.bf16.msra.mxu0 %v2207
    %2593 = vmatprep.subr.bf16.mxu0 0
    %2594 = vmatpush1.bf16.msra.mxu0 %v2208
    %2595 = vmatprep.subr.bf16.mxu0 0
    %2596 = vmatpush1.bf16.msra.mxu0 %v2209
    %2597 = vmatprep.subr.bf16.mxu0 0
    %2598 = vmatpush1.bf16.msra.mxu0 %v2210
    %2599 = vmatprep.subr.bf16.mxu0 0
    %2600 = vmatpush1.bf16.msra.mxu0 %v2211
    %2601 = vmatprep.subr.bf16.mxu0 0
    %2602 = vmatpush1.bf16.msra.mxu0 %v2212
    %2603 = vmatprep.subr.bf16.mxu0 0
    %2604 = vmatpush1.bf16.msra.mxu0 %v2213
    %2605 = vmatprep.subr.bf16.mxu0 0
    %2606 = vmatpush1.bf16.msra.mxu0 %v2214
    %2607 = vmatprep.subr.bf16.mxu0 0
    %2608 = vmatpush1.bf16.msra.mxu0 %v2215
    %2609 = vmatprep.subr.bf16.mxu0 0
    %2610 = vmatpush1.bf16.msra.mxu0 %v2216
    %2611 = vmatprep.subr.bf16.mxu0 0
    %2612 = vmatpush1.bf16.msra.mxu0 %v2217
    %2613 = vmatprep.subr.bf16.mxu0 0
    %2614 = vmatpush1.bf16.msra.mxu0 %v2218
    %2615 = vmatprep.subr.bf16.mxu0 0
    %2616 = vmatpush1.bf16.msra.mxu0 %v2219
    %2617 = vmatprep.mubr.bf16.mxu0 %v1346
    %2618 = vmatmul.mubr.bf16.gmra.mrb[0].mxu0 %v1345
    %v2619 = vpop.f32.mrb[0].mxu0
    %v2620 = vadd.f32 %v2579, %v2619
    %v2621 = vpop.f32.mrb[0].mxu0
    %v2622 = vpop.f32.mrb[0].mxu0
    %v2623 = vadd.f32 %v2582, %v2622
    %v2624 = vpop.f32.mrb[0].mxu0
    %2625 = vdwg.mxu0
    %2626 = vmatprep.subr.bf16.mxu0 0
    %2627 = vmatpush1.bf16.msra.mxu0 %v2220
    %2628 = vmatprep.subr.bf16.mxu0 0
    %2629 = vmatpush1.bf16.msra.mxu0 %v2221
    %2630 = vmatprep.subr.bf16.mxu0 0
    %2631 = vmatpush1.bf16.msra.mxu0 %v2222
    %2632 = vmatprep.subr.bf16.mxu0 0
    %2633 = vmatpush1.bf16.msra.mxu0 %v2223
    %2634 = vmatprep.subr.bf16.mxu0 0
    %2635 = vmatpush1.bf16.msra.mxu0 %v2224
    %2636 = vmatprep.subr.bf16.mxu0 0
    %2637 = vmatpush1.bf16.msra.mxu0 %v2225
    %2638 = vmatprep.subr.bf16.mxu0 0
    %2639 = vmatpush1.bf16.msra.mxu0 %v2226
    %2640 = vmatprep.subr.bf16.mxu0 0
    %2641 = vmatpush1.bf16.msra.mxu0 %v2227
    %2642 = vmatprep.subr.bf16.mxu0 0
    %2643 = vmatpush1.bf16.msra.mxu0 %v2228
    %2644 = vmatprep.subr.bf16.mxu0 0
    %2645 = vmatpush1.bf16.msra.mxu0 %v2229
    %2646 = vmatprep.subr.bf16.mxu0 0
    %2647 = vmatpush1.bf16.msra.mxu0 %v2230
    %2648 = vmatprep.subr.bf16.mxu0 0
    %2649 = vmatpush1.bf16.msra.mxu0 %v2231
    %2650 = vmatprep.subr.bf16.mxu0 0
    %2651 = vmatpush1.bf16.msra.mxu0 %v2232
    %2652 = vmatprep.subr.bf16.mxu0 0
    %2653 = vmatpush1.bf16.msra.mxu0 %v2233
    %2654 = vmatprep.subr.bf16.mxu0 0
    %2655 = vmatpush1.bf16.msra.mxu0 %v2234
    %2656 = vmatprep.subr.bf16.mxu0 0
    %2657 = vmatpush1.bf16.msra.mxu0 %v2235
    %2658 = vmatprep.mubr.bf16.mxu0 %v1348
    %2659 = vmatmul.mubr.bf16.gmra.mrb[0].mxu0 %v1347
    %v2660 = vpop.f32.mrb[0].mxu0
    %v2661 = vadd.f32 %v2620, %v2660
    %v2662 = vpop.f32.mrb[0].mxu0
    %v2663 = vpop.f32.mrb[0].mxu0
    %v2664 = vadd.f32 %v2623, %v2663
    %v2665 = vpop.f32.mrb[0].mxu0
    %2666 = vdwg.mxu0
    %2667 = vmatprep.subr.bf16.mxu0 0
    %2668 = vmatpush1.bf16.msra.mxu0 %v2236
    %2669 = vmatprep.subr.bf16.mxu0 0
    %2670 = vmatpush1.bf16.msra.mxu0 %v2237
    %2671 = vmatprep.subr.bf16.mxu0 0
    %2672 = vmatpush1.bf16.msra.mxu0 %v2238
    %2673 = vmatprep.subr.bf16.mxu0 0
    %2674 = vmatpush1.bf16.msra.mxu0 %v2239
    %2675 = vmatprep.subr.bf16.mxu0 0
    %2676 = vmatpush1.bf16.msra.mxu0 %v2240
    %2677 = vmatprep.subr.bf16.mxu0 0
    %2678 = vmatpush1.bf16.msra.mxu0 %v2241
    %2679 = vmatprep.subr.bf16.mxu0 0
    %2680 = vmatpush1.bf16.msra.mxu0 %v2242
    %2681 = vmatprep.subr.bf16.mxu0 0
    %2682 = vmatpush1.bf16.msra.mxu0 %v2243
    %2683 = vmatprep.subr.bf16.mxu0 0
    %2684 = vmatpush1.bf16.msra.mxu0 %v2244
    %2685 = vmatprep.subr.bf16.mxu0 0
    %2686 = vmatpush1.bf16.msra.mxu0 %v2245
    %2687 = vmatprep.subr.bf16.mxu0 0
    %2688 = vmatpush1.bf16.msra.mxu0 %v2246
    %2689 = vmatprep.subr.bf16.mxu0 0
    %2690 = vmatpush1.bf16.msra.mxu0 %v2247
    %2691 = vmatprep.subr.bf16.mxu0 0
    %2692 = vmatpush1.bf16.msra.mxu0 %v2248
    %2693 = vmatprep.subr.bf16.mxu0 0
    %2694 = vmatpush1.bf16.msra.mxu0 %v2249
    %2695 = vmatprep.subr.bf16.mxu0 0
    %2696 = vmatpush1.bf16.msra.mxu0 %v2250
    %2697 = vmatprep.subr.bf16.mxu0 0
    %2698 = vmatpush1.bf16.msra.mxu0 %v2251
    %2699 = vmatprep.mubr.bf16.mxu0 %v1350
    %2700 = vmatmul.mubr.bf16.gmra.mrb[0].mxu0 %v1349
    %v2701 = vpop.f32.mrb[0].mxu0
    %v2702 = vadd.f32 %v2661, %v2701
    %v2703 = vpop.f32.mrb[0].mxu0
    %v2704 = vpop.f32.mrb[0].mxu0
    %v2705 = vadd.f32 %v2664, %v2704
    %v2706 = vpop.f32.mrb[0].mxu0
    %2707 = vdwg.mxu0
    %v2708 = vadd.f32 %v771, %v2702
    %v2709 = vadd.f32 %v772, %v2705
    %v2710 = vld [vmem:[%s15] sm:$0x1]
    %v2711 = vld [vmem:[%s16] sm:$0x1]
    %v2712 = vsel %vm78, %v2708, 0.0
    %2713 = vadd.xlane.f32.xlu0 %v2712
    %v2714 = vpop.xlane.xlu0 %2713
    %v2715 = vsel %vm78, %v2709, 0.0
    %2716 = vadd.xlane.f32.xlu0 %v2715
    %v2717 = vpop.xlane.xlu0 %2716
    %v2718 = vmul.f32 %v2714, %v740
    %v2719 = vmul.f32 %v2717, %v740
    %v2720 = vsub.f32 %v2708, %v2718
    %v2721 = vsub.f32 %v2709, %v2719
    %v2722 = vmul.f32 %v2720, %v2720
    %v2723 = vmul.f32 %v2721, %v2721
    %v2724 = vsel %vm78, %v2722, 0.0
    %2725 = vadd.xlane.f32.xlu0 %v2724
    %v2726 = vpop.xlane.xlu0 %2725
    %v2727 = vsel %vm78, %v2723, 0.0
    %2728 = vadd.xlane.f32.xlu0 %v2727
    %v2729 = vpop.xlane.xlu0 %2728
    %v2730 = vmul.f32 %v2726, %v740
    %v2731 = vmul.f32 %v2729, %v740
    %v2732 = vadd.f32 %v2730, 1e-05
    %v2733 = vadd.f32 %v2731, 1e-05
    %v2734 = vrsqrt.pop %v2732
    %v2735 = vrsqrt.pop %v2733
    %v2736 = vmul.f32 %v2720, %v2734
    %v2737 = vmul.f32 %v2721, %v2735
    %v2738 = vlaneseq
    %v2739 = vshrl.u32 %v2738, 7
    %v2740 = vsub.s32 0, %v2739
    %v2741 = vrot.slane %v2710, %v2740
    %v2742 = vmul.f32 %v2736, %v2741
    %v2743 = vmul.f32 %v2737, %v2741
    %v2744 = vlaneseq
    %v2745 = vshrl.u32 %v2744, 7
    %v2746 = vsub.s32 0, %v2745
    %v2747 = vrot.slane %v2711, %v2746
    %v2748 = vadd.f32 %v2742, %v2747
    %v2749 = vadd.f32 %v2743, %v2747
    %s2750 = scalar_lea.vmem %s3, 8
    %v2751 = vld [vmem:[%s2750] sm:$0xff]
    %v2752 = vld [vmem:[%s4 + $0x1] sm:$0x1]
    %v2753 = vlaneseq
    %v2754 = vshrl.u32 %v2753, 7
    %v2755 = vsub.s32 0, %v2754
    %v2756 = vrot.slane %v2752, %v2755
    %v2758 = vsel %vm78, %v2748, 0
    %v2761 = vsel %vm78, %v2749, 0
    %2763 = vmatprep.subr.mxu0 0.0
    %2764 = vmatpush1.msra.mxu0 %v2751
    %2765 = vmatprep.subr.mxu0 0.0
    %2766 = vmatpush1.msra.mxu0 0.0
    %2767 = vmatprep.subr.mxu0 0.0
    %2768 = vmatpush1.msra.mxu0 0.0
    %2769 = vmatprep.subr.mxu0 0.0
    %2770 = vmatpush1.msra.mxu0 0.0
    %2771 = vmatprep.subr.mxu0 0.0
    %2772 = vmatpush1.msra.mxu0 0.0
    %2773 = vmatprep.subr.mxu0 0.0
    %2774 = vmatpush1.msra.mxu0 0.0
    %2775 = vmatprep.subr.mxu0 0.0
    %2776 = vmatpush1.msra.mxu0 0.0
    %2777 = vmatprep.subr.mxu0 0.0
    %2778 = vmatpush1.msra.mxu0 0.0
    %2779 = vmatprep.subr.mxu0 0.0
    %2780 = vmatpush1.msra.mxu0 0.0
    %2781 = vmatprep.subr.mxu0 0.0
    %2782 = vmatpush1.msra.mxu0 0.0
    %2783 = vmatprep.subr.mxu0 0.0
    %2784 = vmatpush1.msra.mxu0 0.0
    %2785 = vmatprep.subr.mxu0 0.0
    %2786 = vmatpush1.msra.mxu0 0.0
    %2787 = vmatprep.subr.mxu0 0.0
    %2788 = vmatpush1.msra.mxu0 0.0
    %2789 = vmatprep.subr.mxu0 0.0
    %2790 = vmatpush1.msra.mxu0 0.0
    %2791 = vmatprep.subr.mxu0 0.0
    %2792 = vmatpush1.msra.mxu0 0.0
    %2793 = vmatprep.subr.mxu0 0.0
    %2794 = vmatpush1.msra.mxu0 0.0
    %2795 = vmatprep.subr.mxu0 0.0
    %2796 = vmatpush1.msra.mxu0 0.0
    %2797 = vmatprep.subr.mxu0 0.0
    %2798 = vmatpush1.msra.mxu0 0.0
    %2799 = vmatprep.subr.mxu0 0.0
    %2800 = vmatpush1.msra.mxu0 0.0
    %2801 = vmatprep.subr.mxu0 0.0
    %2802 = vmatpush1.msra.mxu0 0.0
    %2803 = vmatprep.subr.mxu0 0.0
    %2804 = vmatpush1.msra.mxu0 0.0
    %2805 = vmatprep.subr.mxu0 0.0
    %2806 = vmatpush1.msra.mxu0 0.0
    %2807 = vmatprep.subr.mxu0 0.0
    %2808 = vmatpush1.msra.mxu0 0.0
    %2809 = vmatprep.subr.mxu0 0.0
    %2810 = vmatpush1.msra.mxu0 0.0
    %2811 = vmatprep.subr.mxu0 0.0
    %2812 = vmatpush1.msra.mxu0 0.0
    %2813 = vmatprep.subr.mxu0 0.0
    %2814 = vmatpush1.msra.mxu0 0.0
    %2815 = vmatprep.subr.mxu0 0.0
    %2816 = vmatpush1.msra.mxu0 0.0
    %2817 = vmatprep.subr.mxu0 0.0
    %2818 = vmatpush1.msra.mxu0 0.0
    %2819 = vmatprep.subr.mxu0 0.0
    %2820 = vmatpush1.msra.mxu0 0.0
    %2821 = vmatprep.subr.mxu0 0.0
    %2822 = vmatpush1.msra.mxu0 0.0
    %2823 = vmatprep.subr.mxu0 0.0
    %2824 = vmatpush1.msra.mxu0 0.0
    %2825 = vmatprep.subr.mxu0 0.0
    %2826 = vmatpush1.msra.mxu0 0.0
    %2827 = vmatprep.mubr.f32.mxu0 0.0
    %2828 = vmatmul.mubr.f32.gmra.mrb[0].mxu0 %v2758
    %v2829 = vpop.f32.mrb[0].mxu0
    %v2830 = vadd.f32 %v2756, %v2829
    %v2831 = vpop.f32.mrb[0].mxu0
    %2832 = vmatprep.mubr.f32.mxu0 0.0
    %2833 = vmatmul.mubr.f32.gmra.mrb[0].mxu0 %v2761
    %v2834 = vpop.f32.mrb[0].mxu0
    %v2835 = vadd.f32 %v2756, %v2834
    %v2836 = vpop.f32.mrb[0].mxu0
    %2837 = vdwg.mxu0
    %s2838 = scalar_lea.vmem %s5, 16
    %v2839 = vld [vmem:[%s2838] sm:$0xff]
    %v2840 = vld [vmem:[%s2838 + $0x8] sm:$0xff]
    %s2841 = scalar_lea.vmem %s6, 16
    %v2842 = vld [vmem:[%s2841] sm:$0xff]
    %v2843 = vld [vmem:[%s2841 + $0x8] sm:$0xff]
    %2845 = vset.pattern.permute.xlu0 0
    %2846 = vperm.xlu0 %2845, %v2842
    %v2847 = vpop.permute.xlu0 %2846
    %2850 = vset.pattern.permute.xlu0 0
    %2851 = vperm.xlu0 %2850, %v2843
    %v2852 = vpop.permute.xlu0 %2851
    %v2855 = vsel %vm78, %v2839, 0
    %v2858 = vsel %vm78, %v2840, 0
    %2860 = vmatprep.subr.mxu0 0.0
    %2861 = vmatpush1.xpose.msra.mxu0 %v2758
    %2862 = vmatprep.subr.mxu0 0.0
    %2863 = vmatpush1.xpose.msra.mxu0 %v2761
    %2864 = vmatprep.subr.mxu0 0.0
    %2865 = vmatpush1.xpose.msra.mxu0 0.0
    %2866 = vmatprep.subr.mxu0 0.0
    %2867 = vmatpush1.xpose.msra.mxu0 0.0
    %2868 = vmatprep.subr.mxu0 0.0
    %2869 = vmatpush1.xpose.msra.mxu0 0.0
    %2870 = vmatprep.subr.mxu0 0.0
    %2871 = vmatpush1.xpose.msra.mxu0 0.0
    %2872 = vmatprep.subr.mxu0 0.0
    %2873 = vmatpush1.xpose.msra.mxu0 0.0
    %2874 = vmatprep.subr.mxu0 0.0
    %2875 = vmatpush1.xpose.msra.mxu0 0.0
    %2876 = vmatprep.subr.mxu0 0.0
    %2877 = vmatpush1.xpose.msra.mxu0 0.0
    %2878 = vmatprep.subr.mxu0 0.0
    %2879 = vmatpush1.xpose.msra.mxu0 0.0
    %2880 = vmatprep.subr.mxu0 0.0
    %2881 = vmatpush1.xpose.msra.mxu0 0.0
    %2882 = vmatprep.subr.mxu0 0.0
    %2883 = vmatpush1.xpose.msra.mxu0 0.0
    %2884 = vmatprep.subr.mxu0 0.0
    %2885 = vmatpush1.xpose.msra.mxu0 0.0
    %2886 = vmatprep.subr.mxu0 0.0
    %2887 = vmatpush1.xpose.msra.mxu0 0.0
    %2888 = vmatprep.subr.mxu0 0.0
    %2889 = vmatpush1.xpose.msra.mxu0 0.0
    %2890 = vmatprep.subr.mxu0 0.0
    %2891 = vmatpush1.xpose.msra.mxu0 0.0
    %2892 = vmatprep.subr.mxu0 0.0
    %2893 = vmatpush1.xpose.msra.mxu0 0.0
    %2894 = vmatprep.subr.mxu0 0.0
    %2895 = vmatpush1.xpose.msra.mxu0 0.0
    %2896 = vmatprep.subr.mxu0 0.0
    %2897 = vmatpush1.xpose.msra.mxu0 0.0
    %2898 = vmatprep.subr.mxu0 0.0
    %2899 = vmatpush1.xpose.msra.mxu0 0.0
    %2900 = vmatprep.subr.mxu0 0.0
    %2901 = vmatpush1.xpose.msra.mxu0 0.0
    %2902 = vmatprep.subr.mxu0 0.0
    %2903 = vmatpush1.xpose.msra.mxu0 0.0
    %2904 = vmatprep.subr.mxu0 0.0
    %2905 = vmatpush1.xpose.msra.mxu0 0.0
    %2906 = vmatprep.subr.mxu0 0.0
    %2907 = vmatpush1.xpose.msra.mxu0 0.0
    %2908 = vmatprep.subr.mxu0 0.0
    %2909 = vmatpush1.xpose.msra.mxu0 0.0
    %2910 = vmatprep.subr.mxu0 0.0
    %2911 = vmatpush1.xpose.msra.mxu0 0.0
    %2912 = vmatprep.subr.mxu0 0.0
    %2913 = vmatpush1.xpose.msra.mxu0 0.0
    %2914 = vmatprep.subr.mxu0 0.0
    %2915 = vmatpush1.xpose.msra.mxu0 0.0
    %2916 = vmatprep.subr.mxu0 0.0
    %2917 = vmatpush1.xpose.msra.mxu0 0.0
    %2918 = vmatprep.subr.mxu0 0.0
    %2919 = vmatpush1.xpose.msra.mxu0 0.0
    %2920 = vmatprep.subr.mxu0 0.0
    %2921 = vmatpush1.xpose.msra.mxu0 0.0
    %2922 = vmatprep.subr.mxu0 0.0
    %2923 = vmatpush1.xpose.msra.mxu0 0.0
    %2924 = vmatprep.mubr.f32.mxu0 0.0
    %2925 = vmatmul.mubr.f32.gmra.mrb[0].mxu0 %v2855
    %v2926 = vpop.f32.mrb[0].mxu0
    %v2927 = vadd.f32 %v2847, %v2926
    %v2928 = vpop.f32.mrb[0].mxu0
    %2929 = vmatprep.mubr.f32.mxu0 0.0
    %2930 = vmatmul.mubr.f32.gmra.mrb[0].mxu0 %v2858
    %v2931 = vpop.f32.mrb[0].mxu0
    %v2932 = vadd.f32 %v2852, %v2931
    %v2933 = vpop.f32.mrb[0].mxu0
    %2934 = vdwg.mxu0
    %s2935 = scalar_lea.vmem %s7, 8
    %v2936 = vld [vmem:[%s2935] sm:$0xff]
    %2938 = vset.pattern.permute.xlu0 0
    %2939 = vperm.xlu0 %2938, %v2830
    %v2940 = vpop.permute.xlu0 %2939
    %2943 = vset.pattern.permute.xlu0 0
    %2944 = vperm.xlu0 %2943, %v2835
    %v2945 = vpop.permute.xlu0 %2944
    %v2947 = vlaneseq
    %v2948 = vshrl.u32 %v2947, 7
    %v2949 = vsub.s32 0, %v2948
    %v2950 = vrot.slane %v2927, %v2949
    %v2951 = vmul.f32 %v2940, %v2950
    %v2952 = vmul.f32 %v2945, %v2950
    %v2953 = vadd.f32 %v2951, %v70
    %v2954 = vadd.f32 %v2952, %v71
    %v2955 = vsel %vm274, %v2953, -inf
    %2956 = vmax.xlane.f32.xlu0 %v2955
    %v2957 = vpop.xlane.xlu0 %2956
    %v2958 = vsel %vm274, %v2954, -inf
    %2959 = vmax.xlane.f32.xlu0 %v2958
    %v2960 = vpop.xlane.xlu0 %2959
    %v2961 = vsub.f32 %v2953, %v2957
    %v2962 = vsub.f32 %v2954, %v2960
    %v2963 = vmul.f32 %v2961, 1.442695
    %v2964 = vpow.pop %v2963
    %v2965 = vmul.f32 %v2962, 1.442695
    %v2966 = vpow.pop %v2965
    %v2967 = vsel %vm274, %v2964, 0.0
    %2968 = vadd.xlane.f32.xlu0 %v2967
    %v2969 = vpop.xlane.xlu0 %2968
    %v2970 = vsel %vm274, %v2966, 0.0
    %2971 = vadd.xlane.f32.xlu0 %v2970
    %v2972 = vpop.xlane.xlu0 %2971
    %v2973 = vlaneseq
    %v2974 = vshrl.u32 %v2973, 7
    %v2975 = vsub.s32 0, %v2974
    %v2976 = vrot.slane %v2932, %v2975
    %v2977 = vmul.f32 %v2964, %v2976
    %v2978 = vmul.f32 %v2966, %v2976
    %v2979 = vsel %vm274, %v2977, 0.0
    %2980 = vadd.xlane.f32.xlu0 %v2979
    %v2981 = vpop.xlane.xlu0 %2980
    %v2982 = vsel %vm274, %v2978, 0.0
    %2983 = vadd.xlane.f32.xlu0 %v2982
    %v2984 = vpop.xlane.xlu0 %2983
    %v2985 = vrcp.pop %v2969
    %v2986 = vrcp.pop %v2972
    %v2987 = vmul.f32 %v2981, %v2985
    %v2988 = vmul.f32 %v2984, %v2986
    %v2989 = vlaneseq
    %v2990 = vshrl.u32 %v2989, 7
    %v2991 = vsub.s32 0, %v2990
    %v2992 = vrot.slane %v2936, %v2991
    %v2993 = vmul.f32 %v2987, %v2992
    %v2994 = vmul.f32 %v2988, %v2992
    %v2995 = vadd.f32 %v2993, 0.0
    %v2996 = vadd.f32 %v2994, 0.0
    %2997 = vset.pattern.permute.xlu0 1
    %2998 = vperm.xlu0 %2997, %v2830
    %v2999 = vpop.permute.xlu0 %2998
    %3001 = vset.pattern.permute.xlu0 1
    %3002 = vperm.xlu0 %3001, %v2835
    %v3003 = vpop.permute.xlu0 %3002
    %v3005 = vlaneseq
    %v3006 = vshrl.u32 %v3005, 7
    %v3007 = vsub.s32 1, %v3006
    %v3008 = vrot.slane %v2927, %v3007
    %v3009 = vmul.f32 %v2999, %v3008
    %v3010 = vmul.f32 %v3003, %v3008
    %v3011 = vadd.f32 %v3009, %v70
    %v3012 = vadd.f32 %v3010, %v71
    %v3013 = vsel %vm274, %v3011, -inf
    %3014 = vmax.xlane.f32.xlu0 %v3013
    %v3015 = vpop.xlane.xlu0 %3014
    %v3016 = vsel %vm274, %v3012, -inf
    %3017 = vmax.xlane.f32.xlu0 %v3016
    %v3018 = vpop.xlane.xlu0 %3017
    %v3019 = vsub.f32 %v3011, %v3015
    %v3020 = vsub.f32 %v3012, %v3018
    %v3021 = vmul.f32 %v3019, 1.442695
    %v3022 = vpow.pop %v3021
    %v3023 = vmul.f32 %v3020, 1.442695
    %v3024 = vpow.pop %v3023
    %v3025 = vsel %vm274, %v3022, 0.0
    %3026 = vadd.xlane.f32.xlu0 %v3025
    %v3027 = vpop.xlane.xlu0 %3026
    %v3028 = vsel %vm274, %v3024, 0.0
    %3029 = vadd.xlane.f32.xlu0 %v3028
    %v3030 = vpop.xlane.xlu0 %3029
    %v3031 = vlaneseq
    %v3032 = vshrl.u32 %v3031, 7
    %v3033 = vsub.s32 1, %v3032
    %v3034 = vrot.slane %v2932, %v3033
    %v3035 = vmul.f32 %v3022, %v3034
    %v3036 = vmul.f32 %v3024, %v3034
    %v3037 = vsel %vm274, %v3035, 0.0
    %3038 = vadd.xlane.f32.xlu0 %v3037
    %v3039 = vpop.xlane.xlu0 %3038
    %v3040 = vsel %vm274, %v3036, 0.0
    %3041 = vadd.xlane.f32.xlu0 %v3040
    %v3042 = vpop.xlane.xlu0 %3041
    %v3043 = vrcp.pop %v3027
    %v3044 = vrcp.pop %v3030
    %v3045 = vmul.f32 %v3039, %v3043
    %v3046 = vmul.f32 %v3042, %v3044
    %v3047 = vlaneseq
    %v3048 = vshrl.u32 %v3047, 7
    %v3049 = vsub.s32 1, %v3048
    %v3050 = vrot.slane %v2936, %v3049
    %v3051 = vmul.f32 %v3045, %v3050
    %v3052 = vmul.f32 %v3046, %v3050
    %v3053 = vadd.f32 %v2995, %v3051
    %v3054 = vadd.f32 %v2996, %v3052
    %3055 = vset.pattern.permute.xlu0 2
    %3056 = vperm.xlu0 %3055, %v2830
    %v3057 = vpop.permute.xlu0 %3056
    %3059 = vset.pattern.permute.xlu0 2
    %3060 = vperm.xlu0 %3059, %v2835
    %v3061 = vpop.permute.xlu0 %3060
    %v3063 = vlaneseq
    %v3064 = vshrl.u32 %v3063, 7
    %v3065 = vsub.s32 2, %v3064
    %v3066 = vrot.slane %v2927, %v3065
    %v3067 = vmul.f32 %v3057, %v3066
    %v3068 = vmul.f32 %v3061, %v3066
    %v3069 = vadd.f32 %v3067, %v70
    %v3070 = vadd.f32 %v3068, %v71
    %v3071 = vsel %vm274, %v3069, -inf
    %3072 = vmax.xlane.f32.xlu0 %v3071
    %v3073 = vpop.xlane.xlu0 %3072
    %v3074 = vsel %vm274, %v3070, -inf
    %3075 = vmax.xlane.f32.xlu0 %v3074
    %v3076 = vpop.xlane.xlu0 %3075
    %v3077 = vsub.f32 %v3069, %v3073
    %v3078 = vsub.f32 %v3070, %v3076
    %v3079 = vmul.f32 %v3077, 1.442695
    %v3080 = vpow.pop %v3079
    %v3081 = vmul.f32 %v3078, 1.442695
    %v3082 = vpow.pop %v3081
    %v3083 = vsel %vm274, %v3080, 0.0
    %3084 = vadd.xlane.f32.xlu0 %v3083
    %v3085 = vpop.xlane.xlu0 %3084
    %v3086 = vsel %vm274, %v3082, 0.0
    %3087 = vadd.xlane.f32.xlu0 %v3086
    %v3088 = vpop.xlane.xlu0 %3087
    %v3089 = vlaneseq
    %v3090 = vshrl.u32 %v3089, 7
    %v3091 = vsub.s32 2, %v3090
    %v3092 = vrot.slane %v2932, %v3091
    %v3093 = vmul.f32 %v3080, %v3092
    %v3094 = vmul.f32 %v3082, %v3092
    %v3095 = vsel %vm274, %v3093, 0.0
    %3096 = vadd.xlane.f32.xlu0 %v3095
    %v3097 = vpop.xlane.xlu0 %3096
    %v3098 = vsel %vm274, %v3094, 0.0
    %3099 = vadd.xlane.f32.xlu0 %v3098
    %v3100 = vpop.xlane.xlu0 %3099
    %v3101 = vrcp.pop %v3085
    %v3102 = vrcp.pop %v3088
    %v3103 = vmul.f32 %v3097, %v3101
    %v3104 = vmul.f32 %v3100, %v3102
    %v3105 = vlaneseq
    %v3106 = vshrl.u32 %v3105, 7
    %v3107 = vsub.s32 2, %v3106
    %v3108 = vrot.slane %v2936, %v3107
    %v3109 = vmul.f32 %v3103, %v3108
    %v3110 = vmul.f32 %v3104, %v3108
    %v3111 = vadd.f32 %v3053, %v3109
    %v3112 = vadd.f32 %v3054, %v3110
    %3113 = vset.pattern.permute.xlu0 3
    %3114 = vperm.xlu0 %3113, %v2830
    %v3115 = vpop.permute.xlu0 %3114
    %3117 = vset.pattern.permute.xlu0 3
    %3118 = vperm.xlu0 %3117, %v2835
    %v3119 = vpop.permute.xlu0 %3118
    %v3121 = vlaneseq
    %v3122 = vshrl.u32 %v3121, 7
    %v3123 = vsub.s32 3, %v3122
    %v3124 = vrot.slane %v2927, %v3123
    %v3125 = vmul.f32 %v3115, %v3124
    %v3126 = vmul.f32 %v3119, %v3124
    %v3127 = vadd.f32 %v3125, %v70
    %v3128 = vadd.f32 %v3126, %v71
    %v3129 = vsel %vm274, %v3127, -inf
    %3130 = vmax.xlane.f32.xlu0 %v3129
    %v3131 = vpop.xlane.xlu0 %3130
    %v3132 = vsel %vm274, %v3128, -inf
    %3133 = vmax.xlane.f32.xlu0 %v3132
    %v3134 = vpop.xlane.xlu0 %3133
    %v3135 = vsub.f32 %v3127, %v3131
    %v3136 = vsub.f32 %v3128, %v3134
    %v3137 = vmul.f32 %v3135, 1.442695
    %v3138 = vpow.pop %v3137
    %v3139 = vmul.f32 %v3136, 1.442695
    %v3140 = vpow.pop %v3139
    %v3141 = vsel %vm274, %v3138, 0.0
    %3142 = vadd.xlane.f32.xlu0 %v3141
    %v3143 = vpop.xlane.xlu0 %3142
    %v3144 = vsel %vm274, %v3140, 0.0
    %3145 = vadd.xlane.f32.xlu0 %v3144
    %v3146 = vpop.xlane.xlu0 %3145
    %v3147 = vlaneseq
    %v3148 = vshrl.u32 %v3147, 7
    %v3149 = vsub.s32 3, %v3148
    %v3150 = vrot.slane %v2932, %v3149
    %v3151 = vmul.f32 %v3138, %v3150
    %v3152 = vmul.f32 %v3140, %v3150
    %v3153 = vsel %vm274, %v3151, 0.0
    %3154 = vadd.xlane.f32.xlu0 %v3153
    %v3155 = vpop.xlane.xlu0 %3154
    %v3156 = vsel %vm274, %v3152, 0.0
    %3157 = vadd.xlane.f32.xlu0 %v3156
    %v3158 = vpop.xlane.xlu0 %3157
    %v3159 = vrcp.pop %v3143
    %v3160 = vrcp.pop %v3146
    %v3161 = vmul.f32 %v3155, %v3159
    %v3162 = vmul.f32 %v3158, %v3160
    %v3163 = vlaneseq
    %v3164 = vshrl.u32 %v3163, 7
    %v3165 = vsub.s32 3, %v3164
    %v3166 = vrot.slane %v2936, %v3165
    %v3167 = vmul.f32 %v3161, %v3166
    %v3168 = vmul.f32 %v3162, %v3166
    %v3169 = vadd.f32 %v3111, %v3167
    %v3170 = vadd.f32 %v3112, %v3168
    %3171 = vset.pattern.permute.xlu0 4
    %3172 = vperm.xlu0 %3171, %v2830
    %v3173 = vpop.permute.xlu0 %3172
    %3175 = vset.pattern.permute.xlu0 4
    %3176 = vperm.xlu0 %3175, %v2835
    %v3177 = vpop.permute.xlu0 %3176
    %v3179 = vlaneseq
    %v3180 = vshrl.u32 %v3179, 7
    %v3181 = vsub.s32 4, %v3180
    %v3182 = vrot.slane %v2927, %v3181
    %v3183 = vmul.f32 %v3173, %v3182
    %v3184 = vmul.f32 %v3177, %v3182
    %v3185 = vadd.f32 %v3183, %v70
    %v3186 = vadd.f32 %v3184, %v71
    %v3187 = vsel %vm274, %v3185, -inf
    %3188 = vmax.xlane.f32.xlu0 %v3187
    %v3189 = vpop.xlane.xlu0 %3188
    %v3190 = vsel %vm274, %v3186, -inf
    %3191 = vmax.xlane.f32.xlu0 %v3190
    %v3192 = vpop.xlane.xlu0 %3191
    %v3193 = vsub.f32 %v3185, %v3189
    %v3194 = vsub.f32 %v3186, %v3192
    %v3195 = vmul.f32 %v3193, 1.442695
    %v3196 = vpow.pop %v3195
    %v3197 = vmul.f32 %v3194, 1.442695
    %v3198 = vpow.pop %v3197
    %v3199 = vsel %vm274, %v3196, 0.0
    %3200 = vadd.xlane.f32.xlu0 %v3199
    %v3201 = vpop.xlane.xlu0 %3200
    %v3202 = vsel %vm274, %v3198, 0.0
    %3203 = vadd.xlane.f32.xlu0 %v3202
    %v3204 = vpop.xlane.xlu0 %3203
    %v3205 = vlaneseq
    %v3206 = vshrl.u32 %v3205, 7
    %v3207 = vsub.s32 4, %v3206
    %v3208 = vrot.slane %v2932, %v3207
    %v3209 = vmul.f32 %v3196, %v3208
    %v3210 = vmul.f32 %v3198, %v3208
    %v3211 = vsel %vm274, %v3209, 0.0
    %3212 = vadd.xlane.f32.xlu0 %v3211
    %v3213 = vpop.xlane.xlu0 %3212
    %v3214 = vsel %vm274, %v3210, 0.0
    %3215 = vadd.xlane.f32.xlu0 %v3214
    %v3216 = vpop.xlane.xlu0 %3215
    %v3217 = vrcp.pop %v3201
    %v3218 = vrcp.pop %v3204
    %v3219 = vmul.f32 %v3213, %v3217
    %v3220 = vmul.f32 %v3216, %v3218
    %v3221 = vlaneseq
    %v3222 = vshrl.u32 %v3221, 7
    %v3223 = vsub.s32 4, %v3222
    %v3224 = vrot.slane %v2936, %v3223
    %v3225 = vmul.f32 %v3219, %v3224
    %v3226 = vmul.f32 %v3220, %v3224
    %v3227 = vadd.f32 %v3169, %v3225
    %v3228 = vadd.f32 %v3170, %v3226
    %3229 = vset.pattern.permute.xlu0 5
    %3230 = vperm.xlu0 %3229, %v2830
    %v3231 = vpop.permute.xlu0 %3230
    %3233 = vset.pattern.permute.xlu0 5
    %3234 = vperm.xlu0 %3233, %v2835
    %v3235 = vpop.permute.xlu0 %3234
    %v3237 = vlaneseq
    %v3238 = vshrl.u32 %v3237, 7
    %v3239 = vsub.s32 5, %v3238
    %v3240 = vrot.slane %v2927, %v3239
    %v3241 = vmul.f32 %v3231, %v3240
    %v3242 = vmul.f32 %v3235, %v3240
    %v3243 = vadd.f32 %v3241, %v70
    %v3244 = vadd.f32 %v3242, %v71
    %v3245 = vsel %vm274, %v3243, -inf
    %3246 = vmax.xlane.f32.xlu0 %v3245
    %v3247 = vpop.xlane.xlu0 %3246
    %v3248 = vsel %vm274, %v3244, -inf
    %3249 = vmax.xlane.f32.xlu0 %v3248
    %v3250 = vpop.xlane.xlu0 %3249
    %v3251 = vsub.f32 %v3243, %v3247
    %v3252 = vsub.f32 %v3244, %v3250
    %v3253 = vmul.f32 %v3251, 1.442695
    %v3254 = vpow.pop %v3253
    %v3255 = vmul.f32 %v3252, 1.442695
    %v3256 = vpow.pop %v3255
    %v3257 = vsel %vm274, %v3254, 0.0
    %3258 = vadd.xlane.f32.xlu0 %v3257
    %v3259 = vpop.xlane.xlu0 %3258
    %v3260 = vsel %vm274, %v3256, 0.0
    %3261 = vadd.xlane.f32.xlu0 %v3260
    %v3262 = vpop.xlane.xlu0 %3261
    %v3263 = vlaneseq
    %v3264 = vshrl.u32 %v3263, 7
    %v3265 = vsub.s32 5, %v3264
    %v3266 = vrot.slane %v2932, %v3265
    %v3267 = vmul.f32 %v3254, %v3266
    %v3268 = vmul.f32 %v3256, %v3266
    %v3269 = vsel %vm274, %v3267, 0.0
    %3270 = vadd.xlane.f32.xlu0 %v3269
    %v3271 = vpop.xlane.xlu0 %3270
    %v3272 = vsel %vm274, %v3268, 0.0
    %3273 = vadd.xlane.f32.xlu0 %v3272
    %v3274 = vpop.xlane.xlu0 %3273
    %v3275 = vrcp.pop %v3259
    %v3276 = vrcp.pop %v3262
    %v3277 = vmul.f32 %v3271, %v3275
    %v3278 = vmul.f32 %v3274, %v3276
    %v3279 = vlaneseq
    %v3280 = vshrl.u32 %v3279, 7
    %v3281 = vsub.s32 5, %v3280
    %v3282 = vrot.slane %v2936, %v3281
    %v3283 = vmul.f32 %v3277, %v3282
    %v3284 = vmul.f32 %v3278, %v3282
    %v3285 = vadd.f32 %v3227, %v3283
    %v3286 = vadd.f32 %v3228, %v3284
    %3287 = vset.pattern.permute.xlu0 6
    %3288 = vperm.xlu0 %3287, %v2830
    %v3289 = vpop.permute.xlu0 %3288
    %3291 = vset.pattern.permute.xlu0 6
    %3292 = vperm.xlu0 %3291, %v2835
    %v3293 = vpop.permute.xlu0 %3292
    %v3295 = vlaneseq
    %v3296 = vshrl.u32 %v3295, 7
    %v3297 = vsub.s32 6, %v3296
    %v3298 = vrot.slane %v2927, %v3297
    %v3299 = vmul.f32 %v3289, %v3298
    %v3300 = vmul.f32 %v3293, %v3298
    %v3301 = vadd.f32 %v3299, %v70
    %v3302 = vadd.f32 %v3300, %v71
    %v3303 = vsel %vm274, %v3301, -inf
    %3304 = vmax.xlane.f32.xlu0 %v3303
    %v3305 = vpop.xlane.xlu0 %3304
    %v3306 = vsel %vm274, %v3302, -inf
    %3307 = vmax.xlane.f32.xlu0 %v3306
    %v3308 = vpop.xlane.xlu0 %3307
    %v3309 = vsub.f32 %v3301, %v3305
    %v3310 = vsub.f32 %v3302, %v3308
    %v3311 = vmul.f32 %v3309, 1.442695
    %v3312 = vpow.pop %v3311
    %v3313 = vmul.f32 %v3310, 1.442695
    %v3314 = vpow.pop %v3313
    %v3315 = vsel %vm274, %v3312, 0.0
    %3316 = vadd.xlane.f32.xlu0 %v3315
    %v3317 = vpop.xlane.xlu0 %3316
    %v3318 = vsel %vm274, %v3314, 0.0
    %3319 = vadd.xlane.f32.xlu0 %v3318
    %v3320 = vpop.xlane.xlu0 %3319
    %v3321 = vlaneseq
    %v3322 = vshrl.u32 %v3321, 7
    %v3323 = vsub.s32 6, %v3322
    %v3324 = vrot.slane %v2932, %v3323
    %v3325 = vmul.f32 %v3312, %v3324
    %v3326 = vmul.f32 %v3314, %v3324
    %v3327 = vsel %vm274, %v3325, 0.0
    %3328 = vadd.xlane.f32.xlu0 %v3327
    %v3329 = vpop.xlane.xlu0 %3328
    %v3330 = vsel %vm274, %v3326, 0.0
    %3331 = vadd.xlane.f32.xlu0 %v3330
    %v3332 = vpop.xlane.xlu0 %3331
    %v3333 = vrcp.pop %v3317
    %v3334 = vrcp.pop %v3320
    %v3335 = vmul.f32 %v3329, %v3333
    %v3336 = vmul.f32 %v3332, %v3334
    %v3337 = vlaneseq
    %v3338 = vshrl.u32 %v3337, 7
    %v3339 = vsub.s32 6, %v3338
    %v3340 = vrot.slane %v2936, %v3339
    %v3341 = vmul.f32 %v3335, %v3340
    %v3342 = vmul.f32 %v3336, %v3340
    %v3343 = vadd.f32 %v3285, %v3341
    %v3344 = vadd.f32 %v3286, %v3342
    %3345 = vset.pattern.permute.xlu0 7
    %3346 = vperm.xlu0 %3345, %v2830
    %v3347 = vpop.permute.xlu0 %3346
    %3349 = vset.pattern.permute.xlu0 7
    %3350 = vperm.xlu0 %3349, %v2835
    %v3351 = vpop.permute.xlu0 %3350
    %v3353 = vlaneseq
    %v3354 = vshrl.u32 %v3353, 7
    %v3355 = vsub.s32 7, %v3354
    %v3356 = vrot.slane %v2927, %v3355
    %v3357 = vmul.f32 %v3347, %v3356
    %v3358 = vmul.f32 %v3351, %v3356
    %v3359 = vadd.f32 %v3357, %v70
    %v3360 = vadd.f32 %v3358, %v71
    %v3361 = vsel %vm274, %v3359, -inf
    %3362 = vmax.xlane.f32.xlu0 %v3361
    %v3363 = vpop.xlane.xlu0 %3362
    %v3364 = vsel %vm274, %v3360, -inf
    %3365 = vmax.xlane.f32.xlu0 %v3364
    %v3366 = vpop.xlane.xlu0 %3365
    %v3367 = vsub.f32 %v3359, %v3363
    %v3368 = vsub.f32 %v3360, %v3366
    %v3369 = vmul.f32 %v3367, 1.442695
    %v3370 = vpow.pop %v3369
    %v3371 = vmul.f32 %v3368, 1.442695
    %v3372 = vpow.pop %v3371
    %v3373 = vsel %vm274, %v3370, 0.0
    %3374 = vadd.xlane.f32.xlu0 %v3373
    %v3375 = vpop.xlane.xlu0 %3374
    %v3376 = vsel %vm274, %v3372, 0.0
    %3377 = vadd.xlane.f32.xlu0 %v3376
    %v3378 = vpop.xlane.xlu0 %3377
    %v3379 = vlaneseq
    %v3380 = vshrl.u32 %v3379, 7
    %v3381 = vsub.s32 7, %v3380
    %v3382 = vrot.slane %v2932, %v3381
    %v3383 = vmul.f32 %v3370, %v3382
    %v3384 = vmul.f32 %v3372, %v3382
    %v3385 = vsel %vm274, %v3383, 0.0
    %3386 = vadd.xlane.f32.xlu0 %v3385
    %v3387 = vpop.xlane.xlu0 %3386
    %v3388 = vsel %vm274, %v3384, 0.0
    %3389 = vadd.xlane.f32.xlu0 %v3388
    %v3390 = vpop.xlane.xlu0 %3389
    %v3391 = vrcp.pop %v3375
    %v3392 = vrcp.pop %v3378
    %v3393 = vmul.f32 %v3387, %v3391
    %v3394 = vmul.f32 %v3390, %v3392
    %v3395 = vlaneseq
    %v3396 = vshrl.u32 %v3395, 7
    %v3397 = vsub.s32 7, %v3396
    %v3398 = vrot.slane %v2936, %v3397
    %v3399 = vmul.f32 %v3393, %v3398
    %v3400 = vmul.f32 %v3394, %v3398
    %v3401 = vadd.f32 %v3343, %v3399
    %v3402 = vadd.f32 %v3344, %v3400
    %v3403 = vadd.f32 %v2748, %v3401
    %v3404 = vadd.f32 %v2749, %v3402
    %v3405 = vld [vmem:[%s8 + $0x1] sm:$0x1]
    %v3406 = vlaneseq
    %v3407 = vshrl.u32 %v3406, 7
    %v3408 = vsub.s32 0, %v3407
    %v3409 = vrot.slane %v3405, %v3408
    %v3410 = vadd.f32 %v3403, %v3409
    %v3411 = vadd.f32 %v3404, %v3409
    %v3412 = vld [vmem:[%s9 + $0x1] sm:$0x1]
    %v3413 = vld [vmem:[%s10 + $0x1] sm:$0x1]
    %v3414 = vsel %vm78, %v3410, 0.0
    %3415 = vadd.xlane.f32.xlu0 %v3414
    %v3416 = vpop.xlane.xlu0 %3415
    %v3417 = vsel %vm78, %v3411, 0.0
    %3418 = vadd.xlane.f32.xlu0 %v3417
    %v3419 = vpop.xlane.xlu0 %3418
    %v3420 = vmul.f32 %v3416, %v740
    %v3421 = vmul.f32 %v3419, %v740
    %v3422 = vsub.f32 %v3410, %v3420
    %v3423 = vsub.f32 %v3411, %v3421
    %v3424 = vmul.f32 %v3422, %v3422
    %v3425 = vmul.f32 %v3423, %v3423
    %v3426 = vsel %vm78, %v3424, 0.0
    %3427 = vadd.xlane.f32.xlu0 %v3426
    %v3428 = vpop.xlane.xlu0 %3427
    %v3429 = vsel %vm78, %v3425, 0.0
    %3430 = vadd.xlane.f32.xlu0 %v3429
    %v3431 = vpop.xlane.xlu0 %3430
    %v3432 = vmul.f32 %v3428, %v740
    %v3433 = vmul.f32 %v3431, %v740
    %v3434 = vadd.f32 %v3432, 1e-05
    %v3435 = vadd.f32 %v3433, 1e-05
    %v3436 = vrsqrt.pop %v3434
    %v3437 = vrsqrt.pop %v3435
    %v3438 = vmul.f32 %v3422, %v3436
    %v3439 = vmul.f32 %v3423, %v3437
    %v3440 = vlaneseq
    %v3441 = vshrl.u32 %v3440, 7
    %v3442 = vsub.s32 0, %v3441
    %v3443 = vrot.slane %v3412, %v3442
    %v3444 = vmul.f32 %v3438, %v3443
    %v3445 = vmul.f32 %v3439, %v3443
    %v3446 = vlaneseq
    %v3447 = vshrl.u32 %v3446, 7
    %v3448 = vsub.s32 0, %v3447
    %v3449 = vrot.slane %v3413, %v3448
    %v3450 = vadd.f32 %v3444, %v3449
    %v3451 = vadd.f32 %v3445, %v3449
    %v3452 = vpack.c.bf16 %v3451, %v3450
    %s3453 = scalar_lea.vmem %s11, 64
    %v3454 = vld [vmem:[%s3453] sm:$0xff]
    %v3455 = vld [vmem:[%s3453 + $0x8] sm:$0xff]
    %v3456 = vld [vmem:[%s3453 + $0x10] sm:$0xff]
    %v3457 = vld [vmem:[%s3453 + $0x18] sm:$0xff]
    %v3458 = vld [vmem:[%s3453 + $0x20] sm:$0xff]
    %v3459 = vld [vmem:[%s3453 + $0x28] sm:$0xff]
    %v3460 = vld [vmem:[%s3453 + $0x30] sm:$0xff]
    %v3461 = vld [vmem:[%s3453 + $0x38] sm:$0xff]
    %s3462 = scalar_lea.vmem %s12, 1
    %v3463 = vld [vmem:[%s3462] ss:$4 sm:$0xff]
    %s3464 = scalar_lea.vmem %s12, 33
    %v3465 = vld [vmem:[%s3464] ss:$4 sm:$0xff]
    %v3468 = vlaneseq
    %v3469 = vshrl.u32 %v3468, 7
    %v3470 = vsub.s32 0, %v3469
    %v3471 = vrot.slane %v3463, %v3470
    %v3472 = vlaneseq
    %v3473 = vshrl.u32 %v3472, 7
    %v3474 = vsub.s32 1, %v3473
    %v3475 = vrot.slane %v3463, %v3474
    %v3476 = vlaneseq
    %v3477 = vshrl.u32 %v3476, 7
    %v3478 = vsub.s32 2, %v3477
    %v3479 = vrot.slane %v3463, %v3478
    %v3480 = vlaneseq
    %v3481 = vshrl.u32 %v3480, 7
    %v3482 = vsub.s32 3, %v3481
    %v3483 = vrot.slane %v3463, %v3482
    %v3484 = vlaneseq
    %v3485 = vshrl.u32 %v3484, 7
    %v3486 = vsub.s32 4, %v3485
    %v3487 = vrot.slane %v3463, %v3486
    %v3488 = vlaneseq
    %v3489 = vshrl.u32 %v3488, 7
    %v3490 = vsub.s32 5, %v3489
    %v3491 = vrot.slane %v3463, %v3490
    %v3492 = vlaneseq
    %v3493 = vshrl.u32 %v3492, 7
    %v3494 = vsub.s32 6, %v3493
    %v3495 = vrot.slane %v3463, %v3494
    %v3496 = vlaneseq
    %v3497 = vshrl.u32 %v3496, 7
    %v3498 = vsub.s32 7, %v3497
    %v3499 = vrot.slane %v3463, %v3498
    %v3500 = vlaneseq
    %v3501 = vshrl.u32 %v3500, 7
    %v3502 = vsub.s32 0, %v3501
    %v3503 = vrot.slane %v3465, %v3502
    %v3504 = vlaneseq
    %v3505 = vshrl.u32 %v3504, 7
    %v3506 = vsub.s32 1, %v3505
    %v3507 = vrot.slane %v3465, %v3506
    %v3508 = vlaneseq
    %v3509 = vshrl.u32 %v3508, 7
    %v3510 = vsub.s32 2, %v3509
    %v3511 = vrot.slane %v3465, %v3510
    %v3512 = vlaneseq
    %v3513 = vshrl.u32 %v3512, 7
    %v3514 = vsub.s32 3, %v3513
    %v3515 = vrot.slane %v3465, %v3514
    %v3516 = vlaneseq
    %v3517 = vshrl.u32 %v3516, 7
    %v3518 = vsub.s32 4, %v3517
    %v3519 = vrot.slane %v3465, %v3518
    %v3520 = vlaneseq
    %v3521 = vshrl.u32 %v3520, 7
    %v3522 = vsub.s32 5, %v3521
    %v3523 = vrot.slane %v3465, %v3522
    %v3524 = vlaneseq
    %v3525 = vshrl.u32 %v3524, 7
    %v3526 = vsub.s32 6, %v3525
    %v3527 = vrot.slane %v3465, %v3526
    %v3528 = vlaneseq
    %v3529 = vshrl.u32 %v3528, 7
    %v3530 = vsub.s32 7, %v3529
    %v3531 = vrot.slane %v3465, %v3530
    %v3556 = vunpack.c.l.b16 %v3454
    %v3557 = vunpack.c.h.b16 %v3454
    %v3558 = vunpack.c.l.b16 %v3455
    %v3559 = vunpack.c.h.b16 %v3455
    %v3560 = vunpack.c.l.b16 %v3456
    %v3561 = vunpack.c.h.b16 %v3456
    %v3562 = vunpack.c.l.b16 %v3457
    %v3563 = vunpack.c.h.b16 %v3457
    %v3564 = vunpack.c.l.b16 %v3458
    %v3565 = vunpack.c.h.b16 %v3458
    %v3566 = vunpack.c.l.b16 %v3459
    %v3567 = vunpack.c.h.b16 %v3459
    %v3568 = vunpack.c.l.b16 %v3460
    %v3569 = vunpack.c.h.b16 %v3460
    %v3570 = vunpack.c.l.b16 %v3461
    %v3571 = vunpack.c.h.b16 %v3461
    %v3572 = vpack.c.b16 %v3556, %v3556
    %v3573 = vpack.c.b16 %v3557, %v3557
    %v3574 = vpack.c.b16 %v3558, %v3558
    %v3575 = vpack.c.b16 %v3559, %v3559
    %v3576 = vpack.c.b16 %v3560, %v3560
    %v3577 = vpack.c.b16 %v3561, %v3561
    %v3578 = vpack.c.b16 %v3562, %v3562
    %v3579 = vpack.c.b16 %v3563, %v3563
    %v3580 = vpack.c.b16 %v3564, %v3564
    %v3581 = vpack.c.b16 %v3565, %v3565
    %v3582 = vpack.c.b16 %v3566, %v3566
    %v3583 = vpack.c.b16 %v3567, %v3567
    %v3584 = vpack.c.b16 %v3568, %v3568
    %v3585 = vpack.c.b16 %v3569, %v3569
    %v3586 = vpack.c.b16 %v3570, %v3570
    %v3587 = vpack.c.b16 %v3571, %v3571
    %v3589 = vsel %vm78, %v3452, 0
    %v3592 = vsel %vm910, %v3572, 0
    %v3595 = vsel %vm910, %v3573, 0
    %v3598 = vsel %vm910, %v3574, 0
    %v3601 = vsel %vm910, %v3575, 0
    %v3604 = vsel %vm910, %v3576, 0
    %v3607 = vsel %vm910, %v3577, 0
    %v3610 = vsel %vm910, %v3578, 0
    %v3613 = vsel %vm910, %v3579, 0
    %v3616 = vsel %vm910, %v3580, 0
    %v3619 = vsel %vm910, %v3581, 0
    %v3622 = vsel %vm910, %v3582, 0
    %v3625 = vsel %vm910, %v3583, 0
    %v3628 = vsel %vm910, %v3584, 0
    %v3631 = vsel %vm910, %v3585, 0
    %v3634 = vsel %vm910, %v3586, 0
    %v3637 = vsel %vm910, %v3587, 0
    %3639 = vmatprep.subr.bf16.mxu0 %v3595
    %3640 = vmatpush1.bf16.msra.mxu0 %v3592
    %3641 = vmatprep.subr.bf16.mxu0 0
    %3642 = vmatpush1.bf16.msra.mxu0 0
    %3643 = vmatprep.subr.bf16.mxu0 0
    %3644 = vmatpush1.bf16.msra.mxu0 0
    %3645 = vmatprep.subr.bf16.mxu0 0
    %3646 = vmatpush1.bf16.msra.mxu0 0
    %3647 = vmatprep.subr.bf16.mxu0 0
    %3648 = vmatpush1.bf16.msra.mxu0 0
    %3649 = vmatprep.subr.bf16.mxu0 0
    %3650 = vmatpush1.bf16.msra.mxu0 0
    %3651 = vmatprep.subr.bf16.mxu0 0
    %3652 = vmatpush1.bf16.msra.mxu0 0
    %3653 = vmatprep.subr.bf16.mxu0 0
    %3654 = vmatpush1.bf16.msra.mxu0 0
    %3655 = vmatprep.subr.bf16.mxu0 0
    %3656 = vmatpush1.bf16.msra.mxu0 0
    %3657 = vmatprep.subr.bf16.mxu0 0
    %3658 = vmatpush1.bf16.msra.mxu0 0
    %3659 = vmatprep.subr.bf16.mxu0 0
    %3660 = vmatpush1.bf16.msra.mxu0 0
    %3661 = vmatprep.subr.bf16.mxu0 0
    %3662 = vmatpush1.bf16.msra.mxu0 0
    %3663 = vmatprep.subr.bf16.mxu0 0
    %3664 = vmatpush1.bf16.msra.mxu0 0
    %3665 = vmatprep.subr.bf16.mxu0 0
    %3666 = vmatpush1.bf16.msra.mxu0 0
    %3667 = vmatprep.subr.bf16.mxu0 0
    %3668 = vmatpush1.bf16.msra.mxu0 0
    %3669 = vmatprep.subr.bf16.mxu0 0
    %3670 = vmatpush1.bf16.msra.mxu0 0
    %3671 = vmatprep.mubr.bf16.mxu0 0
    %3672 = vmatmul.mubr.bf16.gmra.mrb[0].mxu0 %v3589
    %v3673 = vpop.f32.mrb[0].mxu0
    %v3674 = vadd.f32 %v3471, %v3673
    %v3675 = vpop.f32.mrb[0].mxu0
    %v3676 = vadd.f32 %v3475, %v3675
    %v3677 = vpop.f32.mrb[0].mxu0
    %v3678 = vadd.f32 %v3471, %v3677
    %v3679 = vpop.f32.mrb[0].mxu0
    %v3680 = vadd.f32 %v3475, %v3679
    %3681 = vdwg.mxu0
    %3682 = vmatprep.subr.bf16.mxu0 %v3601
    %3683 = vmatpush1.bf16.msra.mxu0 %v3598
    %3684 = vmatprep.subr.bf16.mxu0 0
    %3685 = vmatpush1.bf16.msra.mxu0 0
    %3686 = vmatprep.subr.bf16.mxu0 0
    %3687 = vmatpush1.bf16.msra.mxu0 0
    %3688 = vmatprep.subr.bf16.mxu0 0
    %3689 = vmatpush1.bf16.msra.mxu0 0
    %3690 = vmatprep.subr.bf16.mxu0 0
    %3691 = vmatpush1.bf16.msra.mxu0 0
    %3692 = vmatprep.subr.bf16.mxu0 0
    %3693 = vmatpush1.bf16.msra.mxu0 0
    %3694 = vmatprep.subr.bf16.mxu0 0
    %3695 = vmatpush1.bf16.msra.mxu0 0
    %3696 = vmatprep.subr.bf16.mxu0 0
    %3697 = vmatpush1.bf16.msra.mxu0 0
    %3698 = vmatprep.subr.bf16.mxu0 0
    %3699 = vmatpush1.bf16.msra.mxu0 0
    %3700 = vmatprep.subr.bf16.mxu0 0
    %3701 = vmatpush1.bf16.msra.mxu0 0
    %3702 = vmatprep.subr.bf16.mxu0 0
    %3703 = vmatpush1.bf16.msra.mxu0 0
    %3704 = vmatprep.subr.bf16.mxu0 0
    %3705 = vmatpush1.bf16.msra.mxu0 0
    %3706 = vmatprep.subr.bf16.mxu0 0
    %3707 = vmatpush1.bf16.msra.mxu0 0
    %3708 = vmatprep.subr.bf16.mxu0 0
    %3709 = vmatpush1.bf16.msra.mxu0 0
    %3710 = vmatprep.subr.bf16.mxu0 0
    %3711 = vmatpush1.bf16.msra.mxu0 0
    %3712 = vmatprep.subr.bf16.mxu0 0
    %3713 = vmatpush1.bf16.msra.mxu0 0
    %3714 = vmatprep.mubr.bf16.mxu0 0
    %3715 = vmatmul.mubr.bf16.gmra.mrb[0].mxu0 %v3589
    %v3716 = vpop.f32.mrb[0].mxu0
    %v3717 = vadd.f32 %v3479, %v3716
    %v3718 = vpop.f32.mrb[0].mxu0
    %v3719 = vadd.f32 %v3483, %v3718
    %v3720 = vpop.f32.mrb[0].mxu0
    %v3721 = vadd.f32 %v3479, %v3720
    %v3722 = vpop.f32.mrb[0].mxu0
    %v3723 = vadd.f32 %v3483, %v3722
    %3724 = vdwg.mxu0
    %3725 = vmatprep.subr.bf16.mxu0 %v3607
    %3726 = vmatpush1.bf16.msra.mxu0 %v3604
    %3727 = vmatprep.subr.bf16.mxu0 0
    %3728 = vmatpush1.bf16.msra.mxu0 0
    %3729 = vmatprep.subr.bf16.mxu0 0
    %3730 = vmatpush1.bf16.msra.mxu0 0
    %3731 = vmatprep.subr.bf16.mxu0 0
    %3732 = vmatpush1.bf16.msra.mxu0 0
    %3733 = vmatprep.subr.bf16.mxu0 0
    %3734 = vmatpush1.bf16.msra.mxu0 0
    %3735 = vmatprep.subr.bf16.mxu0 0
    %3736 = vmatpush1.bf16.msra.mxu0 0
    %3737 = vmatprep.subr.bf16.mxu0 0
    %3738 = vmatpush1.bf16.msra.mxu0 0
    %3739 = vmatprep.subr.bf16.mxu0 0
    %3740 = vmatpush1.bf16.msra.mxu0 0
    %3741 = vmatprep.subr.bf16.mxu0 0
    %3742 = vmatpush1.bf16.msra.mxu0 0
    %3743 = vmatprep.subr.bf16.mxu0 0
    %3744 = vmatpush1.bf16.msra.mxu0 0
    %3745 = vmatprep.subr.bf16.mxu0 0
    %3746 = vmatpush1.bf16.msra.mxu0 0
    %3747 = vmatprep.subr.bf16.mxu0 0
    %3748 = vmatpush1.bf16.msra.mxu0 0
    %3749 = vmatprep.subr.bf16.mxu0 0
    %3750 = vmatpush1.bf16.msra.mxu0 0
    %3751 = vmatprep.subr.bf16.mxu0 0
    %3752 = vmatpush1.bf16.msra.mxu0 0
    %3753 = vmatprep.subr.bf16.mxu0 0
    %3754 = vmatpush1.bf16.msra.mxu0 0
    %3755 = vmatprep.subr.bf16.mxu0 0
    %3756 = vmatpush1.bf16.msra.mxu0 0
    %3757 = vmatprep.mubr.bf16.mxu0 0
    %3758 = vmatmul.mubr.bf16.gmra.mrb[0].mxu0 %v3589
    %v3759 = vpop.f32.mrb[0].mxu0
    %v3760 = vadd.f32 %v3487, %v3759
    %v3761 = vpop.f32.mrb[0].mxu0
    %v3762 = vadd.f32 %v3491, %v3761
    %v3763 = vpop.f32.mrb[0].mxu0
    %v3764 = vadd.f32 %v3487, %v3763
    %v3765 = vpop.f32.mrb[0].mxu0
    %v3766 = vadd.f32 %v3491, %v3765
    %3767 = vdwg.mxu0
    %3768 = vmatprep.subr.bf16.mxu0 %v3613
    %3769 = vmatpush1.bf16.msra.mxu0 %v3610
    %3770 = vmatprep.subr.bf16.mxu0 0
    %3771 = vmatpush1.bf16.msra.mxu0 0
    %3772 = vmatprep.subr.bf16.mxu0 0
    %3773 = vmatpush1.bf16.msra.mxu0 0
    %3774 = vmatprep.subr.bf16.mxu0 0
    %3775 = vmatpush1.bf16.msra.mxu0 0
    %3776 = vmatprep.subr.bf16.mxu0 0
    %3777 = vmatpush1.bf16.msra.mxu0 0
    %3778 = vmatprep.subr.bf16.mxu0 0
    %3779 = vmatpush1.bf16.msra.mxu0 0
    %3780 = vmatprep.subr.bf16.mxu0 0
    %3781 = vmatpush1.bf16.msra.mxu0 0
    %3782 = vmatprep.subr.bf16.mxu0 0
    %3783 = vmatpush1.bf16.msra.mxu0 0
    %3784 = vmatprep.subr.bf16.mxu0 0
    %3785 = vmatpush1.bf16.msra.mxu0 0
    %3786 = vmatprep.subr.bf16.mxu0 0
    %3787 = vmatpush1.bf16.msra.mxu0 0
    %3788 = vmatprep.subr.bf16.mxu0 0
    %3789 = vmatpush1.bf16.msra.mxu0 0
    %3790 = vmatprep.subr.bf16.mxu0 0
    %3791 = vmatpush1.bf16.msra.mxu0 0
    %3792 = vmatprep.subr.bf16.mxu0 0
    %3793 = vmatpush1.bf16.msra.mxu0 0
    %3794 = vmatprep.subr.bf16.mxu0 0
    %3795 = vmatpush1.bf16.msra.mxu0 0
    %3796 = vmatprep.subr.bf16.mxu0 0
    %3797 = vmatpush1.bf16.msra.mxu0 0
    %3798 = vmatprep.subr.bf16.mxu0 0
    %3799 = vmatpush1.bf16.msra.mxu0 0
    %3800 = vmatprep.mubr.bf16.mxu0 0
    %3801 = vmatmul.mubr.bf16.gmra.mrb[0].mxu0 %v3589
    %v3802 = vpop.f32.mrb[0].mxu0
    %v3803 = vadd.f32 %v3495, %v3802
    %v3804 = vpop.f32.mrb[0].mxu0
    %v3805 = vadd.f32 %v3499, %v3804
    %v3806 = vpop.f32.mrb[0].mxu0
    %v3807 = vadd.f32 %v3495, %v3806
    %v3808 = vpop.f32.mrb[0].mxu0
    %v3809 = vadd.f32 %v3499, %v3808
    %3810 = vdwg.mxu0
    %3811 = vmatprep.subr.bf16.mxu0 %v3619
    %3812 = vmatpush1.bf16.msra.mxu0 %v3616
    %3813 = vmatprep.subr.bf16.mxu0 0
    %3814 = vmatpush1.bf16.msra.mxu0 0
    %3815 = vmatprep.subr.bf16.mxu0 0
    %3816 = vmatpush1.bf16.msra.mxu0 0
    %3817 = vmatprep.subr.bf16.mxu0 0
    %3818 = vmatpush1.bf16.msra.mxu0 0
    %3819 = vmatprep.subr.bf16.mxu0 0
    %3820 = vmatpush1.bf16.msra.mxu0 0
    %3821 = vmatprep.subr.bf16.mxu0 0
    %3822 = vmatpush1.bf16.msra.mxu0 0
    %3823 = vmatprep.subr.bf16.mxu0 0
    %3824 = vmatpush1.bf16.msra.mxu0 0
    %3825 = vmatprep.subr.bf16.mxu0 0
    %3826 = vmatpush1.bf16.msra.mxu0 0
    %3827 = vmatprep.subr.bf16.mxu0 0
    %3828 = vmatpush1.bf16.msra.mxu0 0
    %3829 = vmatprep.subr.bf16.mxu0 0
    %3830 = vmatpush1.bf16.msra.mxu0 0
    %3831 = vmatprep.subr.bf16.mxu0 0
    %3832 = vmatpush1.bf16.msra.mxu0 0
    %3833 = vmatprep.subr.bf16.mxu0 0
    %3834 = vmatpush1.bf16.msra.mxu0 0
    %3835 = vmatprep.subr.bf16.mxu0 0
    %3836 = vmatpush1.bf16.msra.mxu0 0
    %3837 = vmatprep.subr.bf16.mxu0 0
    %3838 = vmatpush1.bf16.msra.mxu0 0
    %3839 = vmatprep.subr.bf16.mxu0 0
    %3840 = vmatpush1.bf16.msra.mxu0 0
    %3841 = vmatprep.subr.bf16.mxu0 0
    %3842 = vmatpush1.bf16.msra.mxu0 0
    %3843 = vmatprep.mubr.bf16.mxu0 0
    %3844 = vmatmul.mubr.bf16.gmra.mrb[0].mxu0 %v3589
    %v3845 = vpop.f32.mrb[0].mxu0
    %v3846 = vadd.f32 %v3503, %v3845
    %v3847 = vpop.f32.mrb[0].mxu0
    %v3848 = vadd.f32 %v3507, %v3847
    %v3849 = vpop.f32.mrb[0].mxu0
    %v3850 = vadd.f32 %v3503, %v3849
    %v3851 = vpop.f32.mrb[0].mxu0
    %v3852 = vadd.f32 %v3507, %v3851
    %3853 = vdwg.mxu0
    %3854 = vmatprep.subr.bf16.mxu0 %v3625
    %3855 = vmatpush1.bf16.msra.mxu0 %v3622
    %3856 = vmatprep.subr.bf16.mxu0 0
    %3857 = vmatpush1.bf16.msra.mxu0 0
    %3858 = vmatprep.subr.bf16.mxu0 0
    %3859 = vmatpush1.bf16.msra.mxu0 0
    %3860 = vmatprep.subr.bf16.mxu0 0
    %3861 = vmatpush1.bf16.msra.mxu0 0
    %3862 = vmatprep.subr.bf16.mxu0 0
    %3863 = vmatpush1.bf16.msra.mxu0 0
    %3864 = vmatprep.subr.bf16.mxu0 0
    %3865 = vmatpush1.bf16.msra.mxu0 0
    %3866 = vmatprep.subr.bf16.mxu0 0
    %3867 = vmatpush1.bf16.msra.mxu0 0
    %3868 = vmatprep.subr.bf16.mxu0 0
    %3869 = vmatpush1.bf16.msra.mxu0 0
    %3870 = vmatprep.subr.bf16.mxu0 0
    %3871 = vmatpush1.bf16.msra.mxu0 0
    %3872 = vmatprep.subr.bf16.mxu0 0
    %3873 = vmatpush1.bf16.msra.mxu0 0
    %3874 = vmatprep.subr.bf16.mxu0 0
    %3875 = vmatpush1.bf16.msra.mxu0 0
    %3876 = vmatprep.subr.bf16.mxu0 0
    %3877 = vmatpush1.bf16.msra.mxu0 0
    %3878 = vmatprep.subr.bf16.mxu0 0
    %3879 = vmatpush1.bf16.msra.mxu0 0
    %3880 = vmatprep.subr.bf16.mxu0 0
    %3881 = vmatpush1.bf16.msra.mxu0 0
    %3882 = vmatprep.subr.bf16.mxu0 0
    %3883 = vmatpush1.bf16.msra.mxu0 0
    %3884 = vmatprep.subr.bf16.mxu0 0
    %3885 = vmatpush1.bf16.msra.mxu0 0
    %3886 = vmatprep.mubr.bf16.mxu0 0
    %3887 = vmatmul.mubr.bf16.gmra.mrb[0].mxu0 %v3589
    %v3888 = vpop.f32.mrb[0].mxu0
    %v3889 = vadd.f32 %v3511, %v3888
    %v3890 = vpop.f32.mrb[0].mxu0
    %v3891 = vadd.f32 %v3515, %v3890
    %v3892 = vpop.f32.mrb[0].mxu0
    %v3893 = vadd.f32 %v3511, %v3892
    %v3894 = vpop.f32.mrb[0].mxu0
    %v3895 = vadd.f32 %v3515, %v3894
    %3896 = vdwg.mxu0
    %3897 = vmatprep.subr.bf16.mxu0 %v3631
    %3898 = vmatpush1.bf16.msra.mxu0 %v3628
    %3899 = vmatprep.subr.bf16.mxu0 0
    %3900 = vmatpush1.bf16.msra.mxu0 0
    %3901 = vmatprep.subr.bf16.mxu0 0
    %3902 = vmatpush1.bf16.msra.mxu0 0
    %3903 = vmatprep.subr.bf16.mxu0 0
    %3904 = vmatpush1.bf16.msra.mxu0 0
    %3905 = vmatprep.subr.bf16.mxu0 0
    %3906 = vmatpush1.bf16.msra.mxu0 0
    %3907 = vmatprep.subr.bf16.mxu0 0
    %3908 = vmatpush1.bf16.msra.mxu0 0
    %3909 = vmatprep.subr.bf16.mxu0 0
    %3910 = vmatpush1.bf16.msra.mxu0 0
    %3911 = vmatprep.subr.bf16.mxu0 0
    %3912 = vmatpush1.bf16.msra.mxu0 0
    %3913 = vmatprep.subr.bf16.mxu0 0
    %3914 = vmatpush1.bf16.msra.mxu0 0
    %3915 = vmatprep.subr.bf16.mxu0 0
    %3916 = vmatpush1.bf16.msra.mxu0 0
    %3917 = vmatprep.subr.bf16.mxu0 0
    %3918 = vmatpush1.bf16.msra.mxu0 0
    %3919 = vmatprep.subr.bf16.mxu0 0
    %3920 = vmatpush1.bf16.msra.mxu0 0
    %3921 = vmatprep.subr.bf16.mxu0 0
    %3922 = vmatpush1.bf16.msra.mxu0 0
    %3923 = vmatprep.subr.bf16.mxu0 0
    %3924 = vmatpush1.bf16.msra.mxu0 0
    %3925 = vmatprep.subr.bf16.mxu0 0
    %3926 = vmatpush1.bf16.msra.mxu0 0
    %3927 = vmatprep.subr.bf16.mxu0 0
    %3928 = vmatpush1.bf16.msra.mxu0 0
    %3929 = vmatprep.mubr.bf16.mxu0 0
    %3930 = vmatmul.mubr.bf16.gmra.mrb[0].mxu0 %v3589
    %v3931 = vpop.f32.mrb[0].mxu0
    %v3932 = vadd.f32 %v3519, %v3931
    %v3933 = vpop.f32.mrb[0].mxu0
    %v3934 = vadd.f32 %v3523, %v3933
    %v3935 = vpop.f32.mrb[0].mxu0
    %v3936 = vadd.f32 %v3519, %v3935
    %v3937 = vpop.f32.mrb[0].mxu0
    %v3938 = vadd.f32 %v3523, %v3937
    %3939 = vdwg.mxu0
    %3940 = vmatprep.subr.bf16.mxu0 %v3637
    %3941 = vmatpush1.bf16.msra.mxu0 %v3634
    %3942 = vmatprep.subr.bf16.mxu0 0
    %3943 = vmatpush1.bf16.msra.mxu0 0
    %3944 = vmatprep.subr.bf16.mxu0 0
    %3945 = vmatpush1.bf16.msra.mxu0 0
    %3946 = vmatprep.subr.bf16.mxu0 0
    %3947 = vmatpush1.bf16.msra.mxu0 0
    %3948 = vmatprep.subr.bf16.mxu0 0
    %3949 = vmatpush1.bf16.msra.mxu0 0
    %3950 = vmatprep.subr.bf16.mxu0 0
    %3951 = vmatpush1.bf16.msra.mxu0 0
    %3952 = vmatprep.subr.bf16.mxu0 0
    %3953 = vmatpush1.bf16.msra.mxu0 0
    %3954 = vmatprep.subr.bf16.mxu0 0
    %3955 = vmatpush1.bf16.msra.mxu0 0
    %3956 = vmatprep.subr.bf16.mxu0 0
    %3957 = vmatpush1.bf16.msra.mxu0 0
    %3958 = vmatprep.subr.bf16.mxu0 0
    %3959 = vmatpush1.bf16.msra.mxu0 0
    %3960 = vmatprep.subr.bf16.mxu0 0
    %3961 = vmatpush1.bf16.msra.mxu0 0
    %3962 = vmatprep.subr.bf16.mxu0 0
    %3963 = vmatpush1.bf16.msra.mxu0 0
    %3964 = vmatprep.subr.bf16.mxu0 0
    %3965 = vmatpush1.bf16.msra.mxu0 0
    %3966 = vmatprep.subr.bf16.mxu0 0
    %3967 = vmatpush1.bf16.msra.mxu0 0
    %3968 = vmatprep.subr.bf16.mxu0 0
    %3969 = vmatpush1.bf16.msra.mxu0 0
    %3970 = vmatprep.subr.bf16.mxu0 0
    %3971 = vmatpush1.bf16.msra.mxu0 0
    %3972 = vmatprep.mubr.bf16.mxu0 0
    %3973 = vmatmul.mubr.bf16.gmra.mrb[0].mxu0 %v3589
    %v3974 = vpop.f32.mrb[0].mxu0
    %v3975 = vadd.f32 %v3527, %v3974
    %v3976 = vpop.f32.mrb[0].mxu0
    %v3977 = vadd.f32 %v3531, %v3976
    %v3978 = vpop.f32.mrb[0].mxu0
    %v3979 = vadd.f32 %v3527, %v3978
    %v3980 = vpop.f32.mrb[0].mxu0
    %v3981 = vadd.f32 %v3531, %v3980
    %3982 = vdwg.mxu0
    %v3983 = vmax.f32 %v3674, 0.0
    %v3984 = vmax.f32 %v3676, 0.0
    %v3985 = vmax.f32 %v3717, 0.0
    %v3986 = vmax.f32 %v3719, 0.0
    %v3987 = vmax.f32 %v3760, 0.0
    %v3988 = vmax.f32 %v3762, 0.0
    %v3989 = vmax.f32 %v3803, 0.0
    %v3990 = vmax.f32 %v3805, 0.0
    %v3991 = vmax.f32 %v3846, 0.0
    %v3992 = vmax.f32 %v3848, 0.0
    %v3993 = vmax.f32 %v3889, 0.0
    %v3994 = vmax.f32 %v3891, 0.0
    %v3995 = vmax.f32 %v3932, 0.0
    %v3996 = vmax.f32 %v3934, 0.0
    %v3997 = vmax.f32 %v3975, 0.0
    %v3998 = vmax.f32 %v3977, 0.0
    %v3999 = vmax.f32 %v3678, 0.0
    %v4000 = vmax.f32 %v3680, 0.0
    %v4001 = vmax.f32 %v3721, 0.0
    %v4002 = vmax.f32 %v3723, 0.0
    %v4003 = vmax.f32 %v3764, 0.0
    %v4004 = vmax.f32 %v3766, 0.0
    %v4005 = vmax.f32 %v3807, 0.0
    %v4006 = vmax.f32 %v3809, 0.0
    %v4007 = vmax.f32 %v3850, 0.0
    %v4008 = vmax.f32 %v3852, 0.0
    %v4009 = vmax.f32 %v3893, 0.0
    %v4010 = vmax.f32 %v3895, 0.0
    %v4011 = vmax.f32 %v3936, 0.0
    %v4012 = vmax.f32 %v3938, 0.0
    %v4013 = vmax.f32 %v3979, 0.0
    %v4014 = vmax.f32 %v3981, 0.0
    %v4015 = vpack.c.bf16 %v3999, %v3983
    %v4016 = vpack.c.bf16 %v4000, %v3984
    %v4017 = vpack.c.bf16 %v4001, %v3985
    %v4018 = vpack.c.bf16 %v4002, %v3986
    %v4019 = vpack.c.bf16 %v4003, %v3987
    %v4020 = vpack.c.bf16 %v4004, %v3988
    %v4021 = vpack.c.bf16 %v4005, %v3989
    %v4022 = vpack.c.bf16 %v4006, %v3990
    %v4023 = vpack.c.bf16 %v4007, %v3991
    %v4024 = vpack.c.bf16 %v4008, %v3992
    %v4025 = vpack.c.bf16 %v4009, %v3993
    %v4026 = vpack.c.bf16 %v4010, %v3994
    %v4027 = vpack.c.bf16 %v4011, %v3995
    %v4028 = vpack.c.bf16 %v4012, %v3996
    %v4029 = vpack.c.bf16 %v4013, %v3997
    %v4030 = vpack.c.bf16 %v4014, %v3998
    %s4031 = scalar_lea.vmem %s13, 1024
    %v4032 = vld [vmem:[%s4031] sm:$0xf]
    %v4033 = vld [vmem:[%s4031 + $0x4] sm:$0xf]
    %v4034 = vld [vmem:[%s4031 + $0x8] sm:$0xf]
    %v4035 = vld [vmem:[%s4031 + $0xc] sm:$0xf]
    %v4036 = vld [vmem:[%s4031 + $0x10] sm:$0xf]
    %v4037 = vld [vmem:[%s4031 + $0x14] sm:$0xf]
    %v4038 = vld [vmem:[%s4031 + $0x18] sm:$0xf]
    %v4039 = vld [vmem:[%s4031 + $0x1c] sm:$0xf]
    %v4040 = vld [vmem:[%s4031 + $0x20] sm:$0xf]
    %v4041 = vld [vmem:[%s4031 + $0x24] sm:$0xf]
    %v4042 = vld [vmem:[%s4031 + $0x28] sm:$0xf]
    %v4043 = vld [vmem:[%s4031 + $0x2c] sm:$0xf]
    %v4044 = vld [vmem:[%s4031 + $0x30] sm:$0xf]
    %v4045 = vld [vmem:[%s4031 + $0x34] sm:$0xf]
    %v4046 = vld [vmem:[%s4031 + $0x38] sm:$0xf]
    %v4047 = vld [vmem:[%s4031 + $0x3c] sm:$0xf]
    %v4048 = vld [vmem:[%s4031 + $0x40] sm:$0xf]
    %v4049 = vld [vmem:[%s4031 + $0x44] sm:$0xf]
    %v4050 = vld [vmem:[%s4031 + $0x48] sm:$0xf]
    %v4051 = vld [vmem:[%s4031 + $0x4c] sm:$0xf]
    %v4052 = vld [vmem:[%s4031 + $0x50] sm:$0xf]
    %v4053 = vld [vmem:[%s4031 + $0x54] sm:$0xf]
    %v4054 = vld [vmem:[%s4031 + $0x58] sm:$0xf]
    %v4055 = vld [vmem:[%s4031 + $0x5c] sm:$0xf]
    %v4056 = vld [vmem:[%s4031 + $0x60] sm:$0xf]
    %v4057 = vld [vmem:[%s4031 + $0x64] sm:$0xf]
    %v4058 = vld [vmem:[%s4031 + $0x68] sm:$0xf]
    %v4059 = vld [vmem:[%s4031 + $0x6c] sm:$0xf]
    %v4060 = vld [vmem:[%s4031 + $0x70] sm:$0xf]
    %v4061 = vld [vmem:[%s4031 + $0x74] sm:$0xf]
    %v4062 = vld [vmem:[%s4031 + $0x78] sm:$0xf]
    %v4063 = vld [vmem:[%s4031 + $0x7c] sm:$0xf]
    %v4064 = vld [vmem:[%s4031 + $0x80] sm:$0xf]
    %v4065 = vld [vmem:[%s4031 + $0x84] sm:$0xf]
    %v4066 = vld [vmem:[%s4031 + $0x88] sm:$0xf]
    %v4067 = vld [vmem:[%s4031 + $0x8c] sm:$0xf]
    %v4068 = vld [vmem:[%s4031 + $0x90] sm:$0xf]
    %v4069 = vld [vmem:[%s4031 + $0x94] sm:$0xf]
    %v4070 = vld [vmem:[%s4031 + $0x98] sm:$0xf]
    %v4071 = vld [vmem:[%s4031 + $0x9c] sm:$0xf]
    %v4072 = vld [vmem:[%s4031 + $0xa0] sm:$0xf]
    %v4073 = vld [vmem:[%s4031 + $0xa4] sm:$0xf]
    %v4074 = vld [vmem:[%s4031 + $0xa8] sm:$0xf]
    %v4075 = vld [vmem:[%s4031 + $0xac] sm:$0xf]
    %v4076 = vld [vmem:[%s4031 + $0xb0] sm:$0xf]
    %v4077 = vld [vmem:[%s4031 + $0xb4] sm:$0xf]
    %v4078 = vld [vmem:[%s4031 + $0xb8] sm:$0xf]
    %v4079 = vld [vmem:[%s4031 + $0xbc] sm:$0xf]
    %v4080 = vld [vmem:[%s4031 + $0xc0] sm:$0xf]
    %v4081 = vld [vmem:[%s4031 + $0xc4] sm:$0xf]
    %v4082 = vld [vmem:[%s4031 + $0xc8] sm:$0xf]
    %v4083 = vld [vmem:[%s4031 + $0xcc] sm:$0xf]
    %v4084 = vld [vmem:[%s4031 + $0xd0] sm:$0xf]
    %v4085 = vld [vmem:[%s4031 + $0xd4] sm:$0xf]
    %v4086 = vld [vmem:[%s4031 + $0xd8] sm:$0xf]
    %v4087 = vld [vmem:[%s4031 + $0xdc] sm:$0xf]
    %v4088 = vld [vmem:[%s4031 + $0xe0] sm:$0xf]
    %v4089 = vld [vmem:[%s4031 + $0xe4] sm:$0xf]
    %v4090 = vld [vmem:[%s4031 + $0xe8] sm:$0xf]
    %v4091 = vld [vmem:[%s4031 + $0xec] sm:$0xf]
    %v4092 = vld [vmem:[%s4031 + $0xf0] sm:$0xf]
    %v4093 = vld [vmem:[%s4031 + $0xf4] sm:$0xf]
    %v4094 = vld [vmem:[%s4031 + $0xf8] sm:$0xf]
    %v4095 = vld [vmem:[%s4031 + $0xfc] sm:$0xf]
    %v4096 = vld [vmem:[%s4031 + $0x100] sm:$0xf]
    %v4097 = vld [vmem:[%s4031 + $0x104] sm:$0xf]
    %v4098 = vld [vmem:[%s4031 + $0x108] sm:$0xf]
    %v4099 = vld [vmem:[%s4031 + $0x10c] sm:$0xf]
    %v4100 = vld [vmem:[%s4031 + $0x110] sm:$0xf]
    %v4101 = vld [vmem:[%s4031 + $0x114] sm:$0xf]
    %v4102 = vld [vmem:[%s4031 + $0x118] sm:$0xf]
    %v4103 = vld [vmem:[%s4031 + $0x11c] sm:$0xf]
    %v4104 = vld [vmem:[%s4031 + $0x120] sm:$0xf]
    %v4105 = vld [vmem:[%s4031 + $0x124] sm:$0xf]
    %v4106 = vld [vmem:[%s4031 + $0x128] sm:$0xf]
    %v4107 = vld [vmem:[%s4031 + $0x12c] sm:$0xf]
    %v4108 = vld [vmem:[%s4031 + $0x130] sm:$0xf]
    %v4109 = vld [vmem:[%s4031 + $0x134] sm:$0xf]
    %v4110 = vld [vmem:[%s4031 + $0x138] sm:$0xf]
    %v4111 = vld [vmem:[%s4031 + $0x13c] sm:$0xf]
    %v4112 = vld [vmem:[%s4031 + $0x140] sm:$0xf]
    %v4113 = vld [vmem:[%s4031 + $0x144] sm:$0xf]
    %v4114 = vld [vmem:[%s4031 + $0x148] sm:$0xf]
    %v4115 = vld [vmem:[%s4031 + $0x14c] sm:$0xf]
    %v4116 = vld [vmem:[%s4031 + $0x150] sm:$0xf]
    %v4117 = vld [vmem:[%s4031 + $0x154] sm:$0xf]
    %v4118 = vld [vmem:[%s4031 + $0x158] sm:$0xf]
    %v4119 = vld [vmem:[%s4031 + $0x15c] sm:$0xf]
    %v4120 = vld [vmem:[%s4031 + $0x160] sm:$0xf]
    %v4121 = vld [vmem:[%s4031 + $0x164] sm:$0xf]
    %v4122 = vld [vmem:[%s4031 + $0x168] sm:$0xf]
    %v4123 = vld [vmem:[%s4031 + $0x16c] sm:$0xf]
    %v4124 = vld [vmem:[%s4031 + $0x170] sm:$0xf]
    %v4125 = vld [vmem:[%s4031 + $0x174] sm:$0xf]
    %v4126 = vld [vmem:[%s4031 + $0x178] sm:$0xf]
    %v4127 = vld [vmem:[%s4031 + $0x17c] sm:$0xf]
    %v4128 = vld [vmem:[%s4031 + $0x180] sm:$0xf]
    %v4129 = vld [vmem:[%s4031 + $0x184] sm:$0xf]
    %v4130 = vld [vmem:[%s4031 + $0x188] sm:$0xf]
    %v4131 = vld [vmem:[%s4031 + $0x18c] sm:$0xf]
    %v4132 = vld [vmem:[%s4031 + $0x190] sm:$0xf]
    %v4133 = vld [vmem:[%s4031 + $0x194] sm:$0xf]
    %v4134 = vld [vmem:[%s4031 + $0x198] sm:$0xf]
    %v4135 = vld [vmem:[%s4031 + $0x19c] sm:$0xf]
    %v4136 = vld [vmem:[%s4031 + $0x1a0] sm:$0xf]
    %v4137 = vld [vmem:[%s4031 + $0x1a4] sm:$0xf]
    %v4138 = vld [vmem:[%s4031 + $0x1a8] sm:$0xf]
    %v4139 = vld [vmem:[%s4031 + $0x1ac] sm:$0xf]
    %v4140 = vld [vmem:[%s4031 + $0x1b0] sm:$0xf]
    %v4141 = vld [vmem:[%s4031 + $0x1b4] sm:$0xf]
    %v4142 = vld [vmem:[%s4031 + $0x1b8] sm:$0xf]
    %v4143 = vld [vmem:[%s4031 + $0x1bc] sm:$0xf]
    %v4144 = vld [vmem:[%s4031 + $0x1c0] sm:$0xf]
    %v4145 = vld [vmem:[%s4031 + $0x1c4] sm:$0xf]
    %v4146 = vld [vmem:[%s4031 + $0x1c8] sm:$0xf]
    %v4147 = vld [vmem:[%s4031 + $0x1cc] sm:$0xf]
    %v4148 = vld [vmem:[%s4031 + $0x1d0] sm:$0xf]
    %v4149 = vld [vmem:[%s4031 + $0x1d4] sm:$0xf]
    %v4150 = vld [vmem:[%s4031 + $0x1d8] sm:$0xf]
    %v4151 = vld [vmem:[%s4031 + $0x1dc] sm:$0xf]
    %v4152 = vld [vmem:[%s4031 + $0x1e0] sm:$0xf]
    %v4153 = vld [vmem:[%s4031 + $0x1e4] sm:$0xf]
    %v4154 = vld [vmem:[%s4031 + $0x1e8] sm:$0xf]
    %v4155 = vld [vmem:[%s4031 + $0x1ec] sm:$0xf]
    %v4156 = vld [vmem:[%s4031 + $0x1f0] sm:$0xf]
    %v4157 = vld [vmem:[%s4031 + $0x1f4] sm:$0xf]
    %v4158 = vld [vmem:[%s4031 + $0x1f8] sm:$0xf]
    %v4159 = vld [vmem:[%s4031 + $0x1fc] sm:$0xf]
    %v4160 = vld [vmem:[%s4031 + $0x200] sm:$0xf]
    %v4161 = vld [vmem:[%s4031 + $0x204] sm:$0xf]
    %v4162 = vld [vmem:[%s4031 + $0x208] sm:$0xf]
    %v4163 = vld [vmem:[%s4031 + $0x20c] sm:$0xf]
    %v4164 = vld [vmem:[%s4031 + $0x210] sm:$0xf]
    %v4165 = vld [vmem:[%s4031 + $0x214] sm:$0xf]
    %v4166 = vld [vmem:[%s4031 + $0x218] sm:$0xf]
    %v4167 = vld [vmem:[%s4031 + $0x21c] sm:$0xf]
    %v4168 = vld [vmem:[%s4031 + $0x220] sm:$0xf]
    %v4169 = vld [vmem:[%s4031 + $0x224] sm:$0xf]
    %v4170 = vld [vmem:[%s4031 + $0x228] sm:$0xf]
    %v4171 = vld [vmem:[%s4031 + $0x22c] sm:$0xf]
    %v4172 = vld [vmem:[%s4031 + $0x230] sm:$0xf]
    %v4173 = vld [vmem:[%s4031 + $0x234] sm:$0xf]
    %v4174 = vld [vmem:[%s4031 + $0x238] sm:$0xf]
    %v4175 = vld [vmem:[%s4031 + $0x23c] sm:$0xf]
    %v4176 = vld [vmem:[%s4031 + $0x240] sm:$0xf]
    %v4177 = vld [vmem:[%s4031 + $0x244] sm:$0xf]
    %v4178 = vld [vmem:[%s4031 + $0x248] sm:$0xf]
    %v4179 = vld [vmem:[%s4031 + $0x24c] sm:$0xf]
    %v4180 = vld [vmem:[%s4031 + $0x250] sm:$0xf]
    %v4181 = vld [vmem:[%s4031 + $0x254] sm:$0xf]
    %v4182 = vld [vmem:[%s4031 + $0x258] sm:$0xf]
    %v4183 = vld [vmem:[%s4031 + $0x25c] sm:$0xf]
    %v4184 = vld [vmem:[%s4031 + $0x260] sm:$0xf]
    %v4185 = vld [vmem:[%s4031 + $0x264] sm:$0xf]
    %v4186 = vld [vmem:[%s4031 + $0x268] sm:$0xf]
    %v4187 = vld [vmem:[%s4031 + $0x26c] sm:$0xf]
    %v4188 = vld [vmem:[%s4031 + $0x270] sm:$0xf]
    %v4189 = vld [vmem:[%s4031 + $0x274] sm:$0xf]
    %v4190 = vld [vmem:[%s4031 + $0x278] sm:$0xf]
    %v4191 = vld [vmem:[%s4031 + $0x27c] sm:$0xf]
    %v4192 = vld [vmem:[%s4031 + $0x280] sm:$0xf]
    %v4193 = vld [vmem:[%s4031 + $0x284] sm:$0xf]
    %v4194 = vld [vmem:[%s4031 + $0x288] sm:$0xf]
    %v4195 = vld [vmem:[%s4031 + $0x28c] sm:$0xf]
    %v4196 = vld [vmem:[%s4031 + $0x290] sm:$0xf]
    %v4197 = vld [vmem:[%s4031 + $0x294] sm:$0xf]
    %v4198 = vld [vmem:[%s4031 + $0x298] sm:$0xf]
    %v4199 = vld [vmem:[%s4031 + $0x29c] sm:$0xf]
    %v4200 = vld [vmem:[%s4031 + $0x2a0] sm:$0xf]
    %v4201 = vld [vmem:[%s4031 + $0x2a4] sm:$0xf]
    %v4202 = vld [vmem:[%s4031 + $0x2a8] sm:$0xf]
    %v4203 = vld [vmem:[%s4031 + $0x2ac] sm:$0xf]
    %v4204 = vld [vmem:[%s4031 + $0x2b0] sm:$0xf]
    %v4205 = vld [vmem:[%s4031 + $0x2b4] sm:$0xf]
    %v4206 = vld [vmem:[%s4031 + $0x2b8] sm:$0xf]
    %v4207 = vld [vmem:[%s4031 + $0x2bc] sm:$0xf]
    %v4208 = vld [vmem:[%s4031 + $0x2c0] sm:$0xf]
    %v4209 = vld [vmem:[%s4031 + $0x2c4] sm:$0xf]
    %v4210 = vld [vmem:[%s4031 + $0x2c8] sm:$0xf]
    %v4211 = vld [vmem:[%s4031 + $0x2cc] sm:$0xf]
    %v4212 = vld [vmem:[%s4031 + $0x2d0] sm:$0xf]
    %v4213 = vld [vmem:[%s4031 + $0x2d4] sm:$0xf]
    %v4214 = vld [vmem:[%s4031 + $0x2d8] sm:$0xf]
    %v4215 = vld [vmem:[%s4031 + $0x2dc] sm:$0xf]
    %v4216 = vld [vmem:[%s4031 + $0x2e0] sm:$0xf]
    %v4217 = vld [vmem:[%s4031 + $0x2e4] sm:$0xf]
    %v4218 = vld [vmem:[%s4031 + $0x2e8] sm:$0xf]
    %v4219 = vld [vmem:[%s4031 + $0x2ec] sm:$0xf]
    %v4220 = vld [vmem:[%s4031 + $0x2f0] sm:$0xf]
    %v4221 = vld [vmem:[%s4031 + $0x2f4] sm:$0xf]
    %v4222 = vld [vmem:[%s4031 + $0x2f8] sm:$0xf]
    %v4223 = vld [vmem:[%s4031 + $0x2fc] sm:$0xf]
    %v4224 = vld [vmem:[%s4031 + $0x300] sm:$0xf]
    %v4225 = vld [vmem:[%s4031 + $0x304] sm:$0xf]
    %v4226 = vld [vmem:[%s4031 + $0x308] sm:$0xf]
    %v4227 = vld [vmem:[%s4031 + $0x30c] sm:$0xf]
    %v4228 = vld [vmem:[%s4031 + $0x310] sm:$0xf]
    %v4229 = vld [vmem:[%s4031 + $0x314] sm:$0xf]
    %v4230 = vld [vmem:[%s4031 + $0x318] sm:$0xf]
    %v4231 = vld [vmem:[%s4031 + $0x31c] sm:$0xf]
    %v4232 = vld [vmem:[%s4031 + $0x320] sm:$0xf]
    %v4233 = vld [vmem:[%s4031 + $0x324] sm:$0xf]
    %v4234 = vld [vmem:[%s4031 + $0x328] sm:$0xf]
    %v4235 = vld [vmem:[%s4031 + $0x32c] sm:$0xf]
    %v4236 = vld [vmem:[%s4031 + $0x330] sm:$0xf]
    %v4237 = vld [vmem:[%s4031 + $0x334] sm:$0xf]
    %v4238 = vld [vmem:[%s4031 + $0x338] sm:$0xf]
    %v4239 = vld [vmem:[%s4031 + $0x33c] sm:$0xf]
    %v4240 = vld [vmem:[%s4031 + $0x340] sm:$0xf]
    %v4241 = vld [vmem:[%s4031 + $0x344] sm:$0xf]
    %v4242 = vld [vmem:[%s4031 + $0x348] sm:$0xf]
    %v4243 = vld [vmem:[%s4031 + $0x34c] sm:$0xf]
    %v4244 = vld [vmem:[%s4031 + $0x350] sm:$0xf]
    %v4245 = vld [vmem:[%s4031 + $0x354] sm:$0xf]
    %v4246 = vld [vmem:[%s4031 + $0x358] sm:$0xf]
    %v4247 = vld [vmem:[%s4031 + $0x35c] sm:$0xf]
    %v4248 = vld [vmem:[%s4031 + $0x360] sm:$0xf]
    %v4249 = vld [vmem:[%s4031 + $0x364] sm:$0xf]
    %v4250 = vld [vmem:[%s4031 + $0x368] sm:$0xf]
    %v4251 = vld [vmem:[%s4031 + $0x36c] sm:$0xf]
    %v4252 = vld [vmem:[%s4031 + $0x370] sm:$0xf]
    %v4253 = vld [vmem:[%s4031 + $0x374] sm:$0xf]
    %v4254 = vld [vmem:[%s4031 + $0x378] sm:$0xf]
    %v4255 = vld [vmem:[%s4031 + $0x37c] sm:$0xf]
    %v4256 = vld [vmem:[%s4031 + $0x380] sm:$0xf]
    %v4257 = vld [vmem:[%s4031 + $0x384] sm:$0xf]
    %v4258 = vld [vmem:[%s4031 + $0x388] sm:$0xf]
    %v4259 = vld [vmem:[%s4031 + $0x38c] sm:$0xf]
    %v4260 = vld [vmem:[%s4031 + $0x390] sm:$0xf]
    %v4261 = vld [vmem:[%s4031 + $0x394] sm:$0xf]
    %v4262 = vld [vmem:[%s4031 + $0x398] sm:$0xf]
    %v4263 = vld [vmem:[%s4031 + $0x39c] sm:$0xf]
    %v4264 = vld [vmem:[%s4031 + $0x3a0] sm:$0xf]
    %v4265 = vld [vmem:[%s4031 + $0x3a4] sm:$0xf]
    %v4266 = vld [vmem:[%s4031 + $0x3a8] sm:$0xf]
    %v4267 = vld [vmem:[%s4031 + $0x3ac] sm:$0xf]
    %v4268 = vld [vmem:[%s4031 + $0x3b0] sm:$0xf]
    %v4269 = vld [vmem:[%s4031 + $0x3b4] sm:$0xf]
    %v4270 = vld [vmem:[%s4031 + $0x3b8] sm:$0xf]
    %v4271 = vld [vmem:[%s4031 + $0x3bc] sm:$0xf]
    %v4272 = vld [vmem:[%s4031 + $0x3c0] sm:$0xf]
    %v4273 = vld [vmem:[%s4031 + $0x3c4] sm:$0xf]
    %v4274 = vld [vmem:[%s4031 + $0x3c8] sm:$0xf]
    %v4275 = vld [vmem:[%s4031 + $0x3cc] sm:$0xf]
    %v4276 = vld [vmem:[%s4031 + $0x3d0] sm:$0xf]
    %v4277 = vld [vmem:[%s4031 + $0x3d4] sm:$0xf]
    %v4278 = vld [vmem:[%s4031 + $0x3d8] sm:$0xf]
    %v4279 = vld [vmem:[%s4031 + $0x3dc] sm:$0xf]
    %v4280 = vld [vmem:[%s4031 + $0x3e0] sm:$0xf]
    %v4281 = vld [vmem:[%s4031 + $0x3e4] sm:$0xf]
    %v4282 = vld [vmem:[%s4031 + $0x3e8] sm:$0xf]
    %v4283 = vld [vmem:[%s4031 + $0x3ec] sm:$0xf]
    %v4284 = vld [vmem:[%s4031 + $0x3f0] sm:$0xf]
    %v4285 = vld [vmem:[%s4031 + $0x3f4] sm:$0xf]
    %v4286 = vld [vmem:[%s4031 + $0x3f8] sm:$0xf]
    %v4287 = vld [vmem:[%s4031 + $0x3fc] sm:$0xf]
    %v4288 = vld [vmem:[%s14 + $0x1] sm:$0x1]
    %v4289 = vlaneseq
    %v4290 = vshrl.u32 %v4289, 7
    %v4291 = vsub.s32 0, %v4290
    %v4292 = vrot.slane %v4288, %v4291
    %v4549 = vunpack.c.l.b16 %v4032
    %v4550 = vunpack.c.l.b16 %v4033
    %v4551 = vunpack.c.l.b16 %v4034
    %v4552 = vunpack.c.l.b16 %v4035
    %v4553 = vunpack.c.l.b16 %v4036
    %v4554 = vunpack.c.l.b16 %v4037
    %v4555 = vunpack.c.l.b16 %v4038
    %v4556 = vunpack.c.l.b16 %v4039
    %v4557 = vunpack.c.l.b16 %v4040
    %v4558 = vunpack.c.l.b16 %v4041
    %v4559 = vunpack.c.l.b16 %v4042
    %v4560 = vunpack.c.l.b16 %v4043
    %v4561 = vunpack.c.l.b16 %v4044
    %v4562 = vunpack.c.l.b16 %v4045
    %v4563 = vunpack.c.l.b16 %v4046
    %v4564 = vunpack.c.l.b16 %v4047
    %v4565 = vunpack.c.l.b16 %v4048
    %v4566 = vunpack.c.l.b16 %v4049
    %v4567 = vunpack.c.l.b16 %v4050
    %v4568 = vunpack.c.l.b16 %v4051
    %v4569 = vunpack.c.l.b16 %v4052
    %v4570 = vunpack.c.l.b16 %v4053
    %v4571 = vunpack.c.l.b16 %v4054
    %v4572 = vunpack.c.l.b16 %v4055
    %v4573 = vunpack.c.l.b16 %v4056
    %v4574 = vunpack.c.l.b16 %v4057
    %v4575 = vunpack.c.l.b16 %v4058
    %v4576 = vunpack.c.l.b16 %v4059
    %v4577 = vunpack.c.l.b16 %v4060
    %v4578 = vunpack.c.l.b16 %v4061
    %v4579 = vunpack.c.l.b16 %v4062
    %v4580 = vunpack.c.l.b16 %v4063
    %v4581 = vunpack.c.l.b16 %v4064
    %v4582 = vunpack.c.l.b16 %v4065
    %v4583 = vunpack.c.l.b16 %v4066
    %v4584 = vunpack.c.l.b16 %v4067
    %v4585 = vunpack.c.l.b16 %v4068
    %v4586 = vunpack.c.l.b16 %v4069
    %v4587 = vunpack.c.l.b16 %v4070
    %v4588 = vunpack.c.l.b16 %v4071
    %v4589 = vunpack.c.l.b16 %v4072
    %v4590 = vunpack.c.l.b16 %v4073
    %v4591 = vunpack.c.l.b16 %v4074
    %v4592 = vunpack.c.l.b16 %v4075
    %v4593 = vunpack.c.l.b16 %v4076
    %v4594 = vunpack.c.l.b16 %v4077
    %v4595 = vunpack.c.l.b16 %v4078
    %v4596 = vunpack.c.l.b16 %v4079
    %v4597 = vunpack.c.l.b16 %v4080
    %v4598 = vunpack.c.l.b16 %v4081
    %v4599 = vunpack.c.l.b16 %v4082
    %v4600 = vunpack.c.l.b16 %v4083
    %v4601 = vunpack.c.l.b16 %v4084
    %v4602 = vunpack.c.l.b16 %v4085
    %v4603 = vunpack.c.l.b16 %v4086
    %v4604 = vunpack.c.l.b16 %v4087
    %v4605 = vunpack.c.l.b16 %v4088
    %v4606 = vunpack.c.l.b16 %v4089
    %v4607 = vunpack.c.l.b16 %v4090
    %v4608 = vunpack.c.l.b16 %v4091
    %v4609 = vunpack.c.l.b16 %v4092
    %v4610 = vunpack.c.l.b16 %v4093
    %v4611 = vunpack.c.l.b16 %v4094
    %v4612 = vunpack.c.l.b16 %v4095
    %v4613 = vunpack.c.l.b16 %v4096
    %v4614 = vunpack.c.l.b16 %v4097
    %v4615 = vunpack.c.l.b16 %v4098
    %v4616 = vunpack.c.l.b16 %v4099
    %v4617 = vunpack.c.l.b16 %v4100
    %v4618 = vunpack.c.l.b16 %v4101
    %v4619 = vunpack.c.l.b16 %v4102
    %v4620 = vunpack.c.l.b16 %v4103
    %v4621 = vunpack.c.l.b16 %v4104
    %v4622 = vunpack.c.l.b16 %v4105
    %v4623 = vunpack.c.l.b16 %v4106
    %v4624 = vunpack.c.l.b16 %v4107
    %v4625 = vunpack.c.l.b16 %v4108
    %v4626 = vunpack.c.l.b16 %v4109
    %v4627 = vunpack.c.l.b16 %v4110
    %v4628 = vunpack.c.l.b16 %v4111
    %v4629 = vunpack.c.l.b16 %v4112
    %v4630 = vunpack.c.l.b16 %v4113
    %v4631 = vunpack.c.l.b16 %v4114
    %v4632 = vunpack.c.l.b16 %v4115
    %v4633 = vunpack.c.l.b16 %v4116
    %v4634 = vunpack.c.l.b16 %v4117
    %v4635 = vunpack.c.l.b16 %v4118
    %v4636 = vunpack.c.l.b16 %v4119
    %v4637 = vunpack.c.l.b16 %v4120
    %v4638 = vunpack.c.l.b16 %v4121
    %v4639 = vunpack.c.l.b16 %v4122
    %v4640 = vunpack.c.l.b16 %v4123
    %v4641 = vunpack.c.l.b16 %v4124
    %v4642 = vunpack.c.l.b16 %v4125
    %v4643 = vunpack.c.l.b16 %v4126
    %v4644 = vunpack.c.l.b16 %v4127
    %v4645 = vunpack.c.l.b16 %v4128
    %v4646 = vunpack.c.l.b16 %v4129
    %v4647 = vunpack.c.l.b16 %v4130
    %v4648 = vunpack.c.l.b16 %v4131
    %v4649 = vunpack.c.l.b16 %v4132
    %v4650 = vunpack.c.l.b16 %v4133
    %v4651 = vunpack.c.l.b16 %v4134
    %v4652 = vunpack.c.l.b16 %v4135
    %v4653 = vunpack.c.l.b16 %v4136
    %v4654 = vunpack.c.l.b16 %v4137
    %v4655 = vunpack.c.l.b16 %v4138
    %v4656 = vunpack.c.l.b16 %v4139
    %v4657 = vunpack.c.l.b16 %v4140
    %v4658 = vunpack.c.l.b16 %v4141
    %v4659 = vunpack.c.l.b16 %v4142
    %v4660 = vunpack.c.l.b16 %v4143
    %v4661 = vunpack.c.l.b16 %v4144
    %v4662 = vunpack.c.l.b16 %v4145
    %v4663 = vunpack.c.l.b16 %v4146
    %v4664 = vunpack.c.l.b16 %v4147
    %v4665 = vunpack.c.l.b16 %v4148
    %v4666 = vunpack.c.l.b16 %v4149
    %v4667 = vunpack.c.l.b16 %v4150
    %v4668 = vunpack.c.l.b16 %v4151
    %v4669 = vunpack.c.l.b16 %v4152
    %v4670 = vunpack.c.l.b16 %v4153
    %v4671 = vunpack.c.l.b16 %v4154
    %v4672 = vunpack.c.l.b16 %v4155
    %v4673 = vunpack.c.l.b16 %v4156
    %v4674 = vunpack.c.l.b16 %v4157
    %v4675 = vunpack.c.l.b16 %v4158
    %v4676 = vunpack.c.l.b16 %v4159
    %v4677 = vunpack.c.l.b16 %v4160
    %v4678 = vunpack.c.l.b16 %v4161
    %v4679 = vunpack.c.l.b16 %v4162
    %v4680 = vunpack.c.l.b16 %v4163
    %v4681 = vunpack.c.l.b16 %v4164
    %v4682 = vunpack.c.l.b16 %v4165
    %v4683 = vunpack.c.l.b16 %v4166
    %v4684 = vunpack.c.l.b16 %v4167
    %v4685 = vunpack.c.l.b16 %v4168
    %v4686 = vunpack.c.l.b16 %v4169
    %v4687 = vunpack.c.l.b16 %v4170
    %v4688 = vunpack.c.l.b16 %v4171
    %v4689 = vunpack.c.l.b16 %v4172
    %v4690 = vunpack.c.l.b16 %v4173
    %v4691 = vunpack.c.l.b16 %v4174
    %v4692 = vunpack.c.l.b16 %v4175
    %v4693 = vunpack.c.l.b16 %v4176
    %v4694 = vunpack.c.l.b16 %v4177
    %v4695 = vunpack.c.l.b16 %v4178
    %v4696 = vunpack.c.l.b16 %v4179
    %v4697 = vunpack.c.l.b16 %v4180
    %v4698 = vunpack.c.l.b16 %v4181
    %v4699 = vunpack.c.l.b16 %v4182
    %v4700 = vunpack.c.l.b16 %v4183
    %v4701 = vunpack.c.l.b16 %v4184
    %v4702 = vunpack.c.l.b16 %v4185
    %v4703 = vunpack.c.l.b16 %v4186
    %v4704 = vunpack.c.l.b16 %v4187
    %v4705 = vunpack.c.l.b16 %v4188
    %v4706 = vunpack.c.l.b16 %v4189
    %v4707 = vunpack.c.l.b16 %v4190
    %v4708 = vunpack.c.l.b16 %v4191
    %v4709 = vunpack.c.l.b16 %v4192
    %v4710 = vunpack.c.l.b16 %v4193
    %v4711 = vunpack.c.l.b16 %v4194
    %v4712 = vunpack.c.l.b16 %v4195
    %v4713 = vunpack.c.l.b16 %v4196
    %v4714 = vunpack.c.l.b16 %v4197
    %v4715 = vunpack.c.l.b16 %v4198
    %v4716 = vunpack.c.l.b16 %v4199
    %v4717 = vunpack.c.l.b16 %v4200
    %v4718 = vunpack.c.l.b16 %v4201
    %v4719 = vunpack.c.l.b16 %v4202
    %v4720 = vunpack.c.l.b16 %v4203
    %v4721 = vunpack.c.l.b16 %v4204
    %v4722 = vunpack.c.l.b16 %v4205
    %v4723 = vunpack.c.l.b16 %v4206
    %v4724 = vunpack.c.l.b16 %v4207
    %v4725 = vunpack.c.l.b16 %v4208
    %v4726 = vunpack.c.l.b16 %v4209
    %v4727 = vunpack.c.l.b16 %v4210
    %v4728 = vunpack.c.l.b16 %v4211
    %v4729 = vunpack.c.l.b16 %v4212
    %v4730 = vunpack.c.l.b16 %v4213
    %v4731 = vunpack.c.l.b16 %v4214
    %v4732 = vunpack.c.l.b16 %v4215
    %v4733 = vunpack.c.l.b16 %v4216
    %v4734 = vunpack.c.l.b16 %v4217
    %v4735 = vunpack.c.l.b16 %v4218
    %v4736 = vunpack.c.l.b16 %v4219
    %v4737 = vunpack.c.l.b16 %v4220
    %v4738 = vunpack.c.l.b16 %v4221
    %v4739 = vunpack.c.l.b16 %v4222
    %v4740 = vunpack.c.l.b16 %v4223
    %v4741 = vunpack.c.l.b16 %v4224
    %v4742 = vunpack.c.l.b16 %v4225
    %v4743 = vunpack.c.l.b16 %v4226
    %v4744 = vunpack.c.l.b16 %v4227
    %v4745 = vunpack.c.l.b16 %v4228
    %v4746 = vunpack.c.l.b16 %v4229
    %v4747 = vunpack.c.l.b16 %v4230
    %v4748 = vunpack.c.l.b16 %v4231
    %v4749 = vunpack.c.l.b16 %v4232
    %v4750 = vunpack.c.l.b16 %v4233
    %v4751 = vunpack.c.l.b16 %v4234
    %v4752 = vunpack.c.l.b16 %v4235
    %v4753 = vunpack.c.l.b16 %v4236
    %v4754 = vunpack.c.l.b16 %v4237
    %v4755 = vunpack.c.l.b16 %v4238
    %v4756 = vunpack.c.l.b16 %v4239
    %v4757 = vunpack.c.l.b16 %v4240
    %v4758 = vunpack.c.l.b16 %v4241
    %v4759 = vunpack.c.l.b16 %v4242
    %v4760 = vunpack.c.l.b16 %v4243
    %v4761 = vunpack.c.l.b16 %v4244
    %v4762 = vunpack.c.l.b16 %v4245
    %v4763 = vunpack.c.l.b16 %v4246
    %v4764 = vunpack.c.l.b16 %v4247
    %v4765 = vunpack.c.l.b16 %v4248
    %v4766 = vunpack.c.l.b16 %v4249
    %v4767 = vunpack.c.l.b16 %v4250
    %v4768 = vunpack.c.l.b16 %v4251
    %v4769 = vunpack.c.l.b16 %v4252
    %v4770 = vunpack.c.l.b16 %v4253
    %v4771 = vunpack.c.l.b16 %v4254
    %v4772 = vunpack.c.l.b16 %v4255
    %v4773 = vunpack.c.l.b16 %v4256
    %v4774 = vunpack.c.l.b16 %v4257
    %v4775 = vunpack.c.l.b16 %v4258
    %v4776 = vunpack.c.l.b16 %v4259
    %v4777 = vunpack.c.l.b16 %v4260
    %v4778 = vunpack.c.l.b16 %v4261
    %v4779 = vunpack.c.l.b16 %v4262
    %v4780 = vunpack.c.l.b16 %v4263
    %v4781 = vunpack.c.l.b16 %v4264
    %v4782 = vunpack.c.l.b16 %v4265
    %v4783 = vunpack.c.l.b16 %v4266
    %v4784 = vunpack.c.l.b16 %v4267
    %v4785 = vunpack.c.l.b16 %v4268
    %v4786 = vunpack.c.l.b16 %v4269
    %v4787 = vunpack.c.l.b16 %v4270
    %v4788 = vunpack.c.l.b16 %v4271
    %v4789 = vunpack.c.l.b16 %v4272
    %v4790 = vunpack.c.l.b16 %v4273
    %v4791 = vunpack.c.l.b16 %v4274
    %v4792 = vunpack.c.l.b16 %v4275
    %v4793 = vunpack.c.l.b16 %v4276
    %v4794 = vunpack.c.l.b16 %v4277
    %v4795 = vunpack.c.l.b16 %v4278
    %v4796 = vunpack.c.l.b16 %v4279
    %v4797 = vunpack.c.l.b16 %v4280
    %v4798 = vunpack.c.l.b16 %v4281
    %v4799 = vunpack.c.l.b16 %v4282
    %v4800 = vunpack.c.l.b16 %v4283
    %v4801 = vunpack.c.l.b16 %v4284
    %v4802 = vunpack.c.l.b16 %v4285
    %v4803 = vunpack.c.l.b16 %v4286
    %v4804 = vunpack.c.l.b16 %v4287
    %v4805 = vpack.c.b16 %v4550, %v4549
    %v4806 = vpack.c.b16 %v4552, %v4551
    %v4807 = vpack.c.b16 %v4554, %v4553
    %v4808 = vpack.c.b16 %v4556, %v4555
    %v4809 = vpack.c.b16 %v4558, %v4557
    %v4810 = vpack.c.b16 %v4560, %v4559
    %v4811 = vpack.c.b16 %v4562, %v4561
    %v4812 = vpack.c.b16 %v4564, %v4563
    %v4813 = vpack.c.b16 %v4566, %v4565
    %v4814 = vpack.c.b16 %v4568, %v4567
    %v4815 = vpack.c.b16 %v4570, %v4569
    %v4816 = vpack.c.b16 %v4572, %v4571
    %v4817 = vpack.c.b16 %v4574, %v4573
    %v4818 = vpack.c.b16 %v4576, %v4575
    %v4819 = vpack.c.b16 %v4578, %v4577
    %v4820 = vpack.c.b16 %v4580, %v4579
    %v4821 = vpack.c.b16 %v4582, %v4581
    %v4822 = vpack.c.b16 %v4584, %v4583
    %v4823 = vpack.c.b16 %v4586, %v4585
    %v4824 = vpack.c.b16 %v4588, %v4587
    %v4825 = vpack.c.b16 %v4590, %v4589
    %v4826 = vpack.c.b16 %v4592, %v4591
    %v4827 = vpack.c.b16 %v4594, %v4593
    %v4828 = vpack.c.b16 %v4596, %v4595
    %v4829 = vpack.c.b16 %v4598, %v4597
    %v4830 = vpack.c.b16 %v4600, %v4599
    %v4831 = vpack.c.b16 %v4602, %v4601
    %v4832 = vpack.c.b16 %v4604, %v4603
    %v4833 = vpack.c.b16 %v4606, %v4605
    %v4834 = vpack.c.b16 %v4608, %v4607
    %v4835 = vpack.c.b16 %v4610, %v4609
    %v4836 = vpack.c.b16 %v4612, %v4611
    %v4837 = vpack.c.b16 %v4614, %v4613
    %v4838 = vpack.c.b16 %v4616, %v4615
    %v4839 = vpack.c.b16 %v4618, %v4617
    %v4840 = vpack.c.b16 %v4620, %v4619
    %v4841 = vpack.c.b16 %v4622, %v4621
    %v4842 = vpack.c.b16 %v4624, %v4623
    %v4843 = vpack.c.b16 %v4626, %v4625
    %v4844 = vpack.c.b16 %v4628, %v4627
    %v4845 = vpack.c.b16 %v4630, %v4629
    %v4846 = vpack.c.b16 %v4632, %v4631
    %v4847 = vpack.c.b16 %v4634, %v4633
    %v4848 = vpack.c.b16 %v4636, %v4635
    %v4849 = vpack.c.b16 %v4638, %v4637
    %v4850 = vpack.c.b16 %v4640, %v4639
    %v4851 = vpack.c.b16 %v4642, %v4641
    %v4852 = vpack.c.b16 %v4644, %v4643
    %v4853 = vpack.c.b16 %v4646, %v4645
    %v4854 = vpack.c.b16 %v4648, %v4647
    %v4855 = vpack.c.b16 %v4650, %v4649
    %v4856 = vpack.c.b16 %v4652, %v4651
    %v4857 = vpack.c.b16 %v4654, %v4653
    %v4858 = vpack.c.b16 %v4656, %v4655
    %v4859 = vpack.c.b16 %v4658, %v4657
    %v4860 = vpack.c.b16 %v4660, %v4659
    %v4861 = vpack.c.b16 %v4662, %v4661
    %v4862 = vpack.c.b16 %v4664, %v4663
    %v4863 = vpack.c.b16 %v4666, %v4665
    %v4864 = vpack.c.b16 %v4668, %v4667
    %v4865 = vpack.c.b16 %v4670, %v4669
    %v4866 = vpack.c.b16 %v4672, %v4671
    %v4867 = vpack.c.b16 %v4674, %v4673
    %v4868 = vpack.c.b16 %v4676, %v4675
    %v4869 = vpack.c.b16 %v4678, %v4677
    %v4870 = vpack.c.b16 %v4680, %v4679
    %v4871 = vpack.c.b16 %v4682, %v4681
    %v4872 = vpack.c.b16 %v4684, %v4683
    %v4873 = vpack.c.b16 %v4686, %v4685
    %v4874 = vpack.c.b16 %v4688, %v4687
    %v4875 = vpack.c.b16 %v4690, %v4689
    %v4876 = vpack.c.b16 %v4692, %v4691
    %v4877 = vpack.c.b16 %v4694, %v4693
    %v4878 = vpack.c.b16 %v4696, %v4695
    %v4879 = vpack.c.b16 %v4698, %v4697
    %v4880 = vpack.c.b16 %v4700, %v4699
    %v4881 = vpack.c.b16 %v4702, %v4701
    %v4882 = vpack.c.b16 %v4704, %v4703
    %v4883 = vpack.c.b16 %v4706, %v4705
    %v4884 = vpack.c.b16 %v4708, %v4707
    %v4885 = vpack.c.b16 %v4710, %v4709
    %v4886 = vpack.c.b16 %v4712, %v4711
    %v4887 = vpack.c.b16 %v4714, %v4713
    %v4888 = vpack.c.b16 %v4716, %v4715
    %v4889 = vpack.c.b16 %v4718, %v4717
    %v4890 = vpack.c.b16 %v4720, %v4719
    %v4891 = vpack.c.b16 %v4722, %v4721
    %v4892 = vpack.c.b16 %v4724, %v4723
    %v4893 = vpack.c.b16 %v4726, %v4725
    %v4894 = vpack.c.b16 %v4728, %v4727
    %v4895 = vpack.c.b16 %v4730, %v4729
    %v4896 = vpack.c.b16 %v4732, %v4731
    %v4897 = vpack.c.b16 %v4734, %v4733
    %v4898 = vpack.c.b16 %v4736, %v4735
    %v4899 = vpack.c.b16 %v4738, %v4737
    %v4900 = vpack.c.b16 %v4740, %v4739
    %v4901 = vpack.c.b16 %v4742, %v4741
    %v4902 = vpack.c.b16 %v4744, %v4743
    %v4903 = vpack.c.b16 %v4746, %v4745
    %v4904 = vpack.c.b16 %v4748, %v4747
    %v4905 = vpack.c.b16 %v4750, %v4749
    %v4906 = vpack.c.b16 %v4752, %v4751
    %v4907 = vpack.c.b16 %v4754, %v4753
    %v4908 = vpack.c.b16 %v4756, %v4755
    %v4909 = vpack.c.b16 %v4758, %v4757
    %v4910 = vpack.c.b16 %v4760, %v4759
    %v4911 = vpack.c.b16 %v4762, %v4761
    %v4912 = vpack.c.b16 %v4764, %v4763
    %v4913 = vpack.c.b16 %v4766, %v4765
    %v4914 = vpack.c.b16 %v4768, %v4767
    %v4915 = vpack.c.b16 %v4770, %v4769
    %v4916 = vpack.c.b16 %v4772, %v4771
    %v4917 = vpack.c.b16 %v4774, %v4773
    %v4918 = vpack.c.b16 %v4776, %v4775
    %v4919 = vpack.c.b16 %v4778, %v4777
    %v4920 = vpack.c.b16 %v4780, %v4779
    %v4921 = vpack.c.b16 %v4782, %v4781
    %v4922 = vpack.c.b16 %v4784, %v4783
    %v4923 = vpack.c.b16 %v4786, %v4785
    %v4924 = vpack.c.b16 %v4788, %v4787
    %v4925 = vpack.c.b16 %v4790, %v4789
    %v4926 = vpack.c.b16 %v4792, %v4791
    %v4927 = vpack.c.b16 %v4794, %v4793
    %v4928 = vpack.c.b16 %v4796, %v4795
    %v4929 = vpack.c.b16 %v4798, %v4797
    %v4930 = vpack.c.b16 %v4800, %v4799
    %v4931 = vpack.c.b16 %v4802, %v4801
    %v4932 = vpack.c.b16 %v4804, %v4803
    %5061 = vmatprep.subr.bf16.mxu0 0
    %5062 = vmatpush1.bf16.msra.mxu0 %v4805
    %5063 = vmatprep.subr.bf16.mxu0 0
    %5064 = vmatpush1.bf16.msra.mxu0 %v4806
    %5065 = vmatprep.subr.bf16.mxu0 0
    %5066 = vmatpush1.bf16.msra.mxu0 %v4807
    %5067 = vmatprep.subr.bf16.mxu0 0
    %5068 = vmatpush1.bf16.msra.mxu0 %v4808
    %5069 = vmatprep.subr.bf16.mxu0 0
    %5070 = vmatpush1.bf16.msra.mxu0 %v4809
    %5071 = vmatprep.subr.bf16.mxu0 0
    %5072 = vmatpush1.bf16.msra.mxu0 %v4810
    %5073 = vmatprep.subr.bf16.mxu0 0
    %5074 = vmatpush1.bf16.msra.mxu0 %v4811
    %5075 = vmatprep.subr.bf16.mxu0 0
    %5076 = vmatpush1.bf16.msra.mxu0 %v4812
    %5077 = vmatprep.subr.bf16.mxu0 0
    %5078 = vmatpush1.bf16.msra.mxu0 %v4813
    %5079 = vmatprep.subr.bf16.mxu0 0
    %5080 = vmatpush1.bf16.msra.mxu0 %v4814
    %5081 = vmatprep.subr.bf16.mxu0 0
    %5082 = vmatpush1.bf16.msra.mxu0 %v4815
    %5083 = vmatprep.subr.bf16.mxu0 0
    %5084 = vmatpush1.bf16.msra.mxu0 %v4816
    %5085 = vmatprep.subr.bf16.mxu0 0
    %5086 = vmatpush1.bf16.msra.mxu0 %v4817
    %5087 = vmatprep.subr.bf16.mxu0 0
    %5088 = vmatpush1.bf16.msra.mxu0 %v4818
    %5089 = vmatprep.subr.bf16.mxu0 0
    %5090 = vmatpush1.bf16.msra.mxu0 %v4819
    %5091 = vmatprep.subr.bf16.mxu0 0
    %5092 = vmatpush1.bf16.msra.mxu0 %v4820
    %5093 = vmatprep.mubr.bf16.mxu0 %v4016
    %5094 = vmatmul.mubr.bf16.gmra.mrb[0].mxu0 %v4015
    %v5095 = vpop.f32.mrb[0].mxu0
    %v5096 = vadd.f32 %v4292, %v5095
    %v5097 = vpop.f32.mrb[0].mxu0
    %v5098 = vpop.f32.mrb[0].mxu0
    %v5099 = vadd.f32 %v4292, %v5098
    %v5100 = vpop.f32.mrb[0].mxu0
    %5101 = vdwg.mxu0
    %5102 = vmatprep.subr.bf16.mxu0 0
    %5103 = vmatpush1.bf16.msra.mxu0 %v4821
    %5104 = vmatprep.subr.bf16.mxu0 0
    %5105 = vmatpush1.bf16.msra.mxu0 %v4822
    %5106 = vmatprep.subr.bf16.mxu0 0
    %5107 = vmatpush1.bf16.msra.mxu0 %v4823
    %5108 = vmatprep.subr.bf16.mxu0 0
    %5109 = vmatpush1.bf16.msra.mxu0 %v4824
    %5110 = vmatprep.subr.bf16.mxu0 0
    %5111 = vmatpush1.bf16.msra.mxu0 %v4825
    %5112 = vmatprep.subr.bf16.mxu0 0
    %5113 = vmatpush1.bf16.msra.mxu0 %v4826
    %5114 = vmatprep.subr.bf16.mxu0 0
    %5115 = vmatpush1.bf16.msra.mxu0 %v4827
    %5116 = vmatprep.subr.bf16.mxu0 0
    %5117 = vmatpush1.bf16.msra.mxu0 %v4828
    %5118 = vmatprep.subr.bf16.mxu0 0
    %5119 = vmatpush1.bf16.msra.mxu0 %v4829
    %5120 = vmatprep.subr.bf16.mxu0 0
    %5121 = vmatpush1.bf16.msra.mxu0 %v4830
    %5122 = vmatprep.subr.bf16.mxu0 0
    %5123 = vmatpush1.bf16.msra.mxu0 %v4831
    %5124 = vmatprep.subr.bf16.mxu0 0
    %5125 = vmatpush1.bf16.msra.mxu0 %v4832
    %5126 = vmatprep.subr.bf16.mxu0 0
    %5127 = vmatpush1.bf16.msra.mxu0 %v4833
    %5128 = vmatprep.subr.bf16.mxu0 0
    %5129 = vmatpush1.bf16.msra.mxu0 %v4834
    %5130 = vmatprep.subr.bf16.mxu0 0
    %5131 = vmatpush1.bf16.msra.mxu0 %v4835
    %5132 = vmatprep.subr.bf16.mxu0 0
    %5133 = vmatpush1.bf16.msra.mxu0 %v4836
    %5134 = vmatprep.mubr.bf16.mxu0 %v4018
    %5135 = vmatmul.mubr.bf16.gmra.mrb[0].mxu0 %v4017
    %v5136 = vpop.f32.mrb[0].mxu0
    %v5137 = vadd.f32 %v5096, %v5136
    %v5138 = vpop.f32.mrb[0].mxu0
    %v5139 = vpop.f32.mrb[0].mxu0
    %v5140 = vadd.f32 %v5099, %v5139
    %v5141 = vpop.f32.mrb[0].mxu0
    %5142 = vdwg.mxu0
    %5143 = vmatprep.subr.bf16.mxu0 0
    %5144 = vmatpush1.bf16.msra.mxu0 %v4837
    %5145 = vmatprep.subr.bf16.mxu0 0
    %5146 = vmatpush1.bf16.msra.mxu0 %v4838
    %5147 = vmatprep.subr.bf16.mxu0 0
    %5148 = vmatpush1.bf16.msra.mxu0 %v4839
    %5149 = vmatprep.subr.bf16.mxu0 0
    %5150 = vmatpush1.bf16.msra.mxu0 %v4840
    %5151 = vmatprep.subr.bf16.mxu0 0
    %5152 = vmatpush1.bf16.msra.mxu0 %v4841
    %5153 = vmatprep.subr.bf16.mxu0 0
    %5154 = vmatpush1.bf16.msra.mxu0 %v4842
    %5155 = vmatprep.subr.bf16.mxu0 0
    %5156 = vmatpush1.bf16.msra.mxu0 %v4843
    %5157 = vmatprep.subr.bf16.mxu0 0
    %5158 = vmatpush1.bf16.msra.mxu0 %v4844
    %5159 = vmatprep.subr.bf16.mxu0 0
    %5160 = vmatpush1.bf16.msra.mxu0 %v4845
    %5161 = vmatprep.subr.bf16.mxu0 0
    %5162 = vmatpush1.bf16.msra.mxu0 %v4846
    %5163 = vmatprep.subr.bf16.mxu0 0
    %5164 = vmatpush1.bf16.msra.mxu0 %v4847
    %5165 = vmatprep.subr.bf16.mxu0 0
    %5166 = vmatpush1.bf16.msra.mxu0 %v4848
    %5167 = vmatprep.subr.bf16.mxu0 0
    %5168 = vmatpush1.bf16.msra.mxu0 %v4849
    %5169 = vmatprep.subr.bf16.mxu0 0
    %5170 = vmatpush1.bf16.msra.mxu0 %v4850
    %5171 = vmatprep.subr.bf16.mxu0 0
    %5172 = vmatpush1.bf16.msra.mxu0 %v4851
    %5173 = vmatprep.subr.bf16.mxu0 0
    %5174 = vmatpush1.bf16.msra.mxu0 %v4852
    %5175 = vmatprep.mubr.bf16.mxu0 %v4020
    %5176 = vmatmul.mubr.bf16.gmra.mrb[0].mxu0 %v4019
    %v5177 = vpop.f32.mrb[0].mxu0
    %v5178 = vadd.f32 %v5137, %v5177
    %v5179 = vpop.f32.mrb[0].mxu0
    %v5180 = vpop.f32.mrb[0].mxu0
    %v5181 = vadd.f32 %v5140, %v5180
    %v5182 = vpop.f32.mrb[0].mxu0
    %5183 = vdwg.mxu0
    %5184 = vmatprep.subr.bf16.mxu0 0
    %5185 = vmatpush1.bf16.msra.mxu0 %v4853
    %5186 = vmatprep.subr.bf16.mxu0 0
    %5187 = vmatpush1.bf16.msra.mxu0 %v4854
    %5188 = vmatprep.subr.bf16.mxu0 0
    %5189 = vmatpush1.bf16.msra.mxu0 %v4855
    %5190 = vmatprep.subr.bf16.mxu0 0
    %5191 = vmatpush1.bf16.msra.mxu0 %v4856
    %5192 = vmatprep.subr.bf16.mxu0 0
    %5193 = vmatpush1.bf16.msra.mxu0 %v4857
    %5194 = vmatprep.subr.bf16.mxu0 0
    %5195 = vmatpush1.bf16.msra.mxu0 %v4858
    %5196 = vmatprep.subr.bf16.mxu0 0
    %5197 = vmatpush1.bf16.msra.mxu0 %v4859
    %5198 = vmatprep.subr.bf16.mxu0 0
    %5199 = vmatpush1.bf16.msra.mxu0 %v4860
    %5200 = vmatprep.subr.bf16.mxu0 0
    %5201 = vmatpush1.bf16.msra.mxu0 %v4861
    %5202 = vmatprep.subr.bf16.mxu0 0
    %5203 = vmatpush1.bf16.msra.mxu0 %v4862
    %5204 = vmatprep.subr.bf16.mxu0 0
    %5205 = vmatpush1.bf16.msra.mxu0 %v4863
    %5206 = vmatprep.subr.bf16.mxu0 0
    %5207 = vmatpush1.bf16.msra.mxu0 %v4864
    %5208 = vmatprep.subr.bf16.mxu0 0
    %5209 = vmatpush1.bf16.msra.mxu0 %v4865
    %5210 = vmatprep.subr.bf16.mxu0 0
    %5211 = vmatpush1.bf16.msra.mxu0 %v4866
    %5212 = vmatprep.subr.bf16.mxu0 0
    %5213 = vmatpush1.bf16.msra.mxu0 %v4867
    %5214 = vmatprep.subr.bf16.mxu0 0
    %5215 = vmatpush1.bf16.msra.mxu0 %v4868
    %5216 = vmatprep.mubr.bf16.mxu0 %v4022
    %5217 = vmatmul.mubr.bf16.gmra.mrb[0].mxu0 %v4021
    %v5218 = vpop.f32.mrb[0].mxu0
    %v5219 = vadd.f32 %v5178, %v5218
    %v5220 = vpop.f32.mrb[0].mxu0
    %v5221 = vpop.f32.mrb[0].mxu0
    %v5222 = vadd.f32 %v5181, %v5221
    %v5223 = vpop.f32.mrb[0].mxu0
    %5224 = vdwg.mxu0
    %5225 = vmatprep.subr.bf16.mxu0 0
    %5226 = vmatpush1.bf16.msra.mxu0 %v4869
    %5227 = vmatprep.subr.bf16.mxu0 0
    %5228 = vmatpush1.bf16.msra.mxu0 %v4870
    %5229 = vmatprep.subr.bf16.mxu0 0
    %5230 = vmatpush1.bf16.msra.mxu0 %v4871
    %5231 = vmatprep.subr.bf16.mxu0 0
    %5232 = vmatpush1.bf16.msra.mxu0 %v4872
    %5233 = vmatprep.subr.bf16.mxu0 0
    %5234 = vmatpush1.bf16.msra.mxu0 %v4873
    %5235 = vmatprep.subr.bf16.mxu0 0
    %5236 = vmatpush1.bf16.msra.mxu0 %v4874
    %5237 = vmatprep.subr.bf16.mxu0 0
    %5238 = vmatpush1.bf16.msra.mxu0 %v4875
    %5239 = vmatprep.subr.bf16.mxu0 0
    %5240 = vmatpush1.bf16.msra.mxu0 %v4876
    %5241 = vmatprep.subr.bf16.mxu0 0
    %5242 = vmatpush1.bf16.msra.mxu0 %v4877
    %5243 = vmatprep.subr.bf16.mxu0 0
    %5244 = vmatpush1.bf16.msra.mxu0 %v4878
    %5245 = vmatprep.subr.bf16.mxu0 0
    %5246 = vmatpush1.bf16.msra.mxu0 %v4879
    %5247 = vmatprep.subr.bf16.mxu0 0
    %5248 = vmatpush1.bf16.msra.mxu0 %v4880
    %5249 = vmatprep.subr.bf16.mxu0 0
    %5250 = vmatpush1.bf16.msra.mxu0 %v4881
    %5251 = vmatprep.subr.bf16.mxu0 0
    %5252 = vmatpush1.bf16.msra.mxu0 %v4882
    %5253 = vmatprep.subr.bf16.mxu0 0
    %5254 = vmatpush1.bf16.msra.mxu0 %v4883
    %5255 = vmatprep.subr.bf16.mxu0 0
    %5256 = vmatpush1.bf16.msra.mxu0 %v4884
    %5257 = vmatprep.mubr.bf16.mxu0 %v4024
    %5258 = vmatmul.mubr.bf16.gmra.mrb[0].mxu0 %v4023
    %v5259 = vpop.f32.mrb[0].mxu0
    %v5260 = vadd.f32 %v5219, %v5259
    %v5261 = vpop.f32.mrb[0].mxu0
    %v5262 = vpop.f32.mrb[0].mxu0
    %v5263 = vadd.f32 %v5222, %v5262
    %v5264 = vpop.f32.mrb[0].mxu0
    %5265 = vdwg.mxu0
    %5266 = vmatprep.subr.bf16.mxu0 0
    %5267 = vmatpush1.bf16.msra.mxu0 %v4885
    %5268 = vmatprep.subr.bf16.mxu0 0
    %5269 = vmatpush1.bf16.msra.mxu0 %v4886
    %5270 = vmatprep.subr.bf16.mxu0 0
    %5271 = vmatpush1.bf16.msra.mxu0 %v4887
    %5272 = vmatprep.subr.bf16.mxu0 0
    %5273 = vmatpush1.bf16.msra.mxu0 %v4888
    %5274 = vmatprep.subr.bf16.mxu0 0
    %5275 = vmatpush1.bf16.msra.mxu0 %v4889
    %5276 = vmatprep.subr.bf16.mxu0 0
    %5277 = vmatpush1.bf16.msra.mxu0 %v4890
    %5278 = vmatprep.subr.bf16.mxu0 0
    %5279 = vmatpush1.bf16.msra.mxu0 %v4891
    %5280 = vmatprep.subr.bf16.mxu0 0
    %5281 = vmatpush1.bf16.msra.mxu0 %v4892
    %5282 = vmatprep.subr.bf16.mxu0 0
    %5283 = vmatpush1.bf16.msra.mxu0 %v4893
    %5284 = vmatprep.subr.bf16.mxu0 0
    %5285 = vmatpush1.bf16.msra.mxu0 %v4894
    %5286 = vmatprep.subr.bf16.mxu0 0
    %5287 = vmatpush1.bf16.msra.mxu0 %v4895
    %5288 = vmatprep.subr.bf16.mxu0 0
    %5289 = vmatpush1.bf16.msra.mxu0 %v4896
    %5290 = vmatprep.subr.bf16.mxu0 0
    %5291 = vmatpush1.bf16.msra.mxu0 %v4897
    %5292 = vmatprep.subr.bf16.mxu0 0
    %5293 = vmatpush1.bf16.msra.mxu0 %v4898
    %5294 = vmatprep.subr.bf16.mxu0 0
    %5295 = vmatpush1.bf16.msra.mxu0 %v4899
    %5296 = vmatprep.subr.bf16.mxu0 0
    %5297 = vmatpush1.bf16.msra.mxu0 %v4900
    %5298 = vmatprep.mubr.bf16.mxu0 %v4026
    %5299 = vmatmul.mubr.bf16.gmra.mrb[0].mxu0 %v4025
    %v5300 = vpop.f32.mrb[0].mxu0
    %v5301 = vadd.f32 %v5260, %v5300
    %v5302 = vpop.f32.mrb[0].mxu0
    %v5303 = vpop.f32.mrb[0].mxu0
    %v5304 = vadd.f32 %v5263, %v5303
    %v5305 = vpop.f32.mrb[0].mxu0
    %5306 = vdwg.mxu0
    %5307 = vmatprep.subr.bf16.mxu0 0
    %5308 = vmatpush1.bf16.msra.mxu0 %v4901
    %5309 = vmatprep.subr.bf16.mxu0 0
    %5310 = vmatpush1.bf16.msra.mxu0 %v4902
    %5311 = vmatprep.subr.bf16.mxu0 0
    %5312 = vmatpush1.bf16.msra.mxu0 %v4903
    %5313 = vmatprep.subr.bf16.mxu0 0
    %5314 = vmatpush1.bf16.msra.mxu0 %v4904
    %5315 = vmatprep.subr.bf16.mxu0 0
    %5316 = vmatpush1.bf16.msra.mxu0 %v4905
    %5317 = vmatprep.subr.bf16.mxu0 0
    %5318 = vmatpush1.bf16.msra.mxu0 %v4906
    %5319 = vmatprep.subr.bf16.mxu0 0
    %5320 = vmatpush1.bf16.msra.mxu0 %v4907
    %5321 = vmatprep.subr.bf16.mxu0 0
    %5322 = vmatpush1.bf16.msra.mxu0 %v4908
    %5323 = vmatprep.subr.bf16.mxu0 0
    %5324 = vmatpush1.bf16.msra.mxu0 %v4909
    %5325 = vmatprep.subr.bf16.mxu0 0
    %5326 = vmatpush1.bf16.msra.mxu0 %v4910
    %5327 = vmatprep.subr.bf16.mxu0 0
    %5328 = vmatpush1.bf16.msra.mxu0 %v4911
    %5329 = vmatprep.subr.bf16.mxu0 0
    %5330 = vmatpush1.bf16.msra.mxu0 %v4912
    %5331 = vmatprep.subr.bf16.mxu0 0
    %5332 = vmatpush1.bf16.msra.mxu0 %v4913
    %5333 = vmatprep.subr.bf16.mxu0 0
    %5334 = vmatpush1.bf16.msra.mxu0 %v4914
    %5335 = vmatprep.subr.bf16.mxu0 0
    %5336 = vmatpush1.bf16.msra.mxu0 %v4915
    %5337 = vmatprep.subr.bf16.mxu0 0
    %5338 = vmatpush1.bf16.msra.mxu0 %v4916
    %5339 = vmatprep.mubr.bf16.mxu0 %v4028
    %5340 = vmatmul.mubr.bf16.gmra.mrb[0].mxu0 %v4027
    %v5341 = vpop.f32.mrb[0].mxu0
    %v5342 = vadd.f32 %v5301, %v5341
    %v5343 = vpop.f32.mrb[0].mxu0
    %v5344 = vpop.f32.mrb[0].mxu0
    %v5345 = vadd.f32 %v5304, %v5344
    %v5346 = vpop.f32.mrb[0].mxu0
    %5347 = vdwg.mxu0
    %5348 = vmatprep.subr.bf16.mxu0 0
    %5349 = vmatpush1.bf16.msra.mxu0 %v4917
    %5350 = vmatprep.subr.bf16.mxu0 0
    %5351 = vmatpush1.bf16.msra.mxu0 %v4918
    %5352 = vmatprep.subr.bf16.mxu0 0
    %5353 = vmatpush1.bf16.msra.mxu0 %v4919
    %5354 = vmatprep.subr.bf16.mxu0 0
    %5355 = vmatpush1.bf16.msra.mxu0 %v4920
    %5356 = vmatprep.subr.bf16.mxu0 0
    %5357 = vmatpush1.bf16.msra.mxu0 %v4921
    %5358 = vmatprep.subr.bf16.mxu0 0
    %5359 = vmatpush1.bf16.msra.mxu0 %v4922
    %5360 = vmatprep.subr.bf16.mxu0 0
    %5361 = vmatpush1.bf16.msra.mxu0 %v4923
    %5362 = vmatprep.subr.bf16.mxu0 0
    %5363 = vmatpush1.bf16.msra.mxu0 %v4924
    %5364 = vmatprep.subr.bf16.mxu0 0
    %5365 = vmatpush1.bf16.msra.mxu0 %v4925
    %5366 = vmatprep.subr.bf16.mxu0 0
    %5367 = vmatpush1.bf16.msra.mxu0 %v4926
    %5368 = vmatprep.subr.bf16.mxu0 0
    %5369 = vmatpush1.bf16.msra.mxu0 %v4927
    %5370 = vmatprep.subr.bf16.mxu0 0
    %5371 = vmatpush1.bf16.msra.mxu0 %v4928
    %5372 = vmatprep.subr.bf16.mxu0 0
    %5373 = vmatpush1.bf16.msra.mxu0 %v4929
    %5374 = vmatprep.subr.bf16.mxu0 0
    %5375 = vmatpush1.bf16.msra.mxu0 %v4930
    %5376 = vmatprep.subr.bf16.mxu0 0
    %5377 = vmatpush1.bf16.msra.mxu0 %v4931
    %5378 = vmatprep.subr.bf16.mxu0 0
    %5379 = vmatpush1.bf16.msra.mxu0 %v4932
    %5380 = vmatprep.mubr.bf16.mxu0 %v4030
    %5381 = vmatmul.mubr.bf16.gmra.mrb[0].mxu0 %v4029
    %v5382 = vpop.f32.mrb[0].mxu0
    %v5383 = vadd.f32 %v5342, %v5382
    %v5384 = vpop.f32.mrb[0].mxu0
    %v5385 = vpop.f32.mrb[0].mxu0
    %v5386 = vadd.f32 %v5345, %v5385
    %v5387 = vpop.f32.mrb[0].mxu0
    %5388 = vdwg.mxu0
    %v5389 = vadd.f32 %v3450, %v5383
    %v5390 = vadd.f32 %v3451, %v5386
    %v5391 = vld [vmem:[%s15 + $0x1] sm:$0x1]
    %v5392 = vld [vmem:[%s16 + $0x1] sm:$0x1]
    %v5393 = vsel %vm78, %v5389, 0.0
    %5394 = vadd.xlane.f32.xlu0 %v5393
    %v5395 = vpop.xlane.xlu0 %5394
    %v5396 = vsel %vm78, %v5390, 0.0
    %5397 = vadd.xlane.f32.xlu0 %v5396
    %v5398 = vpop.xlane.xlu0 %5397
    %v5399 = vmul.f32 %v5395, %v740
    %v5400 = vmul.f32 %v5398, %v740
    %v5401 = vsub.f32 %v5389, %v5399
    %v5402 = vsub.f32 %v5390, %v5400
    %v5403 = vmul.f32 %v5401, %v5401
    %v5404 = vmul.f32 %v5402, %v5402
    %v5405 = vsel %vm78, %v5403, 0.0
    %5406 = vadd.xlane.f32.xlu0 %v5405
    %v5407 = vpop.xlane.xlu0 %5406
    %v5408 = vsel %vm78, %v5404, 0.0
    %5409 = vadd.xlane.f32.xlu0 %v5408
    %v5410 = vpop.xlane.xlu0 %5409
    %v5411 = vmul.f32 %v5407, %v740
    %v5412 = vmul.f32 %v5410, %v740
    %v5413 = vadd.f32 %v5411, 1e-05
    %v5414 = vadd.f32 %v5412, 1e-05
    %v5415 = vrsqrt.pop %v5413
    %v5416 = vrsqrt.pop %v5414
    %v5417 = vmul.f32 %v5401, %v5415
    %v5418 = vmul.f32 %v5402, %v5416
    %v5419 = vlaneseq
    %v5420 = vshrl.u32 %v5419, 7
    %v5421 = vsub.s32 0, %v5420
    %v5422 = vrot.slane %v5391, %v5421
    %v5423 = vmul.f32 %v5417, %v5422
    %v5424 = vmul.f32 %v5418, %v5422
    %v5425 = vlaneseq
    %v5426 = vshrl.u32 %v5425, 7
    %v5427 = vsub.s32 0, %v5426
    %v5428 = vrot.slane %v5392, %v5427
    %v5429 = vadd.f32 %v5423, %v5428
    %v5430 = vadd.f32 %v5424, %v5428
    %s5431 = scalar_lea.vmem %s3, 16
    %v5432 = vld [vmem:[%s5431] sm:$0xff]
    %v5433 = vld [vmem:[%s4 + $0x2] sm:$0x1]
    %v5434 = vlaneseq
    %v5435 = vshrl.u32 %v5434, 7
    %v5436 = vsub.s32 0, %v5435
    %v5437 = vrot.slane %v5433, %v5436
    %v5439 = vsel %vm78, %v5429, 0
    %v5442 = vsel %vm78, %v5430, 0
    %5444 = vmatprep.subr.mxu0 0.0
    %5445 = vmatpush1.msra.mxu0 %v5432
    %5446 = vmatprep.subr.mxu0 0.0
    %5447 = vmatpush1.msra.mxu0 0.0
    %5448 = vmatprep.subr.mxu0 0.0
    %5449 = vmatpush1.msra.mxu0 0.0
    %5450 = vmatprep.subr.mxu0 0.0
    %5451 = vmatpush1.msra.mxu0 0.0
    %5452 = vmatprep.subr.mxu0 0.0
    %5453 = vmatpush1.msra.mxu0 0.0
    %5454 = vmatprep.subr.mxu0 0.0
    %5455 = vmatpush1.msra.mxu0 0.0
    %5456 = vmatprep.subr.mxu0 0.0
    %5457 = vmatpush1.msra.mxu0 0.0
    %5458 = vmatprep.subr.mxu0 0.0
    %5459 = vmatpush1.msra.mxu0 0.0
    %5460 = vmatprep.subr.mxu0 0.0
    %5461 = vmatpush1.msra.mxu0 0.0
    %5462 = vmatprep.subr.mxu0 0.0
    %5463 = vmatpush1.msra.mxu0 0.0
    %5464 = vmatprep.subr.mxu0 0.0
    %5465 = vmatpush1.msra.mxu0 0.0
    %5466 = vmatprep.subr.mxu0 0.0
    %5467 = vmatpush1.msra.mxu0 0.0
    %5468 = vmatprep.subr.mxu0 0.0
    %5469 = vmatpush1.msra.mxu0 0.0
    %5470 = vmatprep.subr.mxu0 0.0
    %5471 = vmatpush1.msra.mxu0 0.0
    %5472 = vmatprep.subr.mxu0 0.0
    %5473 = vmatpush1.msra.mxu0 0.0
    %5474 = vmatprep.subr.mxu0 0.0
    %5475 = vmatpush1.msra.mxu0 0.0
    %5476 = vmatprep.subr.mxu0 0.0
    %5477 = vmatpush1.msra.mxu0 0.0
    %5478 = vmatprep.subr.mxu0 0.0
    %5479 = vmatpush1.msra.mxu0 0.0
    %5480 = vmatprep.subr.mxu0 0.0
    %5481 = vmatpush1.msra.mxu0 0.0
    %5482 = vmatprep.subr.mxu0 0.0
    %5483 = vmatpush1.msra.mxu0 0.0
    %5484 = vmatprep.subr.mxu0 0.0
    %5485 = vmatpush1.msra.mxu0 0.0
    %5486 = vmatprep.subr.mxu0 0.0
    %5487 = vmatpush1.msra.mxu0 0.0
    %5488 = vmatprep.subr.mxu0 0.0
    %5489 = vmatpush1.msra.mxu0 0.0
    %5490 = vmatprep.subr.mxu0 0.0
    %5491 = vmatpush1.msra.mxu0 0.0
    %5492 = vmatprep.subr.mxu0 0.0
    %5493 = vmatpush1.msra.mxu0 0.0
    %5494 = vmatprep.subr.mxu0 0.0
    %5495 = vmatpush1.msra.mxu0 0.0
    %5496 = vmatprep.subr.mxu0 0.0
    %5497 = vmatpush1.msra.mxu0 0.0
    %5498 = vmatprep.subr.mxu0 0.0
    %5499 = vmatpush1.msra.mxu0 0.0
    %5500 = vmatprep.subr.mxu0 0.0
    %5501 = vmatpush1.msra.mxu0 0.0
    %5502 = vmatprep.subr.mxu0 0.0
    %5503 = vmatpush1.msra.mxu0 0.0
    %5504 = vmatprep.subr.mxu0 0.0
    %5505 = vmatpush1.msra.mxu0 0.0
    %5506 = vmatprep.subr.mxu0 0.0
    %5507 = vmatpush1.msra.mxu0 0.0
    %5508 = vmatprep.mubr.f32.mxu0 0.0
    %5509 = vmatmul.mubr.f32.gmra.mrb[0].mxu0 %v5439
    %v5510 = vpop.f32.mrb[0].mxu0
    %v5511 = vadd.f32 %v5437, %v5510
    %v5512 = vpop.f32.mrb[0].mxu0
    %5513 = vmatprep.mubr.f32.mxu0 0.0
    %5514 = vmatmul.mubr.f32.gmra.mrb[0].mxu0 %v5442
    %v5515 = vpop.f32.mrb[0].mxu0
    %v5516 = vadd.f32 %v5437, %v5515
    %v5517 = vpop.f32.mrb[0].mxu0
    %5518 = vdwg.mxu0
    %s5519 = scalar_lea.vmem %s5, 32
    %v5520 = vld [vmem:[%s5519] sm:$0xff]
    %v5521 = vld [vmem:[%s5519 + $0x8] sm:$0xff]
    %s5522 = scalar_lea.vmem %s6, 32
    %v5523 = vld [vmem:[%s5522] sm:$0xff]
    %v5524 = vld [vmem:[%s5522 + $0x8] sm:$0xff]
    %5526 = vset.pattern.permute.xlu0 0
    %5527 = vperm.xlu0 %5526, %v5523
    %v5528 = vpop.permute.xlu0 %5527
    %5531 = vset.pattern.permute.xlu0 0
    %5532 = vperm.xlu0 %5531, %v5524
    %v5533 = vpop.permute.xlu0 %5532
    %v5536 = vsel %vm78, %v5520, 0
    %v5539 = vsel %vm78, %v5521, 0
    %5541 = vmatprep.subr.mxu0 0.0
    %5542 = vmatpush1.xpose.msra.mxu0 %v5439
    %5543 = vmatprep.subr.mxu0 0.0
    %5544 = vmatpush1.xpose.msra.mxu0 %v5442
    %5545 = vmatprep.subr.mxu0 0.0
    %5546 = vmatpush1.xpose.msra.mxu0 0.0
    %5547 = vmatprep.subr.mxu0 0.0
    %5548 = vmatpush1.xpose.msra.mxu0 0.0
    %5549 = vmatprep.subr.mxu0 0.0
    %5550 = vmatpush1.xpose.msra.mxu0 0.0
    %5551 = vmatprep.subr.mxu0 0.0
    %5552 = vmatpush1.xpose.msra.mxu0 0.0
    %5553 = vmatprep.subr.mxu0 0.0
    %5554 = vmatpush1.xpose.msra.mxu0 0.0
    %5555 = vmatprep.subr.mxu0 0.0
    %5556 = vmatpush1.xpose.msra.mxu0 0.0
    %5557 = vmatprep.subr.mxu0 0.0
    %5558 = vmatpush1.xpose.msra.mxu0 0.0
    %5559 = vmatprep.subr.mxu0 0.0
    %5560 = vmatpush1.xpose.msra.mxu0 0.0
    %5561 = vmatprep.subr.mxu0 0.0
    %5562 = vmatpush1.xpose.msra.mxu0 0.0
    %5563 = vmatprep.subr.mxu0 0.0
    %5564 = vmatpush1.xpose.msra.mxu0 0.0
    %5565 = vmatprep.subr.mxu0 0.0
    %5566 = vmatpush1.xpose.msra.mxu0 0.0
    %5567 = vmatprep.subr.mxu0 0.0
    %5568 = vmatpush1.xpose.msra.mxu0 0.0
    %5569 = vmatprep.subr.mxu0 0.0
    %5570 = vmatpush1.xpose.msra.mxu0 0.0
    %5571 = vmatprep.subr.mxu0 0.0
    %5572 = vmatpush1.xpose.msra.mxu0 0.0
    %5573 = vmatprep.subr.mxu0 0.0
    %5574 = vmatpush1.xpose.msra.mxu0 0.0
    %5575 = vmatprep.subr.mxu0 0.0
    %5576 = vmatpush1.xpose.msra.mxu0 0.0
    %5577 = vmatprep.subr.mxu0 0.0
    %5578 = vmatpush1.xpose.msra.mxu0 0.0
    %5579 = vmatprep.subr.mxu0 0.0
    %5580 = vmatpush1.xpose.msra.mxu0 0.0
    %5581 = vmatprep.subr.mxu0 0.0
    %5582 = vmatpush1.xpose.msra.mxu0 0.0
    %5583 = vmatprep.subr.mxu0 0.0
    %5584 = vmatpush1.xpose.msra.mxu0 0.0
    %5585 = vmatprep.subr.mxu0 0.0
    %5586 = vmatpush1.xpose.msra.mxu0 0.0
    %5587 = vmatprep.subr.mxu0 0.0
    %5588 = vmatpush1.xpose.msra.mxu0 0.0
    %5589 = vmatprep.subr.mxu0 0.0
    %5590 = vmatpush1.xpose.msra.mxu0 0.0
    %5591 = vmatprep.subr.mxu0 0.0
    %5592 = vmatpush1.xpose.msra.mxu0 0.0
    %5593 = vmatprep.subr.mxu0 0.0
    %5594 = vmatpush1.xpose.msra.mxu0 0.0
    %5595 = vmatprep.subr.mxu0 0.0
    %5596 = vmatpush1.xpose.msra.mxu0 0.0
    %5597 = vmatprep.subr.mxu0 0.0
    %5598 = vmatpush1.xpose.msra.mxu0 0.0
    %5599 = vmatprep.subr.mxu0 0.0
    %5600 = vmatpush1.xpose.msra.mxu0 0.0
    %5601 = vmatprep.subr.mxu0 0.0
    %5602 = vmatpush1.xpose.msra.mxu0 0.0
    %5603 = vmatprep.subr.mxu0 0.0
    %5604 = vmatpush1.xpose.msra.mxu0 0.0
    %5605 = vmatprep.mubr.f32.mxu0 0.0
    %5606 = vmatmul.mubr.f32.gmra.mrb[0].mxu0 %v5536
    %v5607 = vpop.f32.mrb[0].mxu0
    %v5608 = vadd.f32 %v5528, %v5607
    %v5609 = vpop.f32.mrb[0].mxu0
    %5610 = vmatprep.mubr.f32.mxu0 0.0
    %5611 = vmatmul.mubr.f32.gmra.mrb[0].mxu0 %v5539
    %v5612 = vpop.f32.mrb[0].mxu0
    %v5613 = vadd.f32 %v5533, %v5612
    %v5614 = vpop.f32.mrb[0].mxu0
    %5615 = vdwg.mxu0
    %s5616 = scalar_lea.vmem %s7, 16
    %v5617 = vld [vmem:[%s5616] sm:$0xff]
    %5619 = vset.pattern.permute.xlu0 0
    %5620 = vperm.xlu0 %5619, %v5511
    %v5621 = vpop.permute.xlu0 %5620
    %5624 = vset.pattern.permute.xlu0 0
    %5625 = vperm.xlu0 %5624, %v5516
    %v5626 = vpop.permute.xlu0 %5625
    %v5628 = vlaneseq
    %v5629 = vshrl.u32 %v5628, 7
    %v5630 = vsub.s32 0, %v5629
    %v5631 = vrot.slane %v5608, %v5630
    %v5632 = vmul.f32 %v5621, %v5631
    %v5633 = vmul.f32 %v5626, %v5631
    %v5634 = vadd.f32 %v5632, %v70
    %v5635 = vadd.f32 %v5633, %v71
    %v5636 = vsel %vm274, %v5634, -inf
    %5637 = vmax.xlane.f32.xlu0 %v5636
    %v5638 = vpop.xlane.xlu0 %5637
    %v5639 = vsel %vm274, %v5635, -inf
    %5640 = vmax.xlane.f32.xlu0 %v5639
    %v5641 = vpop.xlane.xlu0 %5640
    %v5642 = vsub.f32 %v5634, %v5638
    %v5643 = vsub.f32 %v5635, %v5641
    %v5644 = vmul.f32 %v5642, 1.442695
    %v5645 = vpow.pop %v5644
    %v5646 = vmul.f32 %v5643, 1.442695
    %v5647 = vpow.pop %v5646
    %v5648 = vsel %vm274, %v5645, 0.0
    %5649 = vadd.xlane.f32.xlu0 %v5648
    %v5650 = vpop.xlane.xlu0 %5649
    %v5651 = vsel %vm274, %v5647, 0.0
    %5652 = vadd.xlane.f32.xlu0 %v5651
    %v5653 = vpop.xlane.xlu0 %5652
    %v5654 = vlaneseq
    %v5655 = vshrl.u32 %v5654, 7
    %v5656 = vsub.s32 0, %v5655
    %v5657 = vrot.slane %v5613, %v5656
    %v5658 = vmul.f32 %v5645, %v5657
    %v5659 = vmul.f32 %v5647, %v5657
    %v5660 = vsel %vm274, %v5658, 0.0
    %5661 = vadd.xlane.f32.xlu0 %v5660
    %v5662 = vpop.xlane.xlu0 %5661
    %v5663 = vsel %vm274, %v5659, 0.0
    %5664 = vadd.xlane.f32.xlu0 %v5663
    %v5665 = vpop.xlane.xlu0 %5664
    %v5666 = vrcp.pop %v5650
    %v5667 = vrcp.pop %v5653
    %v5668 = vmul.f32 %v5662, %v5666
    %v5669 = vmul.f32 %v5665, %v5667
    %v5670 = vlaneseq
    %v5671 = vshrl.u32 %v5670, 7
    %v5672 = vsub.s32 0, %v5671
    %v5673 = vrot.slane %v5617, %v5672
    %v5674 = vmul.f32 %v5668, %v5673
    %v5675 = vmul.f32 %v5669, %v5673
    %v5676 = vadd.f32 %v5674, 0.0
    %v5677 = vadd.f32 %v5675, 0.0
    %5678 = vset.pattern.permute.xlu0 1
    %5679 = vperm.xlu0 %5678, %v5511
    %v5680 = vpop.permute.xlu0 %5679
    %5682 = vset.pattern.permute.xlu0 1
    %5683 = vperm.xlu0 %5682, %v5516
    %v5684 = vpop.permute.xlu0 %5683
    %v5686 = vlaneseq
    %v5687 = vshrl.u32 %v5686, 7
    %v5688 = vsub.s32 1, %v5687
    %v5689 = vrot.slane %v5608, %v5688
    %v5690 = vmul.f32 %v5680, %v5689
    %v5691 = vmul.f32 %v5684, %v5689
    %v5692 = vadd.f32 %v5690, %v70
    %v5693 = vadd.f32 %v5691, %v71
    %v5694 = vsel %vm274, %v5692, -inf
    %5695 = vmax.xlane.f32.xlu0 %v5694
    %v5696 = vpop.xlane.xlu0 %5695
    %v5697 = vsel %vm274, %v5693, -inf
    %5698 = vmax.xlane.f32.xlu0 %v5697
    %v5699 = vpop.xlane.xlu0 %5698
    %v5700 = vsub.f32 %v5692, %v5696
    %v5701 = vsub.f32 %v5693, %v5699
    %v5702 = vmul.f32 %v5700, 1.442695
    %v5703 = vpow.pop %v5702
    %v5704 = vmul.f32 %v5701, 1.442695
    %v5705 = vpow.pop %v5704
    %v5706 = vsel %vm274, %v5703, 0.0
    %5707 = vadd.xlane.f32.xlu0 %v5706
    %v5708 = vpop.xlane.xlu0 %5707
    %v5709 = vsel %vm274, %v5705, 0.0
    %5710 = vadd.xlane.f32.xlu0 %v5709
    %v5711 = vpop.xlane.xlu0 %5710
    %v5712 = vlaneseq
    %v5713 = vshrl.u32 %v5712, 7
    %v5714 = vsub.s32 1, %v5713
    %v5715 = vrot.slane %v5613, %v5714
    %v5716 = vmul.f32 %v5703, %v5715
    %v5717 = vmul.f32 %v5705, %v5715
    %v5718 = vsel %vm274, %v5716, 0.0
    %5719 = vadd.xlane.f32.xlu0 %v5718
    %v5720 = vpop.xlane.xlu0 %5719
    %v5721 = vsel %vm274, %v5717, 0.0
    %5722 = vadd.xlane.f32.xlu0 %v5721
    %v5723 = vpop.xlane.xlu0 %5722
    %v5724 = vrcp.pop %v5708
    %v5725 = vrcp.pop %v5711
    %v5726 = vmul.f32 %v5720, %v5724
    %v5727 = vmul.f32 %v5723, %v5725
    %v5728 = vlaneseq
    %v5729 = vshrl.u32 %v5728, 7
    %v5730 = vsub.s32 1, %v5729
    %v5731 = vrot.slane %v5617, %v5730
    %v5732 = vmul.f32 %v5726, %v5731
    %v5733 = vmul.f32 %v5727, %v5731
    %v5734 = vadd.f32 %v5676, %v5732
    %v5735 = vadd.f32 %v5677, %v5733
    %5736 = vset.pattern.permute.xlu0 2
    %5737 = vperm.xlu0 %5736, %v5511
    %v5738 = vpop.permute.xlu0 %5737
    %5740 = vset.pattern.permute.xlu0 2
    %5741 = vperm.xlu0 %5740, %v5516
    %v5742 = vpop.permute.xlu0 %5741
    %v5744 = vlaneseq
    %v5745 = vshrl.u32 %v5744, 7
    %v5746 = vsub.s32 2, %v5745
    %v5747 = vrot.slane %v5608, %v5746
    %v5748 = vmul.f32 %v5738, %v5747
    %v5749 = vmul.f32 %v5742, %v5747
    %v5750 = vadd.f32 %v5748, %v70
    %v5751 = vadd.f32 %v5749, %v71
    %v5752 = vsel %vm274, %v5750, -inf
    %5753 = vmax.xlane.f32.xlu0 %v5752
    %v5754 = vpop.xlane.xlu0 %5753
    %v5755 = vsel %vm274, %v5751, -inf
    %5756 = vmax.xlane.f32.xlu0 %v5755
    %v5757 = vpop.xlane.xlu0 %5756
    %v5758 = vsub.f32 %v5750, %v5754
    %v5759 = vsub.f32 %v5751, %v5757
    %v5760 = vmul.f32 %v5758, 1.442695
    %v5761 = vpow.pop %v5760
    %v5762 = vmul.f32 %v5759, 1.442695
    %v5763 = vpow.pop %v5762
    %v5764 = vsel %vm274, %v5761, 0.0
    %5765 = vadd.xlane.f32.xlu0 %v5764
    %v5766 = vpop.xlane.xlu0 %5765
    %v5767 = vsel %vm274, %v5763, 0.0
    %5768 = vadd.xlane.f32.xlu0 %v5767
    %v5769 = vpop.xlane.xlu0 %5768
    %v5770 = vlaneseq
    %v5771 = vshrl.u32 %v5770, 7
    %v5772 = vsub.s32 2, %v5771
    %v5773 = vrot.slane %v5613, %v5772
    %v5774 = vmul.f32 %v5761, %v5773
    %v5775 = vmul.f32 %v5763, %v5773
    %v5776 = vsel %vm274, %v5774, 0.0
    %5777 = vadd.xlane.f32.xlu0 %v5776
    %v5778 = vpop.xlane.xlu0 %5777
    %v5779 = vsel %vm274, %v5775, 0.0
    %5780 = vadd.xlane.f32.xlu0 %v5779
    %v5781 = vpop.xlane.xlu0 %5780
    %v5782 = vrcp.pop %v5766
    %v5783 = vrcp.pop %v5769
    %v5784 = vmul.f32 %v5778, %v5782
    %v5785 = vmul.f32 %v5781, %v5783
    %v5786 = vlaneseq
    %v5787 = vshrl.u32 %v5786, 7
    %v5788 = vsub.s32 2, %v5787
    %v5789 = vrot.slane %v5617, %v5788
    %v5790 = vmul.f32 %v5784, %v5789
    %v5791 = vmul.f32 %v5785, %v5789
    %v5792 = vadd.f32 %v5734, %v5790
    %v5793 = vadd.f32 %v5735, %v5791
    %5794 = vset.pattern.permute.xlu0 3
    %5795 = vperm.xlu0 %5794, %v5511
    %v5796 = vpop.permute.xlu0 %5795
    %5798 = vset.pattern.permute.xlu0 3
    %5799 = vperm.xlu0 %5798, %v5516
    %v5800 = vpop.permute.xlu0 %5799
    %v5802 = vlaneseq
    %v5803 = vshrl.u32 %v5802, 7
    %v5804 = vsub.s32 3, %v5803
    %v5805 = vrot.slane %v5608, %v5804
    %v5806 = vmul.f32 %v5796, %v5805
    %v5807 = vmul.f32 %v5800, %v5805
    %v5808 = vadd.f32 %v5806, %v70
    %v5809 = vadd.f32 %v5807, %v71
    %v5810 = vsel %vm274, %v5808, -inf
    %5811 = vmax.xlane.f32.xlu0 %v5810
    %v5812 = vpop.xlane.xlu0 %5811
    %v5813 = vsel %vm274, %v5809, -inf
    %5814 = vmax.xlane.f32.xlu0 %v5813
    %v5815 = vpop.xlane.xlu0 %5814
    %v5816 = vsub.f32 %v5808, %v5812
    %v5817 = vsub.f32 %v5809, %v5815
    %v5818 = vmul.f32 %v5816, 1.442695
    %v5819 = vpow.pop %v5818
    %v5820 = vmul.f32 %v5817, 1.442695
    %v5821 = vpow.pop %v5820
    %v5822 = vsel %vm274, %v5819, 0.0
    %5823 = vadd.xlane.f32.xlu0 %v5822
    %v5824 = vpop.xlane.xlu0 %5823
    %v5825 = vsel %vm274, %v5821, 0.0
    %5826 = vadd.xlane.f32.xlu0 %v5825
    %v5827 = vpop.xlane.xlu0 %5826
    %v5828 = vlaneseq
    %v5829 = vshrl.u32 %v5828, 7
    %v5830 = vsub.s32 3, %v5829
    %v5831 = vrot.slane %v5613, %v5830
    %v5832 = vmul.f32 %v5819, %v5831
    %v5833 = vmul.f32 %v5821, %v5831
    %v5834 = vsel %vm274, %v5832, 0.0
    %5835 = vadd.xlane.f32.xlu0 %v5834
    %v5836 = vpop.xlane.xlu0 %5835
    %v5837 = vsel %vm274, %v5833, 0.0
    %5838 = vadd.xlane.f32.xlu0 %v5837
    %v5839 = vpop.xlane.xlu0 %5838
    %v5840 = vrcp.pop %v5824
    %v5841 = vrcp.pop %v5827
    %v5842 = vmul.f32 %v5836, %v5840
    %v5843 = vmul.f32 %v5839, %v5841
    %v5844 = vlaneseq
    %v5845 = vshrl.u32 %v5844, 7
    %v5846 = vsub.s32 3, %v5845
    %v5847 = vrot.slane %v5617, %v5846
    %v5848 = vmul.f32 %v5842, %v5847
    %v5849 = vmul.f32 %v5843, %v5847
    %v5850 = vadd.f32 %v5792, %v5848
    %v5851 = vadd.f32 %v5793, %v5849
    %5852 = vset.pattern.permute.xlu0 4
    %5853 = vperm.xlu0 %5852, %v5511
    %v5854 = vpop.permute.xlu0 %5853
    %5856 = vset.pattern.permute.xlu0 4
    %5857 = vperm.xlu0 %5856, %v5516
    %v5858 = vpop.permute.xlu0 %5857
    %v5860 = vlaneseq
    %v5861 = vshrl.u32 %v5860, 7
    %v5862 = vsub.s32 4, %v5861
    %v5863 = vrot.slane %v5608, %v5862
    %v5864 = vmul.f32 %v5854, %v5863
    %v5865 = vmul.f32 %v5858, %v5863
    %v5866 = vadd.f32 %v5864, %v70
    %v5867 = vadd.f32 %v5865, %v71
    %v5868 = vsel %vm274, %v5866, -inf
    %5869 = vmax.xlane.f32.xlu0 %v5868
    %v5870 = vpop.xlane.xlu0 %5869
    %v5871 = vsel %vm274, %v5867, -inf
    %5872 = vmax.xlane.f32.xlu0 %v5871
    %v5873 = vpop.xlane.xlu0 %5872
    %v5874 = vsub.f32 %v5866, %v5870
    %v5875 = vsub.f32 %v5867, %v5873
    %v5876 = vmul.f32 %v5874, 1.442695
    %v5877 = vpow.pop %v5876
    %v5878 = vmul.f32 %v5875, 1.442695
    %v5879 = vpow.pop %v5878
    %v5880 = vsel %vm274, %v5877, 0.0
    %5881 = vadd.xlane.f32.xlu0 %v5880
    %v5882 = vpop.xlane.xlu0 %5881
    %v5883 = vsel %vm274, %v5879, 0.0
    %5884 = vadd.xlane.f32.xlu0 %v5883
    %v5885 = vpop.xlane.xlu0 %5884
    %v5886 = vlaneseq
    %v5887 = vshrl.u32 %v5886, 7
    %v5888 = vsub.s32 4, %v5887
    %v5889 = vrot.slane %v5613, %v5888
    %v5890 = vmul.f32 %v5877, %v5889
    %v5891 = vmul.f32 %v5879, %v5889
    %v5892 = vsel %vm274, %v5890, 0.0
    %5893 = vadd.xlane.f32.xlu0 %v5892
    %v5894 = vpop.xlane.xlu0 %5893
    %v5895 = vsel %vm274, %v5891, 0.0
    %5896 = vadd.xlane.f32.xlu0 %v5895
    %v5897 = vpop.xlane.xlu0 %5896
    %v5898 = vrcp.pop %v5882
    %v5899 = vrcp.pop %v5885
    %v5900 = vmul.f32 %v5894, %v5898
    %v5901 = vmul.f32 %v5897, %v5899
    %v5902 = vlaneseq
    %v5903 = vshrl.u32 %v5902, 7
    %v5904 = vsub.s32 4, %v5903
    %v5905 = vrot.slane %v5617, %v5904
    %v5906 = vmul.f32 %v5900, %v5905
    %v5907 = vmul.f32 %v5901, %v5905
    %v5908 = vadd.f32 %v5850, %v5906
    %v5909 = vadd.f32 %v5851, %v5907
    %5910 = vset.pattern.permute.xlu0 5
    %5911 = vperm.xlu0 %5910, %v5511
    %v5912 = vpop.permute.xlu0 %5911
    %5914 = vset.pattern.permute.xlu0 5
    %5915 = vperm.xlu0 %5914, %v5516
    %v5916 = vpop.permute.xlu0 %5915
    %v5918 = vlaneseq
    %v5919 = vshrl.u32 %v5918, 7
    %v5920 = vsub.s32 5, %v5919
    %v5921 = vrot.slane %v5608, %v5920
    %v5922 = vmul.f32 %v5912, %v5921
    %v5923 = vmul.f32 %v5916, %v5921
    %v5924 = vadd.f32 %v5922, %v70
    %v5925 = vadd.f32 %v5923, %v71
    %v5926 = vsel %vm274, %v5924, -inf
    %5927 = vmax.xlane.f32.xlu0 %v5926
    %v5928 = vpop.xlane.xlu0 %5927
    %v5929 = vsel %vm274, %v5925, -inf
    %5930 = vmax.xlane.f32.xlu0 %v5929
    %v5931 = vpop.xlane.xlu0 %5930
    %v5932 = vsub.f32 %v5924, %v5928
    %v5933 = vsub.f32 %v5925, %v5931
    %v5934 = vmul.f32 %v5932, 1.442695
    %v5935 = vpow.pop %v5934
    %v5936 = vmul.f32 %v5933, 1.442695
    %v5937 = vpow.pop %v5936
    %v5938 = vsel %vm274, %v5935, 0.0
    %5939 = vadd.xlane.f32.xlu0 %v5938
    %v5940 = vpop.xlane.xlu0 %5939
    %v5941 = vsel %vm274, %v5937, 0.0
    %5942 = vadd.xlane.f32.xlu0 %v5941
    %v5943 = vpop.xlane.xlu0 %5942
    %v5944 = vlaneseq
    %v5945 = vshrl.u32 %v5944, 7
    %v5946 = vsub.s32 5, %v5945
    %v5947 = vrot.slane %v5613, %v5946
    %v5948 = vmul.f32 %v5935, %v5947
    %v5949 = vmul.f32 %v5937, %v5947
    %v5950 = vsel %vm274, %v5948, 0.0
    %5951 = vadd.xlane.f32.xlu0 %v5950
    %v5952 = vpop.xlane.xlu0 %5951
    %v5953 = vsel %vm274, %v5949, 0.0
    %5954 = vadd.xlane.f32.xlu0 %v5953
    %v5955 = vpop.xlane.xlu0 %5954
    %v5956 = vrcp.pop %v5940
    %v5957 = vrcp.pop %v5943
    %v5958 = vmul.f32 %v5952, %v5956
    %v5959 = vmul.f32 %v5955, %v5957
    %v5960 = vlaneseq
    %v5961 = vshrl.u32 %v5960, 7
    %v5962 = vsub.s32 5, %v5961
    %v5963 = vrot.slane %v5617, %v5962
    %v5964 = vmul.f32 %v5958, %v5963
    %v5965 = vmul.f32 %v5959, %v5963
    %v5966 = vadd.f32 %v5908, %v5964
    %v5967 = vadd.f32 %v5909, %v5965
    %5968 = vset.pattern.permute.xlu0 6
    %5969 = vperm.xlu0 %5968, %v5511
    %v5970 = vpop.permute.xlu0 %5969
    %5972 = vset.pattern.permute.xlu0 6
    %5973 = vperm.xlu0 %5972, %v5516
    %v5974 = vpop.permute.xlu0 %5973
    %v5976 = vlaneseq
    %v5977 = vshrl.u32 %v5976, 7
    %v5978 = vsub.s32 6, %v5977
    %v5979 = vrot.slane %v5608, %v5978
    %v5980 = vmul.f32 %v5970, %v5979
    %v5981 = vmul.f32 %v5974, %v5979
    %v5982 = vadd.f32 %v5980, %v70
    %v5983 = vadd.f32 %v5981, %v71
    %v5984 = vsel %vm274, %v5982, -inf
    %5985 = vmax.xlane.f32.xlu0 %v5984
    %v5986 = vpop.xlane.xlu0 %5985
    %v5987 = vsel %vm274, %v5983, -inf
    %5988 = vmax.xlane.f32.xlu0 %v5987
    %v5989 = vpop.xlane.xlu0 %5988
    %v5990 = vsub.f32 %v5982, %v5986
    %v5991 = vsub.f32 %v5983, %v5989
    %v5992 = vmul.f32 %v5990, 1.442695
    %v5993 = vpow.pop %v5992
    %v5994 = vmul.f32 %v5991, 1.442695
    %v5995 = vpow.pop %v5994
    %v5996 = vsel %vm274, %v5993, 0.0
    %5997 = vadd.xlane.f32.xlu0 %v5996
    %v5998 = vpop.xlane.xlu0 %5997
    %v5999 = vsel %vm274, %v5995, 0.0
    %6000 = vadd.xlane.f32.xlu0 %v5999
    %v6001 = vpop.xlane.xlu0 %6000
    %v6002 = vlaneseq
    %v6003 = vshrl.u32 %v6002, 7
    %v6004 = vsub.s32 6, %v6003
    %v6005 = vrot.slane %v5613, %v6004
    %v6006 = vmul.f32 %v5993, %v6005
    %v6007 = vmul.f32 %v5995, %v6005
    %v6008 = vsel %vm274, %v6006, 0.0
    %6009 = vadd.xlane.f32.xlu0 %v6008
    %v6010 = vpop.xlane.xlu0 %6009
    %v6011 = vsel %vm274, %v6007, 0.0
    %6012 = vadd.xlane.f32.xlu0 %v6011
    %v6013 = vpop.xlane.xlu0 %6012
    %v6014 = vrcp.pop %v5998
    %v6015 = vrcp.pop %v6001
    %v6016 = vmul.f32 %v6010, %v6014
    %v6017 = vmul.f32 %v6013, %v6015
    %v6018 = vlaneseq
    %v6019 = vshrl.u32 %v6018, 7
    %v6020 = vsub.s32 6, %v6019
    %v6021 = vrot.slane %v5617, %v6020
    %v6022 = vmul.f32 %v6016, %v6021
    %v6023 = vmul.f32 %v6017, %v6021
    %v6024 = vadd.f32 %v5966, %v6022
    %v6025 = vadd.f32 %v5967, %v6023
    %6026 = vset.pattern.permute.xlu0 7
    %6027 = vperm.xlu0 %6026, %v5511
    %v6028 = vpop.permute.xlu0 %6027
    %6030 = vset.pattern.permute.xlu0 7
    %6031 = vperm.xlu0 %6030, %v5516
    %v6032 = vpop.permute.xlu0 %6031
    %v6034 = vlaneseq
    %v6035 = vshrl.u32 %v6034, 7
    %v6036 = vsub.s32 7, %v6035
    %v6037 = vrot.slane %v5608, %v6036
    %v6038 = vmul.f32 %v6028, %v6037
    %v6039 = vmul.f32 %v6032, %v6037
    %v6040 = vadd.f32 %v6038, %v70
    %v6041 = vadd.f32 %v6039, %v71
    %v6042 = vsel %vm274, %v6040, -inf
    %6043 = vmax.xlane.f32.xlu0 %v6042
    %v6044 = vpop.xlane.xlu0 %6043
    %v6045 = vsel %vm274, %v6041, -inf
    %6046 = vmax.xlane.f32.xlu0 %v6045
    %v6047 = vpop.xlane.xlu0 %6046
    %v6048 = vsub.f32 %v6040, %v6044
    %v6049 = vsub.f32 %v6041, %v6047
    %v6050 = vmul.f32 %v6048, 1.442695
    %v6051 = vpow.pop %v6050
    %v6052 = vmul.f32 %v6049, 1.442695
    %v6053 = vpow.pop %v6052
    %v6054 = vsel %vm274, %v6051, 0.0
    %6055 = vadd.xlane.f32.xlu0 %v6054
    %v6056 = vpop.xlane.xlu0 %6055
    %v6057 = vsel %vm274, %v6053, 0.0
    %6058 = vadd.xlane.f32.xlu0 %v6057
    %v6059 = vpop.xlane.xlu0 %6058
    %v6060 = vlaneseq
    %v6061 = vshrl.u32 %v6060, 7
    %v6062 = vsub.s32 7, %v6061
    %v6063 = vrot.slane %v5613, %v6062
    %v6064 = vmul.f32 %v6051, %v6063
    %v6065 = vmul.f32 %v6053, %v6063
    %v6066 = vsel %vm274, %v6064, 0.0
    %6067 = vadd.xlane.f32.xlu0 %v6066
    %v6068 = vpop.xlane.xlu0 %6067
    %v6069 = vsel %vm274, %v6065, 0.0
    %6070 = vadd.xlane.f32.xlu0 %v6069
    %v6071 = vpop.xlane.xlu0 %6070
    %v6072 = vrcp.pop %v6056
    %v6073 = vrcp.pop %v6059
    %v6074 = vmul.f32 %v6068, %v6072
    %v6075 = vmul.f32 %v6071, %v6073
    %v6076 = vlaneseq
    %v6077 = vshrl.u32 %v6076, 7
    %v6078 = vsub.s32 7, %v6077
    %v6079 = vrot.slane %v5617, %v6078
    %v6080 = vmul.f32 %v6074, %v6079
    %v6081 = vmul.f32 %v6075, %v6079
    %v6082 = vadd.f32 %v6024, %v6080
    %v6083 = vadd.f32 %v6025, %v6081
    %v6084 = vadd.f32 %v5429, %v6082
    %v6085 = vadd.f32 %v5430, %v6083
    %v6086 = vld [vmem:[%s8 + $0x2] sm:$0x1]
    %v6087 = vlaneseq
    %v6088 = vshrl.u32 %v6087, 7
    %v6089 = vsub.s32 0, %v6088
    %v6090 = vrot.slane %v6086, %v6089
    %v6091 = vadd.f32 %v6084, %v6090
    %v6092 = vadd.f32 %v6085, %v6090
    %v6093 = vld [vmem:[%s9 + $0x2] sm:$0x1]
    %v6094 = vld [vmem:[%s10 + $0x2] sm:$0x1]
    %v6095 = vsel %vm78, %v6091, 0.0
    %6096 = vadd.xlane.f32.xlu0 %v6095
    %v6097 = vpop.xlane.xlu0 %6096
    %v6098 = vsel %vm78, %v6092, 0.0
    %6099 = vadd.xlane.f32.xlu0 %v6098
    %v6100 = vpop.xlane.xlu0 %6099
    %v6101 = vmul.f32 %v6097, %v740
    %v6102 = vmul.f32 %v6100, %v740
    %v6103 = vsub.f32 %v6091, %v6101
    %v6104 = vsub.f32 %v6092, %v6102
    %v6105 = vmul.f32 %v6103, %v6103
    %v6106 = vmul.f32 %v6104, %v6104
    %v6107 = vsel %vm78, %v6105, 0.0
    %6108 = vadd.xlane.f32.xlu0 %v6107
    %v6109 = vpop.xlane.xlu0 %6108
    %v6110 = vsel %vm78, %v6106, 0.0
    %6111 = vadd.xlane.f32.xlu0 %v6110
    %v6112 = vpop.xlane.xlu0 %6111
    %v6113 = vmul.f32 %v6109, %v740
    %v6114 = vmul.f32 %v6112, %v740
    %v6115 = vadd.f32 %v6113, 1e-05
    %v6116 = vadd.f32 %v6114, 1e-05
    %v6117 = vrsqrt.pop %v6115
    %v6118 = vrsqrt.pop %v6116
    %v6119 = vmul.f32 %v6103, %v6117
    %v6120 = vmul.f32 %v6104, %v6118
    %v6121 = vlaneseq
    %v6122 = vshrl.u32 %v6121, 7
    %v6123 = vsub.s32 0, %v6122
    %v6124 = vrot.slane %v6093, %v6123
    %v6125 = vmul.f32 %v6119, %v6124
    %v6126 = vmul.f32 %v6120, %v6124
    %v6127 = vlaneseq
    %v6128 = vshrl.u32 %v6127, 7
    %v6129 = vsub.s32 0, %v6128
    %v6130 = vrot.slane %v6094, %v6129
    %v6131 = vadd.f32 %v6125, %v6130
    %v6132 = vadd.f32 %v6126, %v6130
    %v6133 = vpack.c.bf16 %v6132, %v6131
    %s6134 = scalar_lea.vmem %s11, 128
    %v6135 = vld [vmem:[%s6134] sm:$0xff]
    %v6136 = vld [vmem:[%s6134 + $0x8] sm:$0xff]
    %v6137 = vld [vmem:[%s6134 + $0x10] sm:$0xff]
    %v6138 = vld [vmem:[%s6134 + $0x18] sm:$0xff]
    %v6139 = vld [vmem:[%s6134 + $0x20] sm:$0xff]
    %v6140 = vld [vmem:[%s6134 + $0x28] sm:$0xff]
    %v6141 = vld [vmem:[%s6134 + $0x30] sm:$0xff]
    %v6142 = vld [vmem:[%s6134 + $0x38] sm:$0xff]
    %s6143 = scalar_lea.vmem %s12, 2
    %v6144 = vld [vmem:[%s6143] ss:$4 sm:$0xff]
    %s6145 = scalar_lea.vmem %s12, 34
    %v6146 = vld [vmem:[%s6145] ss:$4 sm:$0xff]
    %v6149 = vlaneseq
    %v6150 = vshrl.u32 %v6149, 7
    %v6151 = vsub.s32 0, %v6150
    %v6152 = vrot.slane %v6144, %v6151
    %v6153 = vlaneseq
    %v6154 = vshrl.u32 %v6153, 7
    %v6155 = vsub.s32 1, %v6154
    %v6156 = vrot.slane %v6144, %v6155
    %v6157 = vlaneseq
    %v6158 = vshrl.u32 %v6157, 7
    %v6159 = vsub.s32 2, %v6158
    %v6160 = vrot.slane %v6144, %v6159
    %v6161 = vlaneseq
    %v6162 = vshrl.u32 %v6161, 7
    %v6163 = vsub.s32 3, %v6162
    %v6164 = vrot.slane %v6144, %v6163
    %v6165 = vlaneseq
    %v6166 = vshrl.u32 %v6165, 7
    %v6167 = vsub.s32 4, %v6166
    %v6168 = vrot.slane %v6144, %v6167
    %v6169 = vlaneseq
    %v6170 = vshrl.u32 %v6169, 7
    %v6171 = vsub.s32 5, %v6170
    %v6172 = vrot.slane %v6144, %v6171
    %v6173 = vlaneseq
    %v6174 = vshrl.u32 %v6173, 7
    %v6175 = vsub.s32 6, %v6174
    %v6176 = vrot.slane %v6144, %v6175
    %v6177 = vlaneseq
    %v6178 = vshrl.u32 %v6177, 7
    %v6179 = vsub.s32 7, %v6178
    %v6180 = vrot.slane %v6144, %v6179
    %v6181 = vlaneseq
    %v6182 = vshrl.u32 %v6181, 7
    %v6183 = vsub.s32 0, %v6182
    %v6184 = vrot.slane %v6146, %v6183
    %v6185 = vlaneseq
    %v6186 = vshrl.u32 %v6185, 7
    %v6187 = vsub.s32 1, %v6186
    %v6188 = vrot.slane %v6146, %v6187
    %v6189 = vlaneseq
    %v6190 = vshrl.u32 %v6189, 7
    %v6191 = vsub.s32 2, %v6190
    %v6192 = vrot.slane %v6146, %v6191
    %v6193 = vlaneseq
    %v6194 = vshrl.u32 %v6193, 7
    %v6195 = vsub.s32 3, %v6194
    %v6196 = vrot.slane %v6146, %v6195
    %v6197 = vlaneseq
    %v6198 = vshrl.u32 %v6197, 7
    %v6199 = vsub.s32 4, %v6198
    %v6200 = vrot.slane %v6146, %v6199
    %v6201 = vlaneseq
    %v6202 = vshrl.u32 %v6201, 7
    %v6203 = vsub.s32 5, %v6202
    %v6204 = vrot.slane %v6146, %v6203
    %v6205 = vlaneseq
    %v6206 = vshrl.u32 %v6205, 7
    %v6207 = vsub.s32 6, %v6206
    %v6208 = vrot.slane %v6146, %v6207
    %v6209 = vlaneseq
    %v6210 = vshrl.u32 %v6209, 7
    %v6211 = vsub.s32 7, %v6210
    %v6212 = vrot.slane %v6146, %v6211
    %v6237 = vunpack.c.l.b16 %v6135
    %v6238 = vunpack.c.h.b16 %v6135
    %v6239 = vunpack.c.l.b16 %v6136
    %v6240 = vunpack.c.h.b16 %v6136
    %v6241 = vunpack.c.l.b16 %v6137
    %v6242 = vunpack.c.h.b16 %v6137
    %v6243 = vunpack.c.l.b16 %v6138
    %v6244 = vunpack.c.h.b16 %v6138
    %v6245 = vunpack.c.l.b16 %v6139
    %v6246 = vunpack.c.h.b16 %v6139
    %v6247 = vunpack.c.l.b16 %v6140
    %v6248 = vunpack.c.h.b16 %v6140
    %v6249 = vunpack.c.l.b16 %v6141
    %v6250 = vunpack.c.h.b16 %v6141
    %v6251 = vunpack.c.l.b16 %v6142
    %v6252 = vunpack.c.h.b16 %v6142
    %v6253 = vpack.c.b16 %v6237, %v6237
    %v6254 = vpack.c.b16 %v6238, %v6238
    %v6255 = vpack.c.b16 %v6239, %v6239
    %v6256 = vpack.c.b16 %v6240, %v6240
    %v6257 = vpack.c.b16 %v6241, %v6241
    %v6258 = vpack.c.b16 %v6242, %v6242
    %v6259 = vpack.c.b16 %v6243, %v6243
    %v6260 = vpack.c.b16 %v6244, %v6244
    %v6261 = vpack.c.b16 %v6245, %v6245
    %v6262 = vpack.c.b16 %v6246, %v6246
    %v6263 = vpack.c.b16 %v6247, %v6247
    %v6264 = vpack.c.b16 %v6248, %v6248
    %v6265 = vpack.c.b16 %v6249, %v6249
    %v6266 = vpack.c.b16 %v6250, %v6250
    %v6267 = vpack.c.b16 %v6251, %v6251
    %v6268 = vpack.c.b16 %v6252, %v6252
    %v6270 = vsel %vm78, %v6133, 0
    %v6273 = vsel %vm910, %v6253, 0
    %v6276 = vsel %vm910, %v6254, 0
    %v6279 = vsel %vm910, %v6255, 0
    %v6282 = vsel %vm910, %v6256, 0
    %v6285 = vsel %vm910, %v6257, 0
    %v6288 = vsel %vm910, %v6258, 0
    %v6291 = vsel %vm910, %v6259, 0
    %v6294 = vsel %vm910, %v6260, 0
    %v6297 = vsel %vm910, %v6261, 0
    %v6300 = vsel %vm910, %v6262, 0
    %v6303 = vsel %vm910, %v6263, 0
    %v6306 = vsel %vm910, %v6264, 0
    %v6309 = vsel %vm910, %v6265, 0
    %v6312 = vsel %vm910, %v6266, 0
    %v6315 = vsel %vm910, %v6267, 0
    %v6318 = vsel %vm910, %v6268, 0
    %6320 = vmatprep.subr.bf16.mxu0 %v6276
    %6321 = vmatpush1.bf16.msra.mxu0 %v6273
    %6322 = vmatprep.subr.bf16.mxu0 0
    %6323 = vmatpush1.bf16.msra.mxu0 0
    %6324 = vmatprep.subr.bf16.mxu0 0
    %6325 = vmatpush1.bf16.msra.mxu0 0
    %6326 = vmatprep.subr.bf16.mxu0 0
    %6327 = vmatpush1.bf16.msra.mxu0 0
    %6328 = vmatprep.subr.bf16.mxu0 0
    %6329 = vmatpush1.bf16.msra.mxu0 0
    %6330 = vmatprep.subr.bf16.mxu0 0
    %6331 = vmatpush1.bf16.msra.mxu0 0
    %6332 = vmatprep.subr.bf16.mxu0 0
    %6333 = vmatpush1.bf16.msra.mxu0 0
    %6334 = vmatprep.subr.bf16.mxu0 0
    %6335 = vmatpush1.bf16.msra.mxu0 0
    %6336 = vmatprep.subr.bf16.mxu0 0
    %6337 = vmatpush1.bf16.msra.mxu0 0
    %6338 = vmatprep.subr.bf16.mxu0 0
    %6339 = vmatpush1.bf16.msra.mxu0 0
    %6340 = vmatprep.subr.bf16.mxu0 0
    %6341 = vmatpush1.bf16.msra.mxu0 0
    %6342 = vmatprep.subr.bf16.mxu0 0
    %6343 = vmatpush1.bf16.msra.mxu0 0
    %6344 = vmatprep.subr.bf16.mxu0 0
    %6345 = vmatpush1.bf16.msra.mxu0 0
    %6346 = vmatprep.subr.bf16.mxu0 0
    %6347 = vmatpush1.bf16.msra.mxu0 0
    %6348 = vmatprep.subr.bf16.mxu0 0
    %6349 = vmatpush1.bf16.msra.mxu0 0
    %6350 = vmatprep.subr.bf16.mxu0 0
    %6351 = vmatpush1.bf16.msra.mxu0 0
    %6352 = vmatprep.mubr.bf16.mxu0 0
    %6353 = vmatmul.mubr.bf16.gmra.mrb[0].mxu0 %v6270
    %v6354 = vpop.f32.mrb[0].mxu0
    %v6355 = vadd.f32 %v6152, %v6354
    %v6356 = vpop.f32.mrb[0].mxu0
    %v6357 = vadd.f32 %v6156, %v6356
    %v6358 = vpop.f32.mrb[0].mxu0
    %v6359 = vadd.f32 %v6152, %v6358
    %v6360 = vpop.f32.mrb[0].mxu0
    %v6361 = vadd.f32 %v6156, %v6360
    %6362 = vdwg.mxu0
    %6363 = vmatprep.subr.bf16.mxu0 %v6282
    %6364 = vmatpush1.bf16.msra.mxu0 %v6279
    %6365 = vmatprep.subr.bf16.mxu0 0
    %6366 = vmatpush1.bf16.msra.mxu0 0
    %6367 = vmatprep.subr.bf16.mxu0 0
    %6368 = vmatpush1.bf16.msra.mxu0 0
    %6369 = vmatprep.subr.bf16.mxu0 0
    %6370 = vmatpush1.bf16.msra.mxu0 0
    %6371 = vmatprep.subr.bf16.mxu0 0
    %6372 = vmatpush1.bf16.msra.mxu0 0
    %6373 = vmatprep.subr.bf16.mxu0 0
    %6374 = vmatpush1.bf16.msra.mxu0 0
    %6375 = vmatprep.subr.bf16.mxu0 0
    %6376 = vmatpush1.bf16.msra.mxu0 0
    %6377 = vmatprep.subr.bf16.mxu0 0
    %6378 = vmatpush1.bf16.msra.mxu0 0
    %6379 = vmatprep.subr.bf16.mxu0 0
    %6380 = vmatpush1.bf16.msra.mxu0 0
    %6381 = vmatprep.subr.bf16.mxu0 0
    %6382 = vmatpush1.bf16.msra.mxu0 0
    %6383 = vmatprep.subr.bf16.mxu0 0
    %6384 = vmatpush1.bf16.msra.mxu0 0
    %6385 = vmatprep.subr.bf16.mxu0 0
    %6386 = vmatpush1.bf16.msra.mxu0 0
    %6387 = vmatprep.subr.bf16.mxu0 0
    %6388 = vmatpush1.bf16.msra.mxu0 0
    %6389 = vmatprep.subr.bf16.mxu0 0
    %6390 = vmatpush1.bf16.msra.mxu0 0
    %6391 = vmatprep.subr.bf16.mxu0 0
    %6392 = vmatpush1.bf16.msra.mxu0 0
    %6393 = vmatprep.subr.bf16.mxu0 0
    %6394 = vmatpush1.bf16.msra.mxu0 0
    %6395 = vmatprep.mubr.bf16.mxu0 0
    %6396 = vmatmul.mubr.bf16.gmra.mrb[0].mxu0 %v6270
    %v6397 = vpop.f32.mrb[0].mxu0
    %v6398 = vadd.f32 %v6160, %v6397
    %v6399 = vpop.f32.mrb[0].mxu0
    %v6400 = vadd.f32 %v6164, %v6399
    %v6401 = vpop.f32.mrb[0].mxu0
    %v6402 = vadd.f32 %v6160, %v6401
    %v6403 = vpop.f32.mrb[0].mxu0
    %v6404 = vadd.f32 %v6164, %v6403
    %6405 = vdwg.mxu0
    %6406 = vmatprep.subr.bf16.mxu0 %v6288
    %6407 = vmatpush1.bf16.msra.mxu0 %v6285
    %6408 = vmatprep.subr.bf16.mxu0 0
    %6409 = vmatpush1.bf16.msra.mxu0 0
    %6410 = vmatprep.subr.bf16.mxu0 0
    %6411 = vmatpush1.bf16.msra.mxu0 0
    %6412 = vmatprep.subr.bf16.mxu0 0
    %6413 = vmatpush1.bf16.msra.mxu0 0
    %6414 = vmatprep.subr.bf16.mxu0 0
    %6415 = vmatpush1.bf16.msra.mxu0 0
    %6416 = vmatprep.subr.bf16.mxu0 0
    %6417 = vmatpush1.bf16.msra.mxu0 0
    %6418 = vmatprep.subr.bf16.mxu0 0
    %6419 = vmatpush1.bf16.msra.mxu0 0
    %6420 = vmatprep.subr.bf16.mxu0 0
    %6421 = vmatpush1.bf16.msra.mxu0 0
    %6422 = vmatprep.subr.bf16.mxu0 0
    %6423 = vmatpush1.bf16.msra.mxu0 0
    %6424 = vmatprep.subr.bf16.mxu0 0
    %6425 = vmatpush1.bf16.msra.mxu0 0
    %6426 = vmatprep.subr.bf16.mxu0 0
    %6427 = vmatpush1.bf16.msra.mxu0 0
    %6428 = vmatprep.subr.bf16.mxu0 0
    %6429 = vmatpush1.bf16.msra.mxu0 0
    %6430 = vmatprep.subr.bf16.mxu0 0
    %6431 = vmatpush1.bf16.msra.mxu0 0
    %6432 = vmatprep.subr.bf16.mxu0 0
    %6433 = vmatpush1.bf16.msra.mxu0 0
    %6434 = vmatprep.subr.bf16.mxu0 0
    %6435 = vmatpush1.bf16.msra.mxu0 0
    %6436 = vmatprep.subr.bf16.mxu0 0
    %6437 = vmatpush1.bf16.msra.mxu0 0
    %6438 = vmatprep.mubr.bf16.mxu0 0
    %6439 = vmatmul.mubr.bf16.gmra.mrb[0].mxu0 %v6270
    %v6440 = vpop.f32.mrb[0].mxu0
    %v6441 = vadd.f32 %v6168, %v6440
    %v6442 = vpop.f32.mrb[0].mxu0
    %v6443 = vadd.f32 %v6172, %v6442
    %v6444 = vpop.f32.mrb[0].mxu0
    %v6445 = vadd.f32 %v6168, %v6444
    %v6446 = vpop.f32.mrb[0].mxu0
    %v6447 = vadd.f32 %v6172, %v6446
    %6448 = vdwg.mxu0
    %6449 = vmatprep.subr.bf16.mxu0 %v6294
    %6450 = vmatpush1.bf16.msra.mxu0 %v6291
    %6451 = vmatprep.subr.bf16.mxu0 0
    %6452 = vmatpush1.bf16.msra.mxu0 0
    %6453 = vmatprep.subr.bf16.mxu0 0
    %6454 = vmatpush1.bf16.msra.mxu0 0
    %6455 = vmatprep.subr.bf16.mxu0 0
    %6456 = vmatpush1.bf16.msra.mxu0 0
    %6457 = vmatprep.subr.bf16.mxu0 0
    %6458 = vmatpush1.bf16.msra.mxu0 0
    %6459 = vmatprep.subr.bf16.mxu0 0
    %6460 = vmatpush1.bf16.msra.mxu0 0
    %6461 = vmatprep.subr.bf16.mxu0 0
    %6462 = vmatpush1.bf16.msra.mxu0 0
    %6463 = vmatprep.subr.bf16.mxu0 0
    %6464 = vmatpush1.bf16.msra.mxu0 0
    %6465 = vmatprep.subr.bf16.mxu0 0
    %6466 = vmatpush1.bf16.msra.mxu0 0
    %6467 = vmatprep.subr.bf16.mxu0 0
    %6468 = vmatpush1.bf16.msra.mxu0 0
    %6469 = vmatprep.subr.bf16.mxu0 0
    %6470 = vmatpush1.bf16.msra.mxu0 0
    %6471 = vmatprep.subr.bf16.mxu0 0
    %6472 = vmatpush1.bf16.msra.mxu0 0
    %6473 = vmatprep.subr.bf16.mxu0 0
    %6474 = vmatpush1.bf16.msra.mxu0 0
    %6475 = vmatprep.subr.bf16.mxu0 0
    %6476 = vmatpush1.bf16.msra.mxu0 0
    %6477 = vmatprep.subr.bf16.mxu0 0
    %6478 = vmatpush1.bf16.msra.mxu0 0
    %6479 = vmatprep.subr.bf16.mxu0 0
    %6480 = vmatpush1.bf16.msra.mxu0 0
    %6481 = vmatprep.mubr.bf16.mxu0 0
    %6482 = vmatmul.mubr.bf16.gmra.mrb[0].mxu0 %v6270
    %v6483 = vpop.f32.mrb[0].mxu0
    %v6484 = vadd.f32 %v6176, %v6483
    %v6485 = vpop.f32.mrb[0].mxu0
    %v6486 = vadd.f32 %v6180, %v6485
    %v6487 = vpop.f32.mrb[0].mxu0
    %v6488 = vadd.f32 %v6176, %v6487
    %v6489 = vpop.f32.mrb[0].mxu0
    %v6490 = vadd.f32 %v6180, %v6489
    %6491 = vdwg.mxu0
    %6492 = vmatprep.subr.bf16.mxu0 %v6300
    %6493 = vmatpush1.bf16.msra.mxu0 %v6297
    %6494 = vmatprep.subr.bf16.mxu0 0
    %6495 = vmatpush1.bf16.msra.mxu0 0
    %6496 = vmatprep.subr.bf16.mxu0 0
    %6497 = vmatpush1.bf16.msra.mxu0 0
    %6498 = vmatprep.subr.bf16.mxu0 0
    %6499 = vmatpush1.bf16.msra.mxu0 0
    %6500 = vmatprep.subr.bf16.mxu0 0
    %6501 = vmatpush1.bf16.msra.mxu0 0
    %6502 = vmatprep.subr.bf16.mxu0 0
    %6503 = vmatpush1.bf16.msra.mxu0 0
    %6504 = vmatprep.subr.bf16.mxu0 0
    %6505 = vmatpush1.bf16.msra.mxu0 0
    %6506 = vmatprep.subr.bf16.mxu0 0
    %6507 = vmatpush1.bf16.msra.mxu0 0
    %6508 = vmatprep.subr.bf16.mxu0 0
    %6509 = vmatpush1.bf16.msra.mxu0 0
    %6510 = vmatprep.subr.bf16.mxu0 0
    %6511 = vmatpush1.bf16.msra.mxu0 0
    %6512 = vmatprep.subr.bf16.mxu0 0
    %6513 = vmatpush1.bf16.msra.mxu0 0
    %6514 = vmatprep.subr.bf16.mxu0 0
    %6515 = vmatpush1.bf16.msra.mxu0 0
    %6516 = vmatprep.subr.bf16.mxu0 0
    %6517 = vmatpush1.bf16.msra.mxu0 0
    %6518 = vmatprep.subr.bf16.mxu0 0
    %6519 = vmatpush1.bf16.msra.mxu0 0
    %6520 = vmatprep.subr.bf16.mxu0 0
    %6521 = vmatpush1.bf16.msra.mxu0 0
    %6522 = vmatprep.subr.bf16.mxu0 0
    %6523 = vmatpush1.bf16.msra.mxu0 0
    %6524 = vmatprep.mubr.bf16.mxu0 0
    %6525 = vmatmul.mubr.bf16.gmra.mrb[0].mxu0 %v6270
    %v6526 = vpop.f32.mrb[0].mxu0
    %v6527 = vadd.f32 %v6184, %v6526
    %v6528 = vpop.f32.mrb[0].mxu0
    %v6529 = vadd.f32 %v6188, %v6528
    %v6530 = vpop.f32.mrb[0].mxu0
    %v6531 = vadd.f32 %v6184, %v6530
    %v6532 = vpop.f32.mrb[0].mxu0
    %v6533 = vadd.f32 %v6188, %v6532
    %6534 = vdwg.mxu0
    %6535 = vmatprep.subr.bf16.mxu0 %v6306
    %6536 = vmatpush1.bf16.msra.mxu0 %v6303
    %6537 = vmatprep.subr.bf16.mxu0 0
    %6538 = vmatpush1.bf16.msra.mxu0 0
    %6539 = vmatprep.subr.bf16.mxu0 0
    %6540 = vmatpush1.bf16.msra.mxu0 0
    %6541 = vmatprep.subr.bf16.mxu0 0
    %6542 = vmatpush1.bf16.msra.mxu0 0
    %6543 = vmatprep.subr.bf16.mxu0 0
    %6544 = vmatpush1.bf16.msra.mxu0 0
    %6545 = vmatprep.subr.bf16.mxu0 0
    %6546 = vmatpush1.bf16.msra.mxu0 0
    %6547 = vmatprep.subr.bf16.mxu0 0
    %6548 = vmatpush1.bf16.msra.mxu0 0
    %6549 = vmatprep.subr.bf16.mxu0 0
    %6550 = vmatpush1.bf16.msra.mxu0 0
    %6551 = vmatprep.subr.bf16.mxu0 0
    %6552 = vmatpush1.bf16.msra.mxu0 0
    %6553 = vmatprep.subr.bf16.mxu0 0
    %6554 = vmatpush1.bf16.msra.mxu0 0
    %6555 = vmatprep.subr.bf16.mxu0 0
    %6556 = vmatpush1.bf16.msra.mxu0 0
    %6557 = vmatprep.subr.bf16.mxu0 0
    %6558 = vmatpush1.bf16.msra.mxu0 0
    %6559 = vmatprep.subr.bf16.mxu0 0
    %6560 = vmatpush1.bf16.msra.mxu0 0
    %6561 = vmatprep.subr.bf16.mxu0 0
    %6562 = vmatpush1.bf16.msra.mxu0 0
    %6563 = vmatprep.subr.bf16.mxu0 0
    %6564 = vmatpush1.bf16.msra.mxu0 0
    %6565 = vmatprep.subr.bf16.mxu0 0
    %6566 = vmatpush1.bf16.msra.mxu0 0
    %6567 = vmatprep.mubr.bf16.mxu0 0
    %6568 = vmatmul.mubr.bf16.gmra.mrb[0].mxu0 %v6270
    %v6569 = vpop.f32.mrb[0].mxu0
    %v6570 = vadd.f32 %v6192, %v6569
    %v6571 = vpop.f32.mrb[0].mxu0
    %v6572 = vadd.f32 %v6196, %v6571
    %v6573 = vpop.f32.mrb[0].mxu0
    %v6574 = vadd.f32 %v6192, %v6573
    %v6575 = vpop.f32.mrb[0].mxu0
    %v6576 = vadd.f32 %v6196, %v6575
    %6577 = vdwg.mxu0
    %6578 = vmatprep.subr.bf16.mxu0 %v6312
    %6579 = vmatpush1.bf16.msra.mxu0 %v6309
    %6580 = vmatprep.subr.bf16.mxu0 0
    %6581 = vmatpush1.bf16.msra.mxu0 0
    %6582 = vmatprep.subr.bf16.mxu0 0
    %6583 = vmatpush1.bf16.msra.mxu0 0
    %6584 = vmatprep.subr.bf16.mxu0 0
    %6585 = vmatpush1.bf16.msra.mxu0 0
    %6586 = vmatprep.subr.bf16.mxu0 0
    %6587 = vmatpush1.bf16.msra.mxu0 0
    %6588 = vmatprep.subr.bf16.mxu0 0
    %6589 = vmatpush1.bf16.msra.mxu0 0
    %6590 = vmatprep.subr.bf16.mxu0 0
    %6591 = vmatpush1.bf16.msra.mxu0 0
    %6592 = vmatprep.subr.bf16.mxu0 0
    %6593 = vmatpush1.bf16.msra.mxu0 0
    %6594 = vmatprep.subr.bf16.mxu0 0
    %6595 = vmatpush1.bf16.msra.mxu0 0
    %6596 = vmatprep.subr.bf16.mxu0 0
    %6597 = vmatpush1.bf16.msra.mxu0 0
    %6598 = vmatprep.subr.bf16.mxu0 0
    %6599 = vmatpush1.bf16.msra.mxu0 0
    %6600 = vmatprep.subr.bf16.mxu0 0
    %6601 = vmatpush1.bf16.msra.mxu0 0
    %6602 = vmatprep.subr.bf16.mxu0 0
    %6603 = vmatpush1.bf16.msra.mxu0 0
    %6604 = vmatprep.subr.bf16.mxu0 0
    %6605 = vmatpush1.bf16.msra.mxu0 0
    %6606 = vmatprep.subr.bf16.mxu0 0
    %6607 = vmatpush1.bf16.msra.mxu0 0
    %6608 = vmatprep.subr.bf16.mxu0 0
    %6609 = vmatpush1.bf16.msra.mxu0 0
    %6610 = vmatprep.mubr.bf16.mxu0 0
    %6611 = vmatmul.mubr.bf16.gmra.mrb[0].mxu0 %v6270
    %v6612 = vpop.f32.mrb[0].mxu0
    %v6613 = vadd.f32 %v6200, %v6612
    %v6614 = vpop.f32.mrb[0].mxu0
    %v6615 = vadd.f32 %v6204, %v6614
    %v6616 = vpop.f32.mrb[0].mxu0
    %v6617 = vadd.f32 %v6200, %v6616
    %v6618 = vpop.f32.mrb[0].mxu0
    %v6619 = vadd.f32 %v6204, %v6618
    %6620 = vdwg.mxu0
    %6621 = vmatprep.subr.bf16.mxu0 %v6318
    %6622 = vmatpush1.bf16.msra.mxu0 %v6315
    %6623 = vmatprep.subr.bf16.mxu0 0
    %6624 = vmatpush1.bf16.msra.mxu0 0
    %6625 = vmatprep.subr.bf16.mxu0 0
    %6626 = vmatpush1.bf16.msra.mxu0 0
    %6627 = vmatprep.subr.bf16.mxu0 0
    %6628 = vmatpush1.bf16.msra.mxu0 0
    %6629 = vmatprep.subr.bf16.mxu0 0
    %6630 = vmatpush1.bf16.msra.mxu0 0
    %6631 = vmatprep.subr.bf16.mxu0 0
    %6632 = vmatpush1.bf16.msra.mxu0 0
    %6633 = vmatprep.subr.bf16.mxu0 0
    %6634 = vmatpush1.bf16.msra.mxu0 0
    %6635 = vmatprep.subr.bf16.mxu0 0
    %6636 = vmatpush1.bf16.msra.mxu0 0
    %6637 = vmatprep.subr.bf16.mxu0 0
    %6638 = vmatpush1.bf16.msra.mxu0 0
    %6639 = vmatprep.subr.bf16.mxu0 0
    %6640 = vmatpush1.bf16.msra.mxu0 0
    %6641 = vmatprep.subr.bf16.mxu0 0
    %6642 = vmatpush1.bf16.msra.mxu0 0
    %6643 = vmatprep.subr.bf16.mxu0 0
    %6644 = vmatpush1.bf16.msra.mxu0 0
    %6645 = vmatprep.subr.bf16.mxu0 0
    %6646 = vmatpush1.bf16.msra.mxu0 0
    %6647 = vmatprep.subr.bf16.mxu0 0
    %6648 = vmatpush1.bf16.msra.mxu0 0
    %6649 = vmatprep.subr.bf16.mxu0 0
    %6650 = vmatpush1.bf16.msra.mxu0 0
    %6651 = vmatprep.subr.bf16.mxu0 0
    %6652 = vmatpush1.bf16.msra.mxu0 0
    %6653 = vmatprep.mubr.bf16.mxu0 0
    %6654 = vmatmul.mubr.bf16.gmra.mrb[0].mxu0 %v6270
    %v6655 = vpop.f32.mrb[0].mxu0
    %v6656 = vadd.f32 %v6208, %v6655
    %v6657 = vpop.f32.mrb[0].mxu0
    %v6658 = vadd.f32 %v6212, %v6657
    %v6659 = vpop.f32.mrb[0].mxu0
    %v6660 = vadd.f32 %v6208, %v6659
    %v6661 = vpop.f32.mrb[0].mxu0
    %v6662 = vadd.f32 %v6212, %v6661
    %6663 = vdwg.mxu0
    %v6664 = vmax.f32 %v6355, 0.0
    %v6665 = vmax.f32 %v6357, 0.0
    %v6666 = vmax.f32 %v6398, 0.0
    %v6667 = vmax.f32 %v6400, 0.0
    %v6668 = vmax.f32 %v6441, 0.0
    %v6669 = vmax.f32 %v6443, 0.0
    %v6670 = vmax.f32 %v6484, 0.0
    %v6671 = vmax.f32 %v6486, 0.0
    %v6672 = vmax.f32 %v6527, 0.0
    %v6673 = vmax.f32 %v6529, 0.0
    %v6674 = vmax.f32 %v6570, 0.0
    %v6675 = vmax.f32 %v6572, 0.0
    %v6676 = vmax.f32 %v6613, 0.0
    %v6677 = vmax.f32 %v6615, 0.0
    %v6678 = vmax.f32 %v6656, 0.0
    %v6679 = vmax.f32 %v6658, 0.0
    %v6680 = vmax.f32 %v6359, 0.0
    %v6681 = vmax.f32 %v6361, 0.0
    %v6682 = vmax.f32 %v6402, 0.0
    %v6683 = vmax.f32 %v6404, 0.0
    %v6684 = vmax.f32 %v6445, 0.0
    %v6685 = vmax.f32 %v6447, 0.0
    %v6686 = vmax.f32 %v6488, 0.0
    %v6687 = vmax.f32 %v6490, 0.0
    %v6688 = vmax.f32 %v6531, 0.0
    %v6689 = vmax.f32 %v6533, 0.0
    %v6690 = vmax.f32 %v6574, 0.0
    %v6691 = vmax.f32 %v6576, 0.0
    %v6692 = vmax.f32 %v6617, 0.0
    %v6693 = vmax.f32 %v6619, 0.0
    %v6694 = vmax.f32 %v6660, 0.0
    %v6695 = vmax.f32 %v6662, 0.0
    %v6696 = vpack.c.bf16 %v6680, %v6664
    %v6697 = vpack.c.bf16 %v6681, %v6665
    %v6698 = vpack.c.bf16 %v6682, %v6666
    %v6699 = vpack.c.bf16 %v6683, %v6667
    %v6700 = vpack.c.bf16 %v6684, %v6668
    %v6701 = vpack.c.bf16 %v6685, %v6669
    %v6702 = vpack.c.bf16 %v6686, %v6670
    %v6703 = vpack.c.bf16 %v6687, %v6671
    %v6704 = vpack.c.bf16 %v6688, %v6672
    %v6705 = vpack.c.bf16 %v6689, %v6673
    %v6706 = vpack.c.bf16 %v6690, %v6674
    %v6707 = vpack.c.bf16 %v6691, %v6675
    %v6708 = vpack.c.bf16 %v6692, %v6676
    %v6709 = vpack.c.bf16 %v6693, %v6677
    %v6710 = vpack.c.bf16 %v6694, %v6678
    %v6711 = vpack.c.bf16 %v6695, %v6679
    %s6712 = scalar_lea.vmem %s13, 2048
    %v6713 = vld [vmem:[%s6712] sm:$0xf]
    %v6714 = vld [vmem:[%s6712 + $0x4] sm:$0xf]
    %v6715 = vld [vmem:[%s6712 + $0x8] sm:$0xf]
    %v6716 = vld [vmem:[%s6712 + $0xc] sm:$0xf]
    %v6717 = vld [vmem:[%s6712 + $0x10] sm:$0xf]
    %v6718 = vld [vmem:[%s6712 + $0x14] sm:$0xf]
    %v6719 = vld [vmem:[%s6712 + $0x18] sm:$0xf]
    %v6720 = vld [vmem:[%s6712 + $0x1c] sm:$0xf]
    %v6721 = vld [vmem:[%s6712 + $0x20] sm:$0xf]
    %v6722 = vld [vmem:[%s6712 + $0x24] sm:$0xf]
    %v6723 = vld [vmem:[%s6712 + $0x28] sm:$0xf]
    %v6724 = vld [vmem:[%s6712 + $0x2c] sm:$0xf]
    %v6725 = vld [vmem:[%s6712 + $0x30] sm:$0xf]
    %v6726 = vld [vmem:[%s6712 + $0x34] sm:$0xf]
    %v6727 = vld [vmem:[%s6712 + $0x38] sm:$0xf]
    %v6728 = vld [vmem:[%s6712 + $0x3c] sm:$0xf]
    %v6729 = vld [vmem:[%s6712 + $0x40] sm:$0xf]
    %v6730 = vld [vmem:[%s6712 + $0x44] sm:$0xf]
    %v6731 = vld [vmem:[%s6712 + $0x48] sm:$0xf]
    %v6732 = vld [vmem:[%s6712 + $0x4c] sm:$0xf]
    %v6733 = vld [vmem:[%s6712 + $0x50] sm:$0xf]
    %v6734 = vld [vmem:[%s6712 + $0x54] sm:$0xf]
    %v6735 = vld [vmem:[%s6712 + $0x58] sm:$0xf]
    %v6736 = vld [vmem:[%s6712 + $0x5c] sm:$0xf]
    %v6737 = vld [vmem:[%s6712 + $0x60] sm:$0xf]
    %v6738 = vld [vmem:[%s6712 + $0x64] sm:$0xf]
    %v6739 = vld [vmem:[%s6712 + $0x68] sm:$0xf]
    %v6740 = vld [vmem:[%s6712 + $0x6c] sm:$0xf]
    %v6741 = vld [vmem:[%s6712 + $0x70] sm:$0xf]
    %v6742 = vld [vmem:[%s6712 + $0x74] sm:$0xf]
    %v6743 = vld [vmem:[%s6712 + $0x78] sm:$0xf]
    %v6744 = vld [vmem:[%s6712 + $0x7c] sm:$0xf]
    %v6745 = vld [vmem:[%s6712 + $0x80] sm:$0xf]
    %v6746 = vld [vmem:[%s6712 + $0x84] sm:$0xf]
    %v6747 = vld [vmem:[%s6712 + $0x88] sm:$0xf]
    %v6748 = vld [vmem:[%s6712 + $0x8c] sm:$0xf]
    %v6749 = vld [vmem:[%s6712 + $0x90] sm:$0xf]
    %v6750 = vld [vmem:[%s6712 + $0x94] sm:$0xf]
    %v6751 = vld [vmem:[%s6712 + $0x98] sm:$0xf]
    %v6752 = vld [vmem:[%s6712 + $0x9c] sm:$0xf]
    %v6753 = vld [vmem:[%s6712 + $0xa0] sm:$0xf]
    %v6754 = vld [vmem:[%s6712 + $0xa4] sm:$0xf]
    %v6755 = vld [vmem:[%s6712 + $0xa8] sm:$0xf]
    %v6756 = vld [vmem:[%s6712 + $0xac] sm:$0xf]
    %v6757 = vld [vmem:[%s6712 + $0xb0] sm:$0xf]
    %v6758 = vld [vmem:[%s6712 + $0xb4] sm:$0xf]
    %v6759 = vld [vmem:[%s6712 + $0xb8] sm:$0xf]
    %v6760 = vld [vmem:[%s6712 + $0xbc] sm:$0xf]
    %v6761 = vld [vmem:[%s6712 + $0xc0] sm:$0xf]
    %v6762 = vld [vmem:[%s6712 + $0xc4] sm:$0xf]
    %v6763 = vld [vmem:[%s6712 + $0xc8] sm:$0xf]
    %v6764 = vld [vmem:[%s6712 + $0xcc] sm:$0xf]
    %v6765 = vld [vmem:[%s6712 + $0xd0] sm:$0xf]
    %v6766 = vld [vmem:[%s6712 + $0xd4] sm:$0xf]
    %v6767 = vld [vmem:[%s6712 + $0xd8] sm:$0xf]
    %v6768 = vld [vmem:[%s6712 + $0xdc] sm:$0xf]
    %v6769 = vld [vmem:[%s6712 + $0xe0] sm:$0xf]
    %v6770 = vld [vmem:[%s6712 + $0xe4] sm:$0xf]
    %v6771 = vld [vmem:[%s6712 + $0xe8] sm:$0xf]
    %v6772 = vld [vmem:[%s6712 + $0xec] sm:$0xf]
    %v6773 = vld [vmem:[%s6712 + $0xf0] sm:$0xf]
    %v6774 = vld [vmem:[%s6712 + $0xf4] sm:$0xf]
    %v6775 = vld [vmem:[%s6712 + $0xf8] sm:$0xf]
    %v6776 = vld [vmem:[%s6712 + $0xfc] sm:$0xf]
    %v6777 = vld [vmem:[%s6712 + $0x100] sm:$0xf]
    %v6778 = vld [vmem:[%s6712 + $0x104] sm:$0xf]
    %v6779 = vld [vmem:[%s6712 + $0x108] sm:$0xf]
    %v6780 = vld [vmem:[%s6712 + $0x10c] sm:$0xf]
    %v6781 = vld [vmem:[%s6712 + $0x110] sm:$0xf]
    %v6782 = vld [vmem:[%s6712 + $0x114] sm:$0xf]
    %v6783 = vld [vmem:[%s6712 + $0x118] sm:$0xf]
    %v6784 = vld [vmem:[%s6712 + $0x11c] sm:$0xf]
    %v6785 = vld [vmem:[%s6712 + $0x120] sm:$0xf]
    %v6786 = vld [vmem:[%s6712 + $0x124] sm:$0xf]
    %v6787 = vld [vmem:[%s6712 + $0x128] sm:$0xf]
    %v6788 = vld [vmem:[%s6712 + $0x12c] sm:$0xf]
    %v6789 = vld [vmem:[%s6712 + $0x130] sm:$0xf]
    %v6790 = vld [vmem:[%s6712 + $0x134] sm:$0xf]
    %v6791 = vld [vmem:[%s6712 + $0x138] sm:$0xf]
    %v6792 = vld [vmem:[%s6712 + $0x13c] sm:$0xf]
    %v6793 = vld [vmem:[%s6712 + $0x140] sm:$0xf]
    %v6794 = vld [vmem:[%s6712 + $0x144] sm:$0xf]
    %v6795 = vld [vmem:[%s6712 + $0x148] sm:$0xf]
    %v6796 = vld [vmem:[%s6712 + $0x14c] sm:$0xf]
    %v6797 = vld [vmem:[%s6712 + $0x150] sm:$0xf]
    %v6798 = vld [vmem:[%s6712 + $0x154] sm:$0xf]
    %v6799 = vld [vmem:[%s6712 + $0x158] sm:$0xf]
    %v6800 = vld [vmem:[%s6712 + $0x15c] sm:$0xf]
    %v6801 = vld [vmem:[%s6712 + $0x160] sm:$0xf]
    %v6802 = vld [vmem:[%s6712 + $0x164] sm:$0xf]
    %v6803 = vld [vmem:[%s6712 + $0x168] sm:$0xf]
    %v6804 = vld [vmem:[%s6712 + $0x16c] sm:$0xf]
    %v6805 = vld [vmem:[%s6712 + $0x170] sm:$0xf]
    %v6806 = vld [vmem:[%s6712 + $0x174] sm:$0xf]
    %v6807 = vld [vmem:[%s6712 + $0x178] sm:$0xf]
    %v6808 = vld [vmem:[%s6712 + $0x17c] sm:$0xf]
    %v6809 = vld [vmem:[%s6712 + $0x180] sm:$0xf]
    %v6810 = vld [vmem:[%s6712 + $0x184] sm:$0xf]
    %v6811 = vld [vmem:[%s6712 + $0x188] sm:$0xf]
    %v6812 = vld [vmem:[%s6712 + $0x18c] sm:$0xf]
    %v6813 = vld [vmem:[%s6712 + $0x190] sm:$0xf]
    %v6814 = vld [vmem:[%s6712 + $0x194] sm:$0xf]
    %v6815 = vld [vmem:[%s6712 + $0x198] sm:$0xf]
    %v6816 = vld [vmem:[%s6712 + $0x19c] sm:$0xf]
    %v6817 = vld [vmem:[%s6712 + $0x1a0] sm:$0xf]
    %v6818 = vld [vmem:[%s6712 + $0x1a4] sm:$0xf]
    %v6819 = vld [vmem:[%s6712 + $0x1a8] sm:$0xf]
    %v6820 = vld [vmem:[%s6712 + $0x1ac] sm:$0xf]
    %v6821 = vld [vmem:[%s6712 + $0x1b0] sm:$0xf]
    %v6822 = vld [vmem:[%s6712 + $0x1b4] sm:$0xf]
    %v6823 = vld [vmem:[%s6712 + $0x1b8] sm:$0xf]
    %v6824 = vld [vmem:[%s6712 + $0x1bc] sm:$0xf]
    %v6825 = vld [vmem:[%s6712 + $0x1c0] sm:$0xf]
    %v6826 = vld [vmem:[%s6712 + $0x1c4] sm:$0xf]
    %v6827 = vld [vmem:[%s6712 + $0x1c8] sm:$0xf]
    %v6828 = vld [vmem:[%s6712 + $0x1cc] sm:$0xf]
    %v6829 = vld [vmem:[%s6712 + $0x1d0] sm:$0xf]
    %v6830 = vld [vmem:[%s6712 + $0x1d4] sm:$0xf]
    %v6831 = vld [vmem:[%s6712 + $0x1d8] sm:$0xf]
    %v6832 = vld [vmem:[%s6712 + $0x1dc] sm:$0xf]
    %v6833 = vld [vmem:[%s6712 + $0x1e0] sm:$0xf]
    %v6834 = vld [vmem:[%s6712 + $0x1e4] sm:$0xf]
    %v6835 = vld [vmem:[%s6712 + $0x1e8] sm:$0xf]
    %v6836 = vld [vmem:[%s6712 + $0x1ec] sm:$0xf]
    %v6837 = vld [vmem:[%s6712 + $0x1f0] sm:$0xf]
    %v6838 = vld [vmem:[%s6712 + $0x1f4] sm:$0xf]
    %v6839 = vld [vmem:[%s6712 + $0x1f8] sm:$0xf]
    %v6840 = vld [vmem:[%s6712 + $0x1fc] sm:$0xf]
    %v6841 = vld [vmem:[%s6712 + $0x200] sm:$0xf]
    %v6842 = vld [vmem:[%s6712 + $0x204] sm:$0xf]
    %v6843 = vld [vmem:[%s6712 + $0x208] sm:$0xf]
    %v6844 = vld [vmem:[%s6712 + $0x20c] sm:$0xf]
    %v6845 = vld [vmem:[%s6712 + $0x210] sm:$0xf]
    %v6846 = vld [vmem:[%s6712 + $0x214] sm:$0xf]
    %v6847 = vld [vmem:[%s6712 + $0x218] sm:$0xf]
    %v6848 = vld [vmem:[%s6712 + $0x21c] sm:$0xf]
    %v6849 = vld [vmem:[%s6712 + $0x220] sm:$0xf]
    %v6850 = vld [vmem:[%s6712 + $0x224] sm:$0xf]
    %v6851 = vld [vmem:[%s6712 + $0x228] sm:$0xf]
    %v6852 = vld [vmem:[%s6712 + $0x22c] sm:$0xf]
    %v6853 = vld [vmem:[%s6712 + $0x230] sm:$0xf]
    %v6854 = vld [vmem:[%s6712 + $0x234] sm:$0xf]
    %v6855 = vld [vmem:[%s6712 + $0x238] sm:$0xf]
    %v6856 = vld [vmem:[%s6712 + $0x23c] sm:$0xf]
    %v6857 = vld [vmem:[%s6712 + $0x240] sm:$0xf]
    %v6858 = vld [vmem:[%s6712 + $0x244] sm:$0xf]
    %v6859 = vld [vmem:[%s6712 + $0x248] sm:$0xf]
    %v6860 = vld [vmem:[%s6712 + $0x24c] sm:$0xf]
    %v6861 = vld [vmem:[%s6712 + $0x250] sm:$0xf]
    %v6862 = vld [vmem:[%s6712 + $0x254] sm:$0xf]
    %v6863 = vld [vmem:[%s6712 + $0x258] sm:$0xf]
    %v6864 = vld [vmem:[%s6712 + $0x25c] sm:$0xf]
    %v6865 = vld [vmem:[%s6712 + $0x260] sm:$0xf]
    %v6866 = vld [vmem:[%s6712 + $0x264] sm:$0xf]
    %v6867 = vld [vmem:[%s6712 + $0x268] sm:$0xf]
    %v6868 = vld [vmem:[%s6712 + $0x26c] sm:$0xf]
    %v6869 = vld [vmem:[%s6712 + $0x270] sm:$0xf]
    %v6870 = vld [vmem:[%s6712 + $0x274] sm:$0xf]
    %v6871 = vld [vmem:[%s6712 + $0x278] sm:$0xf]
    %v6872 = vld [vmem:[%s6712 + $0x27c] sm:$0xf]
    %v6873 = vld [vmem:[%s6712 + $0x280] sm:$0xf]
    %v6874 = vld [vmem:[%s6712 + $0x284] sm:$0xf]
    %v6875 = vld [vmem:[%s6712 + $0x288] sm:$0xf]
    %v6876 = vld [vmem:[%s6712 + $0x28c] sm:$0xf]
    %v6877 = vld [vmem:[%s6712 + $0x290] sm:$0xf]
    %v6878 = vld [vmem:[%s6712 + $0x294] sm:$0xf]
    %v6879 = vld [vmem:[%s6712 + $0x298] sm:$0xf]
    %v6880 = vld [vmem:[%s6712 + $0x29c] sm:$0xf]
    %v6881 = vld [vmem:[%s6712 + $0x2a0] sm:$0xf]
    %v6882 = vld [vmem:[%s6712 + $0x2a4] sm:$0xf]
    %v6883 = vld [vmem:[%s6712 + $0x2a8] sm:$0xf]
    %v6884 = vld [vmem:[%s6712 + $0x2ac] sm:$0xf]
    %v6885 = vld [vmem:[%s6712 + $0x2b0] sm:$0xf]
    %v6886 = vld [vmem:[%s6712 + $0x2b4] sm:$0xf]
    %v6887 = vld [vmem:[%s6712 + $0x2b8] sm:$0xf]
    %v6888 = vld [vmem:[%s6712 + $0x2bc] sm:$0xf]
    %v6889 = vld [vmem:[%s6712 + $0x2c0] sm:$0xf]
    %v6890 = vld [vmem:[%s6712 + $0x2c4] sm:$0xf]
    %v6891 = vld [vmem:[%s6712 + $0x2c8] sm:$0xf]
    %v6892 = vld [vmem:[%s6712 + $0x2cc] sm:$0xf]
    %v6893 = vld [vmem:[%s6712 + $0x2d0] sm:$0xf]
    %v6894 = vld [vmem:[%s6712 + $0x2d4] sm:$0xf]
    %v6895 = vld [vmem:[%s6712 + $0x2d8] sm:$0xf]
    %v6896 = vld [vmem:[%s6712 + $0x2dc] sm:$0xf]
    %v6897 = vld [vmem:[%s6712 + $0x2e0] sm:$0xf]
    %v6898 = vld [vmem:[%s6712 + $0x2e4] sm:$0xf]
    %v6899 = vld [vmem:[%s6712 + $0x2e8] sm:$0xf]
    %v6900 = vld [vmem:[%s6712 + $0x2ec] sm:$0xf]
    %v6901 = vld [vmem:[%s6712 + $0x2f0] sm:$0xf]
    %v6902 = vld [vmem:[%s6712 + $0x2f4] sm:$0xf]
    %v6903 = vld [vmem:[%s6712 + $0x2f8] sm:$0xf]
    %v6904 = vld [vmem:[%s6712 + $0x2fc] sm:$0xf]
    %v6905 = vld [vmem:[%s6712 + $0x300] sm:$0xf]
    %v6906 = vld [vmem:[%s6712 + $0x304] sm:$0xf]
    %v6907 = vld [vmem:[%s6712 + $0x308] sm:$0xf]
    %v6908 = vld [vmem:[%s6712 + $0x30c] sm:$0xf]
    %v6909 = vld [vmem:[%s6712 + $0x310] sm:$0xf]
    %v6910 = vld [vmem:[%s6712 + $0x314] sm:$0xf]
    %v6911 = vld [vmem:[%s6712 + $0x318] sm:$0xf]
    %v6912 = vld [vmem:[%s6712 + $0x31c] sm:$0xf]
    %v6913 = vld [vmem:[%s6712 + $0x320] sm:$0xf]
    %v6914 = vld [vmem:[%s6712 + $0x324] sm:$0xf]
    %v6915 = vld [vmem:[%s6712 + $0x328] sm:$0xf]
    %v6916 = vld [vmem:[%s6712 + $0x32c] sm:$0xf]
    %v6917 = vld [vmem:[%s6712 + $0x330] sm:$0xf]
    %v6918 = vld [vmem:[%s6712 + $0x334] sm:$0xf]
    %v6919 = vld [vmem:[%s6712 + $0x338] sm:$0xf]
    %v6920 = vld [vmem:[%s6712 + $0x33c] sm:$0xf]
    %v6921 = vld [vmem:[%s6712 + $0x340] sm:$0xf]
    %v6922 = vld [vmem:[%s6712 + $0x344] sm:$0xf]
    %v6923 = vld [vmem:[%s6712 + $0x348] sm:$0xf]
    %v6924 = vld [vmem:[%s6712 + $0x34c] sm:$0xf]
    %v6925 = vld [vmem:[%s6712 + $0x350] sm:$0xf]
    %v6926 = vld [vmem:[%s6712 + $0x354] sm:$0xf]
    %v6927 = vld [vmem:[%s6712 + $0x358] sm:$0xf]
    %v6928 = vld [vmem:[%s6712 + $0x35c] sm:$0xf]
    %v6929 = vld [vmem:[%s6712 + $0x360] sm:$0xf]
    %v6930 = vld [vmem:[%s6712 + $0x364] sm:$0xf]
    %v6931 = vld [vmem:[%s6712 + $0x368] sm:$0xf]
    %v6932 = vld [vmem:[%s6712 + $0x36c] sm:$0xf]
    %v6933 = vld [vmem:[%s6712 + $0x370] sm:$0xf]
    %v6934 = vld [vmem:[%s6712 + $0x374] sm:$0xf]
    %v6935 = vld [vmem:[%s6712 + $0x378] sm:$0xf]
    %v6936 = vld [vmem:[%s6712 + $0x37c] sm:$0xf]
    %v6937 = vld [vmem:[%s6712 + $0x380] sm:$0xf]
    %v6938 = vld [vmem:[%s6712 + $0x384] sm:$0xf]
    %v6939 = vld [vmem:[%s6712 + $0x388] sm:$0xf]
    %v6940 = vld [vmem:[%s6712 + $0x38c] sm:$0xf]
    %v6941 = vld [vmem:[%s6712 + $0x390] sm:$0xf]
    %v6942 = vld [vmem:[%s6712 + $0x394] sm:$0xf]
    %v6943 = vld [vmem:[%s6712 + $0x398] sm:$0xf]
    %v6944 = vld [vmem:[%s6712 + $0x39c] sm:$0xf]
    %v6945 = vld [vmem:[%s6712 + $0x3a0] sm:$0xf]
    %v6946 = vld [vmem:[%s6712 + $0x3a4] sm:$0xf]
    %v6947 = vld [vmem:[%s6712 + $0x3a8] sm:$0xf]
    %v6948 = vld [vmem:[%s6712 + $0x3ac] sm:$0xf]
    %v6949 = vld [vmem:[%s6712 + $0x3b0] sm:$0xf]
    %v6950 = vld [vmem:[%s6712 + $0x3b4] sm:$0xf]
    %v6951 = vld [vmem:[%s6712 + $0x3b8] sm:$0xf]
    %v6952 = vld [vmem:[%s6712 + $0x3bc] sm:$0xf]
    %v6953 = vld [vmem:[%s6712 + $0x3c0] sm:$0xf]
    %v6954 = vld [vmem:[%s6712 + $0x3c4] sm:$0xf]
    %v6955 = vld [vmem:[%s6712 + $0x3c8] sm:$0xf]
    %v6956 = vld [vmem:[%s6712 + $0x3cc] sm:$0xf]
    %v6957 = vld [vmem:[%s6712 + $0x3d0] sm:$0xf]
    %v6958 = vld [vmem:[%s6712 + $0x3d4] sm:$0xf]
    %v6959 = vld [vmem:[%s6712 + $0x3d8] sm:$0xf]
    %v6960 = vld [vmem:[%s6712 + $0x3dc] sm:$0xf]
    %v6961 = vld [vmem:[%s6712 + $0x3e0] sm:$0xf]
    %v6962 = vld [vmem:[%s6712 + $0x3e4] sm:$0xf]
    %v6963 = vld [vmem:[%s6712 + $0x3e8] sm:$0xf]
    %v6964 = vld [vmem:[%s6712 + $0x3ec] sm:$0xf]
    %v6965 = vld [vmem:[%s6712 + $0x3f0] sm:$0xf]
    %v6966 = vld [vmem:[%s6712 + $0x3f4] sm:$0xf]
    %v6967 = vld [vmem:[%s6712 + $0x3f8] sm:$0xf]
    %v6968 = vld [vmem:[%s6712 + $0x3fc] sm:$0xf]
    %v6969 = vld [vmem:[%s14 + $0x2] sm:$0x1]
    %v6970 = vlaneseq
    %v6971 = vshrl.u32 %v6970, 7
    %v6972 = vsub.s32 0, %v6971
    %v6973 = vrot.slane %v6969, %v6972
    %v7230 = vunpack.c.l.b16 %v6713
    %v7231 = vunpack.c.l.b16 %v6714
    %v7232 = vunpack.c.l.b16 %v6715
    %v7233 = vunpack.c.l.b16 %v6716
    %v7234 = vunpack.c.l.b16 %v6717
    %v7235 = vunpack.c.l.b16 %v6718
    %v7236 = vunpack.c.l.b16 %v6719
    %v7237 = vunpack.c.l.b16 %v6720
    %v7238 = vunpack.c.l.b16 %v6721
    %v7239 = vunpack.c.l.b16 %v6722
    %v7240 = vunpack.c.l.b16 %v6723
    %v7241 = vunpack.c.l.b16 %v6724
    %v7242 = vunpack.c.l.b16 %v6725
    %v7243 = vunpack.c.l.b16 %v6726
    %v7244 = vunpack.c.l.b16 %v6727
    %v7245 = vunpack.c.l.b16 %v6728
    %v7246 = vunpack.c.l.b16 %v6729
    %v7247 = vunpack.c.l.b16 %v6730
    %v7248 = vunpack.c.l.b16 %v6731
    %v7249 = vunpack.c.l.b16 %v6732
    %v7250 = vunpack.c.l.b16 %v6733
    %v7251 = vunpack.c.l.b16 %v6734
    %v7252 = vunpack.c.l.b16 %v6735
    %v7253 = vunpack.c.l.b16 %v6736
    %v7254 = vunpack.c.l.b16 %v6737
    %v7255 = vunpack.c.l.b16 %v6738
    %v7256 = vunpack.c.l.b16 %v6739
    %v7257 = vunpack.c.l.b16 %v6740
    %v7258 = vunpack.c.l.b16 %v6741
    %v7259 = vunpack.c.l.b16 %v6742
    %v7260 = vunpack.c.l.b16 %v6743
    %v7261 = vunpack.c.l.b16 %v6744
    %v7262 = vunpack.c.l.b16 %v6745
    %v7263 = vunpack.c.l.b16 %v6746
    %v7264 = vunpack.c.l.b16 %v6747
    %v7265 = vunpack.c.l.b16 %v6748
    %v7266 = vunpack.c.l.b16 %v6749
    %v7267 = vunpack.c.l.b16 %v6750
    %v7268 = vunpack.c.l.b16 %v6751
    %v7269 = vunpack.c.l.b16 %v6752
    %v7270 = vunpack.c.l.b16 %v6753
    %v7271 = vunpack.c.l.b16 %v6754
    %v7272 = vunpack.c.l.b16 %v6755
    %v7273 = vunpack.c.l.b16 %v6756
    %v7274 = vunpack.c.l.b16 %v6757
    %v7275 = vunpack.c.l.b16 %v6758
    %v7276 = vunpack.c.l.b16 %v6759
    %v7277 = vunpack.c.l.b16 %v6760
    %v7278 = vunpack.c.l.b16 %v6761
    %v7279 = vunpack.c.l.b16 %v6762
    %v7280 = vunpack.c.l.b16 %v6763
    %v7281 = vunpack.c.l.b16 %v6764
    %v7282 = vunpack.c.l.b16 %v6765
    %v7283 = vunpack.c.l.b16 %v6766
    %v7284 = vunpack.c.l.b16 %v6767
    %v7285 = vunpack.c.l.b16 %v6768
    %v7286 = vunpack.c.l.b16 %v6769
    %v7287 = vunpack.c.l.b16 %v6770
    %v7288 = vunpack.c.l.b16 %v6771
    %v7289 = vunpack.c.l.b16 %v6772
    %v7290 = vunpack.c.l.b16 %v6773
    %v7291 = vunpack.c.l.b16 %v6774
    %v7292 = vunpack.c.l.b16 %v6775
    %v7293 = vunpack.c.l.b16 %v6776
    %v7294 = vunpack.c.l.b16 %v6777
    %v7295 = vunpack.c.l.b16 %v6778
    %v7296 = vunpack.c.l.b16 %v6779
    %v7297 = vunpack.c.l.b16 %v6780
    %v7298 = vunpack.c.l.b16 %v6781
    %v7299 = vunpack.c.l.b16 %v6782
    %v7300 = vunpack.c.l.b16 %v6783
    %v7301 = vunpack.c.l.b16 %v6784
    %v7302 = vunpack.c.l.b16 %v6785
    %v7303 = vunpack.c.l.b16 %v6786
    %v7304 = vunpack.c.l.b16 %v6787
    %v7305 = vunpack.c.l.b16 %v6788
    %v7306 = vunpack.c.l.b16 %v6789
    %v7307 = vunpack.c.l.b16 %v6790
    %v7308 = vunpack.c.l.b16 %v6791
    %v7309 = vunpack.c.l.b16 %v6792
    %v7310 = vunpack.c.l.b16 %v6793
    %v7311 = vunpack.c.l.b16 %v6794
    %v7312 = vunpack.c.l.b16 %v6795
    %v7313 = vunpack.c.l.b16 %v6796
    %v7314 = vunpack.c.l.b16 %v6797
    %v7315 = vunpack.c.l.b16 %v6798
    %v7316 = vunpack.c.l.b16 %v6799
    %v7317 = vunpack.c.l.b16 %v6800
    %v7318 = vunpack.c.l.b16 %v6801
    %v7319 = vunpack.c.l.b16 %v6802
    %v7320 = vunpack.c.l.b16 %v6803
    %v7321 = vunpack.c.l.b16 %v6804
    %v7322 = vunpack.c.l.b16 %v6805
    %v7323 = vunpack.c.l.b16 %v6806
    %v7324 = vunpack.c.l.b16 %v6807
    %v7325 = vunpack.c.l.b16 %v6808
    %v7326 = vunpack.c.l.b16 %v6809
    %v7327 = vunpack.c.l.b16 %v6810
    %v7328 = vunpack.c.l.b16 %v6811
    %v7329 = vunpack.c.l.b16 %v6812
    %v7330 = vunpack.c.l.b16 %v6813
    %v7331 = vunpack.c.l.b16 %v6814
    %v7332 = vunpack.c.l.b16 %v6815
    %v7333 = vunpack.c.l.b16 %v6816
    %v7334 = vunpack.c.l.b16 %v6817
    %v7335 = vunpack.c.l.b16 %v6818
    %v7336 = vunpack.c.l.b16 %v6819
    %v7337 = vunpack.c.l.b16 %v6820
    %v7338 = vunpack.c.l.b16 %v6821
    %v7339 = vunpack.c.l.b16 %v6822
    %v7340 = vunpack.c.l.b16 %v6823
    %v7341 = vunpack.c.l.b16 %v6824
    %v7342 = vunpack.c.l.b16 %v6825
    %v7343 = vunpack.c.l.b16 %v6826
    %v7344 = vunpack.c.l.b16 %v6827
    %v7345 = vunpack.c.l.b16 %v6828
    %v7346 = vunpack.c.l.b16 %v6829
    %v7347 = vunpack.c.l.b16 %v6830
    %v7348 = vunpack.c.l.b16 %v6831
    %v7349 = vunpack.c.l.b16 %v6832
    %v7350 = vunpack.c.l.b16 %v6833
    %v7351 = vunpack.c.l.b16 %v6834
    %v7352 = vunpack.c.l.b16 %v6835
    %v7353 = vunpack.c.l.b16 %v6836
    %v7354 = vunpack.c.l.b16 %v6837
    %v7355 = vunpack.c.l.b16 %v6838
    %v7356 = vunpack.c.l.b16 %v6839
    %v7357 = vunpack.c.l.b16 %v6840
    %v7358 = vunpack.c.l.b16 %v6841
    %v7359 = vunpack.c.l.b16 %v6842
    %v7360 = vunpack.c.l.b16 %v6843
    %v7361 = vunpack.c.l.b16 %v6844
    %v7362 = vunpack.c.l.b16 %v6845
    %v7363 = vunpack.c.l.b16 %v6846
    %v7364 = vunpack.c.l.b16 %v6847
    %v7365 = vunpack.c.l.b16 %v6848
    %v7366 = vunpack.c.l.b16 %v6849
    %v7367 = vunpack.c.l.b16 %v6850
    %v7368 = vunpack.c.l.b16 %v6851
    %v7369 = vunpack.c.l.b16 %v6852
    %v7370 = vunpack.c.l.b16 %v6853
    %v7371 = vunpack.c.l.b16 %v6854
    %v7372 = vunpack.c.l.b16 %v6855
    %v7373 = vunpack.c.l.b16 %v6856
    %v7374 = vunpack.c.l.b16 %v6857
    %v7375 = vunpack.c.l.b16 %v6858
    %v7376 = vunpack.c.l.b16 %v6859
    %v7377 = vunpack.c.l.b16 %v6860
    %v7378 = vunpack.c.l.b16 %v6861
    %v7379 = vunpack.c.l.b16 %v6862
    %v7380 = vunpack.c.l.b16 %v6863
    %v7381 = vunpack.c.l.b16 %v6864
    %v7382 = vunpack.c.l.b16 %v6865
    %v7383 = vunpack.c.l.b16 %v6866
    %v7384 = vunpack.c.l.b16 %v6867
    %v7385 = vunpack.c.l.b16 %v6868
    %v7386 = vunpack.c.l.b16 %v6869
    %v7387 = vunpack.c.l.b16 %v6870
    %v7388 = vunpack.c.l.b16 %v6871
    %v7389 = vunpack.c.l.b16 %v6872
    %v7390 = vunpack.c.l.b16 %v6873
    %v7391 = vunpack.c.l.b16 %v6874
    %v7392 = vunpack.c.l.b16 %v6875
    %v7393 = vunpack.c.l.b16 %v6876
    %v7394 = vunpack.c.l.b16 %v6877
    %v7395 = vunpack.c.l.b16 %v6878
    %v7396 = vunpack.c.l.b16 %v6879
    %v7397 = vunpack.c.l.b16 %v6880
    %v7398 = vunpack.c.l.b16 %v6881
    %v7399 = vunpack.c.l.b16 %v6882
    %v7400 = vunpack.c.l.b16 %v6883
    %v7401 = vunpack.c.l.b16 %v6884
    %v7402 = vunpack.c.l.b16 %v6885
    %v7403 = vunpack.c.l.b16 %v6886
    %v7404 = vunpack.c.l.b16 %v6887
    %v7405 = vunpack.c.l.b16 %v6888
    %v7406 = vunpack.c.l.b16 %v6889
    %v7407 = vunpack.c.l.b16 %v6890
    %v7408 = vunpack.c.l.b16 %v6891
    %v7409 = vunpack.c.l.b16 %v6892
    %v7410 = vunpack.c.l.b16 %v6893
    %v7411 = vunpack.c.l.b16 %v6894
    %v7412 = vunpack.c.l.b16 %v6895
    %v7413 = vunpack.c.l.b16 %v6896
    %v7414 = vunpack.c.l.b16 %v6897
    %v7415 = vunpack.c.l.b16 %v6898
    %v7416 = vunpack.c.l.b16 %v6899
    %v7417 = vunpack.c.l.b16 %v6900
    %v7418 = vunpack.c.l.b16 %v6901
    %v7419 = vunpack.c.l.b16 %v6902
    %v7420 = vunpack.c.l.b16 %v6903
    %v7421 = vunpack.c.l.b16 %v6904
    %v7422 = vunpack.c.l.b16 %v6905
    %v7423 = vunpack.c.l.b16 %v6906
    %v7424 = vunpack.c.l.b16 %v6907
    %v7425 = vunpack.c.l.b16 %v6908
    %v7426 = vunpack.c.l.b16 %v6909
    %v7427 = vunpack.c.l.b16 %v6910
    %v7428 = vunpack.c.l.b16 %v6911
    %v7429 = vunpack.c.l.b16 %v6912
    %v7430 = vunpack.c.l.b16 %v6913
    %v7431 = vunpack.c.l.b16 %v6914
    %v7432 = vunpack.c.l.b16 %v6915
    %v7433 = vunpack.c.l.b16 %v6916
    %v7434 = vunpack.c.l.b16 %v6917
    %v7435 = vunpack.c.l.b16 %v6918
    %v7436 = vunpack.c.l.b16 %v6919
    %v7437 = vunpack.c.l.b16 %v6920
    %v7438 = vunpack.c.l.b16 %v6921
    %v7439 = vunpack.c.l.b16 %v6922
    %v7440 = vunpack.c.l.b16 %v6923
    %v7441 = vunpack.c.l.b16 %v6924
    %v7442 = vunpack.c.l.b16 %v6925
    %v7443 = vunpack.c.l.b16 %v6926
    %v7444 = vunpack.c.l.b16 %v6927
    %v7445 = vunpack.c.l.b16 %v6928
    %v7446 = vunpack.c.l.b16 %v6929
    %v7447 = vunpack.c.l.b16 %v6930
    %v7448 = vunpack.c.l.b16 %v6931
    %v7449 = vunpack.c.l.b16 %v6932
    %v7450 = vunpack.c.l.b16 %v6933
    %v7451 = vunpack.c.l.b16 %v6934
    %v7452 = vunpack.c.l.b16 %v6935
    %v7453 = vunpack.c.l.b16 %v6936
    %v7454 = vunpack.c.l.b16 %v6937
    %v7455 = vunpack.c.l.b16 %v6938
    %v7456 = vunpack.c.l.b16 %v6939
    %v7457 = vunpack.c.l.b16 %v6940
    %v7458 = vunpack.c.l.b16 %v6941
    %v7459 = vunpack.c.l.b16 %v6942
    %v7460 = vunpack.c.l.b16 %v6943
    %v7461 = vunpack.c.l.b16 %v6944
    %v7462 = vunpack.c.l.b16 %v6945
    %v7463 = vunpack.c.l.b16 %v6946
    %v7464 = vunpack.c.l.b16 %v6947
    %v7465 = vunpack.c.l.b16 %v6948
    %v7466 = vunpack.c.l.b16 %v6949
    %v7467 = vunpack.c.l.b16 %v6950
    %v7468 = vunpack.c.l.b16 %v6951
    %v7469 = vunpack.c.l.b16 %v6952
    %v7470 = vunpack.c.l.b16 %v6953
    %v7471 = vunpack.c.l.b16 %v6954
    %v7472 = vunpack.c.l.b16 %v6955
    %v7473 = vunpack.c.l.b16 %v6956
    %v7474 = vunpack.c.l.b16 %v6957
    %v7475 = vunpack.c.l.b16 %v6958
    %v7476 = vunpack.c.l.b16 %v6959
    %v7477 = vunpack.c.l.b16 %v6960
    %v7478 = vunpack.c.l.b16 %v6961
    %v7479 = vunpack.c.l.b16 %v6962
    %v7480 = vunpack.c.l.b16 %v6963
    %v7481 = vunpack.c.l.b16 %v6964
    %v7482 = vunpack.c.l.b16 %v6965
    %v7483 = vunpack.c.l.b16 %v6966
    %v7484 = vunpack.c.l.b16 %v6967
    %v7485 = vunpack.c.l.b16 %v6968
    %v7486 = vpack.c.b16 %v7231, %v7230
    %v7487 = vpack.c.b16 %v7233, %v7232
    %v7488 = vpack.c.b16 %v7235, %v7234
    %v7489 = vpack.c.b16 %v7237, %v7236
    %v7490 = vpack.c.b16 %v7239, %v7238
    %v7491 = vpack.c.b16 %v7241, %v7240
    %v7492 = vpack.c.b16 %v7243, %v7242
    %v7493 = vpack.c.b16 %v7245, %v7244
    %v7494 = vpack.c.b16 %v7247, %v7246
    %v7495 = vpack.c.b16 %v7249, %v7248
    %v7496 = vpack.c.b16 %v7251, %v7250
    %v7497 = vpack.c.b16 %v7253, %v7252
    %v7498 = vpack.c.b16 %v7255, %v7254
    %v7499 = vpack.c.b16 %v7257, %v7256
    %v7500 = vpack.c.b16 %v7259, %v7258
    %v7501 = vpack.c.b16 %v7261, %v7260
    %v7502 = vpack.c.b16 %v7263, %v7262
    %v7503 = vpack.c.b16 %v7265, %v7264
    %v7504 = vpack.c.b16 %v7267, %v7266
    %v7505 = vpack.c.b16 %v7269, %v7268
    %v7506 = vpack.c.b16 %v7271, %v7270
    %v7507 = vpack.c.b16 %v7273, %v7272
    %v7508 = vpack.c.b16 %v7275, %v7274
    %v7509 = vpack.c.b16 %v7277, %v7276
    %v7510 = vpack.c.b16 %v7279, %v7278
    %v7511 = vpack.c.b16 %v7281, %v7280
    %v7512 = vpack.c.b16 %v7283, %v7282
    %v7513 = vpack.c.b16 %v7285, %v7284
    %v7514 = vpack.c.b16 %v7287, %v7286
    %v7515 = vpack.c.b16 %v7289, %v7288
    %v7516 = vpack.c.b16 %v7291, %v7290
    %v7517 = vpack.c.b16 %v7293, %v7292
    %v7518 = vpack.c.b16 %v7295, %v7294
    %v7519 = vpack.c.b16 %v7297, %v7296
    %v7520 = vpack.c.b16 %v7299, %v7298
    %v7521 = vpack.c.b16 %v7301, %v7300
    %v7522 = vpack.c.b16 %v7303, %v7302
    %v7523 = vpack.c.b16 %v7305, %v7304
    %v7524 = vpack.c.b16 %v7307, %v7306
    %v7525 = vpack.c.b16 %v7309, %v7308
    %v7526 = vpack.c.b16 %v7311, %v7310
    %v7527 = vpack.c.b16 %v7313, %v7312
    %v7528 = vpack.c.b16 %v7315, %v7314
    %v7529 = vpack.c.b16 %v7317, %v7316
    %v7530 = vpack.c.b16 %v7319, %v7318
    %v7531 = vpack.c.b16 %v7321, %v7320
    %v7532 = vpack.c.b16 %v7323, %v7322
    %v7533 = vpack.c.b16 %v7325, %v7324
    %v7534 = vpack.c.b16 %v7327, %v7326
    %v7535 = vpack.c.b16 %v7329, %v7328
    %v7536 = vpack.c.b16 %v7331, %v7330
    %v7537 = vpack.c.b16 %v7333, %v7332
    %v7538 = vpack.c.b16 %v7335, %v7334
    %v7539 = vpack.c.b16 %v7337, %v7336
    %v7540 = vpack.c.b16 %v7339, %v7338
    %v7541 = vpack.c.b16 %v7341, %v7340
    %v7542 = vpack.c.b16 %v7343, %v7342
    %v7543 = vpack.c.b16 %v7345, %v7344
    %v7544 = vpack.c.b16 %v7347, %v7346
    %v7545 = vpack.c.b16 %v7349, %v7348
    %v7546 = vpack.c.b16 %v7351, %v7350
    %v7547 = vpack.c.b16 %v7353, %v7352
    %v7548 = vpack.c.b16 %v7355, %v7354
    %v7549 = vpack.c.b16 %v7357, %v7356
    %v7550 = vpack.c.b16 %v7359, %v7358
    %v7551 = vpack.c.b16 %v7361, %v7360
    %v7552 = vpack.c.b16 %v7363, %v7362
    %v7553 = vpack.c.b16 %v7365, %v7364
    %v7554 = vpack.c.b16 %v7367, %v7366
    %v7555 = vpack.c.b16 %v7369, %v7368
    %v7556 = vpack.c.b16 %v7371, %v7370
    %v7557 = vpack.c.b16 %v7373, %v7372
    %v7558 = vpack.c.b16 %v7375, %v7374
    %v7559 = vpack.c.b16 %v7377, %v7376
    %v7560 = vpack.c.b16 %v7379, %v7378
    %v7561 = vpack.c.b16 %v7381, %v7380
    %v7562 = vpack.c.b16 %v7383, %v7382
    %v7563 = vpack.c.b16 %v7385, %v7384
    %v7564 = vpack.c.b16 %v7387, %v7386
    %v7565 = vpack.c.b16 %v7389, %v7388
    %v7566 = vpack.c.b16 %v7391, %v7390
    %v7567 = vpack.c.b16 %v7393, %v7392
    %v7568 = vpack.c.b16 %v7395, %v7394
    %v7569 = vpack.c.b16 %v7397, %v7396
    %v7570 = vpack.c.b16 %v7399, %v7398
    %v7571 = vpack.c.b16 %v7401, %v7400
    %v7572 = vpack.c.b16 %v7403, %v7402
    %v7573 = vpack.c.b16 %v7405, %v7404
    %v7574 = vpack.c.b16 %v7407, %v7406
    %v7575 = vpack.c.b16 %v7409, %v7408
    %v7576 = vpack.c.b16 %v7411, %v7410
    %v7577 = vpack.c.b16 %v7413, %v7412
    %v7578 = vpack.c.b16 %v7415, %v7414
    %v7579 = vpack.c.b16 %v7417, %v7416
    %v7580 = vpack.c.b16 %v7419, %v7418
    %v7581 = vpack.c.b16 %v7421, %v7420
    %v7582 = vpack.c.b16 %v7423, %v7422
    %v7583 = vpack.c.b16 %v7425, %v7424
    %v7584 = vpack.c.b16 %v7427, %v7426
    %v7585 = vpack.c.b16 %v7429, %v7428
    %v7586 = vpack.c.b16 %v7431, %v7430
    %v7587 = vpack.c.b16 %v7433, %v7432
    %v7588 = vpack.c.b16 %v7435, %v7434
    %v7589 = vpack.c.b16 %v7437, %v7436
    %v7590 = vpack.c.b16 %v7439, %v7438
    %v7591 = vpack.c.b16 %v7441, %v7440
    %v7592 = vpack.c.b16 %v7443, %v7442
    %v7593 = vpack.c.b16 %v7445, %v7444
    %v7594 = vpack.c.b16 %v7447, %v7446
    %v7595 = vpack.c.b16 %v7449, %v7448
    %v7596 = vpack.c.b16 %v7451, %v7450
    %v7597 = vpack.c.b16 %v7453, %v7452
    %v7598 = vpack.c.b16 %v7455, %v7454
    %v7599 = vpack.c.b16 %v7457, %v7456
    %v7600 = vpack.c.b16 %v7459, %v7458
    %v7601 = vpack.c.b16 %v7461, %v7460
    %v7602 = vpack.c.b16 %v7463, %v7462
    %v7603 = vpack.c.b16 %v7465, %v7464
    %v7604 = vpack.c.b16 %v7467, %v7466
    %v7605 = vpack.c.b16 %v7469, %v7468
    %v7606 = vpack.c.b16 %v7471, %v7470
    %v7607 = vpack.c.b16 %v7473, %v7472
    %v7608 = vpack.c.b16 %v7475, %v7474
    %v7609 = vpack.c.b16 %v7477, %v7476
    %v7610 = vpack.c.b16 %v7479, %v7478
    %v7611 = vpack.c.b16 %v7481, %v7480
    %v7612 = vpack.c.b16 %v7483, %v7482
    %v7613 = vpack.c.b16 %v7485, %v7484
    %7742 = vmatprep.subr.bf16.mxu0 0
    %7743 = vmatpush1.bf16.msra.mxu0 %v7486
    %7744 = vmatprep.subr.bf16.mxu0 0
    %7745 = vmatpush1.bf16.msra.mxu0 %v7487
    %7746 = vmatprep.subr.bf16.mxu0 0
    %7747 = vmatpush1.bf16.msra.mxu0 %v7488
    %7748 = vmatprep.subr.bf16.mxu0 0
    %7749 = vmatpush1.bf16.msra.mxu0 %v7489
    %7750 = vmatprep.subr.bf16.mxu0 0
    %7751 = vmatpush1.bf16.msra.mxu0 %v7490
    %7752 = vmatprep.subr.bf16.mxu0 0
    %7753 = vmatpush1.bf16.msra.mxu0 %v7491
    %7754 = vmatprep.subr.bf16.mxu0 0
    %7755 = vmatpush1.bf16.msra.mxu0 %v7492
    %7756 = vmatprep.subr.bf16.mxu0 0
    %7757 = vmatpush1.bf16.msra.mxu0 %v7493
    %7758 = vmatprep.subr.bf16.mxu0 0
    %7759 = vmatpush1.bf16.msra.mxu0 %v7494
    %7760 = vmatprep.subr.bf16.mxu0 0
    %7761 = vmatpush1.bf16.msra.mxu0 %v7495
    %7762 = vmatprep.subr.bf16.mxu0 0
    %7763 = vmatpush1.bf16.msra.mxu0 %v7496
    %7764 = vmatprep.subr.bf16.mxu0 0
    %7765 = vmatpush1.bf16.msra.mxu0 %v7497
    %7766 = vmatprep.subr.bf16.mxu0 0
    %7767 = vmatpush1.bf16.msra.mxu0 %v7498
    %7768 = vmatprep.subr.bf16.mxu0 0
    %7769 = vmatpush1.bf16.msra.mxu0 %v7499
    %7770 = vmatprep.subr.bf16.mxu0 0
    %7771 = vmatpush1.bf16.msra.mxu0 %v7500
    %7772 = vmatprep.subr.bf16.mxu0 0
    %7773 = vmatpush1.bf16.msra.mxu0 %v7501
    %7774 = vmatprep.mubr.bf16.mxu0 %v6697
    %7775 = vmatmul.mubr.bf16.gmra.mrb[0].mxu0 %v6696
    %v7776 = vpop.f32.mrb[0].mxu0
    %v7777 = vadd.f32 %v6973, %v7776
    %v7778 = vpop.f32.mrb[0].mxu0
    %v7779 = vpop.f32.mrb[0].mxu0
    %v7780 = vadd.f32 %v6973, %v7779
    %v7781 = vpop.f32.mrb[0].mxu0
    %7782 = vdwg.mxu0
    %7783 = vmatprep.subr.bf16.mxu0 0
    %7784 = vmatpush1.bf16.msra.mxu0 %v7502
    %7785 = vmatprep.subr.bf16.mxu0 0
    %7786 = vmatpush1.bf16.msra.mxu0 %v7503
    %7787 = vmatprep.subr.bf16.mxu0 0
    %7788 = vmatpush1.bf16.msra.mxu0 %v7504
    %7789 = vmatprep.subr.bf16.mxu0 0
    %7790 = vmatpush1.bf16.msra.mxu0 %v7505
    %7791 = vmatprep.subr.bf16.mxu0 0
    %7792 = vmatpush1.bf16.msra.mxu0 %v7506
    %7793 = vmatprep.subr.bf16.mxu0 0
    %7794 = vmatpush1.bf16.msra.mxu0 %v7507
    %7795 = vmatprep.subr.bf16.mxu0 0
    %7796 = vmatpush1.bf16.msra.mxu0 %v7508
    %7797 = vmatprep.subr.bf16.mxu0 0
    %7798 = vmatpush1.bf16.msra.mxu0 %v7509
    %7799 = vmatprep.subr.bf16.mxu0 0
    %7800 = vmatpush1.bf16.msra.mxu0 %v7510
    %7801 = vmatprep.subr.bf16.mxu0 0
    %7802 = vmatpush1.bf16.msra.mxu0 %v7511
    %7803 = vmatprep.subr.bf16.mxu0 0
    %7804 = vmatpush1.bf16.msra.mxu0 %v7512
    %7805 = vmatprep.subr.bf16.mxu0 0
    %7806 = vmatpush1.bf16.msra.mxu0 %v7513
    %7807 = vmatprep.subr.bf16.mxu0 0
    %7808 = vmatpush1.bf16.msra.mxu0 %v7514
    %7809 = vmatprep.subr.bf16.mxu0 0
    %7810 = vmatpush1.bf16.msra.mxu0 %v7515
    %7811 = vmatprep.subr.bf16.mxu0 0
    %7812 = vmatpush1.bf16.msra.mxu0 %v7516
    %7813 = vmatprep.subr.bf16.mxu0 0
    %7814 = vmatpush1.bf16.msra.mxu0 %v7517
    %7815 = vmatprep.mubr.bf16.mxu0 %v6699
    %7816 = vmatmul.mubr.bf16.gmra.mrb[0].mxu0 %v6698
    %v7817 = vpop.f32.mrb[0].mxu0
    %v7818 = vadd.f32 %v7777, %v7817
    %v7819 = vpop.f32.mrb[0].mxu0
    %v7820 = vpop.f32.mrb[0].mxu0
    %v7821 = vadd.f32 %v7780, %v7820
    %v7822 = vpop.f32.mrb[0].mxu0
    %7823 = vdwg.mxu0
    %7824 = vmatprep.subr.bf16.mxu0 0
    %7825 = vmatpush1.bf16.msra.mxu0 %v7518
    %7826 = vmatprep.subr.bf16.mxu0 0
    %7827 = vmatpush1.bf16.msra.mxu0 %v7519
    %7828 = vmatprep.subr.bf16.mxu0 0
    %7829 = vmatpush1.bf16.msra.mxu0 %v7520
    %7830 = vmatprep.subr.bf16.mxu0 0
    %7831 = vmatpush1.bf16.msra.mxu0 %v7521
    %7832 = vmatprep.subr.bf16.mxu0 0
    %7833 = vmatpush1.bf16.msra.mxu0 %v7522
    %7834 = vmatprep.subr.bf16.mxu0 0
    %7835 = vmatpush1.bf16.msra.mxu0 %v7523
    %7836 = vmatprep.subr.bf16.mxu0 0
    %7837 = vmatpush1.bf16.msra.mxu0 %v7524
    %7838 = vmatprep.subr.bf16.mxu0 0
    %7839 = vmatpush1.bf16.msra.mxu0 %v7525
    %7840 = vmatprep.subr.bf16.mxu0 0
    %7841 = vmatpush1.bf16.msra.mxu0 %v7526
    %7842 = vmatprep.subr.bf16.mxu0 0
    %7843 = vmatpush1.bf16.msra.mxu0 %v7527
    %7844 = vmatprep.subr.bf16.mxu0 0
    %7845 = vmatpush1.bf16.msra.mxu0 %v7528
    %7846 = vmatprep.subr.bf16.mxu0 0
    %7847 = vmatpush1.bf16.msra.mxu0 %v7529
    %7848 = vmatprep.subr.bf16.mxu0 0
    %7849 = vmatpush1.bf16.msra.mxu0 %v7530
    %7850 = vmatprep.subr.bf16.mxu0 0
    %7851 = vmatpush1.bf16.msra.mxu0 %v7531
    %7852 = vmatprep.subr.bf16.mxu0 0
    %7853 = vmatpush1.bf16.msra.mxu0 %v7532
    %7854 = vmatprep.subr.bf16.mxu0 0
    %7855 = vmatpush1.bf16.msra.mxu0 %v7533
    %7856 = vmatprep.mubr.bf16.mxu0 %v6701
    %7857 = vmatmul.mubr.bf16.gmra.mrb[0].mxu0 %v6700
    %v7858 = vpop.f32.mrb[0].mxu0
    %v7859 = vadd.f32 %v7818, %v7858
    %v7860 = vpop.f32.mrb[0].mxu0
    %v7861 = vpop.f32.mrb[0].mxu0
    %v7862 = vadd.f32 %v7821, %v7861
    %v7863 = vpop.f32.mrb[0].mxu0
    %7864 = vdwg.mxu0
    %7865 = vmatprep.subr.bf16.mxu0 0
    %7866 = vmatpush1.bf16.msra.mxu0 %v7534
    %7867 = vmatprep.subr.bf16.mxu0 0
    %7868 = vmatpush1.bf16.msra.mxu0 %v7535
    %7869 = vmatprep.subr.bf16.mxu0 0
    %7870 = vmatpush1.bf16.msra.mxu0 %v7536
    %7871 = vmatprep.subr.bf16.mxu0 0
    %7872 = vmatpush1.bf16.msra.mxu0 %v7537
    %7873 = vmatprep.subr.bf16.mxu0 0
    %7874 = vmatpush1.bf16.msra.mxu0 %v7538
    %7875 = vmatprep.subr.bf16.mxu0 0
    %7876 = vmatpush1.bf16.msra.mxu0 %v7539
    %7877 = vmatprep.subr.bf16.mxu0 0
    %7878 = vmatpush1.bf16.msra.mxu0 %v7540
    %7879 = vmatprep.subr.bf16.mxu0 0
    %7880 = vmatpush1.bf16.msra.mxu0 %v7541
    %7881 = vmatprep.subr.bf16.mxu0 0
    %7882 = vmatpush1.bf16.msra.mxu0 %v7542
    %7883 = vmatprep.subr.bf16.mxu0 0
    %7884 = vmatpush1.bf16.msra.mxu0 %v7543
    %7885 = vmatprep.subr.bf16.mxu0 0
    %7886 = vmatpush1.bf16.msra.mxu0 %v7544
    %7887 = vmatprep.subr.bf16.mxu0 0
    %7888 = vmatpush1.bf16.msra.mxu0 %v7545
    %7889 = vmatprep.subr.bf16.mxu0 0
    %7890 = vmatpush1.bf16.msra.mxu0 %v7546
    %7891 = vmatprep.subr.bf16.mxu0 0
    %7892 = vmatpush1.bf16.msra.mxu0 %v7547
    %7893 = vmatprep.subr.bf16.mxu0 0
    %7894 = vmatpush1.bf16.msra.mxu0 %v7548
    %7895 = vmatprep.subr.bf16.mxu0 0
    %7896 = vmatpush1.bf16.msra.mxu0 %v7549
    %7897 = vmatprep.mubr.bf16.mxu0 %v6703
    %7898 = vmatmul.mubr.bf16.gmra.mrb[0].mxu0 %v6702
    %v7899 = vpop.f32.mrb[0].mxu0
    %v7900 = vadd.f32 %v7859, %v7899
    %v7901 = vpop.f32.mrb[0].mxu0
    %v7902 = vpop.f32.mrb[0].mxu0
    %v7903 = vadd.f32 %v7862, %v7902
    %v7904 = vpop.f32.mrb[0].mxu0
    %7905 = vdwg.mxu0
    %7906 = vmatprep.subr.bf16.mxu0 0
    %7907 = vmatpush1.bf16.msra.mxu0 %v7550
    %7908 = vmatprep.subr.bf16.mxu0 0
    %7909 = vmatpush1.bf16.msra.mxu0 %v7551
    %7910 = vmatprep.subr.bf16.mxu0 0
    %7911 = vmatpush1.bf16.msra.mxu0 %v7552
    %7912 = vmatprep.subr.bf16.mxu0 0
    %7913 = vmatpush1.bf16.msra.mxu0 %v7553
    %7914 = vmatprep.subr.bf16.mxu0 0
    %7915 = vmatpush1.bf16.msra.mxu0 %v7554
    %7916 = vmatprep.subr.bf16.mxu0 0
    %7917 = vmatpush1.bf16.msra.mxu0 %v7555
    %7918 = vmatprep.subr.bf16.mxu0 0
    %7919 = vmatpush1.bf16.msra.mxu0 %v7556
    %7920 = vmatprep.subr.bf16.mxu0 0
    %7921 = vmatpush1.bf16.msra.mxu0 %v7557
    %7922 = vmatprep.subr.bf16.mxu0 0
    %7923 = vmatpush1.bf16.msra.mxu0 %v7558
    %7924 = vmatprep.subr.bf16.mxu0 0
    %7925 = vmatpush1.bf16.msra.mxu0 %v7559
    %7926 = vmatprep.subr.bf16.mxu0 0
    %7927 = vmatpush1.bf16.msra.mxu0 %v7560
    %7928 = vmatprep.subr.bf16.mxu0 0
    %7929 = vmatpush1.bf16.msra.mxu0 %v7561
    %7930 = vmatprep.subr.bf16.mxu0 0
    %7931 = vmatpush1.bf16.msra.mxu0 %v7562
    %7932 = vmatprep.subr.bf16.mxu0 0
    %7933 = vmatpush1.bf16.msra.mxu0 %v7563
    %7934 = vmatprep.subr.bf16.mxu0 0
    %7935 = vmatpush1.bf16.msra.mxu0 %v7564
    %7936 = vmatprep.subr.bf16.mxu0 0
    %7937 = vmatpush1.bf16.msra.mxu0 %v7565
    %7938 = vmatprep.mubr.bf16.mxu0 %v6705
    %7939 = vmatmul.mubr.bf16.gmra.mrb[0].mxu0 %v6704
    %v7940 = vpop.f32.mrb[0].mxu0
    %v7941 = vadd.f32 %v7900, %v7940
    %v7942 = vpop.f32.mrb[0].mxu0
    %v7943 = vpop.f32.mrb[0].mxu0
    %v7944 = vadd.f32 %v7903, %v7943
    %v7945 = vpop.f32.mrb[0].mxu0
    %7946 = vdwg.mxu0
    %7947 = vmatprep.subr.bf16.mxu0 0
    %7948 = vmatpush1.bf16.msra.mxu0 %v7566
    %7949 = vmatprep.subr.bf16.mxu0 0
    %7950 = vmatpush1.bf16.msra.mxu0 %v7567
    %7951 = vmatprep.subr.bf16.mxu0 0
    %7952 = vmatpush1.bf16.msra.mxu0 %v7568
    %7953 = vmatprep.subr.bf16.mxu0 0
    %7954 = vmatpush1.bf16.msra.mxu0 %v7569
    %7955 = vmatprep.subr.bf16.mxu0 0
    %7956 = vmatpush1.bf16.msra.mxu0 %v7570
    %7957 = vmatprep.subr.bf16.mxu0 0
    %7958 = vmatpush1.bf16.msra.mxu0 %v7571
    %7959 = vmatprep.subr.bf16.mxu0 0
    %7960 = vmatpush1.bf16.msra.mxu0 %v7572
    %7961 = vmatprep.subr.bf16.mxu0 0
    %7962 = vmatpush1.bf16.msra.mxu0 %v7573
    %7963 = vmatprep.subr.bf16.mxu0 0
    %7964 = vmatpush1.bf16.msra.mxu0 %v7574
    %7965 = vmatprep.subr.bf16.mxu0 0
    %7966 = vmatpush1.bf16.msra.mxu0 %v7575
    %7967 = vmatprep.subr.bf16.mxu0 0
    %7968 = vmatpush1.bf16.msra.mxu0 %v7576
    %7969 = vmatprep.subr.bf16.mxu0 0
    %7970 = vmatpush1.bf16.msra.mxu0 %v7577
    %7971 = vmatprep.subr.bf16.mxu0 0
    %7972 = vmatpush1.bf16.msra.mxu0 %v7578
    %7973 = vmatprep.subr.bf16.mxu0 0
    %7974 = vmatpush1.bf16.msra.mxu0 %v7579
    %7975 = vmatprep.subr.bf16.mxu0 0
    %7976 = vmatpush1.bf16.msra.mxu0 %v7580
    %7977 = vmatprep.subr.bf16.mxu0 0
    %7978 = vmatpush1.bf16.msra.mxu0 %v7581
    %7979 = vmatprep.mubr.bf16.mxu0 %v6707
    %7980 = vmatmul.mubr.bf16.gmra.mrb[0].mxu0 %v6706
    %v7981 = vpop.f32.mrb[0].mxu0
    %v7982 = vadd.f32 %v7941, %v7981
    %v7983 = vpop.f32.mrb[0].mxu0
    %v7984 = vpop.f32.mrb[0].mxu0
    %v7985 = vadd.f32 %v7944, %v7984
    %v7986 = vpop.f32.mrb[0].mxu0
    %7987 = vdwg.mxu0
    %7988 = vmatprep.subr.bf16.mxu0 0
    %7989 = vmatpush1.bf16.msra.mxu0 %v7582
    %7990 = vmatprep.subr.bf16.mxu0 0
    %7991 = vmatpush1.bf16.msra.mxu0 %v7583
    %7992 = vmatprep.subr.bf16.mxu0 0
    %7993 = vmatpush1.bf16.msra.mxu0 %v7584
    %7994 = vmatprep.subr.bf16.mxu0 0
    %7995 = vmatpush1.bf16.msra.mxu0 %v7585
    %7996 = vmatprep.subr.bf16.mxu0 0
    %7997 = vmatpush1.bf16.msra.mxu0 %v7586
    %7998 = vmatprep.subr.bf16.mxu0 0
    %7999 = vmatpush1.bf16.msra.mxu0 %v7587
    %8000 = vmatprep.subr.bf16.mxu0 0
    %8001 = vmatpush1.bf16.msra.mxu0 %v7588
    %8002 = vmatprep.subr.bf16.mxu0 0
    %8003 = vmatpush1.bf16.msra.mxu0 %v7589
    %8004 = vmatprep.subr.bf16.mxu0 0
    %8005 = vmatpush1.bf16.msra.mxu0 %v7590
    %8006 = vmatprep.subr.bf16.mxu0 0
    %8007 = vmatpush1.bf16.msra.mxu0 %v7591
    %8008 = vmatprep.subr.bf16.mxu0 0
    %8009 = vmatpush1.bf16.msra.mxu0 %v7592
    %8010 = vmatprep.subr.bf16.mxu0 0
    %8011 = vmatpush1.bf16.msra.mxu0 %v7593
    %8012 = vmatprep.subr.bf16.mxu0 0
    %8013 = vmatpush1.bf16.msra.mxu0 %v7594
    %8014 = vmatprep.subr.bf16.mxu0 0
    %8015 = vmatpush1.bf16.msra.mxu0 %v7595
    %8016 = vmatprep.subr.bf16.mxu0 0
    %8017 = vmatpush1.bf16.msra.mxu0 %v7596
    %8018 = vmatprep.subr.bf16.mxu0 0
    %8019 = vmatpush1.bf16.msra.mxu0 %v7597
    %8020 = vmatprep.mubr.bf16.mxu0 %v6709
    %8021 = vmatmul.mubr.bf16.gmra.mrb[0].mxu0 %v6708
    %v8022 = vpop.f32.mrb[0].mxu0
    %v8023 = vadd.f32 %v7982, %v8022
    %v8024 = vpop.f32.mrb[0].mxu0
    %v8025 = vpop.f32.mrb[0].mxu0
    %v8026 = vadd.f32 %v7985, %v8025
    %v8027 = vpop.f32.mrb[0].mxu0
    %8028 = vdwg.mxu0
    %8029 = vmatprep.subr.bf16.mxu0 0
    %8030 = vmatpush1.bf16.msra.mxu0 %v7598
    %8031 = vmatprep.subr.bf16.mxu0 0
    %8032 = vmatpush1.bf16.msra.mxu0 %v7599
    %8033 = vmatprep.subr.bf16.mxu0 0
    %8034 = vmatpush1.bf16.msra.mxu0 %v7600
    %8035 = vmatprep.subr.bf16.mxu0 0
    %8036 = vmatpush1.bf16.msra.mxu0 %v7601
    %8037 = vmatprep.subr.bf16.mxu0 0
    %8038 = vmatpush1.bf16.msra.mxu0 %v7602
    %8039 = vmatprep.subr.bf16.mxu0 0
    %8040 = vmatpush1.bf16.msra.mxu0 %v7603
    %8041 = vmatprep.subr.bf16.mxu0 0
    %8042 = vmatpush1.bf16.msra.mxu0 %v7604
    %8043 = vmatprep.subr.bf16.mxu0 0
    %8044 = vmatpush1.bf16.msra.mxu0 %v7605
    %8045 = vmatprep.subr.bf16.mxu0 0
    %8046 = vmatpush1.bf16.msra.mxu0 %v7606
    %8047 = vmatprep.subr.bf16.mxu0 0
    %8048 = vmatpush1.bf16.msra.mxu0 %v7607
    %8049 = vmatprep.subr.bf16.mxu0 0
    %8050 = vmatpush1.bf16.msra.mxu0 %v7608
    %8051 = vmatprep.subr.bf16.mxu0 0
    %8052 = vmatpush1.bf16.msra.mxu0 %v7609
    %8053 = vmatprep.subr.bf16.mxu0 0
    %8054 = vmatpush1.bf16.msra.mxu0 %v7610
    %8055 = vmatprep.subr.bf16.mxu0 0
    %8056 = vmatpush1.bf16.msra.mxu0 %v7611
    %8057 = vmatprep.subr.bf16.mxu0 0
    %8058 = vmatpush1.bf16.msra.mxu0 %v7612
    %8059 = vmatprep.subr.bf16.mxu0 0
    %8060 = vmatpush1.bf16.msra.mxu0 %v7613
    %8061 = vmatprep.mubr.bf16.mxu0 %v6711
    %8062 = vmatmul.mubr.bf16.gmra.mrb[0].mxu0 %v6710
    %v8063 = vpop.f32.mrb[0].mxu0
    %v8064 = vadd.f32 %v8023, %v8063
    %v8065 = vpop.f32.mrb[0].mxu0
    %v8066 = vpop.f32.mrb[0].mxu0
    %v8067 = vadd.f32 %v8026, %v8066
    %v8068 = vpop.f32.mrb[0].mxu0
    %8069 = vdwg.mxu0
    %v8070 = vadd.f32 %v6131, %v8064
    %v8071 = vadd.f32 %v6132, %v8067
    %v8072 = vld [vmem:[%s15 + $0x2] sm:$0x1]
    %v8073 = vld [vmem:[%s16 + $0x2] sm:$0x1]
    %v8074 = vsel %vm78, %v8070, 0.0
    %8075 = vadd.xlane.f32.xlu0 %v8074
    %v8076 = vpop.xlane.xlu0 %8075
    %v8077 = vsel %vm78, %v8071, 0.0
    %8078 = vadd.xlane.f32.xlu0 %v8077
    %v8079 = vpop.xlane.xlu0 %8078
    %v8080 = vmul.f32 %v8076, %v740
    %v8081 = vmul.f32 %v8079, %v740
    %v8082 = vsub.f32 %v8070, %v8080
    %v8083 = vsub.f32 %v8071, %v8081
    %v8084 = vmul.f32 %v8082, %v8082
    %v8085 = vmul.f32 %v8083, %v8083
    %v8086 = vsel %vm78, %v8084, 0.0
    %8087 = vadd.xlane.f32.xlu0 %v8086
    %v8088 = vpop.xlane.xlu0 %8087
    %v8089 = vsel %vm78, %v8085, 0.0
    %8090 = vadd.xlane.f32.xlu0 %v8089
    %v8091 = vpop.xlane.xlu0 %8090
    %v8092 = vmul.f32 %v8088, %v740
    %v8093 = vmul.f32 %v8091, %v740
    %v8094 = vadd.f32 %v8092, 1e-05
    %v8095 = vadd.f32 %v8093, 1e-05
    %v8096 = vrsqrt.pop %v8094
    %v8097 = vrsqrt.pop %v8095
    %v8098 = vmul.f32 %v8082, %v8096
    %v8099 = vmul.f32 %v8083, %v8097
    %v8100 = vlaneseq
    %v8101 = vshrl.u32 %v8100, 7
    %v8102 = vsub.s32 0, %v8101
    %v8103 = vrot.slane %v8072, %v8102
    %v8104 = vmul.f32 %v8098, %v8103
    %v8105 = vmul.f32 %v8099, %v8103
    %v8106 = vlaneseq
    %v8107 = vshrl.u32 %v8106, 7
    %v8108 = vsub.s32 0, %v8107
    %v8109 = vrot.slane %v8073, %v8108
    %v8110 = vadd.f32 %v8104, %v8109
    %v8111 = vadd.f32 %v8105, %v8109
    %v8112 = vld [vmem:[%s17] sm:$0xff]
    %v8113 = vld [vmem:[%s18] sm:$0x1]
    %v8115 = vlaneseq
    %v8116 = vshrl.u32 %v8115, 7
    %v8117 = vsub.s32 0, %v8116
    %v8118 = vrot.slane %v8113, %v8117
    %v8121 = vsel %vm78, %v8110, 0
    %v8124 = vsel %vm78, %v8111, 0
    %8126 = vmatprep.subr.mxu0 0.0
    %8127 = vmatpush1.msra.mxu0 %v8112
    %8128 = vmatprep.subr.mxu0 0.0
    %8129 = vmatpush1.msra.mxu0 0.0
    %8130 = vmatprep.subr.mxu0 0.0
    %8131 = vmatpush1.msra.mxu0 0.0
    %8132 = vmatprep.subr.mxu0 0.0
    %8133 = vmatpush1.msra.mxu0 0.0
    %8134 = vmatprep.subr.mxu0 0.0
    %8135 = vmatpush1.msra.mxu0 0.0
    %8136 = vmatprep.subr.mxu0 0.0
    %8137 = vmatpush1.msra.mxu0 0.0
    %8138 = vmatprep.subr.mxu0 0.0
    %8139 = vmatpush1.msra.mxu0 0.0
    %8140 = vmatprep.subr.mxu0 0.0
    %8141 = vmatpush1.msra.mxu0 0.0
    %8142 = vmatprep.subr.mxu0 0.0
    %8143 = vmatpush1.msra.mxu0 0.0
    %8144 = vmatprep.subr.mxu0 0.0
    %8145 = vmatpush1.msra.mxu0 0.0
    %8146 = vmatprep.subr.mxu0 0.0
    %8147 = vmatpush1.msra.mxu0 0.0
    %8148 = vmatprep.subr.mxu0 0.0
    %8149 = vmatpush1.msra.mxu0 0.0
    %8150 = vmatprep.subr.mxu0 0.0
    %8151 = vmatpush1.msra.mxu0 0.0
    %8152 = vmatprep.subr.mxu0 0.0
    %8153 = vmatpush1.msra.mxu0 0.0
    %8154 = vmatprep.subr.mxu0 0.0
    %8155 = vmatpush1.msra.mxu0 0.0
    %8156 = vmatprep.subr.mxu0 0.0
    %8157 = vmatpush1.msra.mxu0 0.0
    %8158 = vmatprep.subr.mxu0 0.0
    %8159 = vmatpush1.msra.mxu0 0.0
    %8160 = vmatprep.subr.mxu0 0.0
    %8161 = vmatpush1.msra.mxu0 0.0
    %8162 = vmatprep.subr.mxu0 0.0
    %8163 = vmatpush1.msra.mxu0 0.0
    %8164 = vmatprep.subr.mxu0 0.0
    %8165 = vmatpush1.msra.mxu0 0.0
    %8166 = vmatprep.subr.mxu0 0.0
    %8167 = vmatpush1.msra.mxu0 0.0
    %8168 = vmatprep.subr.mxu0 0.0
    %8169 = vmatpush1.msra.mxu0 0.0
    %8170 = vmatprep.subr.mxu0 0.0
    %8171 = vmatpush1.msra.mxu0 0.0
    %8172 = vmatprep.subr.mxu0 0.0
    %8173 = vmatpush1.msra.mxu0 0.0
    %8174 = vmatprep.subr.mxu0 0.0
    %8175 = vmatpush1.msra.mxu0 0.0
    %8176 = vmatprep.subr.mxu0 0.0
    %8177 = vmatpush1.msra.mxu0 0.0
    %8178 = vmatprep.subr.mxu0 0.0
    %8179 = vmatpush1.msra.mxu0 0.0
    %8180 = vmatprep.subr.mxu0 0.0
    %8181 = vmatpush1.msra.mxu0 0.0
    %8182 = vmatprep.subr.mxu0 0.0
    %8183 = vmatpush1.msra.mxu0 0.0
    %8184 = vmatprep.subr.mxu0 0.0
    %8185 = vmatpush1.msra.mxu0 0.0
    %8186 = vmatprep.subr.mxu0 0.0
    %8187 = vmatpush1.msra.mxu0 0.0
    %8188 = vmatprep.subr.mxu0 0.0
    %8189 = vmatpush1.msra.mxu0 0.0
    %8190 = vmatprep.mubr.f32.mxu0 0.0
    %8191 = vmatmul.mubr.f32.gmra.mrb[0].mxu0 %v8121
    %v8192 = vpop.f32.mrb[0].mxu0
    %v8193 = vadd.f32 %v8118, %v8192
    %v8194 = vpop.f32.mrb[0].mxu0
    %8195 = vmatprep.mubr.f32.mxu0 0.0
    %8196 = vmatmul.mubr.f32.gmra.mrb[0].mxu0 %v8124
    %v8197 = vpop.f32.mrb[0].mxu0
    %v8198 = vadd.f32 %v8118, %v8197
    %v8199 = vpop.f32.mrb[0].mxu0
    %8200 = vdwg.mxu0
    %8201 = vst [vmem:[#allocation2] sm:$0xff] %v8193
    %8202 = vst [vmem:[#allocation2 + $0x8] sm:$0xff] %v8198
    // Predicated region
    $region78: #{tpu_custom_call.1} parent=1 // pred_check
      _
    $region79: #{tpu_custom_call.1} parent=1 // pred_check_branch
      %8204 = sbr.rel (0) target = $region81
    $region80: #{tpu_custom_call.1} parent=1 // pred_region
      %s8206 = ssub.s32 256, 256
      %8207 = vsyncadd [#allocation3], %s8206
      %s8208 = sshll.u32 [#allocation2], 4
      %s8209 = int_to_ptr.vmem [resolvable:$true] %s8208
      %8214 = dma.vmem_to_hbm [thread:$0]  %s8209, 256, %s19, [#allocation3], 128, 128, 8
    $region81: #{tpu_custom_call.1} parent=1 // pred_fallthru
      _
    // Predicated region
    $region82: #{tpu_custom_call.1} parent=1 // pred_check
      _
    $region83: #{tpu_custom_call.1} parent=1 // pred_check_branch
      %8216 = sbr.rel (0) target = $region85
    $region84: #{tpu_custom_call.1} parent=1 // pred_region
      %8217 = dma.done [#allocation3], 256
    $region85: #{tpu_custom_call.1} parent=1 // pred_fallthru
      _
    %8218 = vsyncpa [#allocation3], 1

</llo_original>
